<compile_context>
chip_gen: v5e
topology: v5e:2x2
jax: 0.10.0
libtpu: 0.0.40
codegen_flags: <defaults>
</compile_context>

<pallas_src>
import numpy as np
import jax
import jax.numpy as jnp
from jax.experimental import pallas as pl
from jax.experimental.pallas import tpu as pltpu

TB = 8            # samples per grid step (sublane tile)
NEG_SLOPE = 0.01  # LeakyReLU default negative slope


# ---------------------------------------------------------------- kernel ----

def _bn_lrelu(y, scale, bias):
    y = y * scale + bias
    return jnp.where(y >= 0.0, y, NEG_SLOPE * y)


def _disc_kernel(xe_ref, xo_ref,
                 w1e_ref, w1o_ref, s1_ref, b1_ref,
                 w2_ref, s2_ref, b2_ref,
                 w3_ref, s3_ref, b3_ref,
                 wf_ref, bf_ref, o_ref):
    # xe/xo: (16*TB, 32) f32 padded 28x28 input, rows = h2*TB + n;
    #        xe holds even padded rows (2*h2), xo odd padded rows (2*h2+1).
    f32, bf16 = jnp.float32, jnp.bfloat16
    xe = xe_ref[...]
    xo = xo_ref[...]

    # ---- conv1 (5x5, pad 2, 1->32) + BN + LeakyReLU + MaxPool(2) ----
    # Four accumulators = the four 2x2 pooling-window parities, each
    # (14*TB, 14*32); rows = pooled_row*TB + n, cols = pooled_col*32 + channel.
    acc_ee = jnp.zeros((14 * TB, 448), f32)   # even out-row, even out-col
    acc_eo = jnp.zeros((14 * TB, 448), f32)   # even out-row, odd  out-col
    acc_oe = jnp.zeros((14 * TB, 448), f32)
    acc_oo = jnp.zeros((14 * TB, 448), f32)
    for di in range(5):
        w_e = w1e_ref[di]                     # (32, 448) bf16, even out columns
        w_o = w1o_ref[di]                     # (32, 448) bf16, odd  out columns
        # even output rows h = 2*h2 read padded input row 2*h2 + di
        src = xe if di % 2 == 0 else xo
        off = (di // 2) * TB
        xs = src[off:off + 14 * TB, :].astype(bf16)
        acc_ee = acc_ee + jnp.dot(xs, w_e, preferred_element_type=f32)
        acc_eo = acc_eo + jnp.dot(xs, w_o, preferred_element_type=f32)
        # odd output rows h = 2*h2 + 1 read padded input row 2*h2 + 1 + di
        src = xo if di % 2 == 0 else xe
        off = ((di + 1) // 2) * TB
        xs = src[off:off + 14 * TB, :].astype(bf16)
        acc_oe = acc_oe + jnp.dot(xs, w_e, preferred_element_type=f32)
        acc_oo = acc_oo + jnp.dot(xs, w_o, preferred_element_type=f32)

    s1 = s1_ref[...]
    b1 = b1_ref[...]
    a1 = jnp.maximum(
        jnp.maximum(_bn_lrelu(acc_ee, s1, b1), _bn_lrelu(acc_eo, s1, b1)),
        jnp.maximum(_bn_lrelu(acc_oe, s1, b1), _bn_lrelu(acc_oo, s1, b1)))
    # a1: (14*TB, 448), rows = h*TB + n, cols = w*32 + c   (pooled 14x14x32)

    # ---- conv2 (5x5, 32->16) + BN + LeakyReLU ----
    acc2 = jnp.zeros((10 * TB, 160), f32)
    for di in range(5):
        xs = a1[di * TB:di * TB + 10 * TB, :].astype(bf16)
        acc2 = acc2 + jnp.dot(xs, w2_ref[di], preferred_element_type=f32)
    a2 = _bn_lrelu(acc2, s2_ref[...], b2_ref[...])   # (10*TB, 160), cols = w*16+c

    # ---- conv3 (5x5, 16->8) + BN + LeakyReLU ----
    acc3 = jnp.zeros((6 * TB, 48), f32)
    for di in range(5):
        xs = a2[di * TB:di * TB + 6 * TB, :].astype(bf16)
        acc3 = acc3 + jnp.dot(xs, w3_ref[di], preferred_element_type=f32)
    a3 = _bn_lrelu(acc3, s3_ref[...], b3_ref[...])   # (6*TB, 48), cols = w*8+c

    # ---- fc (288 -> 1) as VPU multiply + reduce, then stable sigmoid ----
    prod = a3 * wf_ref[...]                          # (6*TB, 48)
    s = jnp.sum(prod, axis=1, keepdims=True)         # (6*TB, 1)
    y = (s[0 * TB:1 * TB] + s[1 * TB:2 * TB] + s[2 * TB:3 * TB]
         + s[3 * TB:4 * TB] + s[4 * TB:5 * TB] + s[5 * TB:6 * TB])   # (TB, 1)
    z = y + bf_ref[...]
    e = jnp.exp(-jnp.abs(z))
    o_ref[...] = jnp.where(z >= 0.0, 1.0 / (1.0 + e), e / (1.0 + e))


# ------------------------------------------------ host-side weight packing ----

def _band_weights(w_pt, w_in, w_out, stride=1, phase=0):
    """Banded block-Toeplitz weight so a conv becomes kh row-shifted matmuls.

    w_pt: (Cout, Cin, kh, kw) PyTorch conv weight.
    Returns (kh, w_in*Cin, w_out*Cout) with
      W[di, w*Cin+ci, j*Cout+co] = w_pt[co, ci, di, w-(stride*j+phase)]  (in band).
    """
    w_pt = np.asarray(w_pt, np.float32)
    cout, cin, kh, kw = w_pt.shape
    W = np.zeros((kh, w_in * cin, w_out * cout), np.float32)
    for di in range(kh):
        for j in range(w_out):
            for dj in range(kw):
                w = stride * j + phase + dj
                W[di, w * cin:(w + 1) * cin,
                  j * cout:(j + 1) * cout] = w_pt[:, :, di, dj].T
    return W


def init_params(key):
    """Deterministic synthetic parameters in PyTorch layout."""
    ks = jax.random.split(key, 17)

    def conv(kw_, kb, kg, kbt, km, cout, cin, ksz):
        return dict(
            w=0.1 * jax.random.normal(kw_, (cout, cin, ksz, ksz), jnp.float32),
            b=0.1 * jax.random.normal(kb, (cout,), jnp.float32),
            gamma=1.0 + 0.1 * jax.random.normal(kg, (cout,), jnp.float32),
            beta=0.1 * jax.random.normal(kbt, (cout,), jnp.float32),
            mean=0.1 * jax.random.normal(km, (cout,), jnp.float32),
            var=jnp.ones((cout,), jnp.float32),
        )

    return {
        "conv1": conv(ks[0], ks[1], ks[2], ks[3], ks[4], 32, 1, 5),
        "conv2": conv(ks[5], ks[6], ks[7], ks[8], ks[9], 16, 32, 5),
        "conv3": conv(ks[10], ks[11], ks[12], ks[13], ks[14], 8, 16, 5),
        "fc_w": 0.05 * jax.random.normal(ks[15], (1, 288), jnp.float32),
        "fc_b": 0.05 * jax.random.normal(ks[16], (1,), jnp.float32),
    }


def pack_params(params, eps=1e-5):
    """Fold BN (eval) into scale/bias and build banded bf16 MXU weights."""
    def fold(p):
        s = p["gamma"] / jnp.sqrt(p["var"] + eps)
        return s, (p["b"] - p["mean"]) * s + p["beta"]

    s1, b1 = fold(params["conv1"])
    s2, b2 = fold(params["conv2"])
    s3, b3 = fold(params["conv3"])
    w1, w2, w3 = params["conv1"]["w"], params["conv2"]["w"], params["conv3"]["w"]

    packed = dict(
        # conv1: even / odd output columns == MaxPool column parity
        w1e=jnp.asarray(_band_weights(w1, 32, 14, stride=2, phase=0), jnp.bfloat16),
        w1o=jnp.asarray(_band_weights(w1, 32, 14, stride=2, phase=1), jnp.bfloat16),
        s1=jnp.tile(s1, 14)[None, :], b1=jnp.tile(b1, 14)[None, :],
        w2=jnp.asarray(_band_weights(w2, 14, 10), jnp.bfloat16),
        s2=jnp.tile(s2, 10)[None, :], b2=jnp.tile(b2, 10)[None, :],
        w3=jnp.asarray(_band_weights(w3, 10, 6), jnp.bfloat16),
        s3=jnp.tile(s3, 6)[None, :], b3=jnp.tile(b3, 6)[None, :],
    )
    # fc: PyTorch flattens NCHW (c, h, w); kernel activation is rows h*TB+n,
    # cols w*8+c -> replicate the (h, w*8+c) weight across the TB sample rows.
    wf = np.asarray(params["fc_w"], np.float32).reshape(8, 6, 6)      # [c, h, w]
    wf = np.transpose(wf, (1, 2, 0)).reshape(6, 48)                   # [h, w*8+c]
    packed["wf"] = jnp.asarray(np.repeat(wf, TB, axis=0))             # (6*TB, 48)
    packed["bf"] = params["fc_b"].reshape(1, 1)
    return packed


# ----------------------------------------------------------------- forward ----

def _prep_inputs(x_nchw, n_pad):
    """NCHW -> zero-padded, row-parity-split, batch-tiled 2-D slabs."""
    n = x_nchw.shape[0]
    x = x_nchw[:, 0, :, :].astype(jnp.float32)                 # (N, 28, 28)
    x = jnp.pad(x, ((0, n_pad - n), (2, 2), (2, 2)))           # (Npad, 32, 32)
    nb = n_pad // TB

    def split(parity):
        xs = x[:, parity::2, :]                                # (Npad, 16, 32)
        xs = xs.reshape(nb, TB, 16, 32).transpose(0, 2, 1, 3)  # (nb, 16, TB, 32)
        return xs.reshape(nb * 16 * TB, 32)                    # rows = [b, h2, n]

    return split(0), split(1)


@jax.jit
def discriminator_forward(packed, x_nchw):
    n = x_nchw.shape[0]
    n_pad = ((n + TB - 1) // TB) * TB
    nb = n_pad // TB
    xe, xo = _prep_inputs(x_nchw, n_pad)

    def full(shape):   # whole array, resident across grid steps
        return pl.BlockSpec(shape, lambda b: (0,) * len(shape))

    out = pl.pallas_call(
        _disc_kernel,
        grid=(nb,),
        in_specs=[
            pl.BlockSpec((16 * TB, 32), lambda b: (b, 0)),     # xe
            pl.BlockSpec((16 * TB, 32), lambda b: (b, 0)),     # xo
            full((5, 32, 448)), full((5, 32, 448)),            # w1 even / odd
            full((1, 448)), full((1, 448)),                    # s1, b1
            full((5, 448, 160)), full((1, 160)), full((1, 160)),
            full((5, 160, 48)), full((1, 48)), full((1, 48)),
            full((6 * TB, 48)), full((1, 1)),                  # fc weight, bias
        ],
        out_specs=pl.BlockSpec((TB, 1), lambda b: (b, 0)),
        out_shape=jax.ShapeDtypeStruct((n_pad, 1), jnp.float32),
        compiler_params=pltpu.CompilerParams(
            dimension_semantics=("parallel",),
            vmem_limit_bytes=32 * 1024 * 1024,
        ),
    )(xe, xo,
      packed["w1e"], packed["w1o"], packed["s1"], packed["b1"],
      packed["w2"], packed["s2"], packed["b2"],
      packed["w3"], packed["s3"], packed["b3"],
      packed["wf"], packed["bf"])
    return out[:n]                                             # (N, 1) in (0, 1)


if __name__ == "__main__":
    key = jax.random.PRNGKey(0)
    pkey, xkey = jax.random.split(key)
    params = init_params(pkey)
    packed = pack_params(params)

    # MNIST-like input implied by the module: (N, 1, 28, 28).
    x = jax.random.normal(xkey, (12, 1, 28, 28), dtype=jnp.float32)

    out = discriminator_forward(packed, x)
    out = jax.block_until_ready(out)

    assert out.shape == (12, 1), out.shape
    assert bool(jnp.all(jnp.isfinite(out)))
    assert bool(jnp.all((out >= 0.0) & (out <= 1.0)))   # sigmoid range
    print("KERNEL_OK")
</pallas_src>

<mosaic_0001>
module attributes {stable_mosaic.version = 11 : i64} {
  func.func @_disc_kernel(%arg0: i32, %arg1: memref<128x32xf32, #tpu.memory_space<vmem>>, %arg2: memref<128x32xf32, #tpu.memory_space<vmem>>, %arg3: memref<5x32x448xbf16, #tpu.memory_space<vmem>>, %arg4: memref<5x32x448xbf16, #tpu.memory_space<vmem>>, %arg5: memref<1x448xf32, #tpu.memory_space<vmem>>, %arg6: memref<1x448xf32, #tpu.memory_space<vmem>>, %arg7: memref<5x448x160xbf16, #tpu.memory_space<vmem>>, %arg8: memref<1x160xf32, #tpu.memory_space<vmem>>, %arg9: memref<1x160xf32, #tpu.memory_space<vmem>>, %arg10: memref<5x160x48xbf16, #tpu.memory_space<vmem>>, %arg11: memref<1x48xf32, #tpu.memory_space<vmem>>, %arg12: memref<1x48xf32, #tpu.memory_space<vmem>>, %arg13: memref<48x48xf32, #tpu.memory_space<vmem>>, %arg14: memref<1x1xf32, #tpu.memory_space<vmem>>, %arg15: memref<8x1xf32, #tpu.memory_space<vmem>>) attributes {dimension_semantics = [#tpu.dimension_semantics<parallel>], iteration_bounds = array<i64: 2>, scalar_prefetch = 0 : i64, scratch_operands = 0 : i64, tpu.core_type = #tpu.core_type<tc>, window_params = [{transform_indices = @transform_0, window_bounds = array<i64: 128, 32>}, {transform_indices = @transform_1, window_bounds = array<i64: 128, 32>}, {pipeline_mode = #tpu.pipeline_mode<synchronous>, transform_indices = @transform_2, window_bounds = array<i64: 5, 32, 448>}, {pipeline_mode = #tpu.pipeline_mode<synchronous>, transform_indices = @transform_3, window_bounds = array<i64: 5, 32, 448>}, {pipeline_mode = #tpu.pipeline_mode<synchronous>, transform_indices = @transform_4, window_bounds = array<i64: 1, 448>}, {pipeline_mode = #tpu.pipeline_mode<synchronous>, transform_indices = @transform_5, window_bounds = array<i64: 1, 448>}, {pipeline_mode = #tpu.pipeline_mode<synchronous>, transform_indices = @transform_6, window_bounds = array<i64: 5, 448, 160>}, {pipeline_mode = #tpu.pipeline_mode<synchronous>, transform_indices = @transform_7, window_bounds = array<i64: 1, 160>}, {pipeline_mode = #tpu.pipeline_mode<synchronous>, transform_indices = @transform_8, window_bounds = array<i64: 1, 160>}, {pipeline_mode = #tpu.pipeline_mode<synchronous>, transform_indices = @transform_9, window_bounds = array<i64: 5, 160, 48>}, {pipeline_mode = #tpu.pipeline_mode<synchronous>, transform_indices = @transform_10, window_bounds = array<i64: 1, 48>}, {pipeline_mode = #tpu.pipeline_mode<synchronous>, transform_indices = @transform_11, window_bounds = array<i64: 1, 48>}, {pipeline_mode = #tpu.pipeline_mode<synchronous>, transform_indices = @transform_12, window_bounds = array<i64: 48, 48>}, {pipeline_mode = #tpu.pipeline_mode<synchronous>, transform_indices = @transform_13, window_bounds = array<i64: 1, 1>}, {transform_indices = @transform_14, window_bounds = array<i64: 8, 1>}]} {
    %c0 = arith.constant 0 : index
    %c0_0 = arith.constant 0 : index
    %0 = vector.load %arg1[%c0, %c0_0] : memref<128x32xf32, #tpu.memory_space<vmem>>, vector<128x32xf32>
    %c0_1 = arith.constant 0 : index
    %c0_2 = arith.constant 0 : index
    %1 = vector.load %arg2[%c0_1, %c0_2] : memref<128x32xf32, #tpu.memory_space<vmem>>, vector<128x32xf32>
    %cst = arith.constant 0.000000e+00 : f32
    %2 = vector.broadcast %cst : f32 to vector<112x448xf32>
    %cst_3 = arith.constant 0.000000e+00 : f32
    %3 = vector.broadcast %cst_3 : f32 to vector<112x448xf32>
    %cst_4 = arith.constant 0.000000e+00 : f32
    %4 = vector.broadcast %cst_4 : f32 to vector<112x448xf32>
    %cst_5 = arith.constant 0.000000e+00 : f32
    %5 = vector.broadcast %cst_5 : f32 to vector<112x448xf32>
    %c0_6 = arith.constant 0 : index
    %c0_7 = arith.constant 0 : index
    %c0_8 = arith.constant 0 : index
    %6 = vector.load %arg3[%c0_6, %c0_7, %c0_8] : memref<5x32x448xbf16, #tpu.memory_space<vmem>>, vector<1x32x448xbf16>
    %7 = vector.shape_cast %6 : vector<1x32x448xbf16> to vector<32x448xbf16>
    %c0_9 = arith.constant 0 : index
    %c0_10 = arith.constant 0 : index
    %c0_11 = arith.constant 0 : index
    %8 = vector.load %arg4[%c0_9, %c0_10, %c0_11] : memref<5x32x448xbf16, #tpu.memory_space<vmem>>, vector<1x32x448xbf16>
    %9 = vector.shape_cast %8 : vector<1x32x448xbf16> to vector<32x448xbf16>
    %10 = vector.extract_strided_slice %0 {offsets = [0, 0], sizes = [112, 32], strides = [1, 1]} : vector<128x32xf32> to vector<112x32xf32>
    %11 = arith.truncf %10 : vector<112x32xf32> to vector<112x32xbf16>
    %cst_12 = arith.constant dense<0.000000e+00> : vector<112x448xf32>
    %12 = tpu.matmul %11, %7, %cst_12 {dimension_numbers = #tpu.dot_dimension_numbers<[1], [0], [0], [1], [0, 0, 1, 1], [], []>} : vector<112x32xbf16>, vector<32x448xbf16>, vector<112x448xf32> -> vector<112x448xf32>
    %13 = arith.addf %2, %12 : vector<112x448xf32>
    %cst_13 = arith.constant dense<0.000000e+00> : vector<112x448xf32>
    %14 = tpu.matmul %11, %9, %cst_13 {dimension_numbers = #tpu.dot_dimension_numbers<[1], [0], [0], [1], [0, 0, 1, 1], [], []>} : vector<112x32xbf16>, vector<32x448xbf16>, vector<112x448xf32> -> vector<112x448xf32>
    %15 = arith.addf %3, %14 : vector<112x448xf32>
    %16 = vector.extract_strided_slice %1 {offsets = [0, 0], sizes = [112, 32], strides = [1, 1]} : vector<128x32xf32> to vector<112x32xf32>
    %17 = arith.truncf %16 : vector<112x32xf32> to vector<112x32xbf16>
    %cst_14 = arith.constant dense<0.000000e+00> : vector<112x448xf32>
    %18 = tpu.matmul %17, %7, %cst_14 {dimension_numbers = #tpu.dot_dimension_numbers<[1], [0], [0], [1], [0, 0, 1, 1], [], []>} : vector<112x32xbf16>, vector<32x448xbf16>, vector<112x448xf32> -> vector<112x448xf32>
    %19 = arith.addf %4, %18 : vector<112x448xf32>
    %cst_15 = arith.constant dense<0.000000e+00> : vector<112x448xf32>
    %20 = tpu.matmul %17, %9, %cst_15 {dimension_numbers = #tpu.dot_dimension_numbers<[1], [0], [0], [1], [0, 0, 1, 1], [], []>} : vector<112x32xbf16>, vector<32x448xbf16>, vector<112x448xf32> -> vector<112x448xf32>
    %21 = arith.addf %5, %20 : vector<112x448xf32>
    %c1 = arith.constant 1 : index
    %c0_16 = arith.constant 0 : index
    %c0_17 = arith.constant 0 : index
    %22 = vector.load %arg3[%c1, %c0_16, %c0_17] : memref<5x32x448xbf16, #tpu.memory_space<vmem>>, vector<1x32x448xbf16>
    %23 = vector.shape_cast %22 : vector<1x32x448xbf16> to vector<32x448xbf16>
    %c1_18 = arith.constant 1 : index
    %c0_19 = arith.constant 0 : index
    %c0_20 = arith.constant 0 : index
    %24 = vector.load %arg4[%c1_18, %c0_19, %c0_20] : memref<5x32x448xbf16, #tpu.memory_space<vmem>>, vector<1x32x448xbf16>
    %25 = vector.shape_cast %24 : vector<1x32x448xbf16> to vector<32x448xbf16>
    %26 = vector.extract_strided_slice %1 {offsets = [0, 0], sizes = [112, 32], strides = [1, 1]} : vector<128x32xf32> to vector<112x32xf32>
    %27 = arith.truncf %26 : vector<112x32xf32> to vector<112x32xbf16>
    %cst_21 = arith.constant dense<0.000000e+00> : vector<112x448xf32>
    %28 = tpu.matmul %27, %23, %cst_21 {dimension_numbers = #tpu.dot_dimension_numbers<[1], [0], [0], [1], [0, 0, 1, 1], [], []>} : vector<112x32xbf16>, vector<32x448xbf16>, vector<112x448xf32> -> vector<112x448xf32>
    %29 = arith.addf %13, %28 : vector<112x448xf32>
    %cst_22 = arith.constant dense<0.000000e+00> : vector<112x448xf32>
    %30 = tpu.matmul %27, %25, %cst_22 {dimension_numbers = #tpu.dot_dimension_numbers<[1], [0], [0], [1], [0, 0, 1, 1], [], []>} : vector<112x32xbf16>, vector<32x448xbf16>, vector<112x448xf32> -> vector<112x448xf32>
    %31 = arith.addf %15, %30 : vector<112x448xf32>
    %32 = vector.extract_strided_slice %0 {offsets = [8, 0], sizes = [112, 32], strides = [1, 1]} : vector<128x32xf32> to vector<112x32xf32>
    %33 = arith.truncf %32 : vector<112x32xf32> to vector<112x32xbf16>
    %cst_23 = arith.constant dense<0.000000e+00> : vector<112x448xf32>
    %34 = tpu.matmul %33, %23, %cst_23 {dimension_numbers = #tpu.dot_dimension_numbers<[1], [0], [0], [1], [0, 0, 1, 1], [], []>} : vector<112x32xbf16>, vector<32x448xbf16>, vector<112x448xf32> -> vector<112x448xf32>
    %35 = arith.addf %19, %34 : vector<112x448xf32>
    %cst_24 = arith.constant dense<0.000000e+00> : vector<112x448xf32>
    %36 = tpu.matmul %33, %25, %cst_24 {dimension_numbers = #tpu.dot_dimension_numbers<[1], [0], [0], [1], [0, 0, 1, 1], [], []>} : vector<112x32xbf16>, vector<32x448xbf16>, vector<112x448xf32> -> vector<112x448xf32>
    %37 = arith.addf %21, %36 : vector<112x448xf32>
    %c2 = arith.constant 2 : index
    %c0_25 = arith.constant 0 : index
    %c0_26 = arith.constant 0 : index
    %38 = vector.load %arg3[%c2, %c0_25, %c0_26] : memref<5x32x448xbf16, #tpu.memory_space<vmem>>, vector<1x32x448xbf16>
    %39 = vector.shape_cast %38 : vector<1x32x448xbf16> to vector<32x448xbf16>
    %c2_27 = arith.constant 2 : index
    %c0_28 = arith.constant 0 : index
    %c0_29 = arith.constant 0 : index
    %40 = vector.load %arg4[%c2_27, %c0_28, %c0_29] : memref<5x32x448xbf16, #tpu.memory_space<vmem>>, vector<1x32x448xbf16>
    %41 = vector.shape_cast %40 : vector<1x32x448xbf16> to vector<32x448xbf16>
    %42 = vector.extract_strided_slice %0 {offsets = [8, 0], sizes = [112, 32], strides = [1, 1]} : vector<128x32xf32> to vector<112x32xf32>
    %43 = arith.truncf %42 : vector<112x32xf32> to vector<112x32xbf16>
    %cst_30 = arith.constant dense<0.000000e+00> : vector<112x448xf32>
    %44 = tpu.matmul %43, %39, %cst_30 {dimension_numbers = #tpu.dot_dimension_numbers<[1], [0], [0], [1], [0, 0, 1, 1], [], []>} : vector<112x32xbf16>, vector<32x448xbf16>, vector<112x448xf32> -> vector<112x448xf32>
    %45 = arith.addf %29, %44 : vector<112x448xf32>
    %cst_31 = arith.constant dense<0.000000e+00> : vector<112x448xf32>
    %46 = tpu.matmul %43, %41, %cst_31 {dimension_numbers = #tpu.dot_dimension_numbers<[1], [0], [0], [1], [0, 0, 1, 1], [], []>} : vector<112x32xbf16>, vector<32x448xbf16>, vector<112x448xf32> -> vector<112x448xf32>
    %47 = arith.addf %31, %46 : vector<112x448xf32>
    %48 = vector.extract_strided_slice %1 {offsets = [8, 0], sizes = [112, 32], strides = [1, 1]} : vector<128x32xf32> to vector<112x32xf32>
    %49 = arith.truncf %48 : vector<112x32xf32> to vector<112x32xbf16>
    %cst_32 = arith.constant dense<0.000000e+00> : vector<112x448xf32>
    %50 = tpu.matmul %49, %39, %cst_32 {dimension_numbers = #tpu.dot_dimension_numbers<[1], [0], [0], [1], [0, 0, 1, 1], [], []>} : vector<112x32xbf16>, vector<32x448xbf16>, vector<112x448xf32> -> vector<112x448xf32>
    %51 = arith.addf %35, %50 : vector<112x448xf32>
    %cst_33 = arith.constant dense<0.000000e+00> : vector<112x448xf32>
    %52 = tpu.matmul %49, %41, %cst_33 {dimension_numbers = #tpu.dot_dimension_numbers<[1], [0], [0], [1], [0, 0, 1, 1], [], []>} : vector<112x32xbf16>, vector<32x448xbf16>, vector<112x448xf32> -> vector<112x448xf32>
    %53 = arith.addf %37, %52 : vector<112x448xf32>
    %c3 = arith.constant 3 : index
    %c0_34 = arith.constant 0 : index
    %c0_35 = arith.constant 0 : index
    %54 = vector.load %arg3[%c3, %c0_34, %c0_35] : memref<5x32x448xbf16, #tpu.memory_space<vmem>>, vector<1x32x448xbf16>
    %55 = vector.shape_cast %54 : vector<1x32x448xbf16> to vector<32x448xbf16>
    %c3_36 = arith.constant 3 : index
    %c0_37 = arith.constant 0 : index
    %c0_38 = arith.constant 0 : index
    %56 = vector.load %arg4[%c3_36, %c0_37, %c0_38] : memref<5x32x448xbf16, #tpu.memory_space<vmem>>, vector<1x32x448xbf16>
    %57 = vector.shape_cast %56 : vector<1x32x448xbf16> to vector<32x448xbf16>
    %58 = vector.extract_strided_slice %1 {offsets = [8, 0], sizes = [112, 32], strides = [1, 1]} : vector<128x32xf32> to vector<112x32xf32>
    %59 = arith.truncf %58 : vector<112x32xf32> to vector<112x32xbf16>
    %cst_39 = arith.constant dense<0.000000e+00> : vector<112x448xf32>
    %60 = tpu.matmul %59, %55, %cst_39 {dimension_numbers = #tpu.dot_dimension_numbers<[1], [0], [0], [1], [0, 0, 1, 1], [], []>} : vector<112x32xbf16>, vector<32x448xbf16>, vector<112x448xf32> -> vector<112x448xf32>
    %61 = arith.addf %45, %60 : vector<112x448xf32>
    %cst_40 = arith.constant dense<0.000000e+00> : vector<112x448xf32>
    %62 = tpu.matmul %59, %57, %cst_40 {dimension_numbers = #tpu.dot_dimension_numbers<[1], [0], [0], [1], [0, 0, 1, 1], [], []>} : vector<112x32xbf16>, vector<32x448xbf16>, vector<112x448xf32> -> vector<112x448xf32>
    %63 = arith.addf %47, %62 : vector<112x448xf32>
    %64 = vector.extract_strided_slice %0 {offsets = [16, 0], sizes = [112, 32], strides = [1, 1]} : vector<128x32xf32> to vector<112x32xf32>
    %65 = arith.truncf %64 : vector<112x32xf32> to vector<112x32xbf16>
    %cst_41 = arith.constant dense<0.000000e+00> : vector<112x448xf32>
    %66 = tpu.matmul %65, %55, %cst_41 {dimension_numbers = #tpu.dot_dimension_numbers<[1], [0], [0], [1], [0, 0, 1, 1], [], []>} : vector<112x32xbf16>, vector<32x448xbf16>, vector<112x448xf32> -> vector<112x448xf32>
    %67 = arith.addf %51, %66 : vector<112x448xf32>
    %cst_42 = arith.constant dense<0.000000e+00> : vector<112x448xf32>
    %68 = tpu.matmul %65, %57, %cst_42 {dimension_numbers = #tpu.dot_dimension_numbers<[1], [0], [0], [1], [0, 0, 1, 1], [], []>} : vector<112x32xbf16>, vector<32x448xbf16>, vector<112x448xf32> -> vector<112x448xf32>
    %69 = arith.addf %53, %68 : vector<112x448xf32>
    %c4 = arith.constant 4 : index
    %c0_43 = arith.constant 0 : index
    %c0_44 = arith.constant 0 : index
    %70 = vector.load %arg3[%c4, %c0_43, %c0_44] : memref<5x32x448xbf16, #tpu.memory_space<vmem>>, vector<1x32x448xbf16>
    %71 = vector.shape_cast %70 : vector<1x32x448xbf16> to vector<32x448xbf16>
    %c4_45 = arith.constant 4 : index
    %c0_46 = arith.constant 0 : index
    %c0_47 = arith.constant 0 : index
    %72 = vector.load %arg4[%c4_45, %c0_46, %c0_47] : memref<5x32x448xbf16, #tpu.memory_space<vmem>>, vector<1x32x448xbf16>
    %73 = vector.shape_cast %72 : vector<1x32x448xbf16> to vector<32x448xbf16>
    %74 = vector.extract_strided_slice %0 {offsets = [16, 0], sizes = [112, 32], strides = [1, 1]} : vector<128x32xf32> to vector<112x32xf32>
    %75 = arith.truncf %74 : vector<112x32xf32> to vector<112x32xbf16>
    %cst_48 = arith.constant dense<0.000000e+00> : vector<112x448xf32>
    %76 = tpu.matmul %75, %71, %cst_48 {dimension_numbers = #tpu.dot_dimension_numbers<[1], [0], [0], [1], [0, 0, 1, 1], [], []>} : vector<112x32xbf16>, vector<32x448xbf16>, vector<112x448xf32> -> vector<112x448xf32>
    %77 = arith.addf %61, %76 : vector<112x448xf32>
    %cst_49 = arith.constant dense<0.000000e+00> : vector<112x448xf32>
    %78 = tpu.matmul %75, %73, %cst_49 {dimension_numbers = #tpu.dot_dimension_numbers<[1], [0], [0], [1], [0, 0, 1, 1], [], []>} : vector<112x32xbf16>, vector<32x448xbf16>, vector<112x448xf32> -> vector<112x448xf32>
    %79 = arith.addf %63, %78 : vector<112x448xf32>
    %80 = vector.extract_strided_slice %1 {offsets = [16, 0], sizes = [112, 32], strides = [1, 1]} : vector<128x32xf32> to vector<112x32xf32>
    %81 = arith.truncf %80 : vector<112x32xf32> to vector<112x32xbf16>
    %cst_50 = arith.constant dense<0.000000e+00> : vector<112x448xf32>
    %82 = tpu.matmul %81, %71, %cst_50 {dimension_numbers = #tpu.dot_dimension_numbers<[1], [0], [0], [1], [0, 0, 1, 1], [], []>} : vector<112x32xbf16>, vector<32x448xbf16>, vector<112x448xf32> -> vector<112x448xf32>
    %83 = arith.addf %67, %82 : vector<112x448xf32>
    %cst_51 = arith.constant dense<0.000000e+00> : vector<112x448xf32>
    %84 = tpu.matmul %81, %73, %cst_51 {dimension_numbers = #tpu.dot_dimension_numbers<[1], [0], [0], [1], [0, 0, 1, 1], [], []>} : vector<112x32xbf16>, vector<32x448xbf16>, vector<112x448xf32> -> vector<112x448xf32>
    %85 = arith.addf %69, %84 : vector<112x448xf32>
    %c0_52 = arith.constant 0 : index
    %c0_53 = arith.constant 0 : index
    %86 = vector.load %arg5[%c0_52, %c0_53] : memref<1x448xf32, #tpu.memory_space<vmem>>, vector<1x448xf32>
    %c0_54 = arith.constant 0 : index
    %c0_55 = arith.constant 0 : index
    %87 = vector.load %arg6[%c0_54, %c0_55] : memref<1x448xf32, #tpu.memory_space<vmem>>, vector<1x448xf32>
    %88 = vector.broadcast %86 : vector<1x448xf32> to vector<112x448xf32>
    %89 = arith.mulf %77, %88 : vector<112x448xf32>
    %90 = vector.broadcast %87 : vector<1x448xf32> to vector<112x448xf32>
    %91 = arith.addf %89, %90 : vector<112x448xf32>
    %cst_56 = arith.constant 0.000000e+00 : f32
    %92 = vector.broadcast %cst_56 : f32 to vector<112x448xf32>
    %93 = arith.cmpf oge, %91, %92 : vector<112x448xf32>
    %cst_57 = arith.constant 0.00999999977 : f32
    %94 = vector.broadcast %cst_57 : f32 to vector<112x448xf32>
    %95 = arith.mulf %94, %91 : vector<112x448xf32>
    %96 = arith.select %93, %91, %95 : vector<112x448xi1>, vector<112x448xf32>
    %97 = vector.broadcast %86 : vector<1x448xf32> to vector<112x448xf32>
    %98 = arith.mulf %79, %97 : vector<112x448xf32>
    %99 = vector.broadcast %87 : vector<1x448xf32> to vector<112x448xf32>
    %100 = arith.addf %98, %99 : vector<112x448xf32>
    %cst_58 = arith.constant 0.000000e+00 : f32
    %101 = vector.broadcast %cst_58 : f32 to vector<112x448xf32>
    %102 = arith.cmpf oge, %100, %101 : vector<112x448xf32>
    %cst_59 = arith.constant 0.00999999977 : f32
    %103 = vector.broadcast %cst_59 : f32 to vector<112x448xf32>
    %104 = arith.mulf %103, %100 : vector<112x448xf32>
    %105 = arith.select %102, %100, %104 : vector<112x448xi1>, vector<112x448xf32>
    %106 = arith.maximumf %96, %105 : vector<112x448xf32>
    %107 = vector.broadcast %86 : vector<1x448xf32> to vector<112x448xf32>
    %108 = arith.mulf %83, %107 : vector<112x448xf32>
    %109 = vector.broadcast %87 : vector<1x448xf32> to vector<112x448xf32>
    %110 = arith.addf %108, %109 : vector<112x448xf32>
    %cst_60 = arith.constant 0.000000e+00 : f32
    %111 = vector.broadcast %cst_60 : f32 to vector<112x448xf32>
    %112 = arith.cmpf oge, %110, %111 : vector<112x448xf32>
    %cst_61 = arith.constant 0.00999999977 : f32
    %113 = vector.broadcast %cst_61 : f32 to vector<112x448xf32>
    %114 = arith.mulf %113, %110 : vector<112x448xf32>
    %115 = arith.select %112, %110, %114 : vector<112x448xi1>, vector<112x448xf32>
    %116 = vector.broadcast %86 : vector<1x448xf32> to vector<112x448xf32>
    %117 = arith.mulf %85, %116 : vector<112x448xf32>
    %118 = vector.broadcast %87 : vector<1x448xf32> to vector<112x448xf32>
    %119 = arith.addf %117, %118 : vector<112x448xf32>
    %cst_62 = arith.constant 0.000000e+00 : f32
    %120 = vector.broadcast %cst_62 : f32 to vector<112x448xf32>
    %121 = arith.cmpf oge, %119, %120 : vector<112x448xf32>
    %cst_63 = arith.constant 0.00999999977 : f32
    %122 = vector.broadcast %cst_63 : f32 to vector<112x448xf32>
    %123 = arith.mulf %122, %119 : vector<112x448xf32>
    %124 = arith.select %121, %119, %123 : vector<112x448xi1>, vector<112x448xf32>
    %125 = arith.maximumf %115, %124 : vector<112x448xf32>
    %126 = arith.maximumf %106, %125 : vector<112x448xf32>
    %cst_64 = arith.constant 0.000000e+00 : f32
    %127 = vector.broadcast %cst_64 : f32 to vector<80x160xf32>
    %128 = vector.extract_strided_slice %126 {offsets = [0, 0], sizes = [80, 448], strides = [1, 1]} : vector<112x448xf32> to vector<80x448xf32>
    %129 = arith.truncf %128 : vector<80x448xf32> to vector<80x448xbf16>
    %c0_65 = arith.constant 0 : index
    %c0_66 = arith.constant 0 : index
    %c0_67 = arith.constant 0 : index
    %130 = vector.load %arg7[%c0_65, %c0_66, %c0_67] : memref<5x448x160xbf16, #tpu.memory_space<vmem>>, vector<1x448x160xbf16>
    %131 = vector.shape_cast %130 : vector<1x448x160xbf16> to vector<448x160xbf16>
    %cst_68 = arith.constant dense<0.000000e+00> : vector<80x160xf32>
    %132 = tpu.matmul %129, %131, %cst_68 {dimension_numbers = #tpu.dot_dimension_numbers<[1], [0], [0], [1], [0, 0, 1, 1], [], []>} : vector<80x448xbf16>, vector<448x160xbf16>, vector<80x160xf32> -> vector<80x160xf32>
    %133 = arith.addf %127, %132 : vector<80x160xf32>
    %134 = vector.extract_strided_slice %126 {offsets = [8, 0], sizes = [80, 448], strides = [1, 1]} : vector<112x448xf32> to vector<80x448xf32>
    %135 = arith.truncf %134 : vector<80x448xf32> to vector<80x448xbf16>
    %c1_69 = arith.constant 1 : index
    %c0_70 = arith.constant 0 : index
    %c0_71 = arith.constant 0 : index
    %136 = vector.load %arg7[%c1_69, %c0_70, %c0_71] : memref<5x448x160xbf16, #tpu.memory_space<vmem>>, vector<1x448x160xbf16>
    %137 = vector.shape_cast %136 : vector<1x448x160xbf16> to vector<448x160xbf16>
    %cst_72 = arith.constant dense<0.000000e+00> : vector<80x160xf32>
    %138 = tpu.matmul %135, %137, %cst_72 {dimension_numbers = #tpu.dot_dimension_numbers<[1], [0], [0], [1], [0, 0, 1, 1], [], []>} : vector<80x448xbf16>, vector<448x160xbf16>, vector<80x160xf32> -> vector<80x160xf32>
    %139 = arith.addf %133, %138 : vector<80x160xf32>
    %140 = vector.extract_strided_slice %126 {offsets = [16, 0], sizes = [80, 448], strides = [1, 1]} : vector<112x448xf32> to vector<80x448xf32>
    %141 = arith.truncf %140 : vector<80x448xf32> to vector<80x448xbf16>
    %c2_73 = arith.constant 2 : index
    %c0_74 = arith.constant 0 : index
    %c0_75 = arith.constant 0 : index
    %142 = vector.load %arg7[%c2_73, %c0_74, %c0_75] : memref<5x448x160xbf16, #tpu.memory_space<vmem>>, vector<1x448x160xbf16>
    %143 = vector.shape_cast %142 : vector<1x448x160xbf16> to vector<448x160xbf16>
    %cst_76 = arith.constant dense<0.000000e+00> : vector<80x160xf32>
    %144 = tpu.matmul %141, %143, %cst_76 {dimension_numbers = #tpu.dot_dimension_numbers<[1], [0], [0], [1], [0, 0, 1, 1], [], []>} : vector<80x448xbf16>, vector<448x160xbf16>, vector<80x160xf32> -> vector<80x160xf32>
    %145 = arith.addf %139, %144 : vector<80x160xf32>
    %146 = vector.extract_strided_slice %126 {offsets = [24, 0], sizes = [80, 448], strides = [1, 1]} : vector<112x448xf32> to vector<80x448xf32>
    %147 = arith.truncf %146 : vector<80x448xf32> to vector<80x448xbf16>
    %c3_77 = arith.constant 3 : index
    %c0_78 = arith.constant 0 : index
    %c0_79 = arith.constant 0 : index
    %148 = vector.load %arg7[%c3_77, %c0_78, %c0_79] : memref<5x448x160xbf16, #tpu.memory_space<vmem>>, vector<1x448x160xbf16>
    %149 = vector.shape_cast %148 : vector<1x448x160xbf16> to vector<448x160xbf16>
    %cst_80 = arith.constant dense<0.000000e+00> : vector<80x160xf32>
    %150 = tpu.matmul %147, %149, %cst_80 {dimension_numbers = #tpu.dot_dimension_numbers<[1], [0], [0], [1], [0, 0, 1, 1], [], []>} : vector<80x448xbf16>, vector<448x160xbf16>, vector<80x160xf32> -> vector<80x160xf32>
    %151 = arith.addf %145, %150 : vector<80x160xf32>
    %152 = vector.extract_strided_slice %126 {offsets = [32, 0], sizes = [80, 448], strides = [1, 1]} : vector<112x448xf32> to vector<80x448xf32>
    %153 = arith.truncf %152 : vector<80x448xf32> to vector<80x448xbf16>
    %c4_81 = arith.constant 4 : index
    %c0_82 = arith.constant 0 : index
    %c0_83 = arith.constant 0 : index
    %154 = vector.load %arg7[%c4_81, %c0_82, %c0_83] : memref<5x448x160xbf16, #tpu.memory_space<vmem>>, vector<1x448x160xbf16>
    %155 = vector.shape_cast %154 : vector<1x448x160xbf16> to vector<448x160xbf16>
    %cst_84 = arith.constant dense<0.000000e+00> : vector<80x160xf32>
    %156 = tpu.matmul %153, %155, %cst_84 {dimension_numbers = #tpu.dot_dimension_numbers<[1], [0], [0], [1], [0, 0, 1, 1], [], []>} : vector<80x448xbf16>, vector<448x160xbf16>, vector<80x160xf32> -> vector<80x160xf32>
    %157 = arith.addf %151, %156 : vector<80x160xf32>
    %c0_85 = arith.constant 0 : index
    %c0_86 = arith.constant 0 : index
    %158 = vector.load %arg8[%c0_85, %c0_86] : memref<1x160xf32, #tpu.memory_space<vmem>>, vector<1x160xf32>
    %c0_87 = arith.constant 0 : index
    %c0_88 = arith.constant 0 : index
    %159 = vector.load %arg9[%c0_87, %c0_88] : memref<1x160xf32, #tpu.memory_space<vmem>>, vector<1x160xf32>
    %160 = vector.broadcast %158 : vector<1x160xf32> to vector<80x160xf32>
    %161 = arith.mulf %157, %160 : vector<80x160xf32>
    %162 = vector.broadcast %159 : vector<1x160xf32> to vector<80x160xf32>
    %163 = arith.addf %161, %162 : vector<80x160xf32>
    %cst_89 = arith.constant 0.000000e+00 : f32
    %164 = vector.broadcast %cst_89 : f32 to vector<80x160xf32>
    %165 = arith.cmpf oge, %163, %164 : vector<80x160xf32>
    %cst_90 = arith.constant 0.00999999977 : f32
    %166 = vector.broadcast %cst_90 : f32 to vector<80x160xf32>
    %167 = arith.mulf %166, %163 : vector<80x160xf32>
    %168 = arith.select %165, %163, %167 : vector<80x160xi1>, vector<80x160xf32>
    %cst_91 = arith.constant 0.000000e+00 : f32
    %169 = vector.broadcast %cst_91 : f32 to vector<48x48xf32>
    %170 = vector.extract_strided_slice %168 {offsets = [0, 0], sizes = [48, 160], strides = [1, 1]} : vector<80x160xf32> to vector<48x160xf32>
    %171 = arith.truncf %170 : vector<48x160xf32> to vector<48x160xbf16>
    %c0_92 = arith.constant 0 : index
    %c0_93 = arith.constant 0 : index
    %c0_94 = arith.constant 0 : index
    %172 = vector.load %arg10[%c0_92, %c0_93, %c0_94] : memref<5x160x48xbf16, #tpu.memory_space<vmem>>, vector<1x160x48xbf16>
    %173 = vector.shape_cast %172 : vector<1x160x48xbf16> to vector<160x48xbf16>
    %cst_95 = arith.constant dense<0.000000e+00> : vector<48x48xf32>
    %174 = tpu.matmul %171, %173, %cst_95 {dimension_numbers = #tpu.dot_dimension_numbers<[1], [0], [0], [1], [0, 0, 1, 1], [], []>} : vector<48x160xbf16>, vector<160x48xbf16>, vector<48x48xf32> -> vector<48x48xf32>
    %175 = arith.addf %169, %174 : vector<48x48xf32>
    %176 = vector.extract_strided_slice %168 {offsets = [8, 0], sizes = [48, 160], strides = [1, 1]} : vector<80x160xf32> to vector<48x160xf32>
    %177 = arith.truncf %176 : vector<48x160xf32> to vector<48x160xbf16>
    %c1_96 = arith.constant 1 : index
    %c0_97 = arith.constant 0 : index
    %c0_98 = arith.constant 0 : index
    %178 = vector.load %arg10[%c1_96, %c0_97, %c0_98] : memref<5x160x48xbf16, #tpu.memory_space<vmem>>, vector<1x160x48xbf16>
    %179 = vector.shape_cast %178 : vector<1x160x48xbf16> to vector<160x48xbf16>
    %cst_99 = arith.constant dense<0.000000e+00> : vector<48x48xf32>
    %180 = tpu.matmul %177, %179, %cst_99 {dimension_numbers = #tpu.dot_dimension_numbers<[1], [0], [0], [1], [0, 0, 1, 1], [], []>} : vector<48x160xbf16>, vector<160x48xbf16>, vector<48x48xf32> -> vector<48x48xf32>
    %181 = arith.addf %175, %180 : vector<48x48xf32>
    %182 = vector.extract_strided_slice %168 {offsets = [16, 0], sizes = [48, 160], strides = [1, 1]} : vector<80x160xf32> to vector<48x160xf32>
    %183 = arith.truncf %182 : vector<48x160xf32> to vector<48x160xbf16>
    %c2_100 = arith.constant 2 : index
    %c0_101 = arith.constant 0 : index
    %c0_102 = arith.constant 0 : index
    %184 = vector.load %arg10[%c2_100, %c0_101, %c0_102] : memref<5x160x48xbf16, #tpu.memory_space<vmem>>, vector<1x160x48xbf16>
    %185 = vector.shape_cast %184 : vector<1x160x48xbf16> to vector<160x48xbf16>
    %cst_103 = arith.constant dense<0.000000e+00> : vector<48x48xf32>
    %186 = tpu.matmul %183, %185, %cst_103 {dimension_numbers = #tpu.dot_dimension_numbers<[1], [0], [0], [1], [0, 0, 1, 1], [], []>} : vector<48x160xbf16>, vector<160x48xbf16>, vector<48x48xf32> -> vector<48x48xf32>
    %187 = arith.addf %181, %186 : vector<48x48xf32>
    %188 = vector.extract_strided_slice %168 {offsets = [24, 0], sizes = [48, 160], strides = [1, 1]} : vector<80x160xf32> to vector<48x160xf32>
    %189 = arith.truncf %188 : vector<48x160xf32> to vector<48x160xbf16>
    %c3_104 = arith.constant 3 : index
    %c0_105 = arith.constant 0 : index
    %c0_106 = arith.constant 0 : index
    %190 = vector.load %arg10[%c3_104, %c0_105, %c0_106] : memref<5x160x48xbf16, #tpu.memory_space<vmem>>, vector<1x160x48xbf16>
    %191 = vector.shape_cast %190 : vector<1x160x48xbf16> to vector<160x48xbf16>
    %cst_107 = arith.constant dense<0.000000e+00> : vector<48x48xf32>
    %192 = tpu.matmul %189, %191, %cst_107 {dimension_numbers = #tpu.dot_dimension_numbers<[1], [0], [0], [1], [0, 0, 1, 1], [], []>} : vector<48x160xbf16>, vector<160x48xbf16>, vector<48x48xf32> -> vector<48x48xf32>
    %193 = arith.addf %187, %192 : vector<48x48xf32>
    %194 = vector.extract_strided_slice %168 {offsets = [32, 0], sizes = [48, 160], strides = [1, 1]} : vector<80x160xf32> to vector<48x160xf32>
    %195 = arith.truncf %194 : vector<48x160xf32> to vector<48x160xbf16>
    %c4_108 = arith.constant 4 : index
    %c0_109 = arith.constant 0 : index
    %c0_110 = arith.constant 0 : index
    %196 = vector.load %arg10[%c4_108, %c0_109, %c0_110] : memref<5x160x48xbf16, #tpu.memory_space<vmem>>, vector<1x160x48xbf16>
    %197 = vector.shape_cast %196 : vector<1x160x48xbf16> to vector<160x48xbf16>
    %cst_111 = arith.constant dense<0.000000e+00> : vector<48x48xf32>
    %198 = tpu.matmul %195, %197, %cst_111 {dimension_numbers = #tpu.dot_dimension_numbers<[1], [0], [0], [1], [0, 0, 1, 1], [], []>} : vector<48x160xbf16>, vector<160x48xbf16>, vector<48x48xf32> -> vector<48x48xf32>
    %199 = arith.addf %193, %198 : vector<48x48xf32>
    %c0_112 = arith.constant 0 : index
    %c0_113 = arith.constant 0 : index
    %200 = vector.load %arg11[%c0_112, %c0_113] : memref<1x48xf32, #tpu.memory_space<vmem>>, vector<1x48xf32>
    %c0_114 = arith.constant 0 : index
    %c0_115 = arith.constant 0 : index
    %201 = vector.load %arg12[%c0_114, %c0_115] : memref<1x48xf32, #tpu.memory_space<vmem>>, vector<1x48xf32>
    %202 = vector.broadcast %200 : vector<1x48xf32> to vector<48x48xf32>
    %203 = arith.mulf %199, %202 : vector<48x48xf32>
    %204 = vector.broadcast %201 : vector<1x48xf32> to vector<48x48xf32>
    %205 = arith.addf %203, %204 : vector<48x48xf32>
    %cst_116 = arith.constant 0.000000e+00 : f32
    %206 = vector.broadcast %cst_116 : f32 to vector<48x48xf32>
    %207 = arith.cmpf oge, %205, %206 : vector<48x48xf32>
    %cst_117 = arith.constant 0.00999999977 : f32
    %208 = vector.broadcast %cst_117 : f32 to vector<48x48xf32>
    %209 = arith.mulf %208, %205 : vector<48x48xf32>
    %210 = arith.select %207, %205, %209 : vector<48x48xi1>, vector<48x48xf32>
    %c0_118 = arith.constant 0 : index
    %c0_119 = arith.constant 0 : index
    %211 = vector.load %arg13[%c0_118, %c0_119] : memref<48x48xf32, #tpu.memory_space<vmem>>, vector<48x48xf32>
    %212 = arith.mulf %210, %211 : vector<48x48xf32>
    %cst_120 = arith.constant dense<0.000000e+00> : vector<48xf32>
    %213 = vector.multi_reduction <add>, %212, %cst_120 [1] : vector<48x48xf32> to vector<48xf32>
    %214 = vector.shape_cast %213 : vector<48xf32> to vector<48x1xf32>
    %215 = vector.extract_strided_slice %214 {offsets = [0, 0], sizes = [8, 1], strides = [1, 1]} : vector<48x1xf32> to vector<8x1xf32>
    %216 = vector.extract_strided_slice %214 {offsets = [8, 0], sizes = [8, 1], strides = [1, 1]} : vector<48x1xf32> to vector<8x1xf32>
    %217 = arith.addf %215, %216 : vector<8x1xf32>
    %218 = vector.extract_strided_slice %214 {offsets = [16, 0], sizes = [8, 1], strides = [1, 1]} : vector<48x1xf32> to vector<8x1xf32>
    %219 = arith.addf %217, %218 : vector<8x1xf32>
    %220 = vector.extract_strided_slice %214 {offsets = [24, 0], sizes = [8, 1], strides = [1, 1]} : vector<48x1xf32> to vector<8x1xf32>
    %221 = arith.addf %219, %220 : vector<8x1xf32>
    %222 = vector.extract_strided_slice %214 {offsets = [32, 0], sizes = [8, 1], strides = [1, 1]} : vector<48x1xf32> to vector<8x1xf32>
    %223 = arith.addf %221, %222 : vector<8x1xf32>
    %224 = vector.extract_strided_slice %214 {offsets = [40, 0], sizes = [8, 1], strides = [1, 1]} : vector<48x1xf32> to vector<8x1xf32>
    %225 = arith.addf %223, %224 : vector<8x1xf32>
    %c0_121 = arith.constant 0 : index
    %c0_122 = arith.constant 0 : index
    %226 = vector.load %arg14[%c0_121, %c0_122] : memref<1x1xf32, #tpu.memory_space<vmem>>, vector<1x1xf32>
    %227 = vector.broadcast %226 : vector<1x1xf32> to vector<8x1xf32>
    %228 = arith.addf %225, %227 : vector<8x1xf32>
    %229 = math.absf %228 : vector<8x1xf32>
    %cst_123 = arith.constant 0.000000e+00 : f32
    %230 = vector.broadcast %cst_123 : f32 to vector<8x1xf32>
    %231 = arith.subf %230, %229 : vector<8x1xf32>
    %232 = math.exp %231 : vector<8x1xf32>
    %cst_124 = arith.constant 0.000000e+00 : f32
    %233 = vector.broadcast %cst_124 : f32 to vector<8x1xf32>
    %234 = arith.cmpf oge, %228, %233 : vector<8x1xf32>
    %cst_125 = arith.constant 1.000000e+00 : f32
    %235 = vector.broadcast %cst_125 : f32 to vector<8x1xf32>
    %236 = arith.addf %235, %232 : vector<8x1xf32>
    %cst_126 = arith.constant 1.000000e+00 : f32
    %237 = vector.broadcast %cst_126 : f32 to vector<8x1xf32>
    %238 = arith.divf %237, %236 : vector<8x1xf32>
    %cst_127 = arith.constant 1.000000e+00 : f32
    %239 = vector.broadcast %cst_127 : f32 to vector<8x1xf32>
    %240 = arith.addf %239, %232 : vector<8x1xf32>
    %241 = arith.divf %232, %240 : vector<8x1xf32>
    %242 = arith.select %234, %238, %241 : vector<8x1xi1>, vector<8x1xf32>
    %c0_128 = arith.constant 0 : index
    %c0_129 = arith.constant 0 : index
    %243 = vector.load %arg15[%c0_128, %c0_129] : memref<8x1xf32, #tpu.memory_space<vmem>>, vector<8x1xf32>
    tpu.vector_store %arg15[%c0_128, %c0_129], %242 {strides = array<i32>} : memref<8x1xf32, #tpu.memory_space<vmem>>, vector<8x1xf32>,
    return
  }
  func.func @transform_0(%arg0: i32) -> (i32, i32) {
    %c0_i32 = arith.constant 0 : i32
    %c0_i32_0 = arith.constant 0 : i32
    return %arg0, %c0_i32 : i32, i32
  }
  func.func @transform_1(%arg0: i32) -> (i32, i32) {
    %c0_i32 = arith.constant 0 : i32
    %c0_i32_0 = arith.constant 0 : i32
    return %arg0, %c0_i32 : i32, i32
  }
  func.func @transform_2(%arg0: i32) -> (i32, i32, i32) {
    %c0_i32 = arith.constant 0 : i32
    %c0_i32_0 = arith.constant 0 : i32
    %c0_i32_1 = arith.constant 0 : i32
    %c0_i32_2 = arith.constant 0 : i32
    return %c0_i32, %c0_i32_0, %c0_i32_1 : i32, i32, i32
  }
  func.func @transform_3(%arg0: i32) -> (i32, i32, i32) {
    %c0_i32 = arith.constant 0 : i32
    %c0_i32_0 = arith.constant 0 : i32
    %c0_i32_1 = arith.constant 0 : i32
    %c0_i32_2 = arith.constant 0 : i32
    return %c0_i32, %c0_i32_0, %c0_i32_1 : i32, i32, i32
  }
  func.func @transform_4(%arg0: i32) -> (i32, i32) {
    %c0_i32 = arith.constant 0 : i32
    %c0_i32_0 = arith.constant 0 : i32
    %c0_i32_1 = arith.constant 0 : i32
    return %c0_i32, %c0_i32_0 : i32, i32
  }
  func.func @transform_5(%arg0: i32) -> (i32, i32) {
    %c0_i32 = arith.constant 0 : i32
    %c0_i32_0 = arith.constant 0 : i32
    %c0_i32_1 = arith.constant 0 : i32
    return %c0_i32, %c0_i32_0 : i32, i32
  }
  func.func @transform_6(%arg0: i32) -> (i32, i32, i32) {
    %c0_i32 = arith.constant 0 : i32
    %c0_i32_0 = arith.constant 0 : i32
    %c0_i32_1 = arith.constant 0 : i32
    %c0_i32_2 = arith.constant 0 : i32
    return %c0_i32, %c0_i32_0, %c0_i32_1 : i32, i32, i32
  }
  func.func @transform_7(%arg0: i32) -> (i32, i32) {
    %c0_i32 = arith.constant 0 : i32
    %c0_i32_0 = arith.constant 0 : i32
    %c0_i32_1 = arith.constant 0 : i32
    return %c0_i32, %c0_i32_0 : i32, i32
  }
  func.func @transform_8(%arg0: i32) -> (i32, i32) {
    %c0_i32 = arith.constant 0 : i32
    %c0_i32_0 = arith.constant 0 : i32
    %c0_i32_1 = arith.constant 0 : i32
    return %c0_i32, %c0_i32_0 : i32, i32
  }
  func.func @transform_9(%arg0: i32) -> (i32, i32, i32) {
    %c0_i32 = arith.constant 0 : i32
    %c0_i32_0 = arith.constant 0 : i32
    %c0_i32_1 = arith.constant 0 : i32
    %c0_i32_2 = arith.constant 0 : i32
    return %c0_i32, %c0_i32_0, %c0_i32_1 : i32, i32, i32
  }
  func.func @transform_10(%arg0: i32) -> (i32, i32) {
    %c0_i32 = arith.constant 0 : i32
    %c0_i32_0 = arith.constant 0 : i32
    %c0_i32_1 = arith.constant 0 : i32
    return %c0_i32, %c0_i32_0 : i32, i32
  }
  func.func @transform_11(%arg0: i32) -> (i32, i32) {
    %c0_i32 = arith.constant 0 : i32
    %c0_i32_0 = arith.constant 0 : i32
    %c0_i32_1 = arith.constant 0 : i32
    return %c0_i32, %c0_i32_0 : i32, i32
  }
  func.func @transform_12(%arg0: i32) -> (i32, i32) {
    %c0_i32 = arith.constant 0 : i32
    %c0_i32_0 = arith.constant 0 : i32
    %c0_i32_1 = arith.constant 0 : i32
    return %c0_i32, %c0_i32_0 : i32, i32
  }
  func.func @transform_13(%arg0: i32) -> (i32, i32) {
    %c0_i32 = arith.constant 0 : i32
    %c0_i32_0 = arith.constant 0 : i32
    %c0_i32_1 = arith.constant 0 : i32
    return %c0_i32, %c0_i32_0 : i32, i32
  }
  func.func @transform_14(%arg0: i32) -> (i32, i32) {
    %c0_i32 = arith.constant 0 : i32
    %c0_i32_0 = arith.constant 0 : i32
    return %arg0, %c0_i32 : i32, i32
  }
}

</mosaic_0001>

<llo_original>
// kernel: discriminator_forward.1
$region0: #{discriminator_forward.1}
  #allocation0 [shape = 'u32[]', space=smem, size = 0x4, offset = 0x4, fixed_abs, tag = 'smem constant byte address 0x4 - core index']
  #allocation1 [shape = 'u32[72,128]{1,0:T(1,128)}', space=vmem, size = 0x9000, scoped, tag = 'internal scratch']
  #allocation2 [shape = 'f32[1,1]{1,0:T(1,128)S(1)}', space=vmem, size = 0x200, scoped, tag = 'scoped memory for discriminator_forward.1']
  %s0 = inlined_call_operand.vmem [shape: f32[256,32], index: 0, kind: input, shape index: {}]
  %s1 = inlined_call_operand.vmem [shape: f32[256,32], index: 1, kind: input, shape index: {}]
  %s2 = inlined_call_operand.vmem [shape: bf16[5,32,448], index: 2, kind: input, shape index: {}]
  %s3 = inlined_call_operand.vmem [shape: bf16[5,32,448], index: 3, kind: input, shape index: {}]
  %s4 = inlined_call_operand.vmem [shape: f32[1,448], index: 4, kind: input, shape index: {}]
  %s5 = inlined_call_operand.vmem [shape: f32[1,448], index: 5, kind: input, shape index: {}]
  %s6 = inlined_call_operand.vmem [shape: bf16[5,448,160], index: 6, kind: input, shape index: {}]
  %s7 = inlined_call_operand.vmem [shape: f32[1,160], index: 7, kind: input, shape index: {}]
  %s8 = inlined_call_operand.vmem [shape: f32[1,160], index: 8, kind: input, shape index: {}]
  %s9 = inlined_call_operand.vmem [shape: bf16[5,160,48], index: 9, kind: input, shape index: {}]
  %s10 = inlined_call_operand.vmem [shape: f32[1,48], index: 10, kind: input, shape index: {}]
  %s11 = inlined_call_operand.vmem [shape: f32[1,48], index: 11, kind: input, shape index: {}]
  %s12 = inlined_call_operand.vmem [shape: f32[48,48], index: 12, kind: input, shape index: {}]
  %s13 = inlined_call_operand.<no memory space> [shape: f32[1,1], index: 13, kind: input, shape index: {}]
  %s14 = inlined_call_operand.vmem [shape: f32[16,1], index: 14, kind: output, shape index: {}]
  %s15 = sld [smem:[#allocation0]]
  $region89: #{discriminator_forward.1} parent=0
    _
  %s17 = ssub.s32 1, %s15
  %s18 = scalar_select 0, %s17, %s15
  %v19 = vstv %s13
  %20 = vst [vmem:[#allocation2] sm:$0x1] %v19
  loop: start=0, step=1, limit=4
  $region2: #{discriminator_forward.1} parent=0 // loop_pre_header
    _
  $region3: #{discriminator_forward.1} parent=0 // loop_header
    %s22 = sphi 0, %s26
    %p23 = scmp.ge.s32.totalorder %s22, 4
    %s32 = sphi 0, %s34
    %s35 = sphi 0, %s32
    %s36 = sphi 0, %s35
    %s52 = sphi 0, %s36
    %s58 = sphi 0, %s60
    %s61 = sphi 0, %s58
    %s62 = sphi 0, %s61
    %s78 = sphi 0, %s62
    %s82 = sphi 0, %s82
    %s84 = sphi 0, %s82
    %s85 = sphi 0, %s84
    %s99 = sphi 0, %s85
    %s103 = sphi 0, %s103
    %s105 = sphi 0, %s103
    %s106 = sphi 0, %s105
    %s120 = sphi 0, %s106
    %s124 = sphi 0, %s124
    %s126 = sphi 0, %s124
    %s127 = sphi 0, %s126
    %s141 = sphi 0, %s127
    %s145 = sphi 0, %s145
    %s147 = sphi 0, %s145
    %s148 = sphi 0, %s147
    %s162 = sphi 0, %s148
    %s166 = sphi 0, %s166
    %s168 = sphi 0, %s166
    %s169 = sphi 0, %s168
    %s183 = sphi 0, %s169
    %s187 = sphi 0, %s187
    %s189 = sphi 0, %s187
    %s190 = sphi 0, %s189
    %s204 = sphi 0, %s190
    %s208 = sphi 0, %s208
    %s210 = sphi 0, %s208
    %s211 = sphi 0, %s210
    %s225 = sphi 0, %s211
    %s229 = sphi 0, %s229
    %s231 = sphi 0, %s229
    %s232 = sphi 0, %s231
    %s246 = sphi 0, %s232
    %s250 = sphi 0, %s250
    %s252 = sphi 0, %s250
    %s253 = sphi 0, %s252
    %s267 = sphi 0, %s253
    %s271 = sphi 0, %s271
    %s273 = sphi 0, %s271
    %s274 = sphi 0, %s273
    %s288 = sphi 0, %s274
    %s292 = sphi 0, %s292
    %s294 = sphi 0, %s292
    %s295 = sphi 0, %s294
    %s309 = sphi 0, %s295
    %s313 = sphi 0, %s313
    %s315 = sphi 0, %s313
    %s316 = sphi 0, %s315
    %s330 = sphi 0, %s316
    %s336 = sphi 0, %s338
    %s339 = sphi 0, %s336
    %s340 = sphi 0, %s339
    %s356 = sphi 0, %s340
  $region4: #{discriminator_forward.1} parent=0 // loop_header_branch
    %25 = sbr.rel (%p23) target = $region8
  $region5: #{discriminator_forward.1} parent=0 // loop_body
    %s27 = ssub.s32 %s22, 1
    %s28 = ssub.s32 %s22, 2
    %s29 = sadd.s32 %s22, 1
    %s30 = ssub.s32 %s22, %s29
    %p31 = scmp.eq.s32.totalorder %s30, 0
    %s33 = sadd.s32 %s32, 1
    %s34 = scalar_select %p31, %s32, %s33
    %p37 = pneg %p31
    %p38 = scmp.eq.s32.totalorder %s22, 1
    %p39 = por %p37, %p38
    %p40 = scmp.ne.s32.totalorder %s32, %s35
    %p41 = scmp.eq.s32.totalorder %s22, 0
    %p42 = por %p40, %p41
    %p43 = scmp.ne.s32.totalorder %s32, %s35
    %p44 = scmp.eq.s32.totalorder %s27, 1
    %p45 = por %p43, %p44
    %p46 = scmp.ne.s32.totalorder %s35, %s36
    %p47 = scmp.eq.s32.totalorder %s27, 0
    %p48 = por %p46, %p47
    %p49 = scmp.ne.s32.totalorder %s35, %s36
    %p50 = scmp.eq.s32.totalorder %s28, 1
    %p51 = por %p49, %p50
    %p53 = scmp.ne.s32.totalorder %s36, %s52
    %p54 = scmp.eq.s32.totalorder %s28, 0
    %p55 = por %p53, %p54
    %s56 = ssub.s32 %s22, %s29
    %p57 = scmp.eq.s32.totalorder %s56, 0
    %s59 = sadd.s32 %s58, 1
    %s60 = scalar_select %p57, %s58, %s59
    %p63 = pneg %p57
    %p64 = scmp.eq.s32.totalorder %s22, 1
    %p65 = por %p63, %p64
    %p66 = scmp.ne.s32.totalorder %s58, %s61
    %p67 = scmp.eq.s32.totalorder %s22, 0
    %p68 = por %p66, %p67
    %p69 = scmp.ne.s32.totalorder %s58, %s61
    %p70 = scmp.eq.s32.totalorder %s27, 1
    %p71 = por %p69, %p70
    %p72 = scmp.ne.s32.totalorder %s61, %s62
    %p73 = scmp.eq.s32.totalorder %s27, 0
    %p74 = por %p72, %p73
    %p75 = scmp.ne.s32.totalorder %s61, %s62
    %p76 = scmp.eq.s32.totalorder %s28, 1
    %p77 = por %p75, %p76
    %p79 = scmp.ne.s32.totalorder %s62, %s78
    %p80 = scmp.eq.s32.totalorder %s28, 0
    %p81 = por %p79, %p80
    %s83 = sadd.s32 %s82, 1
    %p86 = scmp.eq.s32.totalorder %s22, 1
    %p87 = scmp.ne.s32.totalorder %s82, %s84
    %p88 = scmp.eq.s32.totalorder %s22, 0
    %p89 = por %p87, %p88
    %p90 = scmp.ne.s32.totalorder %s82, %s84
    %p91 = scmp.eq.s32.totalorder %s27, 1
    %p92 = por %p90, %p91
    %p93 = scmp.ne.s32.totalorder %s84, %s85
    %p94 = scmp.eq.s32.totalorder %s27, 0
    %p95 = por %p93, %p94
    %p96 = scmp.ne.s32.totalorder %s84, %s85
    %p97 = scmp.eq.s32.totalorder %s28, 1
    %p98 = por %p96, %p97
    %p100 = scmp.ne.s32.totalorder %s85, %s99
    %p101 = scmp.eq.s32.totalorder %s28, 0
    %p102 = por %p100, %p101
    %s104 = sadd.s32 %s103, 1
    %p107 = scmp.eq.s32.totalorder %s22, 1
    %p108 = scmp.ne.s32.totalorder %s103, %s105
    %p109 = scmp.eq.s32.totalorder %s22, 0
    %p110 = por %p108, %p109
    %p111 = scmp.ne.s32.totalorder %s103, %s105
    %p112 = scmp.eq.s32.totalorder %s27, 1
    %p113 = por %p111, %p112
    %p114 = scmp.ne.s32.totalorder %s105, %s106
    %p115 = scmp.eq.s32.totalorder %s27, 0
    %p116 = por %p114, %p115
    %p117 = scmp.ne.s32.totalorder %s105, %s106
    %p118 = scmp.eq.s32.totalorder %s28, 1
    %p119 = por %p117, %p118
    %p121 = scmp.ne.s32.totalorder %s106, %s120
    %p122 = scmp.eq.s32.totalorder %s28, 0
    %p123 = por %p121, %p122
    %s125 = sadd.s32 %s124, 1
    %p128 = scmp.eq.s32.totalorder %s22, 1
    %p129 = scmp.ne.s32.totalorder %s124, %s126
    %p130 = scmp.eq.s32.totalorder %s22, 0
    %p131 = por %p129, %p130
    %p132 = scmp.ne.s32.totalorder %s124, %s126
    %p133 = scmp.eq.s32.totalorder %s27, 1
    %p134 = por %p132, %p133
    %p135 = scmp.ne.s32.totalorder %s126, %s127
    %p136 = scmp.eq.s32.totalorder %s27, 0
    %p137 = por %p135, %p136
    %p138 = scmp.ne.s32.totalorder %s126, %s127
    %p139 = scmp.eq.s32.totalorder %s28, 1
    %p140 = por %p138, %p139
    %p142 = scmp.ne.s32.totalorder %s127, %s141
    %p143 = scmp.eq.s32.totalorder %s28, 0
    %p144 = por %p142, %p143
    %s146 = sadd.s32 %s145, 1
    %p149 = scmp.eq.s32.totalorder %s22, 1
    %p150 = scmp.ne.s32.totalorder %s145, %s147
    %p151 = scmp.eq.s32.totalorder %s22, 0
    %p152 = por %p150, %p151
    %p153 = scmp.ne.s32.totalorder %s145, %s147
    %p154 = scmp.eq.s32.totalorder %s27, 1
    %p155 = por %p153, %p154
    %p156 = scmp.ne.s32.totalorder %s147, %s148
    %p157 = scmp.eq.s32.totalorder %s27, 0
    %p158 = por %p156, %p157
    %p159 = scmp.ne.s32.totalorder %s147, %s148
    %p160 = scmp.eq.s32.totalorder %s28, 1
    %p161 = por %p159, %p160
    %p163 = scmp.ne.s32.totalorder %s148, %s162
    %p164 = scmp.eq.s32.totalorder %s28, 0
    %p165 = por %p163, %p164
    %s167 = sadd.s32 %s166, 1
    %p170 = scmp.eq.s32.totalorder %s22, 1
    %p171 = scmp.ne.s32.totalorder %s166, %s168
    %p172 = scmp.eq.s32.totalorder %s22, 0
    %p173 = por %p171, %p172
    %p174 = scmp.ne.s32.totalorder %s166, %s168
    %p175 = scmp.eq.s32.totalorder %s27, 1
    %p176 = por %p174, %p175
    %p177 = scmp.ne.s32.totalorder %s168, %s169
    %p178 = scmp.eq.s32.totalorder %s27, 0
    %p179 = por %p177, %p178
    %p180 = scmp.ne.s32.totalorder %s168, %s169
    %p181 = scmp.eq.s32.totalorder %s28, 1
    %p182 = por %p180, %p181
    %p184 = scmp.ne.s32.totalorder %s169, %s183
    %p185 = scmp.eq.s32.totalorder %s28, 0
    %p186 = por %p184, %p185
    %s188 = sadd.s32 %s187, 1
    %p191 = scmp.eq.s32.totalorder %s22, 1
    %p192 = scmp.ne.s32.totalorder %s187, %s189
    %p193 = scmp.eq.s32.totalorder %s22, 0
    %p194 = por %p192, %p193
    %p195 = scmp.ne.s32.totalorder %s187, %s189
    %p196 = scmp.eq.s32.totalorder %s27, 1
    %p197 = por %p195, %p196
    %p198 = scmp.ne.s32.totalorder %s189, %s190
    %p199 = scmp.eq.s32.totalorder %s27, 0
    %p200 = por %p198, %p199
    %p201 = scmp.ne.s32.totalorder %s189, %s190
    %p202 = scmp.eq.s32.totalorder %s28, 1
    %p203 = por %p201, %p202
    %p205 = scmp.ne.s32.totalorder %s190, %s204
    %p206 = scmp.eq.s32.totalorder %s28, 0
    %p207 = por %p205, %p206
    %s209 = sadd.s32 %s208, 1
    %p212 = scmp.eq.s32.totalorder %s22, 1
    %p213 = scmp.ne.s32.totalorder %s208, %s210
    %p214 = scmp.eq.s32.totalorder %s22, 0
    %p215 = por %p213, %p214
    %p216 = scmp.ne.s32.totalorder %s208, %s210
    %p217 = scmp.eq.s32.totalorder %s27, 1
    %p218 = por %p216, %p217
    %p219 = scmp.ne.s32.totalorder %s210, %s211
    %p220 = scmp.eq.s32.totalorder %s27, 0
    %p221 = por %p219, %p220
    %p222 = scmp.ne.s32.totalorder %s210, %s211
    %p223 = scmp.eq.s32.totalorder %s28, 1
    %p224 = por %p222, %p223
    %p226 = scmp.ne.s32.totalorder %s211, %s225
    %p227 = scmp.eq.s32.totalorder %s28, 0
    %p228 = por %p226, %p227
    %s230 = sadd.s32 %s229, 1
    %p233 = scmp.eq.s32.totalorder %s22, 1
    %p234 = scmp.ne.s32.totalorder %s229, %s231
    %p235 = scmp.eq.s32.totalorder %s22, 0
    %p236 = por %p234, %p235
    %p237 = scmp.ne.s32.totalorder %s229, %s231
    %p238 = scmp.eq.s32.totalorder %s27, 1
    %p239 = por %p237, %p238
    %p240 = scmp.ne.s32.totalorder %s231, %s232
    %p241 = scmp.eq.s32.totalorder %s27, 0
    %p242 = por %p240, %p241
    %p243 = scmp.ne.s32.totalorder %s231, %s232
    %p244 = scmp.eq.s32.totalorder %s28, 1
    %p245 = por %p243, %p244
    %p247 = scmp.ne.s32.totalorder %s232, %s246
    %p248 = scmp.eq.s32.totalorder %s28, 0
    %p249 = por %p247, %p248
    %s251 = sadd.s32 %s250, 1
    %p254 = scmp.eq.s32.totalorder %s22, 1
    %p255 = scmp.ne.s32.totalorder %s250, %s252
    %p256 = scmp.eq.s32.totalorder %s22, 0
    %p257 = por %p255, %p256
    %p258 = scmp.ne.s32.totalorder %s250, %s252
    %p259 = scmp.eq.s32.totalorder %s27, 1
    %p260 = por %p258, %p259
    %p261 = scmp.ne.s32.totalorder %s252, %s253
    %p262 = scmp.eq.s32.totalorder %s27, 0
    %p263 = por %p261, %p262
    %p264 = scmp.ne.s32.totalorder %s252, %s253
    %p265 = scmp.eq.s32.totalorder %s28, 1
    %p266 = por %p264, %p265
    %p268 = scmp.ne.s32.totalorder %s253, %s267
    %p269 = scmp.eq.s32.totalorder %s28, 0
    %p270 = por %p268, %p269
    %s272 = sadd.s32 %s271, 1
    %p275 = scmp.eq.s32.totalorder %s22, 1
    %p276 = scmp.ne.s32.totalorder %s271, %s273
    %p277 = scmp.eq.s32.totalorder %s22, 0
    %p278 = por %p276, %p277
    %p279 = scmp.ne.s32.totalorder %s271, %s273
    %p280 = scmp.eq.s32.totalorder %s27, 1
    %p281 = por %p279, %p280
    %p282 = scmp.ne.s32.totalorder %s273, %s274
    %p283 = scmp.eq.s32.totalorder %s27, 0
    %p284 = por %p282, %p283
    %p285 = scmp.ne.s32.totalorder %s273, %s274
    %p286 = scmp.eq.s32.totalorder %s28, 1
    %p287 = por %p285, %p286
    %p289 = scmp.ne.s32.totalorder %s274, %s288
    %p290 = scmp.eq.s32.totalorder %s28, 0
    %p291 = por %p289, %p290
    %s293 = sadd.s32 %s292, 1
    %p296 = scmp.eq.s32.totalorder %s22, 1
    %p297 = scmp.ne.s32.totalorder %s292, %s294
    %p298 = scmp.eq.s32.totalorder %s22, 0
    %p299 = por %p297, %p298
    %p300 = scmp.ne.s32.totalorder %s292, %s294
    %p301 = scmp.eq.s32.totalorder %s27, 1
    %p302 = por %p300, %p301
    %p303 = scmp.ne.s32.totalorder %s294, %s295
    %p304 = scmp.eq.s32.totalorder %s27, 0
    %p305 = por %p303, %p304
    %p306 = scmp.ne.s32.totalorder %s294, %s295
    %p307 = scmp.eq.s32.totalorder %s28, 1
    %p308 = por %p306, %p307
    %p310 = scmp.ne.s32.totalorder %s295, %s309
    %p311 = scmp.eq.s32.totalorder %s28, 0
    %p312 = por %p310, %p311
    %s314 = sadd.s32 %s313, 1
    %p317 = scmp.eq.s32.totalorder %s22, 1
    %p318 = scmp.ne.s32.totalorder %s313, %s315
    %p319 = scmp.eq.s32.totalorder %s22, 0
    %p320 = por %p318, %p319
    %p321 = scmp.ne.s32.totalorder %s313, %s315
    %p322 = scmp.eq.s32.totalorder %s27, 1
    %p323 = por %p321, %p322
    %p324 = scmp.ne.s32.totalorder %s315, %s316
    %p325 = scmp.eq.s32.totalorder %s27, 0
    %p326 = por %p324, %p325
    %p327 = scmp.ne.s32.totalorder %s315, %s316
    %p328 = scmp.eq.s32.totalorder %s28, 1
    %p329 = por %p327, %p328
    %p331 = scmp.ne.s32.totalorder %s316, %s330
    %p332 = scmp.eq.s32.totalorder %s28, 0
    %p333 = por %p331, %p332
    %s334 = ssub.s32 %s22, %s29
    %p335 = scmp.eq.s32.totalorder %s334, 0
    %s337 = sadd.s32 %s336, 1
    %s338 = scalar_select %p335, %s336, %s337
    %p341 = pneg %p335
    %p342 = scmp.eq.s32.totalorder %s22, 1
    %p343 = por %p341, %p342
    %p344 = scmp.ne.s32.totalorder %s336, %s339
    %p345 = scmp.eq.s32.totalorder %s22, 0
    %p346 = por %p344, %p345
    %p347 = scmp.ne.s32.totalorder %s336, %s339
    %p348 = scmp.eq.s32.totalorder %s27, 1
    %p349 = por %p347, %p348
    %p350 = scmp.ne.s32.totalorder %s339, %s340
    %p351 = scmp.eq.s32.totalorder %s27, 0
    %p352 = por %p350, %p351
    %p353 = scmp.ne.s32.totalorder %s339, %s340
    %p354 = scmp.eq.s32.totalorder %s28, 1
    %p355 = por %p353, %p354
    %p357 = scmp.ne.s32.totalorder %s340, %s356
    %p358 = scmp.eq.s32.totalorder %s28, 0
    %p359 = por %p357, %p358
    %p360 = scmp.le.s32.totalorder 1, %s22
    %p361 = scmp.lt.s32.totalorder %s22, 3
    %p362 = pnand %p360, %p361
    %p363 = pneg %p362
    // Predicated region
    $region9: #{discriminator_forward.1} parent=5 // pred_check
      _
    $region10: #{discriminator_forward.1} parent=5 // pred_check_branch
      %365 = sbr.rel (%p362) target = $region12
    $region11: #{discriminator_forward.1} parent=5 // pred_region
      %s366 = ssub.s32 %s22, 1
      // Predicated region
      $region13: #{discriminator_forward.1} parent=11 // pred_check
        %p367 = pneg %p95
      $region14: #{discriminator_forward.1} parent=11 // pred_check_branch
        %369 = sbr.rel (%p367) target = $region16
      $region15: #{discriminator_forward.1} parent=11 // pred_region
        _
      $region16: #{discriminator_forward.1} parent=11 // pred_fallthru
        _
      // Predicated region
      $region17: #{discriminator_forward.1} parent=11 // pred_check
        %p370 = pneg %p116
      $region18: #{discriminator_forward.1} parent=11 // pred_check_branch
        %372 = sbr.rel (%p370) target = $region20
      $region19: #{discriminator_forward.1} parent=11 // pred_region
        _
      $region20: #{discriminator_forward.1} parent=11 // pred_fallthru
        _
      // Predicated region
      $region21: #{discriminator_forward.1} parent=11 // pred_check
        %p373 = pneg %p137
      $region22: #{discriminator_forward.1} parent=11 // pred_check_branch
        %375 = sbr.rel (%p373) target = $region24
      $region23: #{discriminator_forward.1} parent=11 // pred_region
        _
      $region24: #{discriminator_forward.1} parent=11 // pred_fallthru
        _
      // Predicated region
      $region25: #{discriminator_forward.1} parent=11 // pred_check
        %p376 = pneg %p158
      $region26: #{discriminator_forward.1} parent=11 // pred_check_branch
        %378 = sbr.rel (%p376) target = $region28
      $region27: #{discriminator_forward.1} parent=11 // pred_region
        _
      $region28: #{discriminator_forward.1} parent=11 // pred_fallthru
        _
      // Predicated region
      $region29: #{discriminator_forward.1} parent=11 // pred_check
        %p379 = pneg %p179
      $region30: #{discriminator_forward.1} parent=11 // pred_check_branch
        %381 = sbr.rel (%p379) target = $region32
      $region31: #{discriminator_forward.1} parent=11 // pred_region
        _
      $region32: #{discriminator_forward.1} parent=11 // pred_fallthru
        _
      // Predicated region
      $region33: #{discriminator_forward.1} parent=11 // pred_check
        %p382 = pneg %p200
      $region34: #{discriminator_forward.1} parent=11 // pred_check_branch
        %384 = sbr.rel (%p382) target = $region36
      $region35: #{discriminator_forward.1} parent=11 // pred_region
        _
      $region36: #{discriminator_forward.1} parent=11 // pred_fallthru
        _
      // Predicated region
      $region37: #{discriminator_forward.1} parent=11 // pred_check
        %p385 = pneg %p221
      $region38: #{discriminator_forward.1} parent=11 // pred_check_branch
        %387 = sbr.rel (%p385) target = $region40
      $region39: #{discriminator_forward.1} parent=11 // pred_region
        _
      $region40: #{discriminator_forward.1} parent=11 // pred_fallthru
        _
      // Predicated region
      $region41: #{discriminator_forward.1} parent=11 // pred_check
        %p388 = pneg %p242
      $region42: #{discriminator_forward.1} parent=11 // pred_check_branch
        %390 = sbr.rel (%p388) target = $region44
      $region43: #{discriminator_forward.1} parent=11 // pred_region
        _
      $region44: #{discriminator_forward.1} parent=11 // pred_fallthru
        _
      // Predicated region
      $region45: #{discriminator_forward.1} parent=11 // pred_check
        %p391 = pneg %p263
      $region46: #{discriminator_forward.1} parent=11 // pred_check_branch
        %393 = sbr.rel (%p391) target = $region48
      $region47: #{discriminator_forward.1} parent=11 // pred_region
        _
      $region48: #{discriminator_forward.1} parent=11 // pred_fallthru
        _
      // Predicated region
      $region49: #{discriminator_forward.1} parent=11 // pred_check
        %p394 = pneg %p284
      $region50: #{discriminator_forward.1} parent=11 // pred_check_branch
        %396 = sbr.rel (%p394) target = $region52
      $region51: #{discriminator_forward.1} parent=11 // pred_region
        _
      $region52: #{discriminator_forward.1} parent=11 // pred_fallthru
        _
      // Predicated region
      $region53: #{discriminator_forward.1} parent=11 // pred_check
        %p397 = pneg %p305
      $region54: #{discriminator_forward.1} parent=11 // pred_check_branch
        %399 = sbr.rel (%p397) target = $region56
      $region55: #{discriminator_forward.1} parent=11 // pred_region
        _
      $region56: #{discriminator_forward.1} parent=11 // pred_fallthru
        _
      // Predicated region
      $region57: #{discriminator_forward.1} parent=11 // pred_check
        %p400 = pneg %p326
      $region58: #{discriminator_forward.1} parent=11 // pred_check_branch
        %402 = sbr.rel (%p400) target = $region60
      $region59: #{discriminator_forward.1} parent=11 // pred_region
        _
      $region60: #{discriminator_forward.1} parent=11 // pred_fallthru
        _
    $region12: #{discriminator_forward.1} parent=5 // pred_fallthru
      _
    %p403 = scmp.lt.s32.totalorder %s22, 2
    // Predicated region
    $region61: #{discriminator_forward.1} parent=5 // pred_check
      %p404 = pneg %p403
    $region62: #{discriminator_forward.1} parent=5 // pred_check_branch
      %406 = sbr.rel (%p404) target = $region64
    $region63: #{discriminator_forward.1} parent=5 // pred_region
      // Predicated region
      $region65: #{discriminator_forward.1} parent=63 // pred_check
        %p407 = pneg %p42
      $region66: #{discriminator_forward.1} parent=63 // pred_check_branch
        %409 = sbr.rel (%p407) target = $region68
      $region67: #{discriminator_forward.1} parent=63 // pred_region
        %s410 = smul.u32 16, %s22
        %p411 = scmp.lt.s32.totalorder %s410, 31
        %s412 = scalar_select %p411, %s410, 31
        %s413 = smul.addr %s412, 8
        %s414 = scalar_lea.vmem %s0, %s413
        %s415 = smul.u32 16, %s22
      $region68: #{discriminator_forward.1} parent=63 // pred_fallthru
        _
      // Predicated region
      $region69: #{discriminator_forward.1} parent=63 // pred_check
        %p416 = pneg %p68
      $region70: #{discriminator_forward.1} parent=63 // pred_check_branch
        %418 = sbr.rel (%p416) target = $region72
      $region71: #{discriminator_forward.1} parent=63 // pred_region
        %s419 = smul.u32 16, %s22
        %p420 = scmp.lt.s32.totalorder %s419, 31
        %s421 = scalar_select %p420, %s419, 31
        %s422 = smul.addr %s421, 8
        %s423 = scalar_lea.vmem %s1, %s422
        %s424 = smul.u32 16, %s22
      $region72: #{discriminator_forward.1} parent=63 // pred_fallthru
        _
    $region64: #{discriminator_forward.1} parent=5 // pred_fallthru
      _
    %p425 = scmp.le.s32.totalorder 1, %s22
    %p426 = scmp.lt.s32.totalorder %s22, 3
    %p427 = pnand %p425, %p426
    %p428 = pneg %p427
    // Predicated region
    $region73: #{discriminator_forward.1} parent=5 // pred_check
      _
    $region74: #{discriminator_forward.1} parent=5 // pred_check_branch
      %430 = sbr.rel (%p427) target = $region76
    $region75: #{discriminator_forward.1} parent=5 // pred_region
      %s431 = ssub.s32 %s22, 1
      %s432 = smul.u32 16, %s27
      %p433 = scmp.lt.s32.totalorder %s432, 31
      %s434 = scalar_select %p433, %s432, 31
      %s435 = smul.addr %s434, 8
      %s436 = scalar_lea.vmem %s0, %s435
      %p437 = pneg %p48
      %p438 = pneg %p45
      %s439 = smul.u32 16, %s27
      %p440 = scmp.lt.s32.totalorder %s439, 31
      %s441 = scalar_select %p440, %s439, 31
      %s442 = smul.addr %s441, 8
      %s443 = scalar_lea.vmem %s1, %s442
      %p444 = pneg %p74
      %p445 = pneg %p71
      %p446 = pneg %p95
      %p447 = pneg %p92
      %p448 = pneg %p116
      %p449 = pneg %p113
      %p450 = pneg %p137
      %p451 = pneg %p134
      %p452 = pneg %p158
      %p453 = pneg %p155
      %p454 = pneg %p179
      %p455 = pneg %p176
      %p456 = pneg %p200
      %p457 = pneg %p197
      %p458 = pneg %p221
      %p459 = pneg %p218
      %p460 = pneg %p242
      %p461 = pneg %p239
      %p462 = pneg %p263
      %p463 = pneg %p260
      %p464 = pneg %p284
      %p465 = pneg %p281
      %p466 = pneg %p305
      %p467 = pneg %p302
      %p468 = pneg %p326
      %p469 = pneg %p323
      %p470 = pneg %p352
      %p471 = pneg %p349
      %p472 = scmp.lt.s32.totalorder %s27, 1
      %s473 = scalar_select %p472, %s27, 1
      %s474 = smul.addr %s473, 8
      %s475 = scalar_lea.vmem %s14, %s474
      %s476 = smul.u32 16, %s27
      %p477 = scmp.lt.s32.totalorder %s476, 31
      %s478 = scalar_select %p477, %s476, 31
      %s479 = smul.addr %s478, 8
      %s480 = scalar_lea.vmem %s0, %s479
      %s481 = smul.u32 16, %s27
      %s482 = smul.u32 16, %s27
      %p483 = scmp.lt.s32.totalorder %s482, 31
      %s484 = scalar_select %p483, %s482, 31
      %s485 = smul.addr %s484, 8
      %s486 = scalar_lea.vmem %s1, %s485
      %s487 = smul.u32 16, %s27
      %p488 = scmp.lt.s32.totalorder %s27, 1
      %s489 = scalar_select %p488, %s27, 1
      %s490 = smul.addr %s489, 8
      %s491 = scalar_lea.vmem %s14, %s490
      %v493 = vld [vmem:[%s480] sm:$0xff]
      %v494 = vld [vmem:[%s480 + $0x8] sm:$0xff]
      %v495 = vld [vmem:[%s480 + $0x10] sm:$0xff]
      %v496 = vld [vmem:[%s480 + $0x18] sm:$0xff]
      %v497 = vld [vmem:[%s480 + $0x20] sm:$0xff]
      %v498 = vld [vmem:[%s480 + $0x28] sm:$0xff]
      %v499 = vld [vmem:[%s480 + $0x30] sm:$0xff]
      %v500 = vld [vmem:[%s480 + $0x38] sm:$0xff]
      %v501 = vld [vmem:[%s480 + $0x40] sm:$0xff]
      %v502 = vld [vmem:[%s480 + $0x48] sm:$0xff]
      %v503 = vld [vmem:[%s480 + $0x50] sm:$0xff]
      %v504 = vld [vmem:[%s480 + $0x58] sm:$0xff]
      %v505 = vld [vmem:[%s480 + $0x60] sm:$0xff]
      %v506 = vld [vmem:[%s480 + $0x68] sm:$0xff]
      %v507 = vld [vmem:[%s480 + $0x70] sm:$0xff]
      %v508 = vld [vmem:[%s480 + $0x78] sm:$0xff]
      %v509 = vld [vmem:[%s486] sm:$0xff]
      %v510 = vld [vmem:[%s486 + $0x8] sm:$0xff]
      %v511 = vld [vmem:[%s486 + $0x10] sm:$0xff]
      %v512 = vld [vmem:[%s486 + $0x18] sm:$0xff]
      %v513 = vld [vmem:[%s486 + $0x20] sm:$0xff]
      %v514 = vld [vmem:[%s486 + $0x28] sm:$0xff]
      %v515 = vld [vmem:[%s486 + $0x30] sm:$0xff]
      %v516 = vld [vmem:[%s486 + $0x38] sm:$0xff]
      %v517 = vld [vmem:[%s486 + $0x40] sm:$0xff]
      %v518 = vld [vmem:[%s486 + $0x48] sm:$0xff]
      %v519 = vld [vmem:[%s486 + $0x50] sm:$0xff]
      %v520 = vld [vmem:[%s486 + $0x58] sm:$0xff]
      %v521 = vld [vmem:[%s486 + $0x60] sm:$0xff]
      %v522 = vld [vmem:[%s486 + $0x68] sm:$0xff]
      %v523 = vld [vmem:[%s486 + $0x70] sm:$0xff]
      %v524 = vld [vmem:[%s486 + $0x78] sm:$0xff]
      %v525 = vld [vmem:[%s2] sm:$0xff]
      %v526 = vld [vmem:[%s2 + $0x8] sm:$0xff]
      %v527 = vld [vmem:[%s2 + $0x10] sm:$0xff]
      %v528 = vld [vmem:[%s2 + $0x18] sm:$0xff]
      %v529 = vld [vmem:[%s2 + $0x20] sm:$0xff]
      %v530 = vld [vmem:[%s2 + $0x28] sm:$0xff]
      %v531 = vld [vmem:[%s2 + $0x30] sm:$0xff]
      %v532 = vld [vmem:[%s2 + $0x38] sm:$0xff]
      %v533 = vld [vmem:[%s3] sm:$0xff]
      %v534 = vld [vmem:[%s3 + $0x8] sm:$0xff]
      %v535 = vld [vmem:[%s3 + $0x10] sm:$0xff]
      %v536 = vld [vmem:[%s3 + $0x18] sm:$0xff]
      %v537 = vld [vmem:[%s3 + $0x20] sm:$0xff]
      %v538 = vld [vmem:[%s3 + $0x28] sm:$0xff]
      %v539 = vld [vmem:[%s3 + $0x30] sm:$0xff]
      %v540 = vld [vmem:[%s3 + $0x38] sm:$0xff]
      %v541 = vpack.c.bf16 %v494, %v493
      %v542 = vpack.c.bf16 %v496, %v495
      %v543 = vpack.c.bf16 %v498, %v497
      %v544 = vpack.c.bf16 %v500, %v499
      %v545 = vpack.c.bf16 %v502, %v501
      %v546 = vpack.c.bf16 %v504, %v503
      %v547 = vpack.c.bf16 %v506, %v505
      %v548 = vpack.c.bf16 %v510, %v509
      %v549 = vpack.c.bf16 %v512, %v511
      %v550 = vpack.c.bf16 %v514, %v513
      %v551 = vpack.c.bf16 %v516, %v515
      %v552 = vpack.c.bf16 %v518, %v517
      %v553 = vpack.c.bf16 %v520, %v519
      %v554 = vpack.c.bf16 %v522, %v521
      %s555 = scalar_lea.vmem %s2, 64
      %v556 = vld [vmem:[%s555] sm:$0xff]
      %v557 = vld [vmem:[%s555 + $0x8] sm:$0xff]
      %v558 = vld [vmem:[%s555 + $0x10] sm:$0xff]
      %v559 = vld [vmem:[%s555 + $0x18] sm:$0xff]
      %v560 = vld [vmem:[%s555 + $0x20] sm:$0xff]
      %v561 = vld [vmem:[%s555 + $0x28] sm:$0xff]
      %v562 = vld [vmem:[%s555 + $0x30] sm:$0xff]
      %v563 = vld [vmem:[%s555 + $0x38] sm:$0xff]
      %s564 = scalar_lea.vmem %s3, 64
      %v565 = vld [vmem:[%s564] sm:$0xff]
      %v566 = vld [vmem:[%s564 + $0x8] sm:$0xff]
      %v567 = vld [vmem:[%s564 + $0x10] sm:$0xff]
      %v568 = vld [vmem:[%s564 + $0x18] sm:$0xff]
      %v569 = vld [vmem:[%s564 + $0x20] sm:$0xff]
      %v570 = vld [vmem:[%s564 + $0x28] sm:$0xff]
      %v571 = vld [vmem:[%s564 + $0x30] sm:$0xff]
      %v572 = vld [vmem:[%s564 + $0x38] sm:$0xff]
      %v581 = vunpack.c.l.b16 %v556
      %v582 = vunpack.c.h.b16 %v556
      %v583 = vunpack.c.l.b16 %v557
      %v584 = vunpack.c.h.b16 %v557
      %v585 = vunpack.c.l.b16 %v558
      %v586 = vunpack.c.h.b16 %v558
      %v587 = vunpack.c.l.b16 %v559
      %v588 = vunpack.c.h.b16 %v559
      %v589 = vunpack.c.l.b16 %v560
      %v590 = vunpack.c.h.b16 %v560
      %v591 = vunpack.c.l.b16 %v561
      %v592 = vunpack.c.h.b16 %v561
      %v593 = vunpack.c.l.b16 %v562
      %v594 = vunpack.c.h.b16 %v562
      %v595 = vunpack.c.l.b16 %v563
      %v596 = vunpack.c.h.b16 %v563
      %v597 = vpack.c.b16 %v585, %v581
      %v598 = vpack.c.b16 %v586, %v582
      %v599 = vpack.c.b16 %v587, %v583
      %v600 = vpack.c.b16 %v588, %v584
      %v601 = vpack.c.b16 %v593, %v589
      %v602 = vpack.c.b16 %v594, %v590
      %v603 = vpack.c.b16 %v595, %v591
      %v604 = vpack.c.b16 %v596, %v592
      %vm613 = vcmask 261120
      %v615 = vsel %vm613, %v548, 0
      %v618 = vsel %vm613, %v549, 0
      %v621 = vsel %vm613, %v550, 0
      %v624 = vsel %vm613, %v551, 0
      %v627 = vsel %vm613, %v552, 0
      %v630 = vsel %vm613, %v553, 0
      %v633 = vsel %vm613, %v554, 0
      %635 = vmatpush.bf16.msra.mxu0 0
      %636 = vmatpush.bf16.msra.mxu0 0
      %637 = vmatpush.bf16.msra.mxu0 0
      %638 = vmatpush.bf16.msra.mxu0 0
      %639 = vmatpush.bf16.msra.mxu0 0
      %640 = vmatpush.bf16.msra.mxu0 0
      %641 = vmatpush.bf16.msra.mxu0 %v601
      %642 = vmatpush.bf16.msra.mxu0 %v597
      %643 = vmatmul.bf16.gmra.mxu0 %v615
      %v644 = vpop.f32.mrf.mxu0
      %v645 = vadd.f32 0.0, %v644
      %v646 = vpop.f32.mrf.mxu0
      %v647 = vadd.f32 0.0, %v646
      %648 = vmatmul.bf16.gmra.mxu0 %v618
      %v649 = vpop.f32.mrf.mxu0
      %v650 = vadd.f32 0.0, %v649
      %v651 = vpop.f32.mrf.mxu0
      %v652 = vadd.f32 0.0, %v651
      %653 = vmatmul.bf16.gmra.mxu0 %v621
      %v654 = vpop.f32.mrf.mxu0
      %v655 = vadd.f32 0.0, %v654
      %v656 = vpop.f32.mrf.mxu0
      %v657 = vadd.f32 0.0, %v656
      %658 = vmatmul.bf16.gmra.mxu0 %v624
      %v659 = vpop.f32.mrf.mxu0
      %v660 = vadd.f32 0.0, %v659
      %v661 = vpop.f32.mrf.mxu0
      %v662 = vadd.f32 0.0, %v661
      %663 = vmatmul.bf16.gmra.mxu0 %v627
      %v664 = vpop.f32.mrf.mxu0
      %v665 = vadd.f32 0.0, %v664
      %v666 = vpop.f32.mrf.mxu0
      %v667 = vadd.f32 0.0, %v666
      %668 = vmatmul.bf16.gmra.mxu0 %v630
      %v669 = vpop.f32.mrf.mxu0
      %v670 = vadd.f32 0.0, %v669
      %v671 = vpop.f32.mrf.mxu0
      %v672 = vadd.f32 0.0, %v671
      %673 = vmatmul.bf16.gmra.mxu0 %v633
      %v674 = vpop.f32.mrf.mxu0
      %v675 = vadd.f32 0.0, %v674
      %v676 = vpop.f32.mrf.mxu0
      %v677 = vadd.f32 0.0, %v676
      %678 = vdwg.mxu0
      %679 = vmatpush.bf16.msra.mxu0 0
      %680 = vmatpush.bf16.msra.mxu0 0
      %681 = vmatpush.bf16.msra.mxu0 0
      %682 = vmatpush.bf16.msra.mxu0 0
      %683 = vmatpush.bf16.msra.mxu0 0
      %684 = vmatpush.bf16.msra.mxu0 0
      %685 = vmatpush.bf16.msra.mxu0 %v602
      %686 = vmatpush.bf16.msra.mxu0 %v598
      %687 = vmatmul.bf16.gmra.mxu0 %v615
      %v688 = vpop.f32.mrf.mxu0
      %v689 = vadd.f32 0.0, %v688
      %v690 = vpop.f32.mrf.mxu0
      %v691 = vadd.f32 0.0, %v690
      %692 = vmatmul.bf16.gmra.mxu0 %v618
      %v693 = vpop.f32.mrf.mxu0
      %v694 = vadd.f32 0.0, %v693
      %v695 = vpop.f32.mrf.mxu0
      %v696 = vadd.f32 0.0, %v695
      %697 = vmatmul.bf16.gmra.mxu0 %v621
      %v698 = vpop.f32.mrf.mxu0
      %v699 = vadd.f32 0.0, %v698
      %v700 = vpop.f32.mrf.mxu0
      %v701 = vadd.f32 0.0, %v700
      %702 = vmatmul.bf16.gmra.mxu0 %v624
      %v703 = vpop.f32.mrf.mxu0
      %v704 = vadd.f32 0.0, %v703
      %v705 = vpop.f32.mrf.mxu0
      %v706 = vadd.f32 0.0, %v705
      %707 = vmatmul.bf16.gmra.mxu0 %v627
      %v708 = vpop.f32.mrf.mxu0
      %v709 = vadd.f32 0.0, %v708
      %v710 = vpop.f32.mrf.mxu0
      %v711 = vadd.f32 0.0, %v710
      %712 = vmatmul.bf16.gmra.mxu0 %v630
      %v713 = vpop.f32.mrf.mxu0
      %v714 = vadd.f32 0.0, %v713
      %v715 = vpop.f32.mrf.mxu0
      %v716 = vadd.f32 0.0, %v715
      %717 = vmatmul.bf16.gmra.mxu0 %v633
      %v718 = vpop.f32.mrf.mxu0
      %v719 = vadd.f32 0.0, %v718
      %v720 = vpop.f32.mrf.mxu0
      %v721 = vadd.f32 0.0, %v720
      %722 = vdwg.mxu0
      %723 = vmatpush.bf16.msra.mxu0 0
      %724 = vmatpush.bf16.msra.mxu0 0
      %725 = vmatpush.bf16.msra.mxu0 0
      %726 = vmatpush.bf16.msra.mxu0 0
      %727 = vmatpush.bf16.msra.mxu0 0
      %728 = vmatpush.bf16.msra.mxu0 0
      %729 = vmatpush.bf16.msra.mxu0 %v603
      %730 = vmatpush.bf16.msra.mxu0 %v599
      %731 = vmatmul.bf16.gmra.mxu0 %v615
      %v732 = vpop.f32.mrf.mxu0
      %v733 = vadd.f32 0.0, %v732
      %v734 = vpop.f32.mrf.mxu0
      %v735 = vadd.f32 0.0, %v734
      %736 = vmatmul.bf16.gmra.mxu0 %v618
      %v737 = vpop.f32.mrf.mxu0
      %v738 = vadd.f32 0.0, %v737
      %v739 = vpop.f32.mrf.mxu0
      %v740 = vadd.f32 0.0, %v739
      %741 = vmatmul.bf16.gmra.mxu0 %v621
      %v742 = vpop.f32.mrf.mxu0
      %v743 = vadd.f32 0.0, %v742
      %v744 = vpop.f32.mrf.mxu0
      %v745 = vadd.f32 0.0, %v744
      %746 = vmatmul.bf16.gmra.mxu0 %v624
      %v747 = vpop.f32.mrf.mxu0
      %v748 = vadd.f32 0.0, %v747
      %v749 = vpop.f32.mrf.mxu0
      %v750 = vadd.f32 0.0, %v749
      %751 = vmatmul.bf16.gmra.mxu0 %v627
      %v752 = vpop.f32.mrf.mxu0
      %v753 = vadd.f32 0.0, %v752
      %v754 = vpop.f32.mrf.mxu0
      %v755 = vadd.f32 0.0, %v754
      %756 = vmatmul.bf16.gmra.mxu0 %v630
      %v757 = vpop.f32.mrf.mxu0
      %v758 = vadd.f32 0.0, %v757
      %v759 = vpop.f32.mrf.mxu0
      %v760 = vadd.f32 0.0, %v759
      %761 = vmatmul.bf16.gmra.mxu0 %v633
      %v762 = vpop.f32.mrf.mxu0
      %v763 = vadd.f32 0.0, %v762
      %v764 = vpop.f32.mrf.mxu0
      %v765 = vadd.f32 0.0, %v764
      %766 = vdwg.mxu0
      %767 = vmatpush.bf16.msra.mxu0 0
      %768 = vmatpush.bf16.msra.mxu0 0
      %769 = vmatpush.bf16.msra.mxu0 0
      %770 = vmatpush.bf16.msra.mxu0 0
      %771 = vmatpush.bf16.msra.mxu0 0
      %772 = vmatpush.bf16.msra.mxu0 0
      %773 = vmatpush.bf16.msra.mxu0 %v604
      %774 = vmatpush.bf16.msra.mxu0 %v600
      %775 = vmatmul.bf16.gmra.mxu0 %v615
      %v776 = vpop.f32.mrf.mxu0
      %v777 = vadd.f32 0.0, %v776
      %v778 = vpop.f32.mrf.mxu0
      %v779 = vadd.f32 0.0, %v778
      %780 = vmatmul.bf16.gmra.mxu0 %v618
      %v781 = vpop.f32.mrf.mxu0
      %v782 = vadd.f32 0.0, %v781
      %v783 = vpop.f32.mrf.mxu0
      %v784 = vadd.f32 0.0, %v783
      %785 = vmatmul.bf16.gmra.mxu0 %v621
      %v786 = vpop.f32.mrf.mxu0
      %v787 = vadd.f32 0.0, %v786
      %v788 = vpop.f32.mrf.mxu0
      %v789 = vadd.f32 0.0, %v788
      %790 = vmatmul.bf16.gmra.mxu0 %v624
      %v791 = vpop.f32.mrf.mxu0
      %v792 = vadd.f32 0.0, %v791
      %v793 = vpop.f32.mrf.mxu0
      %v794 = vadd.f32 0.0, %v793
      %795 = vmatmul.bf16.gmra.mxu0 %v627
      %v796 = vpop.f32.mrf.mxu0
      %v797 = vadd.f32 0.0, %v796
      %v798 = vpop.f32.mrf.mxu0
      %v799 = vadd.f32 0.0, %v798
      %800 = vmatmul.bf16.gmra.mxu0 %v630
      %v801 = vpop.f32.mrf.mxu0
      %v802 = vadd.f32 0.0, %v801
      %v803 = vpop.f32.mrf.mxu0
      %v804 = vadd.f32 0.0, %v803
      %805 = vmatmul.bf16.gmra.mxu0 %v633
      %v806 = vpop.f32.mrf.mxu0
      %v807 = vadd.f32 0.0, %v806
      %v808 = vpop.f32.mrf.mxu0
      %v809 = vadd.f32 0.0, %v808
      %810 = vdwg.mxu0
      %v819 = vunpack.c.l.b16 %v525
      %v820 = vunpack.c.h.b16 %v525
      %v821 = vunpack.c.l.b16 %v526
      %v822 = vunpack.c.h.b16 %v526
      %v823 = vunpack.c.l.b16 %v527
      %v824 = vunpack.c.h.b16 %v527
      %v825 = vunpack.c.l.b16 %v528
      %v826 = vunpack.c.h.b16 %v528
      %v827 = vunpack.c.l.b16 %v529
      %v828 = vunpack.c.h.b16 %v529
      %v829 = vunpack.c.l.b16 %v530
      %v830 = vunpack.c.h.b16 %v530
      %v831 = vunpack.c.l.b16 %v531
      %v832 = vunpack.c.h.b16 %v531
      %v833 = vunpack.c.l.b16 %v532
      %v834 = vunpack.c.h.b16 %v532
      %v835 = vpack.c.b16 %v823, %v819
      %v836 = vpack.c.b16 %v824, %v820
      %v837 = vpack.c.b16 %v825, %v821
      %v838 = vpack.c.b16 %v826, %v822
      %v839 = vpack.c.b16 %v831, %v827
      %v840 = vpack.c.b16 %v832, %v828
      %v841 = vpack.c.b16 %v833, %v829
      %v842 = vpack.c.b16 %v834, %v830
      %v852 = vsel %vm613, %v541, 0
      %v855 = vsel %vm613, %v542, 0
      %v858 = vsel %vm613, %v543, 0
      %v861 = vsel %vm613, %v544, 0
      %v864 = vsel %vm613, %v545, 0
      %v867 = vsel %vm613, %v546, 0
      %v870 = vsel %vm613, %v547, 0
      %872 = vmatpush.bf16.msra.mxu0 0
      %873 = vmatpush.bf16.msra.mxu0 0
      %874 = vmatpush.bf16.msra.mxu0 0
      %875 = vmatpush.bf16.msra.mxu0 0
      %876 = vmatpush.bf16.msra.mxu0 0
      %877 = vmatpush.bf16.msra.mxu0 0
      %878 = vmatpush.bf16.msra.mxu0 %v839
      %879 = vmatpush.bf16.msra.mxu0 %v835
      %880 = vmatmul.bf16.gmra.mxu0 %v852
      %v881 = vpop.f32.mrf.mxu0
      %v882 = vadd.f32 %v645, %v881
      %v883 = vpop.f32.mrf.mxu0
      %v884 = vadd.f32 %v647, %v883
      %885 = vmatmul.bf16.gmra.mxu0 %v855
      %v886 = vpop.f32.mrf.mxu0
      %v887 = vadd.f32 %v650, %v886
      %v888 = vpop.f32.mrf.mxu0
      %v889 = vadd.f32 %v652, %v888
      %890 = vmatmul.bf16.gmra.mxu0 %v858
      %v891 = vpop.f32.mrf.mxu0
      %v892 = vadd.f32 %v655, %v891
      %v893 = vpop.f32.mrf.mxu0
      %v894 = vadd.f32 %v657, %v893
      %895 = vmatmul.bf16.gmra.mxu0 %v861
      %v896 = vpop.f32.mrf.mxu0
      %v897 = vadd.f32 %v660, %v896
      %v898 = vpop.f32.mrf.mxu0
      %v899 = vadd.f32 %v662, %v898
      %900 = vmatmul.bf16.gmra.mxu0 %v864
      %v901 = vpop.f32.mrf.mxu0
      %v902 = vadd.f32 %v665, %v901
      %v903 = vpop.f32.mrf.mxu0
      %v904 = vadd.f32 %v667, %v903
      %905 = vmatmul.bf16.gmra.mxu0 %v867
      %v906 = vpop.f32.mrf.mxu0
      %v907 = vadd.f32 %v670, %v906
      %v908 = vpop.f32.mrf.mxu0
      %v909 = vadd.f32 %v672, %v908
      %910 = vmatmul.bf16.gmra.mxu0 %v870
      %v911 = vpop.f32.mrf.mxu0
      %v912 = vadd.f32 %v675, %v911
      %v913 = vpop.f32.mrf.mxu0
      %v914 = vadd.f32 %v677, %v913
      %915 = vdwg.mxu0
      %916 = vmatpush.bf16.msra.mxu0 0
      %917 = vmatpush.bf16.msra.mxu0 0
      %918 = vmatpush.bf16.msra.mxu0 0
      %919 = vmatpush.bf16.msra.mxu0 0
      %920 = vmatpush.bf16.msra.mxu0 0
      %921 = vmatpush.bf16.msra.mxu0 0
      %922 = vmatpush.bf16.msra.mxu0 %v840
      %923 = vmatpush.bf16.msra.mxu0 %v836
      %924 = vmatmul.bf16.gmra.mxu0 %v852
      %v925 = vpop.f32.mrf.mxu0
      %v926 = vadd.f32 %v689, %v925
      %v927 = vpop.f32.mrf.mxu0
      %v928 = vadd.f32 %v691, %v927
      %929 = vmatmul.bf16.gmra.mxu0 %v855
      %v930 = vpop.f32.mrf.mxu0
      %v931 = vadd.f32 %v694, %v930
      %v932 = vpop.f32.mrf.mxu0
      %v933 = vadd.f32 %v696, %v932
      %934 = vmatmul.bf16.gmra.mxu0 %v858
      %v935 = vpop.f32.mrf.mxu0
      %v936 = vadd.f32 %v699, %v935
      %v937 = vpop.f32.mrf.mxu0
      %v938 = vadd.f32 %v701, %v937
      %939 = vmatmul.bf16.gmra.mxu0 %v861
      %v940 = vpop.f32.mrf.mxu0
      %v941 = vadd.f32 %v704, %v940
      %v942 = vpop.f32.mrf.mxu0
      %v943 = vadd.f32 %v706, %v942
      %944 = vmatmul.bf16.gmra.mxu0 %v864
      %v945 = vpop.f32.mrf.mxu0
      %v946 = vadd.f32 %v709, %v945
      %v947 = vpop.f32.mrf.mxu0
      %v948 = vadd.f32 %v711, %v947
      %949 = vmatmul.bf16.gmra.mxu0 %v867
      %v950 = vpop.f32.mrf.mxu0
      %v951 = vadd.f32 %v714, %v950
      %v952 = vpop.f32.mrf.mxu0
      %v953 = vadd.f32 %v716, %v952
      %954 = vmatmul.bf16.gmra.mxu0 %v870
      %v955 = vpop.f32.mrf.mxu0
      %v956 = vadd.f32 %v719, %v955
      %v957 = vpop.f32.mrf.mxu0
      %v958 = vadd.f32 %v721, %v957
      %959 = vdwg.mxu0
      %960 = vmatpush.bf16.msra.mxu0 0
      %961 = vmatpush.bf16.msra.mxu0 0
      %962 = vmatpush.bf16.msra.mxu0 0
      %963 = vmatpush.bf16.msra.mxu0 0
      %964 = vmatpush.bf16.msra.mxu0 0
      %965 = vmatpush.bf16.msra.mxu0 0
      %966 = vmatpush.bf16.msra.mxu0 %v841
      %967 = vmatpush.bf16.msra.mxu0 %v837
      %968 = vmatmul.bf16.gmra.mxu0 %v852
      %v969 = vpop.f32.mrf.mxu0
      %v970 = vadd.f32 %v733, %v969
      %v971 = vpop.f32.mrf.mxu0
      %v972 = vadd.f32 %v735, %v971
      %973 = vmatmul.bf16.gmra.mxu0 %v855
      %v974 = vpop.f32.mrf.mxu0
      %v975 = vadd.f32 %v738, %v974
      %v976 = vpop.f32.mrf.mxu0
      %v977 = vadd.f32 %v740, %v976
      %978 = vmatmul.bf16.gmra.mxu0 %v858
      %v979 = vpop.f32.mrf.mxu0
      %v980 = vadd.f32 %v743, %v979
      %v981 = vpop.f32.mrf.mxu0
      %v982 = vadd.f32 %v745, %v981
      %983 = vmatmul.bf16.gmra.mxu0 %v861
      %v984 = vpop.f32.mrf.mxu0
      %v985 = vadd.f32 %v748, %v984
      %v986 = vpop.f32.mrf.mxu0
      %v987 = vadd.f32 %v750, %v986
      %988 = vmatmul.bf16.gmra.mxu0 %v864
      %v989 = vpop.f32.mrf.mxu0
      %v990 = vadd.f32 %v753, %v989
      %v991 = vpop.f32.mrf.mxu0
      %v992 = vadd.f32 %v755, %v991
      %993 = vmatmul.bf16.gmra.mxu0 %v867
      %v994 = vpop.f32.mrf.mxu0
      %v995 = vadd.f32 %v758, %v994
      %v996 = vpop.f32.mrf.mxu0
      %v997 = vadd.f32 %v760, %v996
      %998 = vmatmul.bf16.gmra.mxu0 %v870
      %v999 = vpop.f32.mrf.mxu0
      %v1000 = vadd.f32 %v763, %v999
      %v1001 = vpop.f32.mrf.mxu0
      %v1002 = vadd.f32 %v765, %v1001
      %1003 = vdwg.mxu0
      %1004 = vmatpush.bf16.msra.mxu0 0
      %1005 = vmatpush.bf16.msra.mxu0 0
      %1006 = vmatpush.bf16.msra.mxu0 0
      %1007 = vmatpush.bf16.msra.mxu0 0
      %1008 = vmatpush.bf16.msra.mxu0 0
      %1009 = vmatpush.bf16.msra.mxu0 0
      %1010 = vmatpush.bf16.msra.mxu0 %v842
      %1011 = vmatpush.bf16.msra.mxu0 %v838
      %1012 = vmatmul.bf16.gmra.mxu0 %v852
      %v1013 = vpop.f32.mrf.mxu0
      %v1014 = vadd.f32 %v777, %v1013
      %v1015 = vpop.f32.mrf.mxu0
      %v1016 = vadd.f32 %v779, %v1015
      %1017 = vmatmul.bf16.gmra.mxu0 %v855
      %v1018 = vpop.f32.mrf.mxu0
      %v1019 = vadd.f32 %v782, %v1018
      %v1020 = vpop.f32.mrf.mxu0
      %v1021 = vadd.f32 %v784, %v1020
      %1022 = vmatmul.bf16.gmra.mxu0 %v858
      %v1023 = vpop.f32.mrf.mxu0
      %v1024 = vadd.f32 %v787, %v1023
      %v1025 = vpop.f32.mrf.mxu0
      %v1026 = vadd.f32 %v789, %v1025
      %1027 = vmatmul.bf16.gmra.mxu0 %v861
      %v1028 = vpop.f32.mrf.mxu0
      %v1029 = vadd.f32 %v792, %v1028
      %v1030 = vpop.f32.mrf.mxu0
      %v1031 = vadd.f32 %v794, %v1030
      %1032 = vmatmul.bf16.gmra.mxu0 %v864
      %v1033 = vpop.f32.mrf.mxu0
      %v1034 = vadd.f32 %v797, %v1033
      %v1035 = vpop.f32.mrf.mxu0
      %v1036 = vadd.f32 %v799, %v1035
      %1037 = vmatmul.bf16.gmra.mxu0 %v867
      %v1038 = vpop.f32.mrf.mxu0
      %v1039 = vadd.f32 %v802, %v1038
      %v1040 = vpop.f32.mrf.mxu0
      %v1041 = vadd.f32 %v804, %v1040
      %1042 = vmatmul.bf16.gmra.mxu0 %v870
      %v1043 = vpop.f32.mrf.mxu0
      %v1044 = vadd.f32 %v807, %v1043
      %v1045 = vpop.f32.mrf.mxu0
      %v1046 = vadd.f32 %v809, %v1045
      %1047 = vdwg.mxu0
      %v1056 = vunpack.c.l.b16 %v565
      %v1057 = vunpack.c.h.b16 %v565
      %v1058 = vunpack.c.l.b16 %v566
      %v1059 = vunpack.c.h.b16 %v566
      %v1060 = vunpack.c.l.b16 %v567
      %v1061 = vunpack.c.h.b16 %v567
      %v1062 = vunpack.c.l.b16 %v568
      %v1063 = vunpack.c.h.b16 %v568
      %v1064 = vunpack.c.l.b16 %v569
      %v1065 = vunpack.c.h.b16 %v569
      %v1066 = vunpack.c.l.b16 %v570
      %v1067 = vunpack.c.h.b16 %v570
      %v1068 = vunpack.c.l.b16 %v571
      %v1069 = vunpack.c.h.b16 %v571
      %v1070 = vunpack.c.l.b16 %v572
      %v1071 = vunpack.c.h.b16 %v572
      %v1072 = vpack.c.b16 %v1060, %v1056
      %v1073 = vpack.c.b16 %v1061, %v1057
      %v1074 = vpack.c.b16 %v1062, %v1058
      %v1075 = vpack.c.b16 %v1063, %v1059
      %v1076 = vpack.c.b16 %v1068, %v1064
      %v1077 = vpack.c.b16 %v1069, %v1065
      %v1078 = vpack.c.b16 %v1070, %v1066
      %v1079 = vpack.c.b16 %v1071, %v1067
      %1088 = vmatpush.bf16.msra.mxu0 0
      %1089 = vmatpush.bf16.msra.mxu0 0
      %1090 = vmatpush.bf16.msra.mxu0 0
      %1091 = vmatpush.bf16.msra.mxu0 0
      %1092 = vmatpush.bf16.msra.mxu0 0
      %1093 = vmatpush.bf16.msra.mxu0 0
      %1094 = vmatpush.bf16.msra.mxu0 %v1076
      %1095 = vmatpush.bf16.msra.mxu0 %v1072
      %1096 = vmatmul.bf16.gmra.mxu0 %v615
      %v1097 = vpop.f32.mrf.mxu0
      %v1098 = vadd.f32 0.0, %v1097
      %v1099 = vpop.f32.mrf.mxu0
      %v1100 = vadd.f32 0.0, %v1099
      %1101 = vmatmul.bf16.gmra.mxu0 %v618
      %v1102 = vpop.f32.mrf.mxu0
      %v1103 = vadd.f32 0.0, %v1102
      %v1104 = vpop.f32.mrf.mxu0
      %v1105 = vadd.f32 0.0, %v1104
      %1106 = vmatmul.bf16.gmra.mxu0 %v621
      %v1107 = vpop.f32.mrf.mxu0
      %v1108 = vadd.f32 0.0, %v1107
      %v1109 = vpop.f32.mrf.mxu0
      %v1110 = vadd.f32 0.0, %v1109
      %1111 = vmatmul.bf16.gmra.mxu0 %v624
      %v1112 = vpop.f32.mrf.mxu0
      %v1113 = vadd.f32 0.0, %v1112
      %v1114 = vpop.f32.mrf.mxu0
      %v1115 = vadd.f32 0.0, %v1114
      %1116 = vmatmul.bf16.gmra.mxu0 %v627
      %v1117 = vpop.f32.mrf.mxu0
      %v1118 = vadd.f32 0.0, %v1117
      %v1119 = vpop.f32.mrf.mxu0
      %v1120 = vadd.f32 0.0, %v1119
      %1121 = vmatmul.bf16.gmra.mxu0 %v630
      %v1122 = vpop.f32.mrf.mxu0
      %v1123 = vadd.f32 0.0, %v1122
      %v1124 = vpop.f32.mrf.mxu0
      %v1125 = vadd.f32 0.0, %v1124
      %1126 = vmatmul.bf16.gmra.mxu0 %v633
      %v1127 = vpop.f32.mrf.mxu0
      %v1128 = vadd.f32 0.0, %v1127
      %v1129 = vpop.f32.mrf.mxu0
      %v1130 = vadd.f32 0.0, %v1129
      %1131 = vdwg.mxu0
      %1132 = vmatpush.bf16.msra.mxu0 0
      %1133 = vmatpush.bf16.msra.mxu0 0
      %1134 = vmatpush.bf16.msra.mxu0 0
      %1135 = vmatpush.bf16.msra.mxu0 0
      %1136 = vmatpush.bf16.msra.mxu0 0
      %1137 = vmatpush.bf16.msra.mxu0 0
      %1138 = vmatpush.bf16.msra.mxu0 %v1077
      %1139 = vmatpush.bf16.msra.mxu0 %v1073
      %1140 = vmatmul.bf16.gmra.mxu0 %v615
      %v1141 = vpop.f32.mrf.mxu0
      %v1142 = vadd.f32 0.0, %v1141
      %v1143 = vpop.f32.mrf.mxu0
      %v1144 = vadd.f32 0.0, %v1143
      %1145 = vmatmul.bf16.gmra.mxu0 %v618
      %v1146 = vpop.f32.mrf.mxu0
      %v1147 = vadd.f32 0.0, %v1146
      %v1148 = vpop.f32.mrf.mxu0
      %v1149 = vadd.f32 0.0, %v1148
      %1150 = vmatmul.bf16.gmra.mxu0 %v621
      %v1151 = vpop.f32.mrf.mxu0
      %v1152 = vadd.f32 0.0, %v1151
      %v1153 = vpop.f32.mrf.mxu0
      %v1154 = vadd.f32 0.0, %v1153
      %1155 = vmatmul.bf16.gmra.mxu0 %v624
      %v1156 = vpop.f32.mrf.mxu0
      %v1157 = vadd.f32 0.0, %v1156
      %v1158 = vpop.f32.mrf.mxu0
      %v1159 = vadd.f32 0.0, %v1158
      %1160 = vmatmul.bf16.gmra.mxu0 %v627
      %v1161 = vpop.f32.mrf.mxu0
      %v1162 = vadd.f32 0.0, %v1161
      %v1163 = vpop.f32.mrf.mxu0
      %v1164 = vadd.f32 0.0, %v1163
      %1165 = vmatmul.bf16.gmra.mxu0 %v630
      %v1166 = vpop.f32.mrf.mxu0
      %v1167 = vadd.f32 0.0, %v1166
      %v1168 = vpop.f32.mrf.mxu0
      %v1169 = vadd.f32 0.0, %v1168
      %1170 = vmatmul.bf16.gmra.mxu0 %v633
      %v1171 = vpop.f32.mrf.mxu0
      %v1172 = vadd.f32 0.0, %v1171
      %v1173 = vpop.f32.mrf.mxu0
      %v1174 = vadd.f32 0.0, %v1173
      %1175 = vdwg.mxu0
      %1176 = vmatpush.bf16.msra.mxu0 0
      %1177 = vmatpush.bf16.msra.mxu0 0
      %1178 = vmatpush.bf16.msra.mxu0 0
      %1179 = vmatpush.bf16.msra.mxu0 0
      %1180 = vmatpush.bf16.msra.mxu0 0
      %1181 = vmatpush.bf16.msra.mxu0 0
      %1182 = vmatpush.bf16.msra.mxu0 %v1078
      %1183 = vmatpush.bf16.msra.mxu0 %v1074
      %1184 = vmatmul.bf16.gmra.mxu0 %v615
      %v1185 = vpop.f32.mrf.mxu0
      %v1186 = vadd.f32 0.0, %v1185
      %v1187 = vpop.f32.mrf.mxu0
      %v1188 = vadd.f32 0.0, %v1187
      %1189 = vmatmul.bf16.gmra.mxu0 %v618
      %v1190 = vpop.f32.mrf.mxu0
      %v1191 = vadd.f32 0.0, %v1190
      %v1192 = vpop.f32.mrf.mxu0
      %v1193 = vadd.f32 0.0, %v1192
      %1194 = vmatmul.bf16.gmra.mxu0 %v621
      %v1195 = vpop.f32.mrf.mxu0
      %v1196 = vadd.f32 0.0, %v1195
      %v1197 = vpop.f32.mrf.mxu0
      %v1198 = vadd.f32 0.0, %v1197
      %1199 = vmatmul.bf16.gmra.mxu0 %v624
      %v1200 = vpop.f32.mrf.mxu0
      %v1201 = vadd.f32 0.0, %v1200
      %v1202 = vpop.f32.mrf.mxu0
      %v1203 = vadd.f32 0.0, %v1202
      %1204 = vmatmul.bf16.gmra.mxu0 %v627
      %v1205 = vpop.f32.mrf.mxu0
      %v1206 = vadd.f32 0.0, %v1205
      %v1207 = vpop.f32.mrf.mxu0
      %v1208 = vadd.f32 0.0, %v1207
      %1209 = vmatmul.bf16.gmra.mxu0 %v630
      %v1210 = vpop.f32.mrf.mxu0
      %v1211 = vadd.f32 0.0, %v1210
      %v1212 = vpop.f32.mrf.mxu0
      %v1213 = vadd.f32 0.0, %v1212
      %1214 = vmatmul.bf16.gmra.mxu0 %v633
      %v1215 = vpop.f32.mrf.mxu0
      %v1216 = vadd.f32 0.0, %v1215
      %v1217 = vpop.f32.mrf.mxu0
      %v1218 = vadd.f32 0.0, %v1217
      %1219 = vdwg.mxu0
      %1220 = vmatpush.bf16.msra.mxu0 0
      %1221 = vmatpush.bf16.msra.mxu0 0
      %1222 = vmatpush.bf16.msra.mxu0 0
      %1223 = vmatpush.bf16.msra.mxu0 0
      %1224 = vmatpush.bf16.msra.mxu0 0
      %1225 = vmatpush.bf16.msra.mxu0 0
      %1226 = vmatpush.bf16.msra.mxu0 %v1079
      %1227 = vmatpush.bf16.msra.mxu0 %v1075
      %1228 = vmatmul.bf16.gmra.mxu0 %v615
      %v1229 = vpop.f32.mrf.mxu0
      %v1230 = vadd.f32 0.0, %v1229
      %v1231 = vpop.f32.mrf.mxu0
      %v1232 = vadd.f32 0.0, %v1231
      %1233 = vmatmul.bf16.gmra.mxu0 %v618
      %v1234 = vpop.f32.mrf.mxu0
      %v1235 = vadd.f32 0.0, %v1234
      %v1236 = vpop.f32.mrf.mxu0
      %v1237 = vadd.f32 0.0, %v1236
      %1238 = vmatmul.bf16.gmra.mxu0 %v621
      %v1239 = vpop.f32.mrf.mxu0
      %v1240 = vadd.f32 0.0, %v1239
      %v1241 = vpop.f32.mrf.mxu0
      %v1242 = vadd.f32 0.0, %v1241
      %1243 = vmatmul.bf16.gmra.mxu0 %v624
      %v1244 = vpop.f32.mrf.mxu0
      %v1245 = vadd.f32 0.0, %v1244
      %v1246 = vpop.f32.mrf.mxu0
      %v1247 = vadd.f32 0.0, %v1246
      %1248 = vmatmul.bf16.gmra.mxu0 %v627
      %v1249 = vpop.f32.mrf.mxu0
      %v1250 = vadd.f32 0.0, %v1249
      %v1251 = vpop.f32.mrf.mxu0
      %v1252 = vadd.f32 0.0, %v1251
      %1253 = vmatmul.bf16.gmra.mxu0 %v630
      %v1254 = vpop.f32.mrf.mxu0
      %v1255 = vadd.f32 0.0, %v1254
      %v1256 = vpop.f32.mrf.mxu0
      %v1257 = vadd.f32 0.0, %v1256
      %1258 = vmatmul.bf16.gmra.mxu0 %v633
      %v1259 = vpop.f32.mrf.mxu0
      %v1260 = vadd.f32 0.0, %v1259
      %v1261 = vpop.f32.mrf.mxu0
      %v1262 = vadd.f32 0.0, %v1261
      %1263 = vdwg.mxu0
      %v1272 = vunpack.c.l.b16 %v533
      %v1273 = vunpack.c.h.b16 %v533
      %v1274 = vunpack.c.l.b16 %v534
      %v1275 = vunpack.c.h.b16 %v534
      %v1276 = vunpack.c.l.b16 %v535
      %v1277 = vunpack.c.h.b16 %v535
      %v1278 = vunpack.c.l.b16 %v536
      %v1279 = vunpack.c.h.b16 %v536
      %v1280 = vunpack.c.l.b16 %v537
      %v1281 = vunpack.c.h.b16 %v537
      %v1282 = vunpack.c.l.b16 %v538
      %v1283 = vunpack.c.h.b16 %v538
      %v1284 = vunpack.c.l.b16 %v539
      %v1285 = vunpack.c.h.b16 %v539
      %v1286 = vunpack.c.l.b16 %v540
      %v1287 = vunpack.c.h.b16 %v540
      %v1288 = vpack.c.b16 %v1276, %v1272
      %v1289 = vpack.c.b16 %v1277, %v1273
      %v1290 = vpack.c.b16 %v1278, %v1274
      %v1291 = vpack.c.b16 %v1279, %v1275
      %v1292 = vpack.c.b16 %v1284, %v1280
      %v1293 = vpack.c.b16 %v1285, %v1281
      %v1294 = vpack.c.b16 %v1286, %v1282
      %v1295 = vpack.c.b16 %v1287, %v1283
      %1304 = vmatpush.bf16.msra.mxu0 0
      %1305 = vmatpush.bf16.msra.mxu0 0
      %1306 = vmatpush.bf16.msra.mxu0 0
      %1307 = vmatpush.bf16.msra.mxu0 0
      %1308 = vmatpush.bf16.msra.mxu0 0
      %1309 = vmatpush.bf16.msra.mxu0 0
      %1310 = vmatpush.bf16.msra.mxu0 %v1292
      %1311 = vmatpush.bf16.msra.mxu0 %v1288
      %1312 = vmatmul.bf16.gmra.mxu0 %v852
      %v1313 = vpop.f32.mrf.mxu0
      %v1314 = vadd.f32 %v1098, %v1313
      %v1315 = vpop.f32.mrf.mxu0
      %v1316 = vadd.f32 %v1100, %v1315
      %1317 = vmatmul.bf16.gmra.mxu0 %v855
      %v1318 = vpop.f32.mrf.mxu0
      %v1319 = vadd.f32 %v1103, %v1318
      %v1320 = vpop.f32.mrf.mxu0
      %v1321 = vadd.f32 %v1105, %v1320
      %1322 = vmatmul.bf16.gmra.mxu0 %v858
      %v1323 = vpop.f32.mrf.mxu0
      %v1324 = vadd.f32 %v1108, %v1323
      %v1325 = vpop.f32.mrf.mxu0
      %v1326 = vadd.f32 %v1110, %v1325
      %1327 = vmatmul.bf16.gmra.mxu0 %v861
      %v1328 = vpop.f32.mrf.mxu0
      %v1329 = vadd.f32 %v1113, %v1328
      %v1330 = vpop.f32.mrf.mxu0
      %v1331 = vadd.f32 %v1115, %v1330
      %1332 = vmatmul.bf16.gmra.mxu0 %v864
      %v1333 = vpop.f32.mrf.mxu0
      %v1334 = vadd.f32 %v1118, %v1333
      %v1335 = vpop.f32.mrf.mxu0
      %v1336 = vadd.f32 %v1120, %v1335
      %1337 = vmatmul.bf16.gmra.mxu0 %v867
      %v1338 = vpop.f32.mrf.mxu0
      %v1339 = vadd.f32 %v1123, %v1338
      %v1340 = vpop.f32.mrf.mxu0
      %v1341 = vadd.f32 %v1125, %v1340
      %1342 = vmatmul.bf16.gmra.mxu0 %v870
      %v1343 = vpop.f32.mrf.mxu0
      %v1344 = vadd.f32 %v1128, %v1343
      %v1345 = vpop.f32.mrf.mxu0
      %v1346 = vadd.f32 %v1130, %v1345
      %1347 = vdwg.mxu0
      %1348 = vmatpush.bf16.msra.mxu0 0
      %1349 = vmatpush.bf16.msra.mxu0 0
      %1350 = vmatpush.bf16.msra.mxu0 0
      %1351 = vmatpush.bf16.msra.mxu0 0
      %1352 = vmatpush.bf16.msra.mxu0 0
      %1353 = vmatpush.bf16.msra.mxu0 0
      %1354 = vmatpush.bf16.msra.mxu0 %v1293
      %1355 = vmatpush.bf16.msra.mxu0 %v1289
      %1356 = vmatmul.bf16.gmra.mxu0 %v852
      %v1357 = vpop.f32.mrf.mxu0
      %v1358 = vadd.f32 %v1142, %v1357
      %v1359 = vpop.f32.mrf.mxu0
      %v1360 = vadd.f32 %v1144, %v1359
      %1361 = vmatmul.bf16.gmra.mxu0 %v855
      %v1362 = vpop.f32.mrf.mxu0
      %v1363 = vadd.f32 %v1147, %v1362
      %v1364 = vpop.f32.mrf.mxu0
      %v1365 = vadd.f32 %v1149, %v1364
      %1366 = vmatmul.bf16.gmra.mxu0 %v858
      %v1367 = vpop.f32.mrf.mxu0
      %v1368 = vadd.f32 %v1152, %v1367
      %v1369 = vpop.f32.mrf.mxu0
      %v1370 = vadd.f32 %v1154, %v1369
      %1371 = vmatmul.bf16.gmra.mxu0 %v861
      %v1372 = vpop.f32.mrf.mxu0
      %v1373 = vadd.f32 %v1157, %v1372
      %v1374 = vpop.f32.mrf.mxu0
      %v1375 = vadd.f32 %v1159, %v1374
      %1376 = vmatmul.bf16.gmra.mxu0 %v864
      %v1377 = vpop.f32.mrf.mxu0
      %v1378 = vadd.f32 %v1162, %v1377
      %v1379 = vpop.f32.mrf.mxu0
      %v1380 = vadd.f32 %v1164, %v1379
      %1381 = vmatmul.bf16.gmra.mxu0 %v867
      %v1382 = vpop.f32.mrf.mxu0
      %v1383 = vadd.f32 %v1167, %v1382
      %v1384 = vpop.f32.mrf.mxu0
      %v1385 = vadd.f32 %v1169, %v1384
      %1386 = vmatmul.bf16.gmra.mxu0 %v870
      %v1387 = vpop.f32.mrf.mxu0
      %v1388 = vadd.f32 %v1172, %v1387
      %v1389 = vpop.f32.mrf.mxu0
      %v1390 = vadd.f32 %v1174, %v1389
      %1391 = vdwg.mxu0
      %1392 = vmatpush.bf16.msra.mxu0 0
      %1393 = vmatpush.bf16.msra.mxu0 0
      %1394 = vmatpush.bf16.msra.mxu0 0
      %1395 = vmatpush.bf16.msra.mxu0 0
      %1396 = vmatpush.bf16.msra.mxu0 0
      %1397 = vmatpush.bf16.msra.mxu0 0
      %1398 = vmatpush.bf16.msra.mxu0 %v1294
      %1399 = vmatpush.bf16.msra.mxu0 %v1290
      %1400 = vmatmul.bf16.gmra.mxu0 %v852
      %v1401 = vpop.f32.mrf.mxu0
      %v1402 = vadd.f32 %v1186, %v1401
      %v1403 = vpop.f32.mrf.mxu0
      %v1404 = vadd.f32 %v1188, %v1403
      %1405 = vmatmul.bf16.gmra.mxu0 %v855
      %v1406 = vpop.f32.mrf.mxu0
      %v1407 = vadd.f32 %v1191, %v1406
      %v1408 = vpop.f32.mrf.mxu0
      %v1409 = vadd.f32 %v1193, %v1408
      %1410 = vmatmul.bf16.gmra.mxu0 %v858
      %v1411 = vpop.f32.mrf.mxu0
      %v1412 = vadd.f32 %v1196, %v1411
      %v1413 = vpop.f32.mrf.mxu0
      %v1414 = vadd.f32 %v1198, %v1413
      %1415 = vmatmul.bf16.gmra.mxu0 %v861
      %v1416 = vpop.f32.mrf.mxu0
      %v1417 = vadd.f32 %v1201, %v1416
      %v1418 = vpop.f32.mrf.mxu0
      %v1419 = vadd.f32 %v1203, %v1418
      %1420 = vmatmul.bf16.gmra.mxu0 %v864
      %v1421 = vpop.f32.mrf.mxu0
      %v1422 = vadd.f32 %v1206, %v1421
      %v1423 = vpop.f32.mrf.mxu0
      %v1424 = vadd.f32 %v1208, %v1423
      %1425 = vmatmul.bf16.gmra.mxu0 %v867
      %v1426 = vpop.f32.mrf.mxu0
      %v1427 = vadd.f32 %v1211, %v1426
      %v1428 = vpop.f32.mrf.mxu0
      %v1429 = vadd.f32 %v1213, %v1428
      %1430 = vmatmul.bf16.gmra.mxu0 %v870
      %v1431 = vpop.f32.mrf.mxu0
      %v1432 = vadd.f32 %v1216, %v1431
      %v1433 = vpop.f32.mrf.mxu0
      %v1434 = vadd.f32 %v1218, %v1433
      %1435 = vdwg.mxu0
      %1436 = vmatpush.bf16.msra.mxu0 0
      %1437 = vmatpush.bf16.msra.mxu0 0
      %1438 = vmatpush.bf16.msra.mxu0 0
      %1439 = vmatpush.bf16.msra.mxu0 0
      %1440 = vmatpush.bf16.msra.mxu0 0
      %1441 = vmatpush.bf16.msra.mxu0 0
      %1442 = vmatpush.bf16.msra.mxu0 %v1295
      %1443 = vmatpush.bf16.msra.mxu0 %v1291
      %1444 = vmatmul.bf16.gmra.mxu0 %v852
      %v1445 = vpop.f32.mrf.mxu0
      %v1446 = vadd.f32 %v1230, %v1445
      %v1447 = vpop.f32.mrf.mxu0
      %v1448 = vadd.f32 %v1232, %v1447
      %1449 = vmatmul.bf16.gmra.mxu0 %v855
      %v1450 = vpop.f32.mrf.mxu0
      %v1451 = vadd.f32 %v1235, %v1450
      %v1452 = vpop.f32.mrf.mxu0
      %v1453 = vadd.f32 %v1237, %v1452
      %1454 = vmatmul.bf16.gmra.mxu0 %v858
      %v1455 = vpop.f32.mrf.mxu0
      %v1456 = vadd.f32 %v1240, %v1455
      %v1457 = vpop.f32.mrf.mxu0
      %v1458 = vadd.f32 %v1242, %v1457
      %1459 = vmatmul.bf16.gmra.mxu0 %v861
      %v1460 = vpop.f32.mrf.mxu0
      %v1461 = vadd.f32 %v1245, %v1460
      %v1462 = vpop.f32.mrf.mxu0
      %v1463 = vadd.f32 %v1247, %v1462
      %1464 = vmatmul.bf16.gmra.mxu0 %v864
      %v1465 = vpop.f32.mrf.mxu0
      %v1466 = vadd.f32 %v1250, %v1465
      %v1467 = vpop.f32.mrf.mxu0
      %v1468 = vadd.f32 %v1252, %v1467
      %1469 = vmatmul.bf16.gmra.mxu0 %v867
      %v1470 = vpop.f32.mrf.mxu0
      %v1471 = vadd.f32 %v1255, %v1470
      %v1472 = vpop.f32.mrf.mxu0
      %v1473 = vadd.f32 %v1257, %v1472
      %1474 = vmatmul.bf16.gmra.mxu0 %v870
      %v1475 = vpop.f32.mrf.mxu0
      %v1476 = vadd.f32 %v1260, %v1475
      %v1477 = vpop.f32.mrf.mxu0
      %v1478 = vadd.f32 %v1262, %v1477
      %1479 = vdwg.mxu0
      %v1480 = vpack.c.bf16 %v495, %v494
      %v1481 = vpack.c.bf16 %v497, %v496
      %v1482 = vpack.c.bf16 %v499, %v498
      %v1483 = vpack.c.bf16 %v501, %v500
      %v1484 = vpack.c.bf16 %v503, %v502
      %v1485 = vpack.c.bf16 %v505, %v504
      %v1486 = vpack.c.bf16 %v507, %v506
      %v1488 = vsel %vm613, %v1480, 0
      %v1491 = vsel %vm613, %v1481, 0
      %v1494 = vsel %vm613, %v1482, 0
      %v1497 = vsel %vm613, %v1483, 0
      %v1500 = vsel %vm613, %v1484, 0
      %v1503 = vsel %vm613, %v1485, 0
      %v1506 = vsel %vm613, %v1486, 0
      %1508 = vmatpush.bf16.msra.mxu0 0
      %1509 = vmatpush.bf16.msra.mxu0 0
      %1510 = vmatpush.bf16.msra.mxu0 0
      %1511 = vmatpush.bf16.msra.mxu0 0
      %1512 = vmatpush.bf16.msra.mxu0 0
      %1513 = vmatpush.bf16.msra.mxu0 0
      %1514 = vmatpush.bf16.msra.mxu0 %v601
      %1515 = vmatpush.bf16.msra.mxu0 %v597
      %1516 = vmatmul.bf16.gmra.mxu0 %v1488
      %v1517 = vpop.f32.mrf.mxu0
      %v1518 = vadd.f32 0.0, %v1517
      %v1519 = vpop.f32.mrf.mxu0
      %v1520 = vadd.f32 0.0, %v1519
      %1521 = vmatmul.bf16.gmra.mxu0 %v1491
      %v1522 = vpop.f32.mrf.mxu0
      %v1523 = vadd.f32 0.0, %v1522
      %v1524 = vpop.f32.mrf.mxu0
      %v1525 = vadd.f32 0.0, %v1524
      %1526 = vmatmul.bf16.gmra.mxu0 %v1494
      %v1527 = vpop.f32.mrf.mxu0
      %v1528 = vadd.f32 0.0, %v1527
      %v1529 = vpop.f32.mrf.mxu0
      %v1530 = vadd.f32 0.0, %v1529
      %1531 = vmatmul.bf16.gmra.mxu0 %v1497
      %v1532 = vpop.f32.mrf.mxu0
      %v1533 = vadd.f32 0.0, %v1532
      %v1534 = vpop.f32.mrf.mxu0
      %v1535 = vadd.f32 0.0, %v1534
      %1536 = vmatmul.bf16.gmra.mxu0 %v1500
      %v1537 = vpop.f32.mrf.mxu0
      %v1538 = vadd.f32 0.0, %v1537
      %v1539 = vpop.f32.mrf.mxu0
      %v1540 = vadd.f32 0.0, %v1539
      %1541 = vmatmul.bf16.gmra.mxu0 %v1503
      %v1542 = vpop.f32.mrf.mxu0
      %v1543 = vadd.f32 0.0, %v1542
      %v1544 = vpop.f32.mrf.mxu0
      %v1545 = vadd.f32 0.0, %v1544
      %1546 = vmatmul.bf16.gmra.mxu0 %v1506
      %v1547 = vpop.f32.mrf.mxu0
      %v1548 = vadd.f32 0.0, %v1547
      %v1549 = vpop.f32.mrf.mxu0
      %v1550 = vadd.f32 0.0, %v1549
      %1551 = vdwg.mxu0
      %1552 = vmatpush.bf16.msra.mxu0 0
      %1553 = vmatpush.bf16.msra.mxu0 0
      %1554 = vmatpush.bf16.msra.mxu0 0
      %1555 = vmatpush.bf16.msra.mxu0 0
      %1556 = vmatpush.bf16.msra.mxu0 0
      %1557 = vmatpush.bf16.msra.mxu0 0
      %1558 = vmatpush.bf16.msra.mxu0 %v602
      %1559 = vmatpush.bf16.msra.mxu0 %v598
      %1560 = vmatmul.bf16.gmra.mxu0 %v1488
      %v1561 = vpop.f32.mrf.mxu0
      %v1562 = vadd.f32 0.0, %v1561
      %v1563 = vpop.f32.mrf.mxu0
      %v1564 = vadd.f32 0.0, %v1563
      %1565 = vmatmul.bf16.gmra.mxu0 %v1491
      %v1566 = vpop.f32.mrf.mxu0
      %v1567 = vadd.f32 0.0, %v1566
      %v1568 = vpop.f32.mrf.mxu0
      %v1569 = vadd.f32 0.0, %v1568
      %1570 = vmatmul.bf16.gmra.mxu0 %v1494
      %v1571 = vpop.f32.mrf.mxu0
      %v1572 = vadd.f32 0.0, %v1571
      %v1573 = vpop.f32.mrf.mxu0
      %v1574 = vadd.f32 0.0, %v1573
      %1575 = vmatmul.bf16.gmra.mxu0 %v1497
      %v1576 = vpop.f32.mrf.mxu0
      %v1577 = vadd.f32 0.0, %v1576
      %v1578 = vpop.f32.mrf.mxu0
      %v1579 = vadd.f32 0.0, %v1578
      %1580 = vmatmul.bf16.gmra.mxu0 %v1500
      %v1581 = vpop.f32.mrf.mxu0
      %v1582 = vadd.f32 0.0, %v1581
      %v1583 = vpop.f32.mrf.mxu0
      %v1584 = vadd.f32 0.0, %v1583
      %1585 = vmatmul.bf16.gmra.mxu0 %v1503
      %v1586 = vpop.f32.mrf.mxu0
      %v1587 = vadd.f32 0.0, %v1586
      %v1588 = vpop.f32.mrf.mxu0
      %v1589 = vadd.f32 0.0, %v1588
      %1590 = vmatmul.bf16.gmra.mxu0 %v1506
      %v1591 = vpop.f32.mrf.mxu0
      %v1592 = vadd.f32 0.0, %v1591
      %v1593 = vpop.f32.mrf.mxu0
      %v1594 = vadd.f32 0.0, %v1593
      %1595 = vdwg.mxu0
      %1596 = vmatpush.bf16.msra.mxu0 0
      %1597 = vmatpush.bf16.msra.mxu0 0
      %1598 = vmatpush.bf16.msra.mxu0 0
      %1599 = vmatpush.bf16.msra.mxu0 0
      %1600 = vmatpush.bf16.msra.mxu0 0
      %1601 = vmatpush.bf16.msra.mxu0 0
      %1602 = vmatpush.bf16.msra.mxu0 %v603
      %1603 = vmatpush.bf16.msra.mxu0 %v599
      %1604 = vmatmul.bf16.gmra.mxu0 %v1488
      %v1605 = vpop.f32.mrf.mxu0
      %v1606 = vadd.f32 0.0, %v1605
      %v1607 = vpop.f32.mrf.mxu0
      %v1608 = vadd.f32 0.0, %v1607
      %1609 = vmatmul.bf16.gmra.mxu0 %v1491
      %v1610 = vpop.f32.mrf.mxu0
      %v1611 = vadd.f32 0.0, %v1610
      %v1612 = vpop.f32.mrf.mxu0
      %v1613 = vadd.f32 0.0, %v1612
      %1614 = vmatmul.bf16.gmra.mxu0 %v1494
      %v1615 = vpop.f32.mrf.mxu0
      %v1616 = vadd.f32 0.0, %v1615
      %v1617 = vpop.f32.mrf.mxu0
      %v1618 = vadd.f32 0.0, %v1617
      %1619 = vmatmul.bf16.gmra.mxu0 %v1497
      %v1620 = vpop.f32.mrf.mxu0
      %v1621 = vadd.f32 0.0, %v1620
      %v1622 = vpop.f32.mrf.mxu0
      %v1623 = vadd.f32 0.0, %v1622
      %1624 = vmatmul.bf16.gmra.mxu0 %v1500
      %v1625 = vpop.f32.mrf.mxu0
      %v1626 = vadd.f32 0.0, %v1625
      %v1627 = vpop.f32.mrf.mxu0
      %v1628 = vadd.f32 0.0, %v1627
      %1629 = vmatmul.bf16.gmra.mxu0 %v1503
      %v1630 = vpop.f32.mrf.mxu0
      %v1631 = vadd.f32 0.0, %v1630
      %v1632 = vpop.f32.mrf.mxu0
      %v1633 = vadd.f32 0.0, %v1632
      %1634 = vmatmul.bf16.gmra.mxu0 %v1506
      %v1635 = vpop.f32.mrf.mxu0
      %v1636 = vadd.f32 0.0, %v1635
      %v1637 = vpop.f32.mrf.mxu0
      %v1638 = vadd.f32 0.0, %v1637
      %1639 = vdwg.mxu0
      %1640 = vmatpush.bf16.msra.mxu0 0
      %1641 = vmatpush.bf16.msra.mxu0 0
      %1642 = vmatpush.bf16.msra.mxu0 0
      %1643 = vmatpush.bf16.msra.mxu0 0
      %1644 = vmatpush.bf16.msra.mxu0 0
      %1645 = vmatpush.bf16.msra.mxu0 0
      %1646 = vmatpush.bf16.msra.mxu0 %v604
      %1647 = vmatpush.bf16.msra.mxu0 %v600
      %1648 = vmatmul.bf16.gmra.mxu0 %v1488
      %v1649 = vpop.f32.mrf.mxu0
      %v1650 = vadd.f32 0.0, %v1649
      %v1651 = vpop.f32.mrf.mxu0
      %v1652 = vadd.f32 0.0, %v1651
      %1653 = vmatmul.bf16.gmra.mxu0 %v1491
      %v1654 = vpop.f32.mrf.mxu0
      %v1655 = vadd.f32 0.0, %v1654
      %v1656 = vpop.f32.mrf.mxu0
      %v1657 = vadd.f32 0.0, %v1656
      %1658 = vmatmul.bf16.gmra.mxu0 %v1494
      %v1659 = vpop.f32.mrf.mxu0
      %v1660 = vadd.f32 0.0, %v1659
      %v1661 = vpop.f32.mrf.mxu0
      %v1662 = vadd.f32 0.0, %v1661
      %1663 = vmatmul.bf16.gmra.mxu0 %v1497
      %v1664 = vpop.f32.mrf.mxu0
      %v1665 = vadd.f32 0.0, %v1664
      %v1666 = vpop.f32.mrf.mxu0
      %v1667 = vadd.f32 0.0, %v1666
      %1668 = vmatmul.bf16.gmra.mxu0 %v1500
      %v1669 = vpop.f32.mrf.mxu0
      %v1670 = vadd.f32 0.0, %v1669
      %v1671 = vpop.f32.mrf.mxu0
      %v1672 = vadd.f32 0.0, %v1671
      %1673 = vmatmul.bf16.gmra.mxu0 %v1503
      %v1674 = vpop.f32.mrf.mxu0
      %v1675 = vadd.f32 0.0, %v1674
      %v1676 = vpop.f32.mrf.mxu0
      %v1677 = vadd.f32 0.0, %v1676
      %1678 = vmatmul.bf16.gmra.mxu0 %v1506
      %v1679 = vpop.f32.mrf.mxu0
      %v1680 = vadd.f32 0.0, %v1679
      %v1681 = vpop.f32.mrf.mxu0
      %v1682 = vadd.f32 0.0, %v1681
      %1683 = vdwg.mxu0
      %1684 = vmatpush.bf16.msra.mxu0 0
      %1685 = vmatpush.bf16.msra.mxu0 0
      %1686 = vmatpush.bf16.msra.mxu0 0
      %1687 = vmatpush.bf16.msra.mxu0 0
      %1688 = vmatpush.bf16.msra.mxu0 0
      %1689 = vmatpush.bf16.msra.mxu0 0
      %1690 = vmatpush.bf16.msra.mxu0 %v839
      %1691 = vmatpush.bf16.msra.mxu0 %v835
      %1692 = vmatmul.bf16.gmra.mxu0 %v615
      %v1693 = vpop.f32.mrf.mxu0
      %v1694 = vadd.f32 %v1518, %v1693
      %v1695 = vpop.f32.mrf.mxu0
      %v1696 = vadd.f32 %v1520, %v1695
      %1697 = vmatmul.bf16.gmra.mxu0 %v618
      %v1698 = vpop.f32.mrf.mxu0
      %v1699 = vadd.f32 %v1523, %v1698
      %v1700 = vpop.f32.mrf.mxu0
      %v1701 = vadd.f32 %v1525, %v1700
      %1702 = vmatmul.bf16.gmra.mxu0 %v621
      %v1703 = vpop.f32.mrf.mxu0
      %v1704 = vadd.f32 %v1528, %v1703
      %v1705 = vpop.f32.mrf.mxu0
      %v1706 = vadd.f32 %v1530, %v1705
      %1707 = vmatmul.bf16.gmra.mxu0 %v624
      %v1708 = vpop.f32.mrf.mxu0
      %v1709 = vadd.f32 %v1533, %v1708
      %v1710 = vpop.f32.mrf.mxu0
      %v1711 = vadd.f32 %v1535, %v1710
      %1712 = vmatmul.bf16.gmra.mxu0 %v627
      %v1713 = vpop.f32.mrf.mxu0
      %v1714 = vadd.f32 %v1538, %v1713
      %v1715 = vpop.f32.mrf.mxu0
      %v1716 = vadd.f32 %v1540, %v1715
      %1717 = vmatmul.bf16.gmra.mxu0 %v630
      %v1718 = vpop.f32.mrf.mxu0
      %v1719 = vadd.f32 %v1543, %v1718
      %v1720 = vpop.f32.mrf.mxu0
      %v1721 = vadd.f32 %v1545, %v1720
      %1722 = vmatmul.bf16.gmra.mxu0 %v633
      %v1723 = vpop.f32.mrf.mxu0
      %v1724 = vadd.f32 %v1548, %v1723
      %v1725 = vpop.f32.mrf.mxu0
      %v1726 = vadd.f32 %v1550, %v1725
      %1727 = vdwg.mxu0
      %1728 = vmatpush.bf16.msra.mxu0 0
      %1729 = vmatpush.bf16.msra.mxu0 0
      %1730 = vmatpush.bf16.msra.mxu0 0
      %1731 = vmatpush.bf16.msra.mxu0 0
      %1732 = vmatpush.bf16.msra.mxu0 0
      %1733 = vmatpush.bf16.msra.mxu0 0
      %1734 = vmatpush.bf16.msra.mxu0 %v840
      %1735 = vmatpush.bf16.msra.mxu0 %v836
      %1736 = vmatmul.bf16.gmra.mxu0 %v615
      %v1737 = vpop.f32.mrf.mxu0
      %v1738 = vadd.f32 %v1562, %v1737
      %v1739 = vpop.f32.mrf.mxu0
      %v1740 = vadd.f32 %v1564, %v1739
      %1741 = vmatmul.bf16.gmra.mxu0 %v618
      %v1742 = vpop.f32.mrf.mxu0
      %v1743 = vadd.f32 %v1567, %v1742
      %v1744 = vpop.f32.mrf.mxu0
      %v1745 = vadd.f32 %v1569, %v1744
      %1746 = vmatmul.bf16.gmra.mxu0 %v621
      %v1747 = vpop.f32.mrf.mxu0
      %v1748 = vadd.f32 %v1572, %v1747
      %v1749 = vpop.f32.mrf.mxu0
      %v1750 = vadd.f32 %v1574, %v1749
      %1751 = vmatmul.bf16.gmra.mxu0 %v624
      %v1752 = vpop.f32.mrf.mxu0
      %v1753 = vadd.f32 %v1577, %v1752
      %v1754 = vpop.f32.mrf.mxu0
      %v1755 = vadd.f32 %v1579, %v1754
      %1756 = vmatmul.bf16.gmra.mxu0 %v627
      %v1757 = vpop.f32.mrf.mxu0
      %v1758 = vadd.f32 %v1582, %v1757
      %v1759 = vpop.f32.mrf.mxu0
      %v1760 = vadd.f32 %v1584, %v1759
      %1761 = vmatmul.bf16.gmra.mxu0 %v630
      %v1762 = vpop.f32.mrf.mxu0
      %v1763 = vadd.f32 %v1587, %v1762
      %v1764 = vpop.f32.mrf.mxu0
      %v1765 = vadd.f32 %v1589, %v1764
      %1766 = vmatmul.bf16.gmra.mxu0 %v633
      %v1767 = vpop.f32.mrf.mxu0
      %v1768 = vadd.f32 %v1592, %v1767
      %v1769 = vpop.f32.mrf.mxu0
      %v1770 = vadd.f32 %v1594, %v1769
      %1771 = vdwg.mxu0
      %1772 = vmatpush.bf16.msra.mxu0 0
      %1773 = vmatpush.bf16.msra.mxu0 0
      %1774 = vmatpush.bf16.msra.mxu0 0
      %1775 = vmatpush.bf16.msra.mxu0 0
      %1776 = vmatpush.bf16.msra.mxu0 0
      %1777 = vmatpush.bf16.msra.mxu0 0
      %1778 = vmatpush.bf16.msra.mxu0 %v841
      %1779 = vmatpush.bf16.msra.mxu0 %v837
      %1780 = vmatmul.bf16.gmra.mxu0 %v615
      %v1781 = vpop.f32.mrf.mxu0
      %v1782 = vadd.f32 %v1606, %v1781
      %v1783 = vpop.f32.mrf.mxu0
      %v1784 = vadd.f32 %v1608, %v1783
      %1785 = vmatmul.bf16.gmra.mxu0 %v618
      %v1786 = vpop.f32.mrf.mxu0
      %v1787 = vadd.f32 %v1611, %v1786
      %v1788 = vpop.f32.mrf.mxu0
      %v1789 = vadd.f32 %v1613, %v1788
      %1790 = vmatmul.bf16.gmra.mxu0 %v621
      %v1791 = vpop.f32.mrf.mxu0
      %v1792 = vadd.f32 %v1616, %v1791
      %v1793 = vpop.f32.mrf.mxu0
      %v1794 = vadd.f32 %v1618, %v1793
      %1795 = vmatmul.bf16.gmra.mxu0 %v624
      %v1796 = vpop.f32.mrf.mxu0
      %v1797 = vadd.f32 %v1621, %v1796
      %v1798 = vpop.f32.mrf.mxu0
      %v1799 = vadd.f32 %v1623, %v1798
      %1800 = vmatmul.bf16.gmra.mxu0 %v627
      %v1801 = vpop.f32.mrf.mxu0
      %v1802 = vadd.f32 %v1626, %v1801
      %v1803 = vpop.f32.mrf.mxu0
      %v1804 = vadd.f32 %v1628, %v1803
      %1805 = vmatmul.bf16.gmra.mxu0 %v630
      %v1806 = vpop.f32.mrf.mxu0
      %v1807 = vadd.f32 %v1631, %v1806
      %v1808 = vpop.f32.mrf.mxu0
      %v1809 = vadd.f32 %v1633, %v1808
      %1810 = vmatmul.bf16.gmra.mxu0 %v633
      %v1811 = vpop.f32.mrf.mxu0
      %v1812 = vadd.f32 %v1636, %v1811
      %v1813 = vpop.f32.mrf.mxu0
      %v1814 = vadd.f32 %v1638, %v1813
      %1815 = vdwg.mxu0
      %1816 = vmatpush.bf16.msra.mxu0 0
      %1817 = vmatpush.bf16.msra.mxu0 0
      %1818 = vmatpush.bf16.msra.mxu0 0
      %1819 = vmatpush.bf16.msra.mxu0 0
      %1820 = vmatpush.bf16.msra.mxu0 0
      %1821 = vmatpush.bf16.msra.mxu0 0
      %1822 = vmatpush.bf16.msra.mxu0 %v842
      %1823 = vmatpush.bf16.msra.mxu0 %v838
      %1824 = vmatmul.bf16.gmra.mxu0 %v615
      %v1825 = vpop.f32.mrf.mxu0
      %v1826 = vadd.f32 %v1650, %v1825
      %v1827 = vpop.f32.mrf.mxu0
      %v1828 = vadd.f32 %v1652, %v1827
      %1829 = vmatmul.bf16.gmra.mxu0 %v618
      %v1830 = vpop.f32.mrf.mxu0
      %v1831 = vadd.f32 %v1655, %v1830
      %v1832 = vpop.f32.mrf.mxu0
      %v1833 = vadd.f32 %v1657, %v1832
      %1834 = vmatmul.bf16.gmra.mxu0 %v621
      %v1835 = vpop.f32.mrf.mxu0
      %v1836 = vadd.f32 %v1660, %v1835
      %v1837 = vpop.f32.mrf.mxu0
      %v1838 = vadd.f32 %v1662, %v1837
      %1839 = vmatmul.bf16.gmra.mxu0 %v624
      %v1840 = vpop.f32.mrf.mxu0
      %v1841 = vadd.f32 %v1665, %v1840
      %v1842 = vpop.f32.mrf.mxu0
      %v1843 = vadd.f32 %v1667, %v1842
      %1844 = vmatmul.bf16.gmra.mxu0 %v627
      %v1845 = vpop.f32.mrf.mxu0
      %v1846 = vadd.f32 %v1670, %v1845
      %v1847 = vpop.f32.mrf.mxu0
      %v1848 = vadd.f32 %v1672, %v1847
      %1849 = vmatmul.bf16.gmra.mxu0 %v630
      %v1850 = vpop.f32.mrf.mxu0
      %v1851 = vadd.f32 %v1675, %v1850
      %v1852 = vpop.f32.mrf.mxu0
      %v1853 = vadd.f32 %v1677, %v1852
      %1854 = vmatmul.bf16.gmra.mxu0 %v633
      %v1855 = vpop.f32.mrf.mxu0
      %v1856 = vadd.f32 %v1680, %v1855
      %v1857 = vpop.f32.mrf.mxu0
      %v1858 = vadd.f32 %v1682, %v1857
      %1859 = vdwg.mxu0
      %1860 = vmatpush.bf16.msra.mxu0 0
      %1861 = vmatpush.bf16.msra.mxu0 0
      %1862 = vmatpush.bf16.msra.mxu0 0
      %1863 = vmatpush.bf16.msra.mxu0 0
      %1864 = vmatpush.bf16.msra.mxu0 0
      %1865 = vmatpush.bf16.msra.mxu0 0
      %1866 = vmatpush.bf16.msra.mxu0 %v1076
      %1867 = vmatpush.bf16.msra.mxu0 %v1072
      %1868 = vmatmul.bf16.gmra.mxu0 %v1488
      %v1869 = vpop.f32.mrf.mxu0
      %v1870 = vadd.f32 0.0, %v1869
      %v1871 = vpop.f32.mrf.mxu0
      %v1872 = vadd.f32 0.0, %v1871
      %1873 = vmatmul.bf16.gmra.mxu0 %v1491
      %v1874 = vpop.f32.mrf.mxu0
      %v1875 = vadd.f32 0.0, %v1874
      %v1876 = vpop.f32.mrf.mxu0
      %v1877 = vadd.f32 0.0, %v1876
      %1878 = vmatmul.bf16.gmra.mxu0 %v1494
      %v1879 = vpop.f32.mrf.mxu0
      %v1880 = vadd.f32 0.0, %v1879
      %v1881 = vpop.f32.mrf.mxu0
      %v1882 = vadd.f32 0.0, %v1881
      %1883 = vmatmul.bf16.gmra.mxu0 %v1497
      %v1884 = vpop.f32.mrf.mxu0
      %v1885 = vadd.f32 0.0, %v1884
      %v1886 = vpop.f32.mrf.mxu0
      %v1887 = vadd.f32 0.0, %v1886
      %1888 = vmatmul.bf16.gmra.mxu0 %v1500
      %v1889 = vpop.f32.mrf.mxu0
      %v1890 = vadd.f32 0.0, %v1889
      %v1891 = vpop.f32.mrf.mxu0
      %v1892 = vadd.f32 0.0, %v1891
      %1893 = vmatmul.bf16.gmra.mxu0 %v1503
      %v1894 = vpop.f32.mrf.mxu0
      %v1895 = vadd.f32 0.0, %v1894
      %v1896 = vpop.f32.mrf.mxu0
      %v1897 = vadd.f32 0.0, %v1896
      %1898 = vmatmul.bf16.gmra.mxu0 %v1506
      %v1899 = vpop.f32.mrf.mxu0
      %v1900 = vadd.f32 0.0, %v1899
      %v1901 = vpop.f32.mrf.mxu0
      %v1902 = vadd.f32 0.0, %v1901
      %1903 = vdwg.mxu0
      %1904 = vmatpush.bf16.msra.mxu0 0
      %1905 = vmatpush.bf16.msra.mxu0 0
      %1906 = vmatpush.bf16.msra.mxu0 0
      %1907 = vmatpush.bf16.msra.mxu0 0
      %1908 = vmatpush.bf16.msra.mxu0 0
      %1909 = vmatpush.bf16.msra.mxu0 0
      %1910 = vmatpush.bf16.msra.mxu0 %v1077
      %1911 = vmatpush.bf16.msra.mxu0 %v1073
      %1912 = vmatmul.bf16.gmra.mxu0 %v1488
      %v1913 = vpop.f32.mrf.mxu0
      %v1914 = vadd.f32 0.0, %v1913
      %v1915 = vpop.f32.mrf.mxu0
      %v1916 = vadd.f32 0.0, %v1915
      %1917 = vmatmul.bf16.gmra.mxu0 %v1491
      %v1918 = vpop.f32.mrf.mxu0
      %v1919 = vadd.f32 0.0, %v1918
      %v1920 = vpop.f32.mrf.mxu0
      %v1921 = vadd.f32 0.0, %v1920
      %1922 = vmatmul.bf16.gmra.mxu0 %v1494
      %v1923 = vpop.f32.mrf.mxu0
      %v1924 = vadd.f32 0.0, %v1923
      %v1925 = vpop.f32.mrf.mxu0
      %v1926 = vadd.f32 0.0, %v1925
      %1927 = vmatmul.bf16.gmra.mxu0 %v1497
      %v1928 = vpop.f32.mrf.mxu0
      %v1929 = vadd.f32 0.0, %v1928
      %v1930 = vpop.f32.mrf.mxu0
      %v1931 = vadd.f32 0.0, %v1930
      %1932 = vmatmul.bf16.gmra.mxu0 %v1500
      %v1933 = vpop.f32.mrf.mxu0
      %v1934 = vadd.f32 0.0, %v1933
      %v1935 = vpop.f32.mrf.mxu0
      %v1936 = vadd.f32 0.0, %v1935
      %1937 = vmatmul.bf16.gmra.mxu0 %v1503
      %v1938 = vpop.f32.mrf.mxu0
      %v1939 = vadd.f32 0.0, %v1938
      %v1940 = vpop.f32.mrf.mxu0
      %v1941 = vadd.f32 0.0, %v1940
      %1942 = vmatmul.bf16.gmra.mxu0 %v1506
      %v1943 = vpop.f32.mrf.mxu0
      %v1944 = vadd.f32 0.0, %v1943
      %v1945 = vpop.f32.mrf.mxu0
      %v1946 = vadd.f32 0.0, %v1945
      %1947 = vdwg.mxu0
      %1948 = vmatpush.bf16.msra.mxu0 0
      %1949 = vmatpush.bf16.msra.mxu0 0
      %1950 = vmatpush.bf16.msra.mxu0 0
      %1951 = vmatpush.bf16.msra.mxu0 0
      %1952 = vmatpush.bf16.msra.mxu0 0
      %1953 = vmatpush.bf16.msra.mxu0 0
      %1954 = vmatpush.bf16.msra.mxu0 %v1078
      %1955 = vmatpush.bf16.msra.mxu0 %v1074
      %1956 = vmatmul.bf16.gmra.mxu0 %v1488
      %v1957 = vpop.f32.mrf.mxu0
      %v1958 = vadd.f32 0.0, %v1957
      %v1959 = vpop.f32.mrf.mxu0
      %v1960 = vadd.f32 0.0, %v1959
      %1961 = vmatmul.bf16.gmra.mxu0 %v1491
      %v1962 = vpop.f32.mrf.mxu0
      %v1963 = vadd.f32 0.0, %v1962
      %v1964 = vpop.f32.mrf.mxu0
      %v1965 = vadd.f32 0.0, %v1964
      %1966 = vmatmul.bf16.gmra.mxu0 %v1494
      %v1967 = vpop.f32.mrf.mxu0
      %v1968 = vadd.f32 0.0, %v1967
      %v1969 = vpop.f32.mrf.mxu0
      %v1970 = vadd.f32 0.0, %v1969
      %1971 = vmatmul.bf16.gmra.mxu0 %v1497
      %v1972 = vpop.f32.mrf.mxu0
      %v1973 = vadd.f32 0.0, %v1972
      %v1974 = vpop.f32.mrf.mxu0
      %v1975 = vadd.f32 0.0, %v1974
      %1976 = vmatmul.bf16.gmra.mxu0 %v1500
      %v1977 = vpop.f32.mrf.mxu0
      %v1978 = vadd.f32 0.0, %v1977
      %v1979 = vpop.f32.mrf.mxu0
      %v1980 = vadd.f32 0.0, %v1979
      %1981 = vmatmul.bf16.gmra.mxu0 %v1503
      %v1982 = vpop.f32.mrf.mxu0
      %v1983 = vadd.f32 0.0, %v1982
      %v1984 = vpop.f32.mrf.mxu0
      %v1985 = vadd.f32 0.0, %v1984
      %1986 = vmatmul.bf16.gmra.mxu0 %v1506
      %v1987 = vpop.f32.mrf.mxu0
      %v1988 = vadd.f32 0.0, %v1987
      %v1989 = vpop.f32.mrf.mxu0
      %v1990 = vadd.f32 0.0, %v1989
      %1991 = vdwg.mxu0
      %1992 = vmatpush.bf16.msra.mxu0 0
      %1993 = vmatpush.bf16.msra.mxu0 0
      %1994 = vmatpush.bf16.msra.mxu0 0
      %1995 = vmatpush.bf16.msra.mxu0 0
      %1996 = vmatpush.bf16.msra.mxu0 0
      %1997 = vmatpush.bf16.msra.mxu0 0
      %1998 = vmatpush.bf16.msra.mxu0 %v1079
      %1999 = vmatpush.bf16.msra.mxu0 %v1075
      %2000 = vmatmul.bf16.gmra.mxu0 %v1488
      %v2001 = vpop.f32.mrf.mxu0
      %v2002 = vadd.f32 0.0, %v2001
      %v2003 = vpop.f32.mrf.mxu0
      %v2004 = vadd.f32 0.0, %v2003
      %2005 = vmatmul.bf16.gmra.mxu0 %v1491
      %v2006 = vpop.f32.mrf.mxu0
      %v2007 = vadd.f32 0.0, %v2006
      %v2008 = vpop.f32.mrf.mxu0
      %v2009 = vadd.f32 0.0, %v2008
      %2010 = vmatmul.bf16.gmra.mxu0 %v1494
      %v2011 = vpop.f32.mrf.mxu0
      %v2012 = vadd.f32 0.0, %v2011
      %v2013 = vpop.f32.mrf.mxu0
      %v2014 = vadd.f32 0.0, %v2013
      %2015 = vmatmul.bf16.gmra.mxu0 %v1497
      %v2016 = vpop.f32.mrf.mxu0
      %v2017 = vadd.f32 0.0, %v2016
      %v2018 = vpop.f32.mrf.mxu0
      %v2019 = vadd.f32 0.0, %v2018
      %2020 = vmatmul.bf16.gmra.mxu0 %v1500
      %v2021 = vpop.f32.mrf.mxu0
      %v2022 = vadd.f32 0.0, %v2021
      %v2023 = vpop.f32.mrf.mxu0
      %v2024 = vadd.f32 0.0, %v2023
      %2025 = vmatmul.bf16.gmra.mxu0 %v1503
      %v2026 = vpop.f32.mrf.mxu0
      %v2027 = vadd.f32 0.0, %v2026
      %v2028 = vpop.f32.mrf.mxu0
      %v2029 = vadd.f32 0.0, %v2028
      %2030 = vmatmul.bf16.gmra.mxu0 %v1506
      %v2031 = vpop.f32.mrf.mxu0
      %v2032 = vadd.f32 0.0, %v2031
      %v2033 = vpop.f32.mrf.mxu0
      %v2034 = vadd.f32 0.0, %v2033
      %2035 = vdwg.mxu0
      %2036 = vmatpush.bf16.msra.mxu0 0
      %2037 = vmatpush.bf16.msra.mxu0 0
      %2038 = vmatpush.bf16.msra.mxu0 0
      %2039 = vmatpush.bf16.msra.mxu0 0
      %2040 = vmatpush.bf16.msra.mxu0 0
      %2041 = vmatpush.bf16.msra.mxu0 0
      %2042 = vmatpush.bf16.msra.mxu0 %v1292
      %2043 = vmatpush.bf16.msra.mxu0 %v1288
      %2044 = vmatmul.bf16.gmra.mxu0 %v615
      %v2045 = vpop.f32.mrf.mxu0
      %v2046 = vadd.f32 %v1870, %v2045
      %v2047 = vpop.f32.mrf.mxu0
      %v2048 = vadd.f32 %v1872, %v2047
      %2049 = vmatmul.bf16.gmra.mxu0 %v618
      %v2050 = vpop.f32.mrf.mxu0
      %v2051 = vadd.f32 %v1875, %v2050
      %v2052 = vpop.f32.mrf.mxu0
      %v2053 = vadd.f32 %v1877, %v2052
      %2054 = vmatmul.bf16.gmra.mxu0 %v621
      %v2055 = vpop.f32.mrf.mxu0
      %v2056 = vadd.f32 %v1880, %v2055
      %v2057 = vpop.f32.mrf.mxu0
      %v2058 = vadd.f32 %v1882, %v2057
      %2059 = vmatmul.bf16.gmra.mxu0 %v624
      %v2060 = vpop.f32.mrf.mxu0
      %v2061 = vadd.f32 %v1885, %v2060
      %v2062 = vpop.f32.mrf.mxu0
      %v2063 = vadd.f32 %v1887, %v2062
      %2064 = vmatmul.bf16.gmra.mxu0 %v627
      %v2065 = vpop.f32.mrf.mxu0
      %v2066 = vadd.f32 %v1890, %v2065
      %v2067 = vpop.f32.mrf.mxu0
      %v2068 = vadd.f32 %v1892, %v2067
      %2069 = vmatmul.bf16.gmra.mxu0 %v630
      %v2070 = vpop.f32.mrf.mxu0
      %v2071 = vadd.f32 %v1895, %v2070
      %v2072 = vpop.f32.mrf.mxu0
      %v2073 = vadd.f32 %v1897, %v2072
      %2074 = vmatmul.bf16.gmra.mxu0 %v633
      %v2075 = vpop.f32.mrf.mxu0
      %v2076 = vadd.f32 %v1900, %v2075
      %v2077 = vpop.f32.mrf.mxu0
      %v2078 = vadd.f32 %v1902, %v2077
      %2079 = vdwg.mxu0
      %2080 = vmatpush.bf16.msra.mxu0 0
      %2081 = vmatpush.bf16.msra.mxu0 0
      %2082 = vmatpush.bf16.msra.mxu0 0
      %2083 = vmatpush.bf16.msra.mxu0 0
      %2084 = vmatpush.bf16.msra.mxu0 0
      %2085 = vmatpush.bf16.msra.mxu0 0
      %2086 = vmatpush.bf16.msra.mxu0 %v1293
      %2087 = vmatpush.bf16.msra.mxu0 %v1289
      %2088 = vmatmul.bf16.gmra.mxu0 %v615
      %v2089 = vpop.f32.mrf.mxu0
      %v2090 = vadd.f32 %v1914, %v2089
      %v2091 = vpop.f32.mrf.mxu0
      %v2092 = vadd.f32 %v1916, %v2091
      %2093 = vmatmul.bf16.gmra.mxu0 %v618
      %v2094 = vpop.f32.mrf.mxu0
      %v2095 = vadd.f32 %v1919, %v2094
      %v2096 = vpop.f32.mrf.mxu0
      %v2097 = vadd.f32 %v1921, %v2096
      %2098 = vmatmul.bf16.gmra.mxu0 %v621
      %v2099 = vpop.f32.mrf.mxu0
      %v2100 = vadd.f32 %v1924, %v2099
      %v2101 = vpop.f32.mrf.mxu0
      %v2102 = vadd.f32 %v1926, %v2101
      %2103 = vmatmul.bf16.gmra.mxu0 %v624
      %v2104 = vpop.f32.mrf.mxu0
      %v2105 = vadd.f32 %v1929, %v2104
      %v2106 = vpop.f32.mrf.mxu0
      %v2107 = vadd.f32 %v1931, %v2106
      %2108 = vmatmul.bf16.gmra.mxu0 %v627
      %v2109 = vpop.f32.mrf.mxu0
      %v2110 = vadd.f32 %v1934, %v2109
      %v2111 = vpop.f32.mrf.mxu0
      %v2112 = vadd.f32 %v1936, %v2111
      %2113 = vmatmul.bf16.gmra.mxu0 %v630
      %v2114 = vpop.f32.mrf.mxu0
      %v2115 = vadd.f32 %v1939, %v2114
      %v2116 = vpop.f32.mrf.mxu0
      %v2117 = vadd.f32 %v1941, %v2116
      %2118 = vmatmul.bf16.gmra.mxu0 %v633
      %v2119 = vpop.f32.mrf.mxu0
      %v2120 = vadd.f32 %v1944, %v2119
      %v2121 = vpop.f32.mrf.mxu0
      %v2122 = vadd.f32 %v1946, %v2121
      %2123 = vdwg.mxu0
      %2124 = vmatpush.bf16.msra.mxu0 0
      %2125 = vmatpush.bf16.msra.mxu0 0
      %2126 = vmatpush.bf16.msra.mxu0 0
      %2127 = vmatpush.bf16.msra.mxu0 0
      %2128 = vmatpush.bf16.msra.mxu0 0
      %2129 = vmatpush.bf16.msra.mxu0 0
      %2130 = vmatpush.bf16.msra.mxu0 %v1294
      %2131 = vmatpush.bf16.msra.mxu0 %v1290
      %2132 = vmatmul.bf16.gmra.mxu0 %v615
      %v2133 = vpop.f32.mrf.mxu0
      %v2134 = vadd.f32 %v1958, %v2133
      %v2135 = vpop.f32.mrf.mxu0
      %v2136 = vadd.f32 %v1960, %v2135
      %2137 = vmatmul.bf16.gmra.mxu0 %v618
      %v2138 = vpop.f32.mrf.mxu0
      %v2139 = vadd.f32 %v1963, %v2138
      %v2140 = vpop.f32.mrf.mxu0
      %v2141 = vadd.f32 %v1965, %v2140
      %2142 = vmatmul.bf16.gmra.mxu0 %v621
      %v2143 = vpop.f32.mrf.mxu0
      %v2144 = vadd.f32 %v1968, %v2143
      %v2145 = vpop.f32.mrf.mxu0
      %v2146 = vadd.f32 %v1970, %v2145
      %2147 = vmatmul.bf16.gmra.mxu0 %v624
      %v2148 = vpop.f32.mrf.mxu0
      %v2149 = vadd.f32 %v1973, %v2148
      %v2150 = vpop.f32.mrf.mxu0
      %v2151 = vadd.f32 %v1975, %v2150
      %2152 = vmatmul.bf16.gmra.mxu0 %v627
      %v2153 = vpop.f32.mrf.mxu0
      %v2154 = vadd.f32 %v1978, %v2153
      %v2155 = vpop.f32.mrf.mxu0
      %v2156 = vadd.f32 %v1980, %v2155
      %2157 = vmatmul.bf16.gmra.mxu0 %v630
      %v2158 = vpop.f32.mrf.mxu0
      %v2159 = vadd.f32 %v1983, %v2158
      %v2160 = vpop.f32.mrf.mxu0
      %v2161 = vadd.f32 %v1985, %v2160
      %2162 = vmatmul.bf16.gmra.mxu0 %v633
      %v2163 = vpop.f32.mrf.mxu0
      %v2164 = vadd.f32 %v1988, %v2163
      %v2165 = vpop.f32.mrf.mxu0
      %v2166 = vadd.f32 %v1990, %v2165
      %2167 = vdwg.mxu0
      %2168 = vmatpush.bf16.msra.mxu0 0
      %2169 = vmatpush.bf16.msra.mxu0 0
      %2170 = vmatpush.bf16.msra.mxu0 0
      %2171 = vmatpush.bf16.msra.mxu0 0
      %2172 = vmatpush.bf16.msra.mxu0 0
      %2173 = vmatpush.bf16.msra.mxu0 0
      %2174 = vmatpush.bf16.msra.mxu0 %v1295
      %2175 = vmatpush.bf16.msra.mxu0 %v1291
      %2176 = vmatmul.bf16.gmra.mxu0 %v615
      %v2177 = vpop.f32.mrf.mxu0
      %v2178 = vadd.f32 %v2002, %v2177
      %v2179 = vpop.f32.mrf.mxu0
      %v2180 = vadd.f32 %v2004, %v2179
      %2181 = vmatmul.bf16.gmra.mxu0 %v618
      %v2182 = vpop.f32.mrf.mxu0
      %v2183 = vadd.f32 %v2007, %v2182
      %v2184 = vpop.f32.mrf.mxu0
      %v2185 = vadd.f32 %v2009, %v2184
      %2186 = vmatmul.bf16.gmra.mxu0 %v621
      %v2187 = vpop.f32.mrf.mxu0
      %v2188 = vadd.f32 %v2012, %v2187
      %v2189 = vpop.f32.mrf.mxu0
      %v2190 = vadd.f32 %v2014, %v2189
      %2191 = vmatmul.bf16.gmra.mxu0 %v624
      %v2192 = vpop.f32.mrf.mxu0
      %v2193 = vadd.f32 %v2017, %v2192
      %v2194 = vpop.f32.mrf.mxu0
      %v2195 = vadd.f32 %v2019, %v2194
      %2196 = vmatmul.bf16.gmra.mxu0 %v627
      %v2197 = vpop.f32.mrf.mxu0
      %v2198 = vadd.f32 %v2022, %v2197
      %v2199 = vpop.f32.mrf.mxu0
      %v2200 = vadd.f32 %v2024, %v2199
      %2201 = vmatmul.bf16.gmra.mxu0 %v630
      %v2202 = vpop.f32.mrf.mxu0
      %v2203 = vadd.f32 %v2027, %v2202
      %v2204 = vpop.f32.mrf.mxu0
      %v2205 = vadd.f32 %v2029, %v2204
      %2206 = vmatmul.bf16.gmra.mxu0 %v633
      %v2207 = vpop.f32.mrf.mxu0
      %v2208 = vadd.f32 %v2032, %v2207
      %v2209 = vpop.f32.mrf.mxu0
      %v2210 = vadd.f32 %v2034, %v2209
      %2211 = vdwg.mxu0
      %s2212 = scalar_lea.vmem %s2, 128
      %v2213 = vld [vmem:[%s2212] sm:$0xff]
      %v2214 = vld [vmem:[%s2212 + $0x8] sm:$0xff]
      %v2215 = vld [vmem:[%s2212 + $0x10] sm:$0xff]
      %v2216 = vld [vmem:[%s2212 + $0x18] sm:$0xff]
      %v2217 = vld [vmem:[%s2212 + $0x20] sm:$0xff]
      %v2218 = vld [vmem:[%s2212 + $0x28] sm:$0xff]
      %v2219 = vld [vmem:[%s2212 + $0x30] sm:$0xff]
      %v2220 = vld [vmem:[%s2212 + $0x38] sm:$0xff]
      %s2221 = scalar_lea.vmem %s3, 128
      %v2222 = vld [vmem:[%s2221] sm:$0xff]
      %v2223 = vld [vmem:[%s2221 + $0x8] sm:$0xff]
      %v2224 = vld [vmem:[%s2221 + $0x10] sm:$0xff]
      %v2225 = vld [vmem:[%s2221 + $0x18] sm:$0xff]
      %v2226 = vld [vmem:[%s2221 + $0x20] sm:$0xff]
      %v2227 = vld [vmem:[%s2221 + $0x28] sm:$0xff]
      %v2228 = vld [vmem:[%s2221 + $0x30] sm:$0xff]
      %v2229 = vld [vmem:[%s2221 + $0x38] sm:$0xff]
      %v2238 = vunpack.c.l.b16 %v2213
      %v2239 = vunpack.c.h.b16 %v2213
      %v2240 = vunpack.c.l.b16 %v2214
      %v2241 = vunpack.c.h.b16 %v2214
      %v2242 = vunpack.c.l.b16 %v2215
      %v2243 = vunpack.c.h.b16 %v2215
      %v2244 = vunpack.c.l.b16 %v2216
      %v2245 = vunpack.c.h.b16 %v2216
      %v2246 = vunpack.c.l.b16 %v2217
      %v2247 = vunpack.c.h.b16 %v2217
      %v2248 = vunpack.c.l.b16 %v2218
      %v2249 = vunpack.c.h.b16 %v2218
      %v2250 = vunpack.c.l.b16 %v2219
      %v2251 = vunpack.c.h.b16 %v2219
      %v2252 = vunpack.c.l.b16 %v2220
      %v2253 = vunpack.c.h.b16 %v2220
      %v2254 = vpack.c.b16 %v2242, %v2238
      %v2255 = vpack.c.b16 %v2243, %v2239
      %v2256 = vpack.c.b16 %v2244, %v2240
      %v2257 = vpack.c.b16 %v2245, %v2241
      %v2258 = vpack.c.b16 %v2250, %v2246
      %v2259 = vpack.c.b16 %v2251, %v2247
      %v2260 = vpack.c.b16 %v2252, %v2248
      %v2261 = vpack.c.b16 %v2253, %v2249
      %2270 = vmatpush.bf16.msra.mxu0 0
      %2271 = vmatpush.bf16.msra.mxu0 0
      %2272 = vmatpush.bf16.msra.mxu0 0
      %2273 = vmatpush.bf16.msra.mxu0 0
      %2274 = vmatpush.bf16.msra.mxu0 0
      %2275 = vmatpush.bf16.msra.mxu0 0
      %2276 = vmatpush.bf16.msra.mxu0 %v2258
      %2277 = vmatpush.bf16.msra.mxu0 %v2254
      %2278 = vmatmul.bf16.gmra.mxu0 %v1488
      %v2279 = vpop.f32.mrf.mxu0
      %v2280 = vadd.f32 0.0, %v2279
      %v2281 = vpop.f32.mrf.mxu0
      %v2282 = vadd.f32 0.0, %v2281
      %2283 = vmatmul.bf16.gmra.mxu0 %v1491
      %v2284 = vpop.f32.mrf.mxu0
      %v2285 = vadd.f32 0.0, %v2284
      %v2286 = vpop.f32.mrf.mxu0
      %v2287 = vadd.f32 0.0, %v2286
      %2288 = vmatmul.bf16.gmra.mxu0 %v1494
      %v2289 = vpop.f32.mrf.mxu0
      %v2290 = vadd.f32 0.0, %v2289
      %v2291 = vpop.f32.mrf.mxu0
      %v2292 = vadd.f32 0.0, %v2291
      %2293 = vmatmul.bf16.gmra.mxu0 %v1497
      %v2294 = vpop.f32.mrf.mxu0
      %v2295 = vadd.f32 0.0, %v2294
      %v2296 = vpop.f32.mrf.mxu0
      %v2297 = vadd.f32 0.0, %v2296
      %2298 = vmatmul.bf16.gmra.mxu0 %v1500
      %v2299 = vpop.f32.mrf.mxu0
      %v2300 = vadd.f32 0.0, %v2299
      %v2301 = vpop.f32.mrf.mxu0
      %v2302 = vadd.f32 0.0, %v2301
      %2303 = vmatmul.bf16.gmra.mxu0 %v1503
      %v2304 = vpop.f32.mrf.mxu0
      %v2305 = vadd.f32 0.0, %v2304
      %v2306 = vpop.f32.mrf.mxu0
      %v2307 = vadd.f32 0.0, %v2306
      %2308 = vmatmul.bf16.gmra.mxu0 %v1506
      %v2309 = vpop.f32.mrf.mxu0
      %v2310 = vadd.f32 0.0, %v2309
      %v2311 = vpop.f32.mrf.mxu0
      %v2312 = vadd.f32 0.0, %v2311
      %2313 = vdwg.mxu0
      %2314 = vmatpush.bf16.msra.mxu0 0
      %2315 = vmatpush.bf16.msra.mxu0 0
      %2316 = vmatpush.bf16.msra.mxu0 0
      %2317 = vmatpush.bf16.msra.mxu0 0
      %2318 = vmatpush.bf16.msra.mxu0 0
      %2319 = vmatpush.bf16.msra.mxu0 0
      %2320 = vmatpush.bf16.msra.mxu0 %v2259
      %2321 = vmatpush.bf16.msra.mxu0 %v2255
      %2322 = vmatmul.bf16.gmra.mxu0 %v1488
      %v2323 = vpop.f32.mrf.mxu0
      %v2324 = vadd.f32 0.0, %v2323
      %v2325 = vpop.f32.mrf.mxu0
      %v2326 = vadd.f32 0.0, %v2325
      %2327 = vmatmul.bf16.gmra.mxu0 %v1491
      %v2328 = vpop.f32.mrf.mxu0
      %v2329 = vadd.f32 0.0, %v2328
      %v2330 = vpop.f32.mrf.mxu0
      %v2331 = vadd.f32 0.0, %v2330
      %2332 = vmatmul.bf16.gmra.mxu0 %v1494
      %v2333 = vpop.f32.mrf.mxu0
      %v2334 = vadd.f32 0.0, %v2333
      %v2335 = vpop.f32.mrf.mxu0
      %v2336 = vadd.f32 0.0, %v2335
      %2337 = vmatmul.bf16.gmra.mxu0 %v1497
      %v2338 = vpop.f32.mrf.mxu0
      %v2339 = vadd.f32 0.0, %v2338
      %v2340 = vpop.f32.mrf.mxu0
      %v2341 = vadd.f32 0.0, %v2340
      %2342 = vmatmul.bf16.gmra.mxu0 %v1500
      %v2343 = vpop.f32.mrf.mxu0
      %v2344 = vadd.f32 0.0, %v2343
      %v2345 = vpop.f32.mrf.mxu0
      %v2346 = vadd.f32 0.0, %v2345
      %2347 = vmatmul.bf16.gmra.mxu0 %v1503
      %v2348 = vpop.f32.mrf.mxu0
      %v2349 = vadd.f32 0.0, %v2348
      %v2350 = vpop.f32.mrf.mxu0
      %v2351 = vadd.f32 0.0, %v2350
      %2352 = vmatmul.bf16.gmra.mxu0 %v1506
      %v2353 = vpop.f32.mrf.mxu0
      %v2354 = vadd.f32 0.0, %v2353
      %v2355 = vpop.f32.mrf.mxu0
      %v2356 = vadd.f32 0.0, %v2355
      %2357 = vdwg.mxu0
      %2358 = vmatpush.bf16.msra.mxu0 0
      %2359 = vmatpush.bf16.msra.mxu0 0
      %2360 = vmatpush.bf16.msra.mxu0 0
      %2361 = vmatpush.bf16.msra.mxu0 0
      %2362 = vmatpush.bf16.msra.mxu0 0
      %2363 = vmatpush.bf16.msra.mxu0 0
      %2364 = vmatpush.bf16.msra.mxu0 %v2260
      %2365 = vmatpush.bf16.msra.mxu0 %v2256
      %2366 = vmatmul.bf16.gmra.mxu0 %v1488
      %v2367 = vpop.f32.mrf.mxu0
      %v2368 = vadd.f32 0.0, %v2367
      %v2369 = vpop.f32.mrf.mxu0
      %v2370 = vadd.f32 0.0, %v2369
      %2371 = vmatmul.bf16.gmra.mxu0 %v1491
      %v2372 = vpop.f32.mrf.mxu0
      %v2373 = vadd.f32 0.0, %v2372
      %v2374 = vpop.f32.mrf.mxu0
      %v2375 = vadd.f32 0.0, %v2374
      %2376 = vmatmul.bf16.gmra.mxu0 %v1494
      %v2377 = vpop.f32.mrf.mxu0
      %v2378 = vadd.f32 0.0, %v2377
      %v2379 = vpop.f32.mrf.mxu0
      %v2380 = vadd.f32 0.0, %v2379
      %2381 = vmatmul.bf16.gmra.mxu0 %v1497
      %v2382 = vpop.f32.mrf.mxu0
      %v2383 = vadd.f32 0.0, %v2382
      %v2384 = vpop.f32.mrf.mxu0
      %v2385 = vadd.f32 0.0, %v2384
      %2386 = vmatmul.bf16.gmra.mxu0 %v1500
      %v2387 = vpop.f32.mrf.mxu0
      %v2388 = vadd.f32 0.0, %v2387
      %v2389 = vpop.f32.mrf.mxu0
      %v2390 = vadd.f32 0.0, %v2389
      %2391 = vmatmul.bf16.gmra.mxu0 %v1503
      %v2392 = vpop.f32.mrf.mxu0
      %v2393 = vadd.f32 0.0, %v2392
      %v2394 = vpop.f32.mrf.mxu0
      %v2395 = vadd.f32 0.0, %v2394
      %2396 = vmatmul.bf16.gmra.mxu0 %v1506
      %v2397 = vpop.f32.mrf.mxu0
      %v2398 = vadd.f32 0.0, %v2397
      %v2399 = vpop.f32.mrf.mxu0
      %v2400 = vadd.f32 0.0, %v2399
      %2401 = vdwg.mxu0
      %2402 = vmatpush.bf16.msra.mxu0 0
      %2403 = vmatpush.bf16.msra.mxu0 0
      %2404 = vmatpush.bf16.msra.mxu0 0
      %2405 = vmatpush.bf16.msra.mxu0 0
      %2406 = vmatpush.bf16.msra.mxu0 0
      %2407 = vmatpush.bf16.msra.mxu0 0
      %2408 = vmatpush.bf16.msra.mxu0 %v2261
      %2409 = vmatpush.bf16.msra.mxu0 %v2257
      %2410 = vmatmul.bf16.gmra.mxu0 %v1488
      %v2411 = vpop.f32.mrf.mxu0
      %v2412 = vadd.f32 0.0, %v2411
      %v2413 = vpop.f32.mrf.mxu0
      %v2414 = vadd.f32 0.0, %v2413
      %2415 = vmatmul.bf16.gmra.mxu0 %v1491
      %v2416 = vpop.f32.mrf.mxu0
      %v2417 = vadd.f32 0.0, %v2416
      %v2418 = vpop.f32.mrf.mxu0
      %v2419 = vadd.f32 0.0, %v2418
      %2420 = vmatmul.bf16.gmra.mxu0 %v1494
      %v2421 = vpop.f32.mrf.mxu0
      %v2422 = vadd.f32 0.0, %v2421
      %v2423 = vpop.f32.mrf.mxu0
      %v2424 = vadd.f32 0.0, %v2423
      %2425 = vmatmul.bf16.gmra.mxu0 %v1497
      %v2426 = vpop.f32.mrf.mxu0
      %v2427 = vadd.f32 0.0, %v2426
      %v2428 = vpop.f32.mrf.mxu0
      %v2429 = vadd.f32 0.0, %v2428
      %2430 = vmatmul.bf16.gmra.mxu0 %v1500
      %v2431 = vpop.f32.mrf.mxu0
      %v2432 = vadd.f32 0.0, %v2431
      %v2433 = vpop.f32.mrf.mxu0
      %v2434 = vadd.f32 0.0, %v2433
      %2435 = vmatmul.bf16.gmra.mxu0 %v1503
      %v2436 = vpop.f32.mrf.mxu0
      %v2437 = vadd.f32 0.0, %v2436
      %v2438 = vpop.f32.mrf.mxu0
      %v2439 = vadd.f32 0.0, %v2438
      %2440 = vmatmul.bf16.gmra.mxu0 %v1506
      %v2441 = vpop.f32.mrf.mxu0
      %v2442 = vadd.f32 0.0, %v2441
      %v2443 = vpop.f32.mrf.mxu0
      %v2444 = vadd.f32 0.0, %v2443
      %2445 = vdwg.mxu0
      %v2446 = vadd.f32 %v882, %v2280
      %v2447 = vadd.f32 %v926, %v2324
      %v2448 = vadd.f32 %v970, %v2368
      %v2449 = vadd.f32 %v1014, %v2412
      %v2450 = vadd.f32 %v884, %v2282
      %v2451 = vadd.f32 %v928, %v2326
      %v2452 = vadd.f32 %v972, %v2370
      %v2453 = vadd.f32 %v1016, %v2414
      %v2454 = vadd.f32 %v887, %v2285
      %v2455 = vadd.f32 %v931, %v2329
      %v2456 = vadd.f32 %v975, %v2373
      %v2457 = vadd.f32 %v1019, %v2417
      %v2458 = vadd.f32 %v889, %v2287
      %v2459 = vadd.f32 %v933, %v2331
      %v2460 = vadd.f32 %v977, %v2375
      %v2461 = vadd.f32 %v1021, %v2419
      %v2462 = vadd.f32 %v892, %v2290
      %v2463 = vadd.f32 %v936, %v2334
      %v2464 = vadd.f32 %v980, %v2378
      %v2465 = vadd.f32 %v1024, %v2422
      %v2466 = vadd.f32 %v894, %v2292
      %v2467 = vadd.f32 %v938, %v2336
      %v2468 = vadd.f32 %v982, %v2380
      %v2469 = vadd.f32 %v1026, %v2424
      %v2470 = vadd.f32 %v897, %v2295
      %v2471 = vadd.f32 %v941, %v2339
      %v2472 = vadd.f32 %v985, %v2383
      %v2473 = vadd.f32 %v1029, %v2427
      %v2474 = vadd.f32 %v899, %v2297
      %v2475 = vadd.f32 %v943, %v2341
      %v2476 = vadd.f32 %v987, %v2385
      %v2477 = vadd.f32 %v1031, %v2429
      %v2478 = vadd.f32 %v902, %v2300
      %v2479 = vadd.f32 %v946, %v2344
      %v2480 = vadd.f32 %v990, %v2388
      %v2481 = vadd.f32 %v1034, %v2432
      %v2482 = vadd.f32 %v904, %v2302
      %v2483 = vadd.f32 %v948, %v2346
      %v2484 = vadd.f32 %v992, %v2390
      %v2485 = vadd.f32 %v1036, %v2434
      %v2486 = vadd.f32 %v907, %v2305
      %v2487 = vadd.f32 %v951, %v2349
      %v2488 = vadd.f32 %v995, %v2393
      %v2489 = vadd.f32 %v1039, %v2437
      %v2490 = vadd.f32 %v909, %v2307
      %v2491 = vadd.f32 %v953, %v2351
      %v2492 = vadd.f32 %v997, %v2395
      %v2493 = vadd.f32 %v1041, %v2439
      %v2494 = vadd.f32 %v912, %v2310
      %v2495 = vadd.f32 %v956, %v2354
      %v2496 = vadd.f32 %v1000, %v2398
      %v2497 = vadd.f32 %v1044, %v2442
      %v2498 = vadd.f32 %v914, %v2312
      %v2499 = vadd.f32 %v958, %v2356
      %v2500 = vadd.f32 %v1002, %v2400
      %v2501 = vadd.f32 %v1046, %v2444
      %v2510 = vunpack.c.l.b16 %v2222
      %v2511 = vunpack.c.h.b16 %v2222
      %v2512 = vunpack.c.l.b16 %v2223
      %v2513 = vunpack.c.h.b16 %v2223
      %v2514 = vunpack.c.l.b16 %v2224
      %v2515 = vunpack.c.h.b16 %v2224
      %v2516 = vunpack.c.l.b16 %v2225
      %v2517 = vunpack.c.h.b16 %v2225
      %v2518 = vunpack.c.l.b16 %v2226
      %v2519 = vunpack.c.h.b16 %v2226
      %v2520 = vunpack.c.l.b16 %v2227
      %v2521 = vunpack.c.h.b16 %v2227
      %v2522 = vunpack.c.l.b16 %v2228
      %v2523 = vunpack.c.h.b16 %v2228
      %v2524 = vunpack.c.l.b16 %v2229
      %v2525 = vunpack.c.h.b16 %v2229
      %v2526 = vpack.c.b16 %v2514, %v2510
      %v2527 = vpack.c.b16 %v2515, %v2511
      %v2528 = vpack.c.b16 %v2516, %v2512
      %v2529 = vpack.c.b16 %v2517, %v2513
      %v2530 = vpack.c.b16 %v2522, %v2518
      %v2531 = vpack.c.b16 %v2523, %v2519
      %v2532 = vpack.c.b16 %v2524, %v2520
      %v2533 = vpack.c.b16 %v2525, %v2521
      %2542 = vmatpush.bf16.msra.mxu0 0
      %2543 = vmatpush.bf16.msra.mxu0 0
      %2544 = vmatpush.bf16.msra.mxu0 0
      %2545 = vmatpush.bf16.msra.mxu0 0
      %2546 = vmatpush.bf16.msra.mxu0 0
      %2547 = vmatpush.bf16.msra.mxu0 0
      %2548 = vmatpush.bf16.msra.mxu0 %v2530
      %2549 = vmatpush.bf16.msra.mxu0 %v2526
      %2550 = vmatmul.bf16.gmra.mxu0 %v1488
      %v2551 = vpop.f32.mrf.mxu0
      %v2552 = vadd.f32 0.0, %v2551
      %v2553 = vpop.f32.mrf.mxu0
      %v2554 = vadd.f32 0.0, %v2553
      %2555 = vmatmul.bf16.gmra.mxu0 %v1491
      %v2556 = vpop.f32.mrf.mxu0
      %v2557 = vadd.f32 0.0, %v2556
      %v2558 = vpop.f32.mrf.mxu0
      %v2559 = vadd.f32 0.0, %v2558
      %2560 = vmatmul.bf16.gmra.mxu0 %v1494
      %v2561 = vpop.f32.mrf.mxu0
      %v2562 = vadd.f32 0.0, %v2561
      %v2563 = vpop.f32.mrf.mxu0
      %v2564 = vadd.f32 0.0, %v2563
      %2565 = vmatmul.bf16.gmra.mxu0 %v1497
      %v2566 = vpop.f32.mrf.mxu0
      %v2567 = vadd.f32 0.0, %v2566
      %v2568 = vpop.f32.mrf.mxu0
      %v2569 = vadd.f32 0.0, %v2568
      %2570 = vmatmul.bf16.gmra.mxu0 %v1500
      %v2571 = vpop.f32.mrf.mxu0
      %v2572 = vadd.f32 0.0, %v2571
      %v2573 = vpop.f32.mrf.mxu0
      %v2574 = vadd.f32 0.0, %v2573
      %2575 = vmatmul.bf16.gmra.mxu0 %v1503
      %v2576 = vpop.f32.mrf.mxu0
      %v2577 = vadd.f32 0.0, %v2576
      %v2578 = vpop.f32.mrf.mxu0
      %v2579 = vadd.f32 0.0, %v2578
      %2580 = vmatmul.bf16.gmra.mxu0 %v1506
      %v2581 = vpop.f32.mrf.mxu0
      %v2582 = vadd.f32 0.0, %v2581
      %v2583 = vpop.f32.mrf.mxu0
      %v2584 = vadd.f32 0.0, %v2583
      %2585 = vdwg.mxu0
      %2586 = vmatpush.bf16.msra.mxu0 0
      %2587 = vmatpush.bf16.msra.mxu0 0
      %2588 = vmatpush.bf16.msra.mxu0 0
      %2589 = vmatpush.bf16.msra.mxu0 0
      %2590 = vmatpush.bf16.msra.mxu0 0
      %2591 = vmatpush.bf16.msra.mxu0 0
      %2592 = vmatpush.bf16.msra.mxu0 %v2531
      %2593 = vmatpush.bf16.msra.mxu0 %v2527
      %2594 = vmatmul.bf16.gmra.mxu0 %v1488
      %v2595 = vpop.f32.mrf.mxu0
      %v2596 = vadd.f32 0.0, %v2595
      %v2597 = vpop.f32.mrf.mxu0
      %v2598 = vadd.f32 0.0, %v2597
      %2599 = vmatmul.bf16.gmra.mxu0 %v1491
      %v2600 = vpop.f32.mrf.mxu0
      %v2601 = vadd.f32 0.0, %v2600
      %v2602 = vpop.f32.mrf.mxu0
      %v2603 = vadd.f32 0.0, %v2602
      %2604 = vmatmul.bf16.gmra.mxu0 %v1494
      %v2605 = vpop.f32.mrf.mxu0
      %v2606 = vadd.f32 0.0, %v2605
      %v2607 = vpop.f32.mrf.mxu0
      %v2608 = vadd.f32 0.0, %v2607
      %2609 = vmatmul.bf16.gmra.mxu0 %v1497
      %v2610 = vpop.f32.mrf.mxu0
      %v2611 = vadd.f32 0.0, %v2610
      %v2612 = vpop.f32.mrf.mxu0
      %v2613 = vadd.f32 0.0, %v2612
      %2614 = vmatmul.bf16.gmra.mxu0 %v1500
      %v2615 = vpop.f32.mrf.mxu0
      %v2616 = vadd.f32 0.0, %v2615
      %v2617 = vpop.f32.mrf.mxu0
      %v2618 = vadd.f32 0.0, %v2617
      %2619 = vmatmul.bf16.gmra.mxu0 %v1503
      %v2620 = vpop.f32.mrf.mxu0
      %v2621 = vadd.f32 0.0, %v2620
      %v2622 = vpop.f32.mrf.mxu0
      %v2623 = vadd.f32 0.0, %v2622
      %2624 = vmatmul.bf16.gmra.mxu0 %v1506
      %v2625 = vpop.f32.mrf.mxu0
      %v2626 = vadd.f32 0.0, %v2625
      %v2627 = vpop.f32.mrf.mxu0
      %v2628 = vadd.f32 0.0, %v2627
      %2629 = vdwg.mxu0
      %2630 = vmatpush.bf16.msra.mxu0 0
      %2631 = vmatpush.bf16.msra.mxu0 0
      %2632 = vmatpush.bf16.msra.mxu0 0
      %2633 = vmatpush.bf16.msra.mxu0 0
      %2634 = vmatpush.bf16.msra.mxu0 0
      %2635 = vmatpush.bf16.msra.mxu0 0
      %2636 = vmatpush.bf16.msra.mxu0 %v2532
      %2637 = vmatpush.bf16.msra.mxu0 %v2528
      %2638 = vmatmul.bf16.gmra.mxu0 %v1488
      %v2639 = vpop.f32.mrf.mxu0
      %v2640 = vadd.f32 0.0, %v2639
      %v2641 = vpop.f32.mrf.mxu0
      %v2642 = vadd.f32 0.0, %v2641
      %2643 = vmatmul.bf16.gmra.mxu0 %v1491
      %v2644 = vpop.f32.mrf.mxu0
      %v2645 = vadd.f32 0.0, %v2644
      %v2646 = vpop.f32.mrf.mxu0
      %v2647 = vadd.f32 0.0, %v2646
      %2648 = vmatmul.bf16.gmra.mxu0 %v1494
      %v2649 = vpop.f32.mrf.mxu0
      %v2650 = vadd.f32 0.0, %v2649
      %v2651 = vpop.f32.mrf.mxu0
      %v2652 = vadd.f32 0.0, %v2651
      %2653 = vmatmul.bf16.gmra.mxu0 %v1497
      %v2654 = vpop.f32.mrf.mxu0
      %v2655 = vadd.f32 0.0, %v2654
      %v2656 = vpop.f32.mrf.mxu0
      %v2657 = vadd.f32 0.0, %v2656
      %2658 = vmatmul.bf16.gmra.mxu0 %v1500
      %v2659 = vpop.f32.mrf.mxu0
      %v2660 = vadd.f32 0.0, %v2659
      %v2661 = vpop.f32.mrf.mxu0
      %v2662 = vadd.f32 0.0, %v2661
      %2663 = vmatmul.bf16.gmra.mxu0 %v1503
      %v2664 = vpop.f32.mrf.mxu0
      %v2665 = vadd.f32 0.0, %v2664
      %v2666 = vpop.f32.mrf.mxu0
      %v2667 = vadd.f32 0.0, %v2666
      %2668 = vmatmul.bf16.gmra.mxu0 %v1506
      %v2669 = vpop.f32.mrf.mxu0
      %v2670 = vadd.f32 0.0, %v2669
      %v2671 = vpop.f32.mrf.mxu0
      %v2672 = vadd.f32 0.0, %v2671
      %2673 = vdwg.mxu0
      %2674 = vmatpush.bf16.msra.mxu0 0
      %2675 = vmatpush.bf16.msra.mxu0 0
      %2676 = vmatpush.bf16.msra.mxu0 0
      %2677 = vmatpush.bf16.msra.mxu0 0
      %2678 = vmatpush.bf16.msra.mxu0 0
      %2679 = vmatpush.bf16.msra.mxu0 0
      %2680 = vmatpush.bf16.msra.mxu0 %v2533
      %2681 = vmatpush.bf16.msra.mxu0 %v2529
      %2682 = vmatmul.bf16.gmra.mxu0 %v1488
      %v2683 = vpop.f32.mrf.mxu0
      %v2684 = vadd.f32 0.0, %v2683
      %v2685 = vpop.f32.mrf.mxu0
      %v2686 = vadd.f32 0.0, %v2685
      %2687 = vmatmul.bf16.gmra.mxu0 %v1491
      %v2688 = vpop.f32.mrf.mxu0
      %v2689 = vadd.f32 0.0, %v2688
      %v2690 = vpop.f32.mrf.mxu0
      %v2691 = vadd.f32 0.0, %v2690
      %2692 = vmatmul.bf16.gmra.mxu0 %v1494
      %v2693 = vpop.f32.mrf.mxu0
      %v2694 = vadd.f32 0.0, %v2693
      %v2695 = vpop.f32.mrf.mxu0
      %v2696 = vadd.f32 0.0, %v2695
      %2697 = vmatmul.bf16.gmra.mxu0 %v1497
      %v2698 = vpop.f32.mrf.mxu0
      %v2699 = vadd.f32 0.0, %v2698
      %v2700 = vpop.f32.mrf.mxu0
      %v2701 = vadd.f32 0.0, %v2700
      %2702 = vmatmul.bf16.gmra.mxu0 %v1500
      %v2703 = vpop.f32.mrf.mxu0
      %v2704 = vadd.f32 0.0, %v2703
      %v2705 = vpop.f32.mrf.mxu0
      %v2706 = vadd.f32 0.0, %v2705
      %2707 = vmatmul.bf16.gmra.mxu0 %v1503
      %v2708 = vpop.f32.mrf.mxu0
      %v2709 = vadd.f32 0.0, %v2708
      %v2710 = vpop.f32.mrf.mxu0
      %v2711 = vadd.f32 0.0, %v2710
      %2712 = vmatmul.bf16.gmra.mxu0 %v1506
      %v2713 = vpop.f32.mrf.mxu0
      %v2714 = vadd.f32 0.0, %v2713
      %v2715 = vpop.f32.mrf.mxu0
      %v2716 = vadd.f32 0.0, %v2715
      %2717 = vdwg.mxu0
      %v2718 = vadd.f32 %v1314, %v2552
      %v2719 = vadd.f32 %v1358, %v2596
      %v2720 = vadd.f32 %v1402, %v2640
      %v2721 = vadd.f32 %v1446, %v2684
      %v2722 = vadd.f32 %v1316, %v2554
      %v2723 = vadd.f32 %v1360, %v2598
      %v2724 = vadd.f32 %v1404, %v2642
      %v2725 = vadd.f32 %v1448, %v2686
      %v2726 = vadd.f32 %v1319, %v2557
      %v2727 = vadd.f32 %v1363, %v2601
      %v2728 = vadd.f32 %v1407, %v2645
      %v2729 = vadd.f32 %v1451, %v2689
      %v2730 = vadd.f32 %v1321, %v2559
      %v2731 = vadd.f32 %v1365, %v2603
      %v2732 = vadd.f32 %v1409, %v2647
      %v2733 = vadd.f32 %v1453, %v2691
      %v2734 = vadd.f32 %v1324, %v2562
      %v2735 = vadd.f32 %v1368, %v2606
      %v2736 = vadd.f32 %v1412, %v2650
      %v2737 = vadd.f32 %v1456, %v2694
      %v2738 = vadd.f32 %v1326, %v2564
      %v2739 = vadd.f32 %v1370, %v2608
      %v2740 = vadd.f32 %v1414, %v2652
      %v2741 = vadd.f32 %v1458, %v2696
      %v2742 = vadd.f32 %v1329, %v2567
      %v2743 = vadd.f32 %v1373, %v2611
      %v2744 = vadd.f32 %v1417, %v2655
      %v2745 = vadd.f32 %v1461, %v2699
      %v2746 = vadd.f32 %v1331, %v2569
      %v2747 = vadd.f32 %v1375, %v2613
      %v2748 = vadd.f32 %v1419, %v2657
      %v2749 = vadd.f32 %v1463, %v2701
      %v2750 = vadd.f32 %v1334, %v2572
      %v2751 = vadd.f32 %v1378, %v2616
      %v2752 = vadd.f32 %v1422, %v2660
      %v2753 = vadd.f32 %v1466, %v2704
      %v2754 = vadd.f32 %v1336, %v2574
      %v2755 = vadd.f32 %v1380, %v2618
      %v2756 = vadd.f32 %v1424, %v2662
      %v2757 = vadd.f32 %v1468, %v2706
      %v2758 = vadd.f32 %v1339, %v2577
      %v2759 = vadd.f32 %v1383, %v2621
      %v2760 = vadd.f32 %v1427, %v2665
      %v2761 = vadd.f32 %v1471, %v2709
      %v2762 = vadd.f32 %v1341, %v2579
      %v2763 = vadd.f32 %v1385, %v2623
      %v2764 = vadd.f32 %v1429, %v2667
      %v2765 = vadd.f32 %v1473, %v2711
      %v2766 = vadd.f32 %v1344, %v2582
      %v2767 = vadd.f32 %v1388, %v2626
      %v2768 = vadd.f32 %v1432, %v2670
      %v2769 = vadd.f32 %v1476, %v2714
      %v2770 = vadd.f32 %v1346, %v2584
      %v2771 = vadd.f32 %v1390, %v2628
      %v2772 = vadd.f32 %v1434, %v2672
      %v2773 = vadd.f32 %v1478, %v2716
      %v2774 = vpack.c.bf16 %v511, %v510
      %v2775 = vpack.c.bf16 %v513, %v512
      %v2776 = vpack.c.bf16 %v515, %v514
      %v2777 = vpack.c.bf16 %v517, %v516
      %v2778 = vpack.c.bf16 %v519, %v518
      %v2779 = vpack.c.bf16 %v521, %v520
      %v2780 = vpack.c.bf16 %v523, %v522
      %v2782 = vsel %vm613, %v2774, 0
      %v2785 = vsel %vm613, %v2775, 0
      %v2788 = vsel %vm613, %v2776, 0
      %v2791 = vsel %vm613, %v2777, 0
      %v2794 = vsel %vm613, %v2778, 0
      %v2797 = vsel %vm613, %v2779, 0
      %v2800 = vsel %vm613, %v2780, 0
      %2802 = vmatpush.bf16.msra.mxu0 0
      %2803 = vmatpush.bf16.msra.mxu0 0
      %2804 = vmatpush.bf16.msra.mxu0 0
      %2805 = vmatpush.bf16.msra.mxu0 0
      %2806 = vmatpush.bf16.msra.mxu0 0
      %2807 = vmatpush.bf16.msra.mxu0 0
      %2808 = vmatpush.bf16.msra.mxu0 %v2258
      %2809 = vmatpush.bf16.msra.mxu0 %v2254
      %2810 = vmatmul.bf16.gmra.mxu0 %v2782
      %v2811 = vpop.f32.mrf.mxu0
      %v2812 = vadd.f32 0.0, %v2811
      %v2813 = vpop.f32.mrf.mxu0
      %v2814 = vadd.f32 0.0, %v2813
      %2815 = vmatmul.bf16.gmra.mxu0 %v2785
      %v2816 = vpop.f32.mrf.mxu0
      %v2817 = vadd.f32 0.0, %v2816
      %v2818 = vpop.f32.mrf.mxu0
      %v2819 = vadd.f32 0.0, %v2818
      %2820 = vmatmul.bf16.gmra.mxu0 %v2788
      %v2821 = vpop.f32.mrf.mxu0
      %v2822 = vadd.f32 0.0, %v2821
      %v2823 = vpop.f32.mrf.mxu0
      %v2824 = vadd.f32 0.0, %v2823
      %2825 = vmatmul.bf16.gmra.mxu0 %v2791
      %v2826 = vpop.f32.mrf.mxu0
      %v2827 = vadd.f32 0.0, %v2826
      %v2828 = vpop.f32.mrf.mxu0
      %v2829 = vadd.f32 0.0, %v2828
      %2830 = vmatmul.bf16.gmra.mxu0 %v2794
      %v2831 = vpop.f32.mrf.mxu0
      %v2832 = vadd.f32 0.0, %v2831
      %v2833 = vpop.f32.mrf.mxu0
      %v2834 = vadd.f32 0.0, %v2833
      %2835 = vmatmul.bf16.gmra.mxu0 %v2797
      %v2836 = vpop.f32.mrf.mxu0
      %v2837 = vadd.f32 0.0, %v2836
      %v2838 = vpop.f32.mrf.mxu0
      %v2839 = vadd.f32 0.0, %v2838
      %2840 = vmatmul.bf16.gmra.mxu0 %v2800
      %v2841 = vpop.f32.mrf.mxu0
      %v2842 = vadd.f32 0.0, %v2841
      %v2843 = vpop.f32.mrf.mxu0
      %v2844 = vadd.f32 0.0, %v2843
      %2845 = vdwg.mxu0
      %2846 = vmatpush.bf16.msra.mxu0 0
      %2847 = vmatpush.bf16.msra.mxu0 0
      %2848 = vmatpush.bf16.msra.mxu0 0
      %2849 = vmatpush.bf16.msra.mxu0 0
      %2850 = vmatpush.bf16.msra.mxu0 0
      %2851 = vmatpush.bf16.msra.mxu0 0
      %2852 = vmatpush.bf16.msra.mxu0 %v2259
      %2853 = vmatpush.bf16.msra.mxu0 %v2255
      %2854 = vmatmul.bf16.gmra.mxu0 %v2782
      %v2855 = vpop.f32.mrf.mxu0
      %v2856 = vadd.f32 0.0, %v2855
      %v2857 = vpop.f32.mrf.mxu0
      %v2858 = vadd.f32 0.0, %v2857
      %2859 = vmatmul.bf16.gmra.mxu0 %v2785
      %v2860 = vpop.f32.mrf.mxu0
      %v2861 = vadd.f32 0.0, %v2860
      %v2862 = vpop.f32.mrf.mxu0
      %v2863 = vadd.f32 0.0, %v2862
      %2864 = vmatmul.bf16.gmra.mxu0 %v2788
      %v2865 = vpop.f32.mrf.mxu0
      %v2866 = vadd.f32 0.0, %v2865
      %v2867 = vpop.f32.mrf.mxu0
      %v2868 = vadd.f32 0.0, %v2867
      %2869 = vmatmul.bf16.gmra.mxu0 %v2791
      %v2870 = vpop.f32.mrf.mxu0
      %v2871 = vadd.f32 0.0, %v2870
      %v2872 = vpop.f32.mrf.mxu0
      %v2873 = vadd.f32 0.0, %v2872
      %2874 = vmatmul.bf16.gmra.mxu0 %v2794
      %v2875 = vpop.f32.mrf.mxu0
      %v2876 = vadd.f32 0.0, %v2875
      %v2877 = vpop.f32.mrf.mxu0
      %v2878 = vadd.f32 0.0, %v2877
      %2879 = vmatmul.bf16.gmra.mxu0 %v2797
      %v2880 = vpop.f32.mrf.mxu0
      %v2881 = vadd.f32 0.0, %v2880
      %v2882 = vpop.f32.mrf.mxu0
      %v2883 = vadd.f32 0.0, %v2882
      %2884 = vmatmul.bf16.gmra.mxu0 %v2800
      %v2885 = vpop.f32.mrf.mxu0
      %v2886 = vadd.f32 0.0, %v2885
      %v2887 = vpop.f32.mrf.mxu0
      %v2888 = vadd.f32 0.0, %v2887
      %2889 = vdwg.mxu0
      %2890 = vmatpush.bf16.msra.mxu0 0
      %2891 = vmatpush.bf16.msra.mxu0 0
      %2892 = vmatpush.bf16.msra.mxu0 0
      %2893 = vmatpush.bf16.msra.mxu0 0
      %2894 = vmatpush.bf16.msra.mxu0 0
      %2895 = vmatpush.bf16.msra.mxu0 0
      %2896 = vmatpush.bf16.msra.mxu0 %v2260
      %2897 = vmatpush.bf16.msra.mxu0 %v2256
      %2898 = vmatmul.bf16.gmra.mxu0 %v2782
      %v2899 = vpop.f32.mrf.mxu0
      %v2900 = vadd.f32 0.0, %v2899
      %v2901 = vpop.f32.mrf.mxu0
      %v2902 = vadd.f32 0.0, %v2901
      %2903 = vmatmul.bf16.gmra.mxu0 %v2785
      %v2904 = vpop.f32.mrf.mxu0
      %v2905 = vadd.f32 0.0, %v2904
      %v2906 = vpop.f32.mrf.mxu0
      %v2907 = vadd.f32 0.0, %v2906
      %2908 = vmatmul.bf16.gmra.mxu0 %v2788
      %v2909 = vpop.f32.mrf.mxu0
      %v2910 = vadd.f32 0.0, %v2909
      %v2911 = vpop.f32.mrf.mxu0
      %v2912 = vadd.f32 0.0, %v2911
      %2913 = vmatmul.bf16.gmra.mxu0 %v2791
      %v2914 = vpop.f32.mrf.mxu0
      %v2915 = vadd.f32 0.0, %v2914
      %v2916 = vpop.f32.mrf.mxu0
      %v2917 = vadd.f32 0.0, %v2916
      %2918 = vmatmul.bf16.gmra.mxu0 %v2794
      %v2919 = vpop.f32.mrf.mxu0
      %v2920 = vadd.f32 0.0, %v2919
      %v2921 = vpop.f32.mrf.mxu0
      %v2922 = vadd.f32 0.0, %v2921
      %2923 = vmatmul.bf16.gmra.mxu0 %v2797
      %v2924 = vpop.f32.mrf.mxu0
      %v2925 = vadd.f32 0.0, %v2924
      %v2926 = vpop.f32.mrf.mxu0
      %v2927 = vadd.f32 0.0, %v2926
      %2928 = vmatmul.bf16.gmra.mxu0 %v2800
      %v2929 = vpop.f32.mrf.mxu0
      %v2930 = vadd.f32 0.0, %v2929
      %v2931 = vpop.f32.mrf.mxu0
      %v2932 = vadd.f32 0.0, %v2931
      %2933 = vdwg.mxu0
      %2934 = vmatpush.bf16.msra.mxu0 0
      %2935 = vmatpush.bf16.msra.mxu0 0
      %2936 = vmatpush.bf16.msra.mxu0 0
      %2937 = vmatpush.bf16.msra.mxu0 0
      %2938 = vmatpush.bf16.msra.mxu0 0
      %2939 = vmatpush.bf16.msra.mxu0 0
      %2940 = vmatpush.bf16.msra.mxu0 %v2261
      %2941 = vmatpush.bf16.msra.mxu0 %v2257
      %2942 = vmatmul.bf16.gmra.mxu0 %v2782
      %v2943 = vpop.f32.mrf.mxu0
      %v2944 = vadd.f32 0.0, %v2943
      %v2945 = vpop.f32.mrf.mxu0
      %v2946 = vadd.f32 0.0, %v2945
      %2947 = vmatmul.bf16.gmra.mxu0 %v2785
      %v2948 = vpop.f32.mrf.mxu0
      %v2949 = vadd.f32 0.0, %v2948
      %v2950 = vpop.f32.mrf.mxu0
      %v2951 = vadd.f32 0.0, %v2950
      %2952 = vmatmul.bf16.gmra.mxu0 %v2788
      %v2953 = vpop.f32.mrf.mxu0
      %v2954 = vadd.f32 0.0, %v2953
      %v2955 = vpop.f32.mrf.mxu0
      %v2956 = vadd.f32 0.0, %v2955
      %2957 = vmatmul.bf16.gmra.mxu0 %v2791
      %v2958 = vpop.f32.mrf.mxu0
      %v2959 = vadd.f32 0.0, %v2958
      %v2960 = vpop.f32.mrf.mxu0
      %v2961 = vadd.f32 0.0, %v2960
      %2962 = vmatmul.bf16.gmra.mxu0 %v2794
      %v2963 = vpop.f32.mrf.mxu0
      %v2964 = vadd.f32 0.0, %v2963
      %v2965 = vpop.f32.mrf.mxu0
      %v2966 = vadd.f32 0.0, %v2965
      %2967 = vmatmul.bf16.gmra.mxu0 %v2797
      %v2968 = vpop.f32.mrf.mxu0
      %v2969 = vadd.f32 0.0, %v2968
      %v2970 = vpop.f32.mrf.mxu0
      %v2971 = vadd.f32 0.0, %v2970
      %2972 = vmatmul.bf16.gmra.mxu0 %v2800
      %v2973 = vpop.f32.mrf.mxu0
      %v2974 = vadd.f32 0.0, %v2973
      %v2975 = vpop.f32.mrf.mxu0
      %v2976 = vadd.f32 0.0, %v2975
      %2977 = vdwg.mxu0
      %v2978 = vadd.f32 %v1694, %v2812
      %v2979 = vadd.f32 %v1738, %v2856
      %v2980 = vadd.f32 %v1782, %v2900
      %v2981 = vadd.f32 %v1826, %v2944
      %v2982 = vadd.f32 %v1696, %v2814
      %v2983 = vadd.f32 %v1740, %v2858
      %v2984 = vadd.f32 %v1784, %v2902
      %v2985 = vadd.f32 %v1828, %v2946
      %v2986 = vadd.f32 %v1699, %v2817
      %v2987 = vadd.f32 %v1743, %v2861
      %v2988 = vadd.f32 %v1787, %v2905
      %v2989 = vadd.f32 %v1831, %v2949
      %v2990 = vadd.f32 %v1701, %v2819
      %v2991 = vadd.f32 %v1745, %v2863
      %v2992 = vadd.f32 %v1789, %v2907
      %v2993 = vadd.f32 %v1833, %v2951
      %v2994 = vadd.f32 %v1704, %v2822
      %v2995 = vadd.f32 %v1748, %v2866
      %v2996 = vadd.f32 %v1792, %v2910
      %v2997 = vadd.f32 %v1836, %v2954
      %v2998 = vadd.f32 %v1706, %v2824
      %v2999 = vadd.f32 %v1750, %v2868
      %v3000 = vadd.f32 %v1794, %v2912
      %v3001 = vadd.f32 %v1838, %v2956
      %v3002 = vadd.f32 %v1709, %v2827
      %v3003 = vadd.f32 %v1753, %v2871
      %v3004 = vadd.f32 %v1797, %v2915
      %v3005 = vadd.f32 %v1841, %v2959
      %v3006 = vadd.f32 %v1711, %v2829
      %v3007 = vadd.f32 %v1755, %v2873
      %v3008 = vadd.f32 %v1799, %v2917
      %v3009 = vadd.f32 %v1843, %v2961
      %v3010 = vadd.f32 %v1714, %v2832
      %v3011 = vadd.f32 %v1758, %v2876
      %v3012 = vadd.f32 %v1802, %v2920
      %v3013 = vadd.f32 %v1846, %v2964
      %v3014 = vadd.f32 %v1716, %v2834
      %v3015 = vadd.f32 %v1760, %v2878
      %v3016 = vadd.f32 %v1804, %v2922
      %v3017 = vadd.f32 %v1848, %v2966
      %v3018 = vadd.f32 %v1719, %v2837
      %v3019 = vadd.f32 %v1763, %v2881
      %v3020 = vadd.f32 %v1807, %v2925
      %v3021 = vadd.f32 %v1851, %v2969
      %v3022 = vadd.f32 %v1721, %v2839
      %v3023 = vadd.f32 %v1765, %v2883
      %v3024 = vadd.f32 %v1809, %v2927
      %v3025 = vadd.f32 %v1853, %v2971
      %v3026 = vadd.f32 %v1724, %v2842
      %v3027 = vadd.f32 %v1768, %v2886
      %v3028 = vadd.f32 %v1812, %v2930
      %v3029 = vadd.f32 %v1856, %v2974
      %v3030 = vadd.f32 %v1726, %v2844
      %v3031 = vadd.f32 %v1770, %v2888
      %v3032 = vadd.f32 %v1814, %v2932
      %v3033 = vadd.f32 %v1858, %v2976
      %3034 = vmatpush.bf16.msra.mxu0 0
      %3035 = vmatpush.bf16.msra.mxu0 0
      %3036 = vmatpush.bf16.msra.mxu0 0
      %3037 = vmatpush.bf16.msra.mxu0 0
      %3038 = vmatpush.bf16.msra.mxu0 0
      %3039 = vmatpush.bf16.msra.mxu0 0
      %3040 = vmatpush.bf16.msra.mxu0 %v2530
      %3041 = vmatpush.bf16.msra.mxu0 %v2526
      %3042 = vmatmul.bf16.gmra.mxu0 %v2782
      %v3043 = vpop.f32.mrf.mxu0
      %v3044 = vadd.f32 0.0, %v3043
      %v3045 = vpop.f32.mrf.mxu0
      %v3046 = vadd.f32 0.0, %v3045
      %3047 = vmatmul.bf16.gmra.mxu0 %v2785
      %v3048 = vpop.f32.mrf.mxu0
      %v3049 = vadd.f32 0.0, %v3048
      %v3050 = vpop.f32.mrf.mxu0
      %v3051 = vadd.f32 0.0, %v3050
      %3052 = vmatmul.bf16.gmra.mxu0 %v2788
      %v3053 = vpop.f32.mrf.mxu0
      %v3054 = vadd.f32 0.0, %v3053
      %v3055 = vpop.f32.mrf.mxu0
      %v3056 = vadd.f32 0.0, %v3055
      %3057 = vmatmul.bf16.gmra.mxu0 %v2791
      %v3058 = vpop.f32.mrf.mxu0
      %v3059 = vadd.f32 0.0, %v3058
      %v3060 = vpop.f32.mrf.mxu0
      %v3061 = vadd.f32 0.0, %v3060
      %3062 = vmatmul.bf16.gmra.mxu0 %v2794
      %v3063 = vpop.f32.mrf.mxu0
      %v3064 = vadd.f32 0.0, %v3063
      %v3065 = vpop.f32.mrf.mxu0
      %v3066 = vadd.f32 0.0, %v3065
      %3067 = vmatmul.bf16.gmra.mxu0 %v2797
      %v3068 = vpop.f32.mrf.mxu0
      %v3069 = vadd.f32 0.0, %v3068
      %v3070 = vpop.f32.mrf.mxu0
      %v3071 = vadd.f32 0.0, %v3070
      %3072 = vmatmul.bf16.gmra.mxu0 %v2800
      %v3073 = vpop.f32.mrf.mxu0
      %v3074 = vadd.f32 0.0, %v3073
      %v3075 = vpop.f32.mrf.mxu0
      %v3076 = vadd.f32 0.0, %v3075
      %3077 = vdwg.mxu0
      %3078 = vmatpush.bf16.msra.mxu0 0
      %3079 = vmatpush.bf16.msra.mxu0 0
      %3080 = vmatpush.bf16.msra.mxu0 0
      %3081 = vmatpush.bf16.msra.mxu0 0
      %3082 = vmatpush.bf16.msra.mxu0 0
      %3083 = vmatpush.bf16.msra.mxu0 0
      %3084 = vmatpush.bf16.msra.mxu0 %v2531
      %3085 = vmatpush.bf16.msra.mxu0 %v2527
      %3086 = vmatmul.bf16.gmra.mxu0 %v2782
      %v3087 = vpop.f32.mrf.mxu0
      %v3088 = vadd.f32 0.0, %v3087
      %v3089 = vpop.f32.mrf.mxu0
      %v3090 = vadd.f32 0.0, %v3089
      %3091 = vmatmul.bf16.gmra.mxu0 %v2785
      %v3092 = vpop.f32.mrf.mxu0
      %v3093 = vadd.f32 0.0, %v3092
      %v3094 = vpop.f32.mrf.mxu0
      %v3095 = vadd.f32 0.0, %v3094
      %3096 = vmatmul.bf16.gmra.mxu0 %v2788
      %v3097 = vpop.f32.mrf.mxu0
      %v3098 = vadd.f32 0.0, %v3097
      %v3099 = vpop.f32.mrf.mxu0
      %v3100 = vadd.f32 0.0, %v3099
      %3101 = vmatmul.bf16.gmra.mxu0 %v2791
      %v3102 = vpop.f32.mrf.mxu0
      %v3103 = vadd.f32 0.0, %v3102
      %v3104 = vpop.f32.mrf.mxu0
      %v3105 = vadd.f32 0.0, %v3104
      %3106 = vmatmul.bf16.gmra.mxu0 %v2794
      %v3107 = vpop.f32.mrf.mxu0
      %v3108 = vadd.f32 0.0, %v3107
      %v3109 = vpop.f32.mrf.mxu0
      %v3110 = vadd.f32 0.0, %v3109
      %3111 = vmatmul.bf16.gmra.mxu0 %v2797
      %v3112 = vpop.f32.mrf.mxu0
      %v3113 = vadd.f32 0.0, %v3112
      %v3114 = vpop.f32.mrf.mxu0
      %v3115 = vadd.f32 0.0, %v3114
      %3116 = vmatmul.bf16.gmra.mxu0 %v2800
      %v3117 = vpop.f32.mrf.mxu0
      %v3118 = vadd.f32 0.0, %v3117
      %v3119 = vpop.f32.mrf.mxu0
      %v3120 = vadd.f32 0.0, %v3119
      %3121 = vdwg.mxu0
      %3122 = vmatpush.bf16.msra.mxu0 0
      %3123 = vmatpush.bf16.msra.mxu0 0
      %3124 = vmatpush.bf16.msra.mxu0 0
      %3125 = vmatpush.bf16.msra.mxu0 0
      %3126 = vmatpush.bf16.msra.mxu0 0
      %3127 = vmatpush.bf16.msra.mxu0 0
      %3128 = vmatpush.bf16.msra.mxu0 %v2532
      %3129 = vmatpush.bf16.msra.mxu0 %v2528
      %3130 = vmatmul.bf16.gmra.mxu0 %v2782
      %v3131 = vpop.f32.mrf.mxu0
      %v3132 = vadd.f32 0.0, %v3131
      %v3133 = vpop.f32.mrf.mxu0
      %v3134 = vadd.f32 0.0, %v3133
      %3135 = vmatmul.bf16.gmra.mxu0 %v2785
      %v3136 = vpop.f32.mrf.mxu0
      %v3137 = vadd.f32 0.0, %v3136
      %v3138 = vpop.f32.mrf.mxu0
      %v3139 = vadd.f32 0.0, %v3138
      %3140 = vmatmul.bf16.gmra.mxu0 %v2788
      %v3141 = vpop.f32.mrf.mxu0
      %v3142 = vadd.f32 0.0, %v3141
      %v3143 = vpop.f32.mrf.mxu0
      %v3144 = vadd.f32 0.0, %v3143
      %3145 = vmatmul.bf16.gmra.mxu0 %v2791
      %v3146 = vpop.f32.mrf.mxu0
      %v3147 = vadd.f32 0.0, %v3146
      %v3148 = vpop.f32.mrf.mxu0
      %v3149 = vadd.f32 0.0, %v3148
      %3150 = vmatmul.bf16.gmra.mxu0 %v2794
      %v3151 = vpop.f32.mrf.mxu0
      %v3152 = vadd.f32 0.0, %v3151
      %v3153 = vpop.f32.mrf.mxu0
      %v3154 = vadd.f32 0.0, %v3153
      %3155 = vmatmul.bf16.gmra.mxu0 %v2797
      %v3156 = vpop.f32.mrf.mxu0
      %v3157 = vadd.f32 0.0, %v3156
      %v3158 = vpop.f32.mrf.mxu0
      %v3159 = vadd.f32 0.0, %v3158
      %3160 = vmatmul.bf16.gmra.mxu0 %v2800
      %v3161 = vpop.f32.mrf.mxu0
      %v3162 = vadd.f32 0.0, %v3161
      %v3163 = vpop.f32.mrf.mxu0
      %v3164 = vadd.f32 0.0, %v3163
      %3165 = vdwg.mxu0
      %3166 = vmatpush.bf16.msra.mxu0 0
      %3167 = vmatpush.bf16.msra.mxu0 0
      %3168 = vmatpush.bf16.msra.mxu0 0
      %3169 = vmatpush.bf16.msra.mxu0 0
      %3170 = vmatpush.bf16.msra.mxu0 0
      %3171 = vmatpush.bf16.msra.mxu0 0
      %3172 = vmatpush.bf16.msra.mxu0 %v2533
      %3173 = vmatpush.bf16.msra.mxu0 %v2529
      %3174 = vmatmul.bf16.gmra.mxu0 %v2782
      %v3175 = vpop.f32.mrf.mxu0
      %v3176 = vadd.f32 0.0, %v3175
      %v3177 = vpop.f32.mrf.mxu0
      %v3178 = vadd.f32 0.0, %v3177
      %3179 = vmatmul.bf16.gmra.mxu0 %v2785
      %v3180 = vpop.f32.mrf.mxu0
      %v3181 = vadd.f32 0.0, %v3180
      %v3182 = vpop.f32.mrf.mxu0
      %v3183 = vadd.f32 0.0, %v3182
      %3184 = vmatmul.bf16.gmra.mxu0 %v2788
      %v3185 = vpop.f32.mrf.mxu0
      %v3186 = vadd.f32 0.0, %v3185
      %v3187 = vpop.f32.mrf.mxu0
      %v3188 = vadd.f32 0.0, %v3187
      %3189 = vmatmul.bf16.gmra.mxu0 %v2791
      %v3190 = vpop.f32.mrf.mxu0
      %v3191 = vadd.f32 0.0, %v3190
      %v3192 = vpop.f32.mrf.mxu0
      %v3193 = vadd.f32 0.0, %v3192
      %3194 = vmatmul.bf16.gmra.mxu0 %v2794
      %v3195 = vpop.f32.mrf.mxu0
      %v3196 = vadd.f32 0.0, %v3195
      %v3197 = vpop.f32.mrf.mxu0
      %v3198 = vadd.f32 0.0, %v3197
      %3199 = vmatmul.bf16.gmra.mxu0 %v2797
      %v3200 = vpop.f32.mrf.mxu0
      %v3201 = vadd.f32 0.0, %v3200
      %v3202 = vpop.f32.mrf.mxu0
      %v3203 = vadd.f32 0.0, %v3202
      %3204 = vmatmul.bf16.gmra.mxu0 %v2800
      %v3205 = vpop.f32.mrf.mxu0
      %v3206 = vadd.f32 0.0, %v3205
      %v3207 = vpop.f32.mrf.mxu0
      %v3208 = vadd.f32 0.0, %v3207
      %3209 = vdwg.mxu0
      %v3210 = vadd.f32 %v2046, %v3044
      %v3211 = vadd.f32 %v2090, %v3088
      %v3212 = vadd.f32 %v2134, %v3132
      %v3213 = vadd.f32 %v2178, %v3176
      %v3214 = vadd.f32 %v2048, %v3046
      %v3215 = vadd.f32 %v2092, %v3090
      %v3216 = vadd.f32 %v2136, %v3134
      %v3217 = vadd.f32 %v2180, %v3178
      %v3218 = vadd.f32 %v2051, %v3049
      %v3219 = vadd.f32 %v2095, %v3093
      %v3220 = vadd.f32 %v2139, %v3137
      %v3221 = vadd.f32 %v2183, %v3181
      %v3222 = vadd.f32 %v2053, %v3051
      %v3223 = vadd.f32 %v2097, %v3095
      %v3224 = vadd.f32 %v2141, %v3139
      %v3225 = vadd.f32 %v2185, %v3183
      %v3226 = vadd.f32 %v2056, %v3054
      %v3227 = vadd.f32 %v2100, %v3098
      %v3228 = vadd.f32 %v2144, %v3142
      %v3229 = vadd.f32 %v2188, %v3186
      %v3230 = vadd.f32 %v2058, %v3056
      %v3231 = vadd.f32 %v2102, %v3100
      %v3232 = vadd.f32 %v2146, %v3144
      %v3233 = vadd.f32 %v2190, %v3188
      %v3234 = vadd.f32 %v2061, %v3059
      %v3235 = vadd.f32 %v2105, %v3103
      %v3236 = vadd.f32 %v2149, %v3147
      %v3237 = vadd.f32 %v2193, %v3191
      %v3238 = vadd.f32 %v2063, %v3061
      %v3239 = vadd.f32 %v2107, %v3105
      %v3240 = vadd.f32 %v2151, %v3149
      %v3241 = vadd.f32 %v2195, %v3193
      %v3242 = vadd.f32 %v2066, %v3064
      %v3243 = vadd.f32 %v2110, %v3108
      %v3244 = vadd.f32 %v2154, %v3152
      %v3245 = vadd.f32 %v2198, %v3196
      %v3246 = vadd.f32 %v2068, %v3066
      %v3247 = vadd.f32 %v2112, %v3110
      %v3248 = vadd.f32 %v2156, %v3154
      %v3249 = vadd.f32 %v2200, %v3198
      %v3250 = vadd.f32 %v2071, %v3069
      %v3251 = vadd.f32 %v2115, %v3113
      %v3252 = vadd.f32 %v2159, %v3157
      %v3253 = vadd.f32 %v2203, %v3201
      %v3254 = vadd.f32 %v2073, %v3071
      %v3255 = vadd.f32 %v2117, %v3115
      %v3256 = vadd.f32 %v2161, %v3159
      %v3257 = vadd.f32 %v2205, %v3203
      %v3258 = vadd.f32 %v2076, %v3074
      %v3259 = vadd.f32 %v2120, %v3118
      %v3260 = vadd.f32 %v2164, %v3162
      %v3261 = vadd.f32 %v2208, %v3206
      %v3262 = vadd.f32 %v2078, %v3076
      %v3263 = vadd.f32 %v2122, %v3120
      %v3264 = vadd.f32 %v2166, %v3164
      %v3265 = vadd.f32 %v2210, %v3208
      %s3266 = scalar_lea.vmem %s2, 192
      %v3267 = vld [vmem:[%s3266] sm:$0xff]
      %v3268 = vld [vmem:[%s3266 + $0x8] sm:$0xff]
      %v3269 = vld [vmem:[%s3266 + $0x10] sm:$0xff]
      %v3270 = vld [vmem:[%s3266 + $0x18] sm:$0xff]
      %v3271 = vld [vmem:[%s3266 + $0x20] sm:$0xff]
      %v3272 = vld [vmem:[%s3266 + $0x28] sm:$0xff]
      %v3273 = vld [vmem:[%s3266 + $0x30] sm:$0xff]
      %v3274 = vld [vmem:[%s3266 + $0x38] sm:$0xff]
      %s3275 = scalar_lea.vmem %s3, 192
      %v3276 = vld [vmem:[%s3275] sm:$0xff]
      %v3277 = vld [vmem:[%s3275 + $0x8] sm:$0xff]
      %v3278 = vld [vmem:[%s3275 + $0x10] sm:$0xff]
      %v3279 = vld [vmem:[%s3275 + $0x18] sm:$0xff]
      %v3280 = vld [vmem:[%s3275 + $0x20] sm:$0xff]
      %v3281 = vld [vmem:[%s3275 + $0x28] sm:$0xff]
      %v3282 = vld [vmem:[%s3275 + $0x30] sm:$0xff]
      %v3283 = vld [vmem:[%s3275 + $0x38] sm:$0xff]
      %v3292 = vunpack.c.l.b16 %v3267
      %v3293 = vunpack.c.h.b16 %v3267
      %v3294 = vunpack.c.l.b16 %v3268
      %v3295 = vunpack.c.h.b16 %v3268
      %v3296 = vunpack.c.l.b16 %v3269
      %v3297 = vunpack.c.h.b16 %v3269
      %v3298 = vunpack.c.l.b16 %v3270
      %v3299 = vunpack.c.h.b16 %v3270
      %v3300 = vunpack.c.l.b16 %v3271
      %v3301 = vunpack.c.h.b16 %v3271
      %v3302 = vunpack.c.l.b16 %v3272
      %v3303 = vunpack.c.h.b16 %v3272
      %v3304 = vunpack.c.l.b16 %v3273
      %v3305 = vunpack.c.h.b16 %v3273
      %v3306 = vunpack.c.l.b16 %v3274
      %v3307 = vunpack.c.h.b16 %v3274
      %v3308 = vpack.c.b16 %v3296, %v3292
      %v3309 = vpack.c.b16 %v3297, %v3293
      %v3310 = vpack.c.b16 %v3298, %v3294
      %v3311 = vpack.c.b16 %v3299, %v3295
      %v3312 = vpack.c.b16 %v3304, %v3300
      %v3313 = vpack.c.b16 %v3305, %v3301
      %v3314 = vpack.c.b16 %v3306, %v3302
      %v3315 = vpack.c.b16 %v3307, %v3303
      %3324 = vmatpush.bf16.msra.mxu0 0
      %3325 = vmatpush.bf16.msra.mxu0 0
      %3326 = vmatpush.bf16.msra.mxu0 0
      %3327 = vmatpush.bf16.msra.mxu0 0
      %3328 = vmatpush.bf16.msra.mxu0 0
      %3329 = vmatpush.bf16.msra.mxu0 0
      %3330 = vmatpush.bf16.msra.mxu0 %v3312
      %3331 = vmatpush.bf16.msra.mxu0 %v3308
      %3332 = vmatmul.bf16.gmra.mxu0 %v2782
      %v3333 = vpop.f32.mrf.mxu0
      %v3334 = vadd.f32 0.0, %v3333
      %v3335 = vpop.f32.mrf.mxu0
      %v3336 = vadd.f32 0.0, %v3335
      %3337 = vmatmul.bf16.gmra.mxu0 %v2785
      %v3338 = vpop.f32.mrf.mxu0
      %v3339 = vadd.f32 0.0, %v3338
      %v3340 = vpop.f32.mrf.mxu0
      %v3341 = vadd.f32 0.0, %v3340
      %3342 = vmatmul.bf16.gmra.mxu0 %v2788
      %v3343 = vpop.f32.mrf.mxu0
      %v3344 = vadd.f32 0.0, %v3343
      %v3345 = vpop.f32.mrf.mxu0
      %v3346 = vadd.f32 0.0, %v3345
      %3347 = vmatmul.bf16.gmra.mxu0 %v2791
      %v3348 = vpop.f32.mrf.mxu0
      %v3349 = vadd.f32 0.0, %v3348
      %v3350 = vpop.f32.mrf.mxu0
      %v3351 = vadd.f32 0.0, %v3350
      %3352 = vmatmul.bf16.gmra.mxu0 %v2794
      %v3353 = vpop.f32.mrf.mxu0
      %v3354 = vadd.f32 0.0, %v3353
      %v3355 = vpop.f32.mrf.mxu0
      %v3356 = vadd.f32 0.0, %v3355
      %3357 = vmatmul.bf16.gmra.mxu0 %v2797
      %v3358 = vpop.f32.mrf.mxu0
      %v3359 = vadd.f32 0.0, %v3358
      %v3360 = vpop.f32.mrf.mxu0
      %v3361 = vadd.f32 0.0, %v3360
      %3362 = vmatmul.bf16.gmra.mxu0 %v2800
      %v3363 = vpop.f32.mrf.mxu0
      %v3364 = vadd.f32 0.0, %v3363
      %v3365 = vpop.f32.mrf.mxu0
      %v3366 = vadd.f32 0.0, %v3365
      %3367 = vdwg.mxu0
      %3368 = vmatpush.bf16.msra.mxu0 0
      %3369 = vmatpush.bf16.msra.mxu0 0
      %3370 = vmatpush.bf16.msra.mxu0 0
      %3371 = vmatpush.bf16.msra.mxu0 0
      %3372 = vmatpush.bf16.msra.mxu0 0
      %3373 = vmatpush.bf16.msra.mxu0 0
      %3374 = vmatpush.bf16.msra.mxu0 %v3313
      %3375 = vmatpush.bf16.msra.mxu0 %v3309
      %3376 = vmatmul.bf16.gmra.mxu0 %v2782
      %v3377 = vpop.f32.mrf.mxu0
      %v3378 = vadd.f32 0.0, %v3377
      %v3379 = vpop.f32.mrf.mxu0
      %v3380 = vadd.f32 0.0, %v3379
      %3381 = vmatmul.bf16.gmra.mxu0 %v2785
      %v3382 = vpop.f32.mrf.mxu0
      %v3383 = vadd.f32 0.0, %v3382
      %v3384 = vpop.f32.mrf.mxu0
      %v3385 = vadd.f32 0.0, %v3384
      %3386 = vmatmul.bf16.gmra.mxu0 %v2788
      %v3387 = vpop.f32.mrf.mxu0
      %v3388 = vadd.f32 0.0, %v3387
      %v3389 = vpop.f32.mrf.mxu0
      %v3390 = vadd.f32 0.0, %v3389
      %3391 = vmatmul.bf16.gmra.mxu0 %v2791
      %v3392 = vpop.f32.mrf.mxu0
      %v3393 = vadd.f32 0.0, %v3392
      %v3394 = vpop.f32.mrf.mxu0
      %v3395 = vadd.f32 0.0, %v3394
      %3396 = vmatmul.bf16.gmra.mxu0 %v2794
      %v3397 = vpop.f32.mrf.mxu0
      %v3398 = vadd.f32 0.0, %v3397
      %v3399 = vpop.f32.mrf.mxu0
      %v3400 = vadd.f32 0.0, %v3399
      %3401 = vmatmul.bf16.gmra.mxu0 %v2797
      %v3402 = vpop.f32.mrf.mxu0
      %v3403 = vadd.f32 0.0, %v3402
      %v3404 = vpop.f32.mrf.mxu0
      %v3405 = vadd.f32 0.0, %v3404
      %3406 = vmatmul.bf16.gmra.mxu0 %v2800
      %v3407 = vpop.f32.mrf.mxu0
      %v3408 = vadd.f32 0.0, %v3407
      %v3409 = vpop.f32.mrf.mxu0
      %v3410 = vadd.f32 0.0, %v3409
      %3411 = vdwg.mxu0
      %3412 = vmatpush.bf16.msra.mxu0 0
      %3413 = vmatpush.bf16.msra.mxu0 0
      %3414 = vmatpush.bf16.msra.mxu0 0
      %3415 = vmatpush.bf16.msra.mxu0 0
      %3416 = vmatpush.bf16.msra.mxu0 0
      %3417 = vmatpush.bf16.msra.mxu0 0
      %3418 = vmatpush.bf16.msra.mxu0 %v3314
      %3419 = vmatpush.bf16.msra.mxu0 %v3310
      %3420 = vmatmul.bf16.gmra.mxu0 %v2782
      %v3421 = vpop.f32.mrf.mxu0
      %v3422 = vadd.f32 0.0, %v3421
      %v3423 = vpop.f32.mrf.mxu0
      %v3424 = vadd.f32 0.0, %v3423
      %3425 = vmatmul.bf16.gmra.mxu0 %v2785
      %v3426 = vpop.f32.mrf.mxu0
      %v3427 = vadd.f32 0.0, %v3426
      %v3428 = vpop.f32.mrf.mxu0
      %v3429 = vadd.f32 0.0, %v3428
      %3430 = vmatmul.bf16.gmra.mxu0 %v2788
      %v3431 = vpop.f32.mrf.mxu0
      %v3432 = vadd.f32 0.0, %v3431
      %v3433 = vpop.f32.mrf.mxu0
      %v3434 = vadd.f32 0.0, %v3433
      %3435 = vmatmul.bf16.gmra.mxu0 %v2791
      %v3436 = vpop.f32.mrf.mxu0
      %v3437 = vadd.f32 0.0, %v3436
      %v3438 = vpop.f32.mrf.mxu0
      %v3439 = vadd.f32 0.0, %v3438
      %3440 = vmatmul.bf16.gmra.mxu0 %v2794
      %v3441 = vpop.f32.mrf.mxu0
      %v3442 = vadd.f32 0.0, %v3441
      %v3443 = vpop.f32.mrf.mxu0
      %v3444 = vadd.f32 0.0, %v3443
      %3445 = vmatmul.bf16.gmra.mxu0 %v2797
      %v3446 = vpop.f32.mrf.mxu0
      %v3447 = vadd.f32 0.0, %v3446
      %v3448 = vpop.f32.mrf.mxu0
      %v3449 = vadd.f32 0.0, %v3448
      %3450 = vmatmul.bf16.gmra.mxu0 %v2800
      %v3451 = vpop.f32.mrf.mxu0
      %v3452 = vadd.f32 0.0, %v3451
      %v3453 = vpop.f32.mrf.mxu0
      %v3454 = vadd.f32 0.0, %v3453
      %3455 = vdwg.mxu0
      %3456 = vmatpush.bf16.msra.mxu0 0
      %3457 = vmatpush.bf16.msra.mxu0 0
      %3458 = vmatpush.bf16.msra.mxu0 0
      %3459 = vmatpush.bf16.msra.mxu0 0
      %3460 = vmatpush.bf16.msra.mxu0 0
      %3461 = vmatpush.bf16.msra.mxu0 0
      %3462 = vmatpush.bf16.msra.mxu0 %v3315
      %3463 = vmatpush.bf16.msra.mxu0 %v3311
      %3464 = vmatmul.bf16.gmra.mxu0 %v2782
      %v3465 = vpop.f32.mrf.mxu0
      %v3466 = vadd.f32 0.0, %v3465
      %v3467 = vpop.f32.mrf.mxu0
      %v3468 = vadd.f32 0.0, %v3467
      %3469 = vmatmul.bf16.gmra.mxu0 %v2785
      %v3470 = vpop.f32.mrf.mxu0
      %v3471 = vadd.f32 0.0, %v3470
      %v3472 = vpop.f32.mrf.mxu0
      %v3473 = vadd.f32 0.0, %v3472
      %3474 = vmatmul.bf16.gmra.mxu0 %v2788
      %v3475 = vpop.f32.mrf.mxu0
      %v3476 = vadd.f32 0.0, %v3475
      %v3477 = vpop.f32.mrf.mxu0
      %v3478 = vadd.f32 0.0, %v3477
      %3479 = vmatmul.bf16.gmra.mxu0 %v2791
      %v3480 = vpop.f32.mrf.mxu0
      %v3481 = vadd.f32 0.0, %v3480
      %v3482 = vpop.f32.mrf.mxu0
      %v3483 = vadd.f32 0.0, %v3482
      %3484 = vmatmul.bf16.gmra.mxu0 %v2794
      %v3485 = vpop.f32.mrf.mxu0
      %v3486 = vadd.f32 0.0, %v3485
      %v3487 = vpop.f32.mrf.mxu0
      %v3488 = vadd.f32 0.0, %v3487
      %3489 = vmatmul.bf16.gmra.mxu0 %v2797
      %v3490 = vpop.f32.mrf.mxu0
      %v3491 = vadd.f32 0.0, %v3490
      %v3492 = vpop.f32.mrf.mxu0
      %v3493 = vadd.f32 0.0, %v3492
      %3494 = vmatmul.bf16.gmra.mxu0 %v2800
      %v3495 = vpop.f32.mrf.mxu0
      %v3496 = vadd.f32 0.0, %v3495
      %v3497 = vpop.f32.mrf.mxu0
      %v3498 = vadd.f32 0.0, %v3497
      %3499 = vdwg.mxu0
      %v3500 = vadd.f32 %v2446, %v3334
      %v3501 = vadd.f32 %v2447, %v3378
      %v3502 = vadd.f32 %v2448, %v3422
      %v3503 = vadd.f32 %v2449, %v3466
      %v3504 = vadd.f32 %v2450, %v3336
      %v3505 = vadd.f32 %v2451, %v3380
      %v3506 = vadd.f32 %v2452, %v3424
      %v3507 = vadd.f32 %v2453, %v3468
      %v3508 = vadd.f32 %v2454, %v3339
      %v3509 = vadd.f32 %v2455, %v3383
      %v3510 = vadd.f32 %v2456, %v3427
      %v3511 = vadd.f32 %v2457, %v3471
      %v3512 = vadd.f32 %v2458, %v3341
      %v3513 = vadd.f32 %v2459, %v3385
      %v3514 = vadd.f32 %v2460, %v3429
      %v3515 = vadd.f32 %v2461, %v3473
      %v3516 = vadd.f32 %v2462, %v3344
      %v3517 = vadd.f32 %v2463, %v3388
      %v3518 = vadd.f32 %v2464, %v3432
      %v3519 = vadd.f32 %v2465, %v3476
      %v3520 = vadd.f32 %v2466, %v3346
      %v3521 = vadd.f32 %v2467, %v3390
      %v3522 = vadd.f32 %v2468, %v3434
      %v3523 = vadd.f32 %v2469, %v3478
      %v3524 = vadd.f32 %v2470, %v3349
      %v3525 = vadd.f32 %v2471, %v3393
      %v3526 = vadd.f32 %v2472, %v3437
      %v3527 = vadd.f32 %v2473, %v3481
      %v3528 = vadd.f32 %v2474, %v3351
      %v3529 = vadd.f32 %v2475, %v3395
      %v3530 = vadd.f32 %v2476, %v3439
      %v3531 = vadd.f32 %v2477, %v3483
      %v3532 = vadd.f32 %v2478, %v3354
      %v3533 = vadd.f32 %v2479, %v3398
      %v3534 = vadd.f32 %v2480, %v3442
      %v3535 = vadd.f32 %v2481, %v3486
      %v3536 = vadd.f32 %v2482, %v3356
      %v3537 = vadd.f32 %v2483, %v3400
      %v3538 = vadd.f32 %v2484, %v3444
      %v3539 = vadd.f32 %v2485, %v3488
      %v3540 = vadd.f32 %v2486, %v3359
      %v3541 = vadd.f32 %v2487, %v3403
      %v3542 = vadd.f32 %v2488, %v3447
      %v3543 = vadd.f32 %v2489, %v3491
      %v3544 = vadd.f32 %v2490, %v3361
      %v3545 = vadd.f32 %v2491, %v3405
      %v3546 = vadd.f32 %v2492, %v3449
      %v3547 = vadd.f32 %v2493, %v3493
      %v3548 = vadd.f32 %v2494, %v3364
      %v3549 = vadd.f32 %v2495, %v3408
      %v3550 = vadd.f32 %v2496, %v3452
      %v3551 = vadd.f32 %v2497, %v3496
      %v3552 = vadd.f32 %v2498, %v3366
      %v3553 = vadd.f32 %v2499, %v3410
      %v3554 = vadd.f32 %v2500, %v3454
      %v3555 = vadd.f32 %v2501, %v3498
      %v3564 = vunpack.c.l.b16 %v3276
      %v3565 = vunpack.c.h.b16 %v3276
      %v3566 = vunpack.c.l.b16 %v3277
      %v3567 = vunpack.c.h.b16 %v3277
      %v3568 = vunpack.c.l.b16 %v3278
      %v3569 = vunpack.c.h.b16 %v3278
      %v3570 = vunpack.c.l.b16 %v3279
      %v3571 = vunpack.c.h.b16 %v3279
      %v3572 = vunpack.c.l.b16 %v3280
      %v3573 = vunpack.c.h.b16 %v3280
      %v3574 = vunpack.c.l.b16 %v3281
      %v3575 = vunpack.c.h.b16 %v3281
      %v3576 = vunpack.c.l.b16 %v3282
      %v3577 = vunpack.c.h.b16 %v3282
      %v3578 = vunpack.c.l.b16 %v3283
      %v3579 = vunpack.c.h.b16 %v3283
      %v3580 = vpack.c.b16 %v3568, %v3564
      %v3581 = vpack.c.b16 %v3569, %v3565
      %v3582 = vpack.c.b16 %v3570, %v3566
      %v3583 = vpack.c.b16 %v3571, %v3567
      %v3584 = vpack.c.b16 %v3576, %v3572
      %v3585 = vpack.c.b16 %v3577, %v3573
      %v3586 = vpack.c.b16 %v3578, %v3574
      %v3587 = vpack.c.b16 %v3579, %v3575
      %3596 = vmatpush.bf16.msra.mxu0 0
      %3597 = vmatpush.bf16.msra.mxu0 0
      %3598 = vmatpush.bf16.msra.mxu0 0
      %3599 = vmatpush.bf16.msra.mxu0 0
      %3600 = vmatpush.bf16.msra.mxu0 0
      %3601 = vmatpush.bf16.msra.mxu0 0
      %3602 = vmatpush.bf16.msra.mxu0 %v3584
      %3603 = vmatpush.bf16.msra.mxu0 %v3580
      %3604 = vmatmul.bf16.gmra.mxu0 %v2782
      %v3605 = vpop.f32.mrf.mxu0
      %v3606 = vadd.f32 0.0, %v3605
      %v3607 = vpop.f32.mrf.mxu0
      %v3608 = vadd.f32 0.0, %v3607
      %3609 = vmatmul.bf16.gmra.mxu0 %v2785
      %v3610 = vpop.f32.mrf.mxu0
      %v3611 = vadd.f32 0.0, %v3610
      %v3612 = vpop.f32.mrf.mxu0
      %v3613 = vadd.f32 0.0, %v3612
      %3614 = vmatmul.bf16.gmra.mxu0 %v2788
      %v3615 = vpop.f32.mrf.mxu0
      %v3616 = vadd.f32 0.0, %v3615
      %v3617 = vpop.f32.mrf.mxu0
      %v3618 = vadd.f32 0.0, %v3617
      %3619 = vmatmul.bf16.gmra.mxu0 %v2791
      %v3620 = vpop.f32.mrf.mxu0
      %v3621 = vadd.f32 0.0, %v3620
      %v3622 = vpop.f32.mrf.mxu0
      %v3623 = vadd.f32 0.0, %v3622
      %3624 = vmatmul.bf16.gmra.mxu0 %v2794
      %v3625 = vpop.f32.mrf.mxu0
      %v3626 = vadd.f32 0.0, %v3625
      %v3627 = vpop.f32.mrf.mxu0
      %v3628 = vadd.f32 0.0, %v3627
      %3629 = vmatmul.bf16.gmra.mxu0 %v2797
      %v3630 = vpop.f32.mrf.mxu0
      %v3631 = vadd.f32 0.0, %v3630
      %v3632 = vpop.f32.mrf.mxu0
      %v3633 = vadd.f32 0.0, %v3632
      %3634 = vmatmul.bf16.gmra.mxu0 %v2800
      %v3635 = vpop.f32.mrf.mxu0
      %v3636 = vadd.f32 0.0, %v3635
      %v3637 = vpop.f32.mrf.mxu0
      %v3638 = vadd.f32 0.0, %v3637
      %3639 = vdwg.mxu0
      %3640 = vmatpush.bf16.msra.mxu0 0
      %3641 = vmatpush.bf16.msra.mxu0 0
      %3642 = vmatpush.bf16.msra.mxu0 0
      %3643 = vmatpush.bf16.msra.mxu0 0
      %3644 = vmatpush.bf16.msra.mxu0 0
      %3645 = vmatpush.bf16.msra.mxu0 0
      %3646 = vmatpush.bf16.msra.mxu0 %v3585
      %3647 = vmatpush.bf16.msra.mxu0 %v3581
      %3648 = vmatmul.bf16.gmra.mxu0 %v2782
      %v3649 = vpop.f32.mrf.mxu0
      %v3650 = vadd.f32 0.0, %v3649
      %v3651 = vpop.f32.mrf.mxu0
      %v3652 = vadd.f32 0.0, %v3651
      %3653 = vmatmul.bf16.gmra.mxu0 %v2785
      %v3654 = vpop.f32.mrf.mxu0
      %v3655 = vadd.f32 0.0, %v3654
      %v3656 = vpop.f32.mrf.mxu0
      %v3657 = vadd.f32 0.0, %v3656
      %3658 = vmatmul.bf16.gmra.mxu0 %v2788
      %v3659 = vpop.f32.mrf.mxu0
      %v3660 = vadd.f32 0.0, %v3659
      %v3661 = vpop.f32.mrf.mxu0
      %v3662 = vadd.f32 0.0, %v3661
      %3663 = vmatmul.bf16.gmra.mxu0 %v2791
      %v3664 = vpop.f32.mrf.mxu0
      %v3665 = vadd.f32 0.0, %v3664
      %v3666 = vpop.f32.mrf.mxu0
      %v3667 = vadd.f32 0.0, %v3666
      %3668 = vmatmul.bf16.gmra.mxu0 %v2794
      %v3669 = vpop.f32.mrf.mxu0
      %v3670 = vadd.f32 0.0, %v3669
      %v3671 = vpop.f32.mrf.mxu0
      %v3672 = vadd.f32 0.0, %v3671
      %3673 = vmatmul.bf16.gmra.mxu0 %v2797
      %v3674 = vpop.f32.mrf.mxu0
      %v3675 = vadd.f32 0.0, %v3674
      %v3676 = vpop.f32.mrf.mxu0
      %v3677 = vadd.f32 0.0, %v3676
      %3678 = vmatmul.bf16.gmra.mxu0 %v2800
      %v3679 = vpop.f32.mrf.mxu0
      %v3680 = vadd.f32 0.0, %v3679
      %v3681 = vpop.f32.mrf.mxu0
      %v3682 = vadd.f32 0.0, %v3681
      %3683 = vdwg.mxu0
      %3684 = vmatpush.bf16.msra.mxu0 0
      %3685 = vmatpush.bf16.msra.mxu0 0
      %3686 = vmatpush.bf16.msra.mxu0 0
      %3687 = vmatpush.bf16.msra.mxu0 0
      %3688 = vmatpush.bf16.msra.mxu0 0
      %3689 = vmatpush.bf16.msra.mxu0 0
      %3690 = vmatpush.bf16.msra.mxu0 %v3586
      %3691 = vmatpush.bf16.msra.mxu0 %v3582
      %3692 = vmatmul.bf16.gmra.mxu0 %v2782
      %v3693 = vpop.f32.mrf.mxu0
      %v3694 = vadd.f32 0.0, %v3693
      %v3695 = vpop.f32.mrf.mxu0
      %v3696 = vadd.f32 0.0, %v3695
      %3697 = vmatmul.bf16.gmra.mxu0 %v2785
      %v3698 = vpop.f32.mrf.mxu0
      %v3699 = vadd.f32 0.0, %v3698
      %v3700 = vpop.f32.mrf.mxu0
      %v3701 = vadd.f32 0.0, %v3700
      %3702 = vmatmul.bf16.gmra.mxu0 %v2788
      %v3703 = vpop.f32.mrf.mxu0
      %v3704 = vadd.f32 0.0, %v3703
      %v3705 = vpop.f32.mrf.mxu0
      %v3706 = vadd.f32 0.0, %v3705
      %3707 = vmatmul.bf16.gmra.mxu0 %v2791
      %v3708 = vpop.f32.mrf.mxu0
      %v3709 = vadd.f32 0.0, %v3708
      %v3710 = vpop.f32.mrf.mxu0
      %v3711 = vadd.f32 0.0, %v3710
      %3712 = vmatmul.bf16.gmra.mxu0 %v2794
      %v3713 = vpop.f32.mrf.mxu0
      %v3714 = vadd.f32 0.0, %v3713
      %v3715 = vpop.f32.mrf.mxu0
      %v3716 = vadd.f32 0.0, %v3715
      %3717 = vmatmul.bf16.gmra.mxu0 %v2797
      %v3718 = vpop.f32.mrf.mxu0
      %v3719 = vadd.f32 0.0, %v3718
      %v3720 = vpop.f32.mrf.mxu0
      %v3721 = vadd.f32 0.0, %v3720
      %3722 = vmatmul.bf16.gmra.mxu0 %v2800
      %v3723 = vpop.f32.mrf.mxu0
      %v3724 = vadd.f32 0.0, %v3723
      %v3725 = vpop.f32.mrf.mxu0
      %v3726 = vadd.f32 0.0, %v3725
      %3727 = vdwg.mxu0
      %3728 = vmatpush.bf16.msra.mxu0 0
      %3729 = vmatpush.bf16.msra.mxu0 0
      %3730 = vmatpush.bf16.msra.mxu0 0
      %3731 = vmatpush.bf16.msra.mxu0 0
      %3732 = vmatpush.bf16.msra.mxu0 0
      %3733 = vmatpush.bf16.msra.mxu0 0
      %3734 = vmatpush.bf16.msra.mxu0 %v3587
      %3735 = vmatpush.bf16.msra.mxu0 %v3583
      %3736 = vmatmul.bf16.gmra.mxu0 %v2782
      %v3737 = vpop.f32.mrf.mxu0
      %v3738 = vadd.f32 0.0, %v3737
      %v3739 = vpop.f32.mrf.mxu0
      %v3740 = vadd.f32 0.0, %v3739
      %3741 = vmatmul.bf16.gmra.mxu0 %v2785
      %v3742 = vpop.f32.mrf.mxu0
      %v3743 = vadd.f32 0.0, %v3742
      %v3744 = vpop.f32.mrf.mxu0
      %v3745 = vadd.f32 0.0, %v3744
      %3746 = vmatmul.bf16.gmra.mxu0 %v2788
      %v3747 = vpop.f32.mrf.mxu0
      %v3748 = vadd.f32 0.0, %v3747
      %v3749 = vpop.f32.mrf.mxu0
      %v3750 = vadd.f32 0.0, %v3749
      %3751 = vmatmul.bf16.gmra.mxu0 %v2791
      %v3752 = vpop.f32.mrf.mxu0
      %v3753 = vadd.f32 0.0, %v3752
      %v3754 = vpop.f32.mrf.mxu0
      %v3755 = vadd.f32 0.0, %v3754
      %3756 = vmatmul.bf16.gmra.mxu0 %v2794
      %v3757 = vpop.f32.mrf.mxu0
      %v3758 = vadd.f32 0.0, %v3757
      %v3759 = vpop.f32.mrf.mxu0
      %v3760 = vadd.f32 0.0, %v3759
      %3761 = vmatmul.bf16.gmra.mxu0 %v2797
      %v3762 = vpop.f32.mrf.mxu0
      %v3763 = vadd.f32 0.0, %v3762
      %v3764 = vpop.f32.mrf.mxu0
      %v3765 = vadd.f32 0.0, %v3764
      %3766 = vmatmul.bf16.gmra.mxu0 %v2800
      %v3767 = vpop.f32.mrf.mxu0
      %v3768 = vadd.f32 0.0, %v3767
      %v3769 = vpop.f32.mrf.mxu0
      %v3770 = vadd.f32 0.0, %v3769
      %3771 = vdwg.mxu0
      %v3772 = vadd.f32 %v2718, %v3606
      %v3773 = vadd.f32 %v2719, %v3650
      %v3774 = vadd.f32 %v2720, %v3694
      %v3775 = vadd.f32 %v2721, %v3738
      %v3776 = vadd.f32 %v2722, %v3608
      %v3777 = vadd.f32 %v2723, %v3652
      %v3778 = vadd.f32 %v2724, %v3696
      %v3779 = vadd.f32 %v2725, %v3740
      %v3780 = vadd.f32 %v2726, %v3611
      %v3781 = vadd.f32 %v2727, %v3655
      %v3782 = vadd.f32 %v2728, %v3699
      %v3783 = vadd.f32 %v2729, %v3743
      %v3784 = vadd.f32 %v2730, %v3613
      %v3785 = vadd.f32 %v2731, %v3657
      %v3786 = vadd.f32 %v2732, %v3701
      %v3787 = vadd.f32 %v2733, %v3745
      %v3788 = vadd.f32 %v2734, %v3616
      %v3789 = vadd.f32 %v2735, %v3660
      %v3790 = vadd.f32 %v2736, %v3704
      %v3791 = vadd.f32 %v2737, %v3748
      %v3792 = vadd.f32 %v2738, %v3618
      %v3793 = vadd.f32 %v2739, %v3662
      %v3794 = vadd.f32 %v2740, %v3706
      %v3795 = vadd.f32 %v2741, %v3750
      %v3796 = vadd.f32 %v2742, %v3621
      %v3797 = vadd.f32 %v2743, %v3665
      %v3798 = vadd.f32 %v2744, %v3709
      %v3799 = vadd.f32 %v2745, %v3753
      %v3800 = vadd.f32 %v2746, %v3623
      %v3801 = vadd.f32 %v2747, %v3667
      %v3802 = vadd.f32 %v2748, %v3711
      %v3803 = vadd.f32 %v2749, %v3755
      %v3804 = vadd.f32 %v2750, %v3626
      %v3805 = vadd.f32 %v2751, %v3670
      %v3806 = vadd.f32 %v2752, %v3714
      %v3807 = vadd.f32 %v2753, %v3758
      %v3808 = vadd.f32 %v2754, %v3628
      %v3809 = vadd.f32 %v2755, %v3672
      %v3810 = vadd.f32 %v2756, %v3716
      %v3811 = vadd.f32 %v2757, %v3760
      %v3812 = vadd.f32 %v2758, %v3631
      %v3813 = vadd.f32 %v2759, %v3675
      %v3814 = vadd.f32 %v2760, %v3719
      %v3815 = vadd.f32 %v2761, %v3763
      %v3816 = vadd.f32 %v2762, %v3633
      %v3817 = vadd.f32 %v2763, %v3677
      %v3818 = vadd.f32 %v2764, %v3721
      %v3819 = vadd.f32 %v2765, %v3765
      %v3820 = vadd.f32 %v2766, %v3636
      %v3821 = vadd.f32 %v2767, %v3680
      %v3822 = vadd.f32 %v2768, %v3724
      %v3823 = vadd.f32 %v2769, %v3768
      %v3824 = vadd.f32 %v2770, %v3638
      %v3825 = vadd.f32 %v2771, %v3682
      %v3826 = vadd.f32 %v2772, %v3726
      %v3827 = vadd.f32 %v2773, %v3770
      %v3828 = vpack.c.bf16 %v508, %v507
      %v3830 = vsel %vm613, %v3828, 0
      %3832 = vmatpush.bf16.msra.mxu0 0
      %3833 = vmatpush.bf16.msra.mxu0 0
      %3834 = vmatpush.bf16.msra.mxu0 0
      %3835 = vmatpush.bf16.msra.mxu0 0
      %3836 = vmatpush.bf16.msra.mxu0 0
      %3837 = vmatpush.bf16.msra.mxu0 0
      %3838 = vmatpush.bf16.msra.mxu0 %v3312
      %3839 = vmatpush.bf16.msra.mxu0 %v3308
      %3840 = vmatmul.bf16.gmra.mxu0 %v855
      %v3841 = vpop.f32.mrf.mxu0
      %v3842 = vadd.f32 0.0, %v3841
      %v3843 = vpop.f32.mrf.mxu0
      %v3844 = vadd.f32 0.0, %v3843
      %3845 = vmatmul.bf16.gmra.mxu0 %v858
      %v3846 = vpop.f32.mrf.mxu0
      %v3847 = vadd.f32 0.0, %v3846
      %v3848 = vpop.f32.mrf.mxu0
      %v3849 = vadd.f32 0.0, %v3848
      %3850 = vmatmul.bf16.gmra.mxu0 %v861
      %v3851 = vpop.f32.mrf.mxu0
      %v3852 = vadd.f32 0.0, %v3851
      %v3853 = vpop.f32.mrf.mxu0
      %v3854 = vadd.f32 0.0, %v3853
      %3855 = vmatmul.bf16.gmra.mxu0 %v864
      %v3856 = vpop.f32.mrf.mxu0
      %v3857 = vadd.f32 0.0, %v3856
      %v3858 = vpop.f32.mrf.mxu0
      %v3859 = vadd.f32 0.0, %v3858
      %3860 = vmatmul.bf16.gmra.mxu0 %v867
      %v3861 = vpop.f32.mrf.mxu0
      %v3862 = vadd.f32 0.0, %v3861
      %v3863 = vpop.f32.mrf.mxu0
      %v3864 = vadd.f32 0.0, %v3863
      %3865 = vmatmul.bf16.gmra.mxu0 %v870
      %v3866 = vpop.f32.mrf.mxu0
      %v3867 = vadd.f32 0.0, %v3866
      %v3868 = vpop.f32.mrf.mxu0
      %v3869 = vadd.f32 0.0, %v3868
      %3870 = vmatmul.bf16.gmra.mxu0 %v3830
      %v3871 = vpop.f32.mrf.mxu0
      %v3872 = vadd.f32 0.0, %v3871
      %v3873 = vpop.f32.mrf.mxu0
      %v3874 = vadd.f32 0.0, %v3873
      %3875 = vdwg.mxu0
      %3876 = vmatpush.bf16.msra.mxu0 0
      %3877 = vmatpush.bf16.msra.mxu0 0
      %3878 = vmatpush.bf16.msra.mxu0 0
      %3879 = vmatpush.bf16.msra.mxu0 0
      %3880 = vmatpush.bf16.msra.mxu0 0
      %3881 = vmatpush.bf16.msra.mxu0 0
      %3882 = vmatpush.bf16.msra.mxu0 %v3313
      %3883 = vmatpush.bf16.msra.mxu0 %v3309
      %3884 = vmatmul.bf16.gmra.mxu0 %v855
      %v3885 = vpop.f32.mrf.mxu0
      %v3886 = vadd.f32 0.0, %v3885
      %v3887 = vpop.f32.mrf.mxu0
      %v3888 = vadd.f32 0.0, %v3887
      %3889 = vmatmul.bf16.gmra.mxu0 %v858
      %v3890 = vpop.f32.mrf.mxu0
      %v3891 = vadd.f32 0.0, %v3890
      %v3892 = vpop.f32.mrf.mxu0
      %v3893 = vadd.f32 0.0, %v3892
      %3894 = vmatmul.bf16.gmra.mxu0 %v861
      %v3895 = vpop.f32.mrf.mxu0
      %v3896 = vadd.f32 0.0, %v3895
      %v3897 = vpop.f32.mrf.mxu0
      %v3898 = vadd.f32 0.0, %v3897
      %3899 = vmatmul.bf16.gmra.mxu0 %v864
      %v3900 = vpop.f32.mrf.mxu0
      %v3901 = vadd.f32 0.0, %v3900
      %v3902 = vpop.f32.mrf.mxu0
      %v3903 = vadd.f32 0.0, %v3902
      %3904 = vmatmul.bf16.gmra.mxu0 %v867
      %v3905 = vpop.f32.mrf.mxu0
      %v3906 = vadd.f32 0.0, %v3905
      %v3907 = vpop.f32.mrf.mxu0
      %v3908 = vadd.f32 0.0, %v3907
      %3909 = vmatmul.bf16.gmra.mxu0 %v870
      %v3910 = vpop.f32.mrf.mxu0
      %v3911 = vadd.f32 0.0, %v3910
      %v3912 = vpop.f32.mrf.mxu0
      %v3913 = vadd.f32 0.0, %v3912
      %3914 = vmatmul.bf16.gmra.mxu0 %v3830
      %v3915 = vpop.f32.mrf.mxu0
      %v3916 = vadd.f32 0.0, %v3915
      %v3917 = vpop.f32.mrf.mxu0
      %v3918 = vadd.f32 0.0, %v3917
      %3919 = vdwg.mxu0
      %3920 = vmatpush.bf16.msra.mxu0 0
      %3921 = vmatpush.bf16.msra.mxu0 0
      %3922 = vmatpush.bf16.msra.mxu0 0
      %3923 = vmatpush.bf16.msra.mxu0 0
      %3924 = vmatpush.bf16.msra.mxu0 0
      %3925 = vmatpush.bf16.msra.mxu0 0
      %3926 = vmatpush.bf16.msra.mxu0 %v3314
      %3927 = vmatpush.bf16.msra.mxu0 %v3310
      %3928 = vmatmul.bf16.gmra.mxu0 %v855
      %v3929 = vpop.f32.mrf.mxu0
      %v3930 = vadd.f32 0.0, %v3929
      %v3931 = vpop.f32.mrf.mxu0
      %v3932 = vadd.f32 0.0, %v3931
      %3933 = vmatmul.bf16.gmra.mxu0 %v858
      %v3934 = vpop.f32.mrf.mxu0
      %v3935 = vadd.f32 0.0, %v3934
      %v3936 = vpop.f32.mrf.mxu0
      %v3937 = vadd.f32 0.0, %v3936
      %3938 = vmatmul.bf16.gmra.mxu0 %v861
      %v3939 = vpop.f32.mrf.mxu0
      %v3940 = vadd.f32 0.0, %v3939
      %v3941 = vpop.f32.mrf.mxu0
      %v3942 = vadd.f32 0.0, %v3941
      %3943 = vmatmul.bf16.gmra.mxu0 %v864
      %v3944 = vpop.f32.mrf.mxu0
      %v3945 = vadd.f32 0.0, %v3944
      %v3946 = vpop.f32.mrf.mxu0
      %v3947 = vadd.f32 0.0, %v3946
      %3948 = vmatmul.bf16.gmra.mxu0 %v867
      %v3949 = vpop.f32.mrf.mxu0
      %v3950 = vadd.f32 0.0, %v3949
      %v3951 = vpop.f32.mrf.mxu0
      %v3952 = vadd.f32 0.0, %v3951
      %3953 = vmatmul.bf16.gmra.mxu0 %v870
      %v3954 = vpop.f32.mrf.mxu0
      %v3955 = vadd.f32 0.0, %v3954
      %v3956 = vpop.f32.mrf.mxu0
      %v3957 = vadd.f32 0.0, %v3956
      %3958 = vmatmul.bf16.gmra.mxu0 %v3830
      %v3959 = vpop.f32.mrf.mxu0
      %v3960 = vadd.f32 0.0, %v3959
      %v3961 = vpop.f32.mrf.mxu0
      %v3962 = vadd.f32 0.0, %v3961
      %3963 = vdwg.mxu0
      %3964 = vmatpush.bf16.msra.mxu0 0
      %3965 = vmatpush.bf16.msra.mxu0 0
      %3966 = vmatpush.bf16.msra.mxu0 0
      %3967 = vmatpush.bf16.msra.mxu0 0
      %3968 = vmatpush.bf16.msra.mxu0 0
      %3969 = vmatpush.bf16.msra.mxu0 0
      %3970 = vmatpush.bf16.msra.mxu0 %v3315
      %3971 = vmatpush.bf16.msra.mxu0 %v3311
      %3972 = vmatmul.bf16.gmra.mxu0 %v855
      %v3973 = vpop.f32.mrf.mxu0
      %v3974 = vadd.f32 0.0, %v3973
      %v3975 = vpop.f32.mrf.mxu0
      %v3976 = vadd.f32 0.0, %v3975
      %3977 = vmatmul.bf16.gmra.mxu0 %v858
      %v3978 = vpop.f32.mrf.mxu0
      %v3979 = vadd.f32 0.0, %v3978
      %v3980 = vpop.f32.mrf.mxu0
      %v3981 = vadd.f32 0.0, %v3980
      %3982 = vmatmul.bf16.gmra.mxu0 %v861
      %v3983 = vpop.f32.mrf.mxu0
      %v3984 = vadd.f32 0.0, %v3983
      %v3985 = vpop.f32.mrf.mxu0
      %v3986 = vadd.f32 0.0, %v3985
      %3987 = vmatmul.bf16.gmra.mxu0 %v864
      %v3988 = vpop.f32.mrf.mxu0
      %v3989 = vadd.f32 0.0, %v3988
      %v3990 = vpop.f32.mrf.mxu0
      %v3991 = vadd.f32 0.0, %v3990
      %3992 = vmatmul.bf16.gmra.mxu0 %v867
      %v3993 = vpop.f32.mrf.mxu0
      %v3994 = vadd.f32 0.0, %v3993
      %v3995 = vpop.f32.mrf.mxu0
      %v3996 = vadd.f32 0.0, %v3995
      %3997 = vmatmul.bf16.gmra.mxu0 %v870
      %v3998 = vpop.f32.mrf.mxu0
      %v3999 = vadd.f32 0.0, %v3998
      %v4000 = vpop.f32.mrf.mxu0
      %v4001 = vadd.f32 0.0, %v4000
      %4002 = vmatmul.bf16.gmra.mxu0 %v3830
      %v4003 = vpop.f32.mrf.mxu0
      %v4004 = vadd.f32 0.0, %v4003
      %v4005 = vpop.f32.mrf.mxu0
      %v4006 = vadd.f32 0.0, %v4005
      %4007 = vdwg.mxu0
      %v4008 = vadd.f32 %v2978, %v3842
      %v4009 = vadd.f32 %v2979, %v3886
      %v4010 = vadd.f32 %v2980, %v3930
      %v4011 = vadd.f32 %v2981, %v3974
      %v4012 = vadd.f32 %v2982, %v3844
      %v4013 = vadd.f32 %v2983, %v3888
      %v4014 = vadd.f32 %v2984, %v3932
      %v4015 = vadd.f32 %v2985, %v3976
      %v4016 = vadd.f32 %v2986, %v3847
      %v4017 = vadd.f32 %v2987, %v3891
      %v4018 = vadd.f32 %v2988, %v3935
      %v4019 = vadd.f32 %v2989, %v3979
      %v4020 = vadd.f32 %v2990, %v3849
      %v4021 = vadd.f32 %v2991, %v3893
      %v4022 = vadd.f32 %v2992, %v3937
      %v4023 = vadd.f32 %v2993, %v3981
      %v4024 = vadd.f32 %v2994, %v3852
      %v4025 = vadd.f32 %v2995, %v3896
      %v4026 = vadd.f32 %v2996, %v3940
      %v4027 = vadd.f32 %v2997, %v3984
      %v4028 = vadd.f32 %v2998, %v3854
      %v4029 = vadd.f32 %v2999, %v3898
      %v4030 = vadd.f32 %v3000, %v3942
      %v4031 = vadd.f32 %v3001, %v3986
      %v4032 = vadd.f32 %v3002, %v3857
      %v4033 = vadd.f32 %v3003, %v3901
      %v4034 = vadd.f32 %v3004, %v3945
      %v4035 = vadd.f32 %v3005, %v3989
      %v4036 = vadd.f32 %v3006, %v3859
      %v4037 = vadd.f32 %v3007, %v3903
      %v4038 = vadd.f32 %v3008, %v3947
      %v4039 = vadd.f32 %v3009, %v3991
      %v4040 = vadd.f32 %v3010, %v3862
      %v4041 = vadd.f32 %v3011, %v3906
      %v4042 = vadd.f32 %v3012, %v3950
      %v4043 = vadd.f32 %v3013, %v3994
      %v4044 = vadd.f32 %v3014, %v3864
      %v4045 = vadd.f32 %v3015, %v3908
      %v4046 = vadd.f32 %v3016, %v3952
      %v4047 = vadd.f32 %v3017, %v3996
      %v4048 = vadd.f32 %v3018, %v3867
      %v4049 = vadd.f32 %v3019, %v3911
      %v4050 = vadd.f32 %v3020, %v3955
      %v4051 = vadd.f32 %v3021, %v3999
      %v4052 = vadd.f32 %v3022, %v3869
      %v4053 = vadd.f32 %v3023, %v3913
      %v4054 = vadd.f32 %v3024, %v3957
      %v4055 = vadd.f32 %v3025, %v4001
      %v4056 = vadd.f32 %v3026, %v3872
      %v4057 = vadd.f32 %v3027, %v3916
      %v4058 = vadd.f32 %v3028, %v3960
      %v4059 = vadd.f32 %v3029, %v4004
      %v4060 = vadd.f32 %v3030, %v3874
      %v4061 = vadd.f32 %v3031, %v3918
      %v4062 = vadd.f32 %v3032, %v3962
      %v4063 = vadd.f32 %v3033, %v4006
      %4064 = vmatpush.bf16.msra.mxu0 0
      %4065 = vmatpush.bf16.msra.mxu0 0
      %4066 = vmatpush.bf16.msra.mxu0 0
      %4067 = vmatpush.bf16.msra.mxu0 0
      %4068 = vmatpush.bf16.msra.mxu0 0
      %4069 = vmatpush.bf16.msra.mxu0 0
      %4070 = vmatpush.bf16.msra.mxu0 %v3584
      %4071 = vmatpush.bf16.msra.mxu0 %v3580
      %4072 = vmatmul.bf16.gmra.mxu0 %v855
      %v4073 = vpop.f32.mrf.mxu0
      %v4074 = vadd.f32 0.0, %v4073
      %v4075 = vpop.f32.mrf.mxu0
      %v4076 = vadd.f32 0.0, %v4075
      %4077 = vmatmul.bf16.gmra.mxu0 %v858
      %v4078 = vpop.f32.mrf.mxu0
      %v4079 = vadd.f32 0.0, %v4078
      %v4080 = vpop.f32.mrf.mxu0
      %v4081 = vadd.f32 0.0, %v4080
      %4082 = vmatmul.bf16.gmra.mxu0 %v861
      %v4083 = vpop.f32.mrf.mxu0
      %v4084 = vadd.f32 0.0, %v4083
      %v4085 = vpop.f32.mrf.mxu0
      %v4086 = vadd.f32 0.0, %v4085
      %4087 = vmatmul.bf16.gmra.mxu0 %v864
      %v4088 = vpop.f32.mrf.mxu0
      %v4089 = vadd.f32 0.0, %v4088
      %v4090 = vpop.f32.mrf.mxu0
      %v4091 = vadd.f32 0.0, %v4090
      %4092 = vmatmul.bf16.gmra.mxu0 %v867
      %v4093 = vpop.f32.mrf.mxu0
      %v4094 = vadd.f32 0.0, %v4093
      %v4095 = vpop.f32.mrf.mxu0
      %v4096 = vadd.f32 0.0, %v4095
      %4097 = vmatmul.bf16.gmra.mxu0 %v870
      %v4098 = vpop.f32.mrf.mxu0
      %v4099 = vadd.f32 0.0, %v4098
      %v4100 = vpop.f32.mrf.mxu0
      %v4101 = vadd.f32 0.0, %v4100
      %4102 = vmatmul.bf16.gmra.mxu0 %v3830
      %v4103 = vpop.f32.mrf.mxu0
      %v4104 = vadd.f32 0.0, %v4103
      %v4105 = vpop.f32.mrf.mxu0
      %v4106 = vadd.f32 0.0, %v4105
      %4107 = vdwg.mxu0
      %4108 = vmatpush.bf16.msra.mxu0 0
      %4109 = vmatpush.bf16.msra.mxu0 0
      %4110 = vmatpush.bf16.msra.mxu0 0
      %4111 = vmatpush.bf16.msra.mxu0 0
      %4112 = vmatpush.bf16.msra.mxu0 0
      %4113 = vmatpush.bf16.msra.mxu0 0
      %4114 = vmatpush.bf16.msra.mxu0 %v3585
      %4115 = vmatpush.bf16.msra.mxu0 %v3581
      %4116 = vmatmul.bf16.gmra.mxu0 %v855
      %v4117 = vpop.f32.mrf.mxu0
      %v4118 = vadd.f32 0.0, %v4117
      %v4119 = vpop.f32.mrf.mxu0
      %v4120 = vadd.f32 0.0, %v4119
      %4121 = vmatmul.bf16.gmra.mxu0 %v858
      %v4122 = vpop.f32.mrf.mxu0
      %v4123 = vadd.f32 0.0, %v4122
      %v4124 = vpop.f32.mrf.mxu0
      %v4125 = vadd.f32 0.0, %v4124
      %4126 = vmatmul.bf16.gmra.mxu0 %v861
      %v4127 = vpop.f32.mrf.mxu0
      %v4128 = vadd.f32 0.0, %v4127
      %v4129 = vpop.f32.mrf.mxu0
      %v4130 = vadd.f32 0.0, %v4129
      %4131 = vmatmul.bf16.gmra.mxu0 %v864
      %v4132 = vpop.f32.mrf.mxu0
      %v4133 = vadd.f32 0.0, %v4132
      %v4134 = vpop.f32.mrf.mxu0
      %v4135 = vadd.f32 0.0, %v4134
      %4136 = vmatmul.bf16.gmra.mxu0 %v867
      %v4137 = vpop.f32.mrf.mxu0
      %v4138 = vadd.f32 0.0, %v4137
      %v4139 = vpop.f32.mrf.mxu0
      %v4140 = vadd.f32 0.0, %v4139
      %4141 = vmatmul.bf16.gmra.mxu0 %v870
      %v4142 = vpop.f32.mrf.mxu0
      %v4143 = vadd.f32 0.0, %v4142
      %v4144 = vpop.f32.mrf.mxu0
      %v4145 = vadd.f32 0.0, %v4144
      %4146 = vmatmul.bf16.gmra.mxu0 %v3830
      %v4147 = vpop.f32.mrf.mxu0
      %v4148 = vadd.f32 0.0, %v4147
      %v4149 = vpop.f32.mrf.mxu0
      %v4150 = vadd.f32 0.0, %v4149
      %4151 = vdwg.mxu0
      %4152 = vmatpush.bf16.msra.mxu0 0
      %4153 = vmatpush.bf16.msra.mxu0 0
      %4154 = vmatpush.bf16.msra.mxu0 0
      %4155 = vmatpush.bf16.msra.mxu0 0
      %4156 = vmatpush.bf16.msra.mxu0 0
      %4157 = vmatpush.bf16.msra.mxu0 0
      %4158 = vmatpush.bf16.msra.mxu0 %v3586
      %4159 = vmatpush.bf16.msra.mxu0 %v3582
      %4160 = vmatmul.bf16.gmra.mxu0 %v855
      %v4161 = vpop.f32.mrf.mxu0
      %v4162 = vadd.f32 0.0, %v4161
      %v4163 = vpop.f32.mrf.mxu0
      %v4164 = vadd.f32 0.0, %v4163
      %4165 = vmatmul.bf16.gmra.mxu0 %v858
      %v4166 = vpop.f32.mrf.mxu0
      %v4167 = vadd.f32 0.0, %v4166
      %v4168 = vpop.f32.mrf.mxu0
      %v4169 = vadd.f32 0.0, %v4168
      %4170 = vmatmul.bf16.gmra.mxu0 %v861
      %v4171 = vpop.f32.mrf.mxu0
      %v4172 = vadd.f32 0.0, %v4171
      %v4173 = vpop.f32.mrf.mxu0
      %v4174 = vadd.f32 0.0, %v4173
      %4175 = vmatmul.bf16.gmra.mxu0 %v864
      %v4176 = vpop.f32.mrf.mxu0
      %v4177 = vadd.f32 0.0, %v4176
      %v4178 = vpop.f32.mrf.mxu0
      %v4179 = vadd.f32 0.0, %v4178
      %4180 = vmatmul.bf16.gmra.mxu0 %v867
      %v4181 = vpop.f32.mrf.mxu0
      %v4182 = vadd.f32 0.0, %v4181
      %v4183 = vpop.f32.mrf.mxu0
      %v4184 = vadd.f32 0.0, %v4183
      %4185 = vmatmul.bf16.gmra.mxu0 %v870
      %v4186 = vpop.f32.mrf.mxu0
      %v4187 = vadd.f32 0.0, %v4186
      %v4188 = vpop.f32.mrf.mxu0
      %v4189 = vadd.f32 0.0, %v4188
      %4190 = vmatmul.bf16.gmra.mxu0 %v3830
      %v4191 = vpop.f32.mrf.mxu0
      %v4192 = vadd.f32 0.0, %v4191
      %v4193 = vpop.f32.mrf.mxu0
      %v4194 = vadd.f32 0.0, %v4193
      %4195 = vdwg.mxu0
      %4196 = vmatpush.bf16.msra.mxu0 0
      %4197 = vmatpush.bf16.msra.mxu0 0
      %4198 = vmatpush.bf16.msra.mxu0 0
      %4199 = vmatpush.bf16.msra.mxu0 0
      %4200 = vmatpush.bf16.msra.mxu0 0
      %4201 = vmatpush.bf16.msra.mxu0 0
      %4202 = vmatpush.bf16.msra.mxu0 %v3587
      %4203 = vmatpush.bf16.msra.mxu0 %v3583
      %4204 = vmatmul.bf16.gmra.mxu0 %v855
      %v4205 = vpop.f32.mrf.mxu0
      %v4206 = vadd.f32 0.0, %v4205
      %v4207 = vpop.f32.mrf.mxu0
      %v4208 = vadd.f32 0.0, %v4207
      %4209 = vmatmul.bf16.gmra.mxu0 %v858
      %v4210 = vpop.f32.mrf.mxu0
      %v4211 = vadd.f32 0.0, %v4210
      %v4212 = vpop.f32.mrf.mxu0
      %v4213 = vadd.f32 0.0, %v4212
      %4214 = vmatmul.bf16.gmra.mxu0 %v861
      %v4215 = vpop.f32.mrf.mxu0
      %v4216 = vadd.f32 0.0, %v4215
      %v4217 = vpop.f32.mrf.mxu0
      %v4218 = vadd.f32 0.0, %v4217
      %4219 = vmatmul.bf16.gmra.mxu0 %v864
      %v4220 = vpop.f32.mrf.mxu0
      %v4221 = vadd.f32 0.0, %v4220
      %v4222 = vpop.f32.mrf.mxu0
      %v4223 = vadd.f32 0.0, %v4222
      %4224 = vmatmul.bf16.gmra.mxu0 %v867
      %v4225 = vpop.f32.mrf.mxu0
      %v4226 = vadd.f32 0.0, %v4225
      %v4227 = vpop.f32.mrf.mxu0
      %v4228 = vadd.f32 0.0, %v4227
      %4229 = vmatmul.bf16.gmra.mxu0 %v870
      %v4230 = vpop.f32.mrf.mxu0
      %v4231 = vadd.f32 0.0, %v4230
      %v4232 = vpop.f32.mrf.mxu0
      %v4233 = vadd.f32 0.0, %v4232
      %4234 = vmatmul.bf16.gmra.mxu0 %v3830
      %v4235 = vpop.f32.mrf.mxu0
      %v4236 = vadd.f32 0.0, %v4235
      %v4237 = vpop.f32.mrf.mxu0
      %v4238 = vadd.f32 0.0, %v4237
      %4239 = vdwg.mxu0
      %v4240 = vadd.f32 %v3210, %v4074
      %v4241 = vadd.f32 %v3211, %v4118
      %v4242 = vadd.f32 %v3212, %v4162
      %v4243 = vadd.f32 %v3213, %v4206
      %v4244 = vadd.f32 %v3214, %v4076
      %v4245 = vadd.f32 %v3215, %v4120
      %v4246 = vadd.f32 %v3216, %v4164
      %v4247 = vadd.f32 %v3217, %v4208
      %v4248 = vadd.f32 %v3218, %v4079
      %v4249 = vadd.f32 %v3219, %v4123
      %v4250 = vadd.f32 %v3220, %v4167
      %v4251 = vadd.f32 %v3221, %v4211
      %v4252 = vadd.f32 %v3222, %v4081
      %v4253 = vadd.f32 %v3223, %v4125
      %v4254 = vadd.f32 %v3224, %v4169
      %v4255 = vadd.f32 %v3225, %v4213
      %v4256 = vadd.f32 %v3226, %v4084
      %v4257 = vadd.f32 %v3227, %v4128
      %v4258 = vadd.f32 %v3228, %v4172
      %v4259 = vadd.f32 %v3229, %v4216
      %v4260 = vadd.f32 %v3230, %v4086
      %v4261 = vadd.f32 %v3231, %v4130
      %v4262 = vadd.f32 %v3232, %v4174
      %v4263 = vadd.f32 %v3233, %v4218
      %v4264 = vadd.f32 %v3234, %v4089
      %v4265 = vadd.f32 %v3235, %v4133
      %v4266 = vadd.f32 %v3236, %v4177
      %v4267 = vadd.f32 %v3237, %v4221
      %v4268 = vadd.f32 %v3238, %v4091
      %v4269 = vadd.f32 %v3239, %v4135
      %v4270 = vadd.f32 %v3240, %v4179
      %v4271 = vadd.f32 %v3241, %v4223
      %v4272 = vadd.f32 %v3242, %v4094
      %v4273 = vadd.f32 %v3243, %v4138
      %v4274 = vadd.f32 %v3244, %v4182
      %v4275 = vadd.f32 %v3245, %v4226
      %v4276 = vadd.f32 %v3246, %v4096
      %v4277 = vadd.f32 %v3247, %v4140
      %v4278 = vadd.f32 %v3248, %v4184
      %v4279 = vadd.f32 %v3249, %v4228
      %v4280 = vadd.f32 %v3250, %v4099
      %v4281 = vadd.f32 %v3251, %v4143
      %v4282 = vadd.f32 %v3252, %v4187
      %v4283 = vadd.f32 %v3253, %v4231
      %v4284 = vadd.f32 %v3254, %v4101
      %v4285 = vadd.f32 %v3255, %v4145
      %v4286 = vadd.f32 %v3256, %v4189
      %v4287 = vadd.f32 %v3257, %v4233
      %v4288 = vadd.f32 %v3258, %v4104
      %v4289 = vadd.f32 %v3259, %v4148
      %v4290 = vadd.f32 %v3260, %v4192
      %v4291 = vadd.f32 %v3261, %v4236
      %v4292 = vadd.f32 %v3262, %v4106
      %v4293 = vadd.f32 %v3263, %v4150
      %v4294 = vadd.f32 %v3264, %v4194
      %v4295 = vadd.f32 %v3265, %v4238
      %s4296 = scalar_lea.vmem %s2, 256
      %v4297 = vld [vmem:[%s4296] sm:$0xff]
      %v4298 = vld [vmem:[%s4296 + $0x8] sm:$0xff]
      %v4299 = vld [vmem:[%s4296 + $0x10] sm:$0xff]
      %v4300 = vld [vmem:[%s4296 + $0x18] sm:$0xff]
      %v4301 = vld [vmem:[%s4296 + $0x20] sm:$0xff]
      %v4302 = vld [vmem:[%s4296 + $0x28] sm:$0xff]
      %v4303 = vld [vmem:[%s4296 + $0x30] sm:$0xff]
      %v4304 = vld [vmem:[%s4296 + $0x38] sm:$0xff]
      %s4305 = scalar_lea.vmem %s3, 256
      %v4306 = vld [vmem:[%s4305] sm:$0xff]
      %v4307 = vld [vmem:[%s4305 + $0x8] sm:$0xff]
      %v4308 = vld [vmem:[%s4305 + $0x10] sm:$0xff]
      %v4309 = vld [vmem:[%s4305 + $0x18] sm:$0xff]
      %v4310 = vld [vmem:[%s4305 + $0x20] sm:$0xff]
      %v4311 = vld [vmem:[%s4305 + $0x28] sm:$0xff]
      %v4312 = vld [vmem:[%s4305 + $0x30] sm:$0xff]
      %v4313 = vld [vmem:[%s4305 + $0x38] sm:$0xff]
      %v4322 = vunpack.c.l.b16 %v4297
      %v4323 = vunpack.c.h.b16 %v4297
      %v4324 = vunpack.c.l.b16 %v4298
      %v4325 = vunpack.c.h.b16 %v4298
      %v4326 = vunpack.c.l.b16 %v4299
      %v4327 = vunpack.c.h.b16 %v4299
      %v4328 = vunpack.c.l.b16 %v4300
      %v4329 = vunpack.c.h.b16 %v4300
      %v4330 = vunpack.c.l.b16 %v4301
      %v4331 = vunpack.c.h.b16 %v4301
      %v4332 = vunpack.c.l.b16 %v4302
      %v4333 = vunpack.c.h.b16 %v4302
      %v4334 = vunpack.c.l.b16 %v4303
      %v4335 = vunpack.c.h.b16 %v4303
      %v4336 = vunpack.c.l.b16 %v4304
      %v4337 = vunpack.c.h.b16 %v4304
      %v4338 = vpack.c.b16 %v4326, %v4322
      %v4339 = vpack.c.b16 %v4327, %v4323
      %v4340 = vpack.c.b16 %v4328, %v4324
      %v4341 = vpack.c.b16 %v4329, %v4325
      %v4342 = vpack.c.b16 %v4334, %v4330
      %v4343 = vpack.c.b16 %v4335, %v4331
      %v4344 = vpack.c.b16 %v4336, %v4332
      %v4345 = vpack.c.b16 %v4337, %v4333
      %4354 = vmatpush.bf16.msra.mxu0 0
      %4355 = vmatpush.bf16.msra.mxu0 0
      %4356 = vmatpush.bf16.msra.mxu0 0
      %4357 = vmatpush.bf16.msra.mxu0 0
      %4358 = vmatpush.bf16.msra.mxu0 0
      %4359 = vmatpush.bf16.msra.mxu0 0
      %4360 = vmatpush.bf16.msra.mxu0 %v4342
      %4361 = vmatpush.bf16.msra.mxu0 %v4338
      %4362 = vmatmul.bf16.gmra.mxu0 %v855
      %v4363 = vpop.f32.mrf.mxu0
      %v4364 = vadd.f32 0.0, %v4363
      %v4365 = vpop.f32.mrf.mxu0
      %v4366 = vadd.f32 0.0, %v4365
      %4367 = vmatmul.bf16.gmra.mxu0 %v858
      %v4368 = vpop.f32.mrf.mxu0
      %v4369 = vadd.f32 0.0, %v4368
      %v4370 = vpop.f32.mrf.mxu0
      %v4371 = vadd.f32 0.0, %v4370
      %4372 = vmatmul.bf16.gmra.mxu0 %v861
      %v4373 = vpop.f32.mrf.mxu0
      %v4374 = vadd.f32 0.0, %v4373
      %v4375 = vpop.f32.mrf.mxu0
      %v4376 = vadd.f32 0.0, %v4375
      %4377 = vmatmul.bf16.gmra.mxu0 %v864
      %v4378 = vpop.f32.mrf.mxu0
      %v4379 = vadd.f32 0.0, %v4378
      %v4380 = vpop.f32.mrf.mxu0
      %v4381 = vadd.f32 0.0, %v4380
      %4382 = vmatmul.bf16.gmra.mxu0 %v867
      %v4383 = vpop.f32.mrf.mxu0
      %v4384 = vadd.f32 0.0, %v4383
      %v4385 = vpop.f32.mrf.mxu0
      %v4386 = vadd.f32 0.0, %v4385
      %4387 = vmatmul.bf16.gmra.mxu0 %v870
      %v4388 = vpop.f32.mrf.mxu0
      %v4389 = vadd.f32 0.0, %v4388
      %v4390 = vpop.f32.mrf.mxu0
      %v4391 = vadd.f32 0.0, %v4390
      %4392 = vmatmul.bf16.gmra.mxu0 %v3830
      %v4393 = vpop.f32.mrf.mxu0
      %v4394 = vadd.f32 0.0, %v4393
      %v4395 = vpop.f32.mrf.mxu0
      %v4396 = vadd.f32 0.0, %v4395
      %4397 = vdwg.mxu0
      %4398 = vmatpush.bf16.msra.mxu0 0
      %4399 = vmatpush.bf16.msra.mxu0 0
      %4400 = vmatpush.bf16.msra.mxu0 0
      %4401 = vmatpush.bf16.msra.mxu0 0
      %4402 = vmatpush.bf16.msra.mxu0 0
      %4403 = vmatpush.bf16.msra.mxu0 0
      %4404 = vmatpush.bf16.msra.mxu0 %v4343
      %4405 = vmatpush.bf16.msra.mxu0 %v4339
      %4406 = vmatmul.bf16.gmra.mxu0 %v855
      %v4407 = vpop.f32.mrf.mxu0
      %v4408 = vadd.f32 0.0, %v4407
      %v4409 = vpop.f32.mrf.mxu0
      %v4410 = vadd.f32 0.0, %v4409
      %4411 = vmatmul.bf16.gmra.mxu0 %v858
      %v4412 = vpop.f32.mrf.mxu0
      %v4413 = vadd.f32 0.0, %v4412
      %v4414 = vpop.f32.mrf.mxu0
      %v4415 = vadd.f32 0.0, %v4414
      %4416 = vmatmul.bf16.gmra.mxu0 %v861
      %v4417 = vpop.f32.mrf.mxu0
      %v4418 = vadd.f32 0.0, %v4417
      %v4419 = vpop.f32.mrf.mxu0
      %v4420 = vadd.f32 0.0, %v4419
      %4421 = vmatmul.bf16.gmra.mxu0 %v864
      %v4422 = vpop.f32.mrf.mxu0
      %v4423 = vadd.f32 0.0, %v4422
      %v4424 = vpop.f32.mrf.mxu0
      %v4425 = vadd.f32 0.0, %v4424
      %4426 = vmatmul.bf16.gmra.mxu0 %v867
      %v4427 = vpop.f32.mrf.mxu0
      %v4428 = vadd.f32 0.0, %v4427
      %v4429 = vpop.f32.mrf.mxu0
      %v4430 = vadd.f32 0.0, %v4429
      %4431 = vmatmul.bf16.gmra.mxu0 %v870
      %v4432 = vpop.f32.mrf.mxu0
      %v4433 = vadd.f32 0.0, %v4432
      %v4434 = vpop.f32.mrf.mxu0
      %v4435 = vadd.f32 0.0, %v4434
      %4436 = vmatmul.bf16.gmra.mxu0 %v3830
      %v4437 = vpop.f32.mrf.mxu0
      %v4438 = vadd.f32 0.0, %v4437
      %v4439 = vpop.f32.mrf.mxu0
      %v4440 = vadd.f32 0.0, %v4439
      %4441 = vdwg.mxu0
      %4442 = vmatpush.bf16.msra.mxu0 0
      %4443 = vmatpush.bf16.msra.mxu0 0
      %4444 = vmatpush.bf16.msra.mxu0 0
      %4445 = vmatpush.bf16.msra.mxu0 0
      %4446 = vmatpush.bf16.msra.mxu0 0
      %4447 = vmatpush.bf16.msra.mxu0 0
      %4448 = vmatpush.bf16.msra.mxu0 %v4344
      %4449 = vmatpush.bf16.msra.mxu0 %v4340
      %4450 = vmatmul.bf16.gmra.mxu0 %v855
      %v4451 = vpop.f32.mrf.mxu0
      %v4452 = vadd.f32 0.0, %v4451
      %v4453 = vpop.f32.mrf.mxu0
      %v4454 = vadd.f32 0.0, %v4453
      %4455 = vmatmul.bf16.gmra.mxu0 %v858
      %v4456 = vpop.f32.mrf.mxu0
      %v4457 = vadd.f32 0.0, %v4456
      %v4458 = vpop.f32.mrf.mxu0
      %v4459 = vadd.f32 0.0, %v4458
      %4460 = vmatmul.bf16.gmra.mxu0 %v861
      %v4461 = vpop.f32.mrf.mxu0
      %v4462 = vadd.f32 0.0, %v4461
      %v4463 = vpop.f32.mrf.mxu0
      %v4464 = vadd.f32 0.0, %v4463
      %4465 = vmatmul.bf16.gmra.mxu0 %v864
      %v4466 = vpop.f32.mrf.mxu0
      %v4467 = vadd.f32 0.0, %v4466
      %v4468 = vpop.f32.mrf.mxu0
      %v4469 = vadd.f32 0.0, %v4468
      %4470 = vmatmul.bf16.gmra.mxu0 %v867
      %v4471 = vpop.f32.mrf.mxu0
      %v4472 = vadd.f32 0.0, %v4471
      %v4473 = vpop.f32.mrf.mxu0
      %v4474 = vadd.f32 0.0, %v4473
      %4475 = vmatmul.bf16.gmra.mxu0 %v870
      %v4476 = vpop.f32.mrf.mxu0
      %v4477 = vadd.f32 0.0, %v4476
      %v4478 = vpop.f32.mrf.mxu0
      %v4479 = vadd.f32 0.0, %v4478
      %4480 = vmatmul.bf16.gmra.mxu0 %v3830
      %v4481 = vpop.f32.mrf.mxu0
      %v4482 = vadd.f32 0.0, %v4481
      %v4483 = vpop.f32.mrf.mxu0
      %v4484 = vadd.f32 0.0, %v4483
      %4485 = vdwg.mxu0
      %4486 = vmatpush.bf16.msra.mxu0 0
      %4487 = vmatpush.bf16.msra.mxu0 0
      %4488 = vmatpush.bf16.msra.mxu0 0
      %4489 = vmatpush.bf16.msra.mxu0 0
      %4490 = vmatpush.bf16.msra.mxu0 0
      %4491 = vmatpush.bf16.msra.mxu0 0
      %4492 = vmatpush.bf16.msra.mxu0 %v4345
      %4493 = vmatpush.bf16.msra.mxu0 %v4341
      %4494 = vmatmul.bf16.gmra.mxu0 %v855
      %v4495 = vpop.f32.mrf.mxu0
      %v4496 = vadd.f32 0.0, %v4495
      %v4497 = vpop.f32.mrf.mxu0
      %v4498 = vadd.f32 0.0, %v4497
      %4499 = vmatmul.bf16.gmra.mxu0 %v858
      %v4500 = vpop.f32.mrf.mxu0
      %v4501 = vadd.f32 0.0, %v4500
      %v4502 = vpop.f32.mrf.mxu0
      %v4503 = vadd.f32 0.0, %v4502
      %4504 = vmatmul.bf16.gmra.mxu0 %v861
      %v4505 = vpop.f32.mrf.mxu0
      %v4506 = vadd.f32 0.0, %v4505
      %v4507 = vpop.f32.mrf.mxu0
      %v4508 = vadd.f32 0.0, %v4507
      %4509 = vmatmul.bf16.gmra.mxu0 %v864
      %v4510 = vpop.f32.mrf.mxu0
      %v4511 = vadd.f32 0.0, %v4510
      %v4512 = vpop.f32.mrf.mxu0
      %v4513 = vadd.f32 0.0, %v4512
      %4514 = vmatmul.bf16.gmra.mxu0 %v867
      %v4515 = vpop.f32.mrf.mxu0
      %v4516 = vadd.f32 0.0, %v4515
      %v4517 = vpop.f32.mrf.mxu0
      %v4518 = vadd.f32 0.0, %v4517
      %4519 = vmatmul.bf16.gmra.mxu0 %v870
      %v4520 = vpop.f32.mrf.mxu0
      %v4521 = vadd.f32 0.0, %v4520
      %v4522 = vpop.f32.mrf.mxu0
      %v4523 = vadd.f32 0.0, %v4522
      %4524 = vmatmul.bf16.gmra.mxu0 %v3830
      %v4525 = vpop.f32.mrf.mxu0
      %v4526 = vadd.f32 0.0, %v4525
      %v4527 = vpop.f32.mrf.mxu0
      %v4528 = vadd.f32 0.0, %v4527
      %4529 = vdwg.mxu0
      %v4530 = vadd.f32 %v3500, %v4364
      %v4531 = vadd.f32 %v3501, %v4408
      %v4532 = vadd.f32 %v3502, %v4452
      %v4533 = vadd.f32 %v3503, %v4496
      %v4534 = vadd.f32 %v3504, %v4366
      %v4535 = vadd.f32 %v3505, %v4410
      %v4536 = vadd.f32 %v3506, %v4454
      %v4537 = vadd.f32 %v3507, %v4498
      %v4538 = vadd.f32 %v3508, %v4369
      %v4539 = vadd.f32 %v3509, %v4413
      %v4540 = vadd.f32 %v3510, %v4457
      %v4541 = vadd.f32 %v3511, %v4501
      %v4542 = vadd.f32 %v3512, %v4371
      %v4543 = vadd.f32 %v3513, %v4415
      %v4544 = vadd.f32 %v3514, %v4459
      %v4545 = vadd.f32 %v3515, %v4503
      %v4546 = vadd.f32 %v3516, %v4374
      %v4547 = vadd.f32 %v3517, %v4418
      %v4548 = vadd.f32 %v3518, %v4462
      %v4549 = vadd.f32 %v3519, %v4506
      %v4550 = vadd.f32 %v3520, %v4376
      %v4551 = vadd.f32 %v3521, %v4420
      %v4552 = vadd.f32 %v3522, %v4464
      %v4553 = vadd.f32 %v3523, %v4508
      %v4554 = vadd.f32 %v3524, %v4379
      %v4555 = vadd.f32 %v3525, %v4423
      %v4556 = vadd.f32 %v3526, %v4467
      %v4557 = vadd.f32 %v3527, %v4511
      %v4558 = vadd.f32 %v3528, %v4381
      %v4559 = vadd.f32 %v3529, %v4425
      %v4560 = vadd.f32 %v3530, %v4469
      %v4561 = vadd.f32 %v3531, %v4513
      %v4562 = vadd.f32 %v3532, %v4384
      %v4563 = vadd.f32 %v3533, %v4428
      %v4564 = vadd.f32 %v3534, %v4472
      %v4565 = vadd.f32 %v3535, %v4516
      %v4566 = vadd.f32 %v3536, %v4386
      %v4567 = vadd.f32 %v3537, %v4430
      %v4568 = vadd.f32 %v3538, %v4474
      %v4569 = vadd.f32 %v3539, %v4518
      %v4570 = vadd.f32 %v3540, %v4389
      %v4571 = vadd.f32 %v3541, %v4433
      %v4572 = vadd.f32 %v3542, %v4477
      %v4573 = vadd.f32 %v3543, %v4521
      %v4574 = vadd.f32 %v3544, %v4391
      %v4575 = vadd.f32 %v3545, %v4435
      %v4576 = vadd.f32 %v3546, %v4479
      %v4577 = vadd.f32 %v3547, %v4523
      %v4578 = vadd.f32 %v3548, %v4394
      %v4579 = vadd.f32 %v3549, %v4438
      %v4580 = vadd.f32 %v3550, %v4482
      %v4581 = vadd.f32 %v3551, %v4526
      %v4582 = vadd.f32 %v3552, %v4396
      %v4583 = vadd.f32 %v3553, %v4440
      %v4584 = vadd.f32 %v3554, %v4484
      %v4585 = vadd.f32 %v3555, %v4528
      %v4594 = vunpack.c.l.b16 %v4306
      %v4595 = vunpack.c.h.b16 %v4306
      %v4596 = vunpack.c.l.b16 %v4307
      %v4597 = vunpack.c.h.b16 %v4307
      %v4598 = vunpack.c.l.b16 %v4308
      %v4599 = vunpack.c.h.b16 %v4308
      %v4600 = vunpack.c.l.b16 %v4309
      %v4601 = vunpack.c.h.b16 %v4309
      %v4602 = vunpack.c.l.b16 %v4310
      %v4603 = vunpack.c.h.b16 %v4310
      %v4604 = vunpack.c.l.b16 %v4311
      %v4605 = vunpack.c.h.b16 %v4311
      %v4606 = vunpack.c.l.b16 %v4312
      %v4607 = vunpack.c.h.b16 %v4312
      %v4608 = vunpack.c.l.b16 %v4313
      %v4609 = vunpack.c.h.b16 %v4313
      %v4610 = vpack.c.b16 %v4598, %v4594
      %v4611 = vpack.c.b16 %v4599, %v4595
      %v4612 = vpack.c.b16 %v4600, %v4596
      %v4613 = vpack.c.b16 %v4601, %v4597
      %v4614 = vpack.c.b16 %v4606, %v4602
      %v4615 = vpack.c.b16 %v4607, %v4603
      %v4616 = vpack.c.b16 %v4608, %v4604
      %v4617 = vpack.c.b16 %v4609, %v4605
      %4626 = vmatpush.bf16.msra.mxu0 0
      %4627 = vmatpush.bf16.msra.mxu0 0
      %4628 = vmatpush.bf16.msra.mxu0 0
      %4629 = vmatpush.bf16.msra.mxu0 0
      %4630 = vmatpush.bf16.msra.mxu0 0
      %4631 = vmatpush.bf16.msra.mxu0 0
      %4632 = vmatpush.bf16.msra.mxu0 %v4614
      %4633 = vmatpush.bf16.msra.mxu0 %v4610
      %4634 = vmatmul.bf16.gmra.mxu0 %v855
      %v4635 = vpop.f32.mrf.mxu0
      %v4636 = vadd.f32 0.0, %v4635
      %v4637 = vpop.f32.mrf.mxu0
      %v4638 = vadd.f32 0.0, %v4637
      %4639 = vmatmul.bf16.gmra.mxu0 %v858
      %v4640 = vpop.f32.mrf.mxu0
      %v4641 = vadd.f32 0.0, %v4640
      %v4642 = vpop.f32.mrf.mxu0
      %v4643 = vadd.f32 0.0, %v4642
      %4644 = vmatmul.bf16.gmra.mxu0 %v861
      %v4645 = vpop.f32.mrf.mxu0
      %v4646 = vadd.f32 0.0, %v4645
      %v4647 = vpop.f32.mrf.mxu0
      %v4648 = vadd.f32 0.0, %v4647
      %4649 = vmatmul.bf16.gmra.mxu0 %v864
      %v4650 = vpop.f32.mrf.mxu0
      %v4651 = vadd.f32 0.0, %v4650
      %v4652 = vpop.f32.mrf.mxu0
      %v4653 = vadd.f32 0.0, %v4652
      %4654 = vmatmul.bf16.gmra.mxu0 %v867
      %v4655 = vpop.f32.mrf.mxu0
      %v4656 = vadd.f32 0.0, %v4655
      %v4657 = vpop.f32.mrf.mxu0
      %v4658 = vadd.f32 0.0, %v4657
      %4659 = vmatmul.bf16.gmra.mxu0 %v870
      %v4660 = vpop.f32.mrf.mxu0
      %v4661 = vadd.f32 0.0, %v4660
      %v4662 = vpop.f32.mrf.mxu0
      %v4663 = vadd.f32 0.0, %v4662
      %4664 = vmatmul.bf16.gmra.mxu0 %v3830
      %v4665 = vpop.f32.mrf.mxu0
      %v4666 = vadd.f32 0.0, %v4665
      %v4667 = vpop.f32.mrf.mxu0
      %v4668 = vadd.f32 0.0, %v4667
      %4669 = vdwg.mxu0
      %4670 = vmatpush.bf16.msra.mxu0 0
      %4671 = vmatpush.bf16.msra.mxu0 0
      %4672 = vmatpush.bf16.msra.mxu0 0
      %4673 = vmatpush.bf16.msra.mxu0 0
      %4674 = vmatpush.bf16.msra.mxu0 0
      %4675 = vmatpush.bf16.msra.mxu0 0
      %4676 = vmatpush.bf16.msra.mxu0 %v4615
      %4677 = vmatpush.bf16.msra.mxu0 %v4611
      %4678 = vmatmul.bf16.gmra.mxu0 %v855
      %v4679 = vpop.f32.mrf.mxu0
      %v4680 = vadd.f32 0.0, %v4679
      %v4681 = vpop.f32.mrf.mxu0
      %v4682 = vadd.f32 0.0, %v4681
      %4683 = vmatmul.bf16.gmra.mxu0 %v858
      %v4684 = vpop.f32.mrf.mxu0
      %v4685 = vadd.f32 0.0, %v4684
      %v4686 = vpop.f32.mrf.mxu0
      %v4687 = vadd.f32 0.0, %v4686
      %4688 = vmatmul.bf16.gmra.mxu0 %v861
      %v4689 = vpop.f32.mrf.mxu0
      %v4690 = vadd.f32 0.0, %v4689
      %v4691 = vpop.f32.mrf.mxu0
      %v4692 = vadd.f32 0.0, %v4691
      %4693 = vmatmul.bf16.gmra.mxu0 %v864
      %v4694 = vpop.f32.mrf.mxu0
      %v4695 = vadd.f32 0.0, %v4694
      %v4696 = vpop.f32.mrf.mxu0
      %v4697 = vadd.f32 0.0, %v4696
      %4698 = vmatmul.bf16.gmra.mxu0 %v867
      %v4699 = vpop.f32.mrf.mxu0
      %v4700 = vadd.f32 0.0, %v4699
      %v4701 = vpop.f32.mrf.mxu0
      %v4702 = vadd.f32 0.0, %v4701
      %4703 = vmatmul.bf16.gmra.mxu0 %v870
      %v4704 = vpop.f32.mrf.mxu0
      %v4705 = vadd.f32 0.0, %v4704
      %v4706 = vpop.f32.mrf.mxu0
      %v4707 = vadd.f32 0.0, %v4706
      %4708 = vmatmul.bf16.gmra.mxu0 %v3830
      %v4709 = vpop.f32.mrf.mxu0
      %v4710 = vadd.f32 0.0, %v4709
      %v4711 = vpop.f32.mrf.mxu0
      %v4712 = vadd.f32 0.0, %v4711
      %4713 = vdwg.mxu0
      %4714 = vmatpush.bf16.msra.mxu0 0
      %4715 = vmatpush.bf16.msra.mxu0 0
      %4716 = vmatpush.bf16.msra.mxu0 0
      %4717 = vmatpush.bf16.msra.mxu0 0
      %4718 = vmatpush.bf16.msra.mxu0 0
      %4719 = vmatpush.bf16.msra.mxu0 0
      %4720 = vmatpush.bf16.msra.mxu0 %v4616
      %4721 = vmatpush.bf16.msra.mxu0 %v4612
      %4722 = vmatmul.bf16.gmra.mxu0 %v855
      %v4723 = vpop.f32.mrf.mxu0
      %v4724 = vadd.f32 0.0, %v4723
      %v4725 = vpop.f32.mrf.mxu0
      %v4726 = vadd.f32 0.0, %v4725
      %4727 = vmatmul.bf16.gmra.mxu0 %v858
      %v4728 = vpop.f32.mrf.mxu0
      %v4729 = vadd.f32 0.0, %v4728
      %v4730 = vpop.f32.mrf.mxu0
      %v4731 = vadd.f32 0.0, %v4730
      %4732 = vmatmul.bf16.gmra.mxu0 %v861
      %v4733 = vpop.f32.mrf.mxu0
      %v4734 = vadd.f32 0.0, %v4733
      %v4735 = vpop.f32.mrf.mxu0
      %v4736 = vadd.f32 0.0, %v4735
      %4737 = vmatmul.bf16.gmra.mxu0 %v864
      %v4738 = vpop.f32.mrf.mxu0
      %v4739 = vadd.f32 0.0, %v4738
      %v4740 = vpop.f32.mrf.mxu0
      %v4741 = vadd.f32 0.0, %v4740
      %4742 = vmatmul.bf16.gmra.mxu0 %v867
      %v4743 = vpop.f32.mrf.mxu0
      %v4744 = vadd.f32 0.0, %v4743
      %v4745 = vpop.f32.mrf.mxu0
      %v4746 = vadd.f32 0.0, %v4745
      %4747 = vmatmul.bf16.gmra.mxu0 %v870
      %v4748 = vpop.f32.mrf.mxu0
      %v4749 = vadd.f32 0.0, %v4748
      %v4750 = vpop.f32.mrf.mxu0
      %v4751 = vadd.f32 0.0, %v4750
      %4752 = vmatmul.bf16.gmra.mxu0 %v3830
      %v4753 = vpop.f32.mrf.mxu0
      %v4754 = vadd.f32 0.0, %v4753
      %v4755 = vpop.f32.mrf.mxu0
      %v4756 = vadd.f32 0.0, %v4755
      %4757 = vdwg.mxu0
      %4758 = vmatpush.bf16.msra.mxu0 0
      %4759 = vmatpush.bf16.msra.mxu0 0
      %4760 = vmatpush.bf16.msra.mxu0 0
      %4761 = vmatpush.bf16.msra.mxu0 0
      %4762 = vmatpush.bf16.msra.mxu0 0
      %4763 = vmatpush.bf16.msra.mxu0 0
      %4764 = vmatpush.bf16.msra.mxu0 %v4617
      %4765 = vmatpush.bf16.msra.mxu0 %v4613
      %4766 = vmatmul.bf16.gmra.mxu0 %v855
      %v4767 = vpop.f32.mrf.mxu0
      %v4768 = vadd.f32 0.0, %v4767
      %v4769 = vpop.f32.mrf.mxu0
      %v4770 = vadd.f32 0.0, %v4769
      %4771 = vmatmul.bf16.gmra.mxu0 %v858
      %v4772 = vpop.f32.mrf.mxu0
      %v4773 = vadd.f32 0.0, %v4772
      %v4774 = vpop.f32.mrf.mxu0
      %v4775 = vadd.f32 0.0, %v4774
      %4776 = vmatmul.bf16.gmra.mxu0 %v861
      %v4777 = vpop.f32.mrf.mxu0
      %v4778 = vadd.f32 0.0, %v4777
      %v4779 = vpop.f32.mrf.mxu0
      %v4780 = vadd.f32 0.0, %v4779
      %4781 = vmatmul.bf16.gmra.mxu0 %v864
      %v4782 = vpop.f32.mrf.mxu0
      %v4783 = vadd.f32 0.0, %v4782
      %v4784 = vpop.f32.mrf.mxu0
      %v4785 = vadd.f32 0.0, %v4784
      %4786 = vmatmul.bf16.gmra.mxu0 %v867
      %v4787 = vpop.f32.mrf.mxu0
      %v4788 = vadd.f32 0.0, %v4787
      %v4789 = vpop.f32.mrf.mxu0
      %v4790 = vadd.f32 0.0, %v4789
      %4791 = vmatmul.bf16.gmra.mxu0 %v870
      %v4792 = vpop.f32.mrf.mxu0
      %v4793 = vadd.f32 0.0, %v4792
      %v4794 = vpop.f32.mrf.mxu0
      %v4795 = vadd.f32 0.0, %v4794
      %4796 = vmatmul.bf16.gmra.mxu0 %v3830
      %v4797 = vpop.f32.mrf.mxu0
      %v4798 = vadd.f32 0.0, %v4797
      %v4799 = vpop.f32.mrf.mxu0
      %v4800 = vadd.f32 0.0, %v4799
      %4801 = vdwg.mxu0
      %v4802 = vadd.f32 %v3772, %v4636
      %v4803 = vadd.f32 %v3773, %v4680
      %v4804 = vadd.f32 %v3774, %v4724
      %v4805 = vadd.f32 %v3775, %v4768
      %v4806 = vadd.f32 %v3776, %v4638
      %v4807 = vadd.f32 %v3777, %v4682
      %v4808 = vadd.f32 %v3778, %v4726
      %v4809 = vadd.f32 %v3779, %v4770
      %v4810 = vadd.f32 %v3780, %v4641
      %v4811 = vadd.f32 %v3781, %v4685
      %v4812 = vadd.f32 %v3782, %v4729
      %v4813 = vadd.f32 %v3783, %v4773
      %v4814 = vadd.f32 %v3784, %v4643
      %v4815 = vadd.f32 %v3785, %v4687
      %v4816 = vadd.f32 %v3786, %v4731
      %v4817 = vadd.f32 %v3787, %v4775
      %v4818 = vadd.f32 %v3788, %v4646
      %v4819 = vadd.f32 %v3789, %v4690
      %v4820 = vadd.f32 %v3790, %v4734
      %v4821 = vadd.f32 %v3791, %v4778
      %v4822 = vadd.f32 %v3792, %v4648
      %v4823 = vadd.f32 %v3793, %v4692
      %v4824 = vadd.f32 %v3794, %v4736
      %v4825 = vadd.f32 %v3795, %v4780
      %v4826 = vadd.f32 %v3796, %v4651
      %v4827 = vadd.f32 %v3797, %v4695
      %v4828 = vadd.f32 %v3798, %v4739
      %v4829 = vadd.f32 %v3799, %v4783
      %v4830 = vadd.f32 %v3800, %v4653
      %v4831 = vadd.f32 %v3801, %v4697
      %v4832 = vadd.f32 %v3802, %v4741
      %v4833 = vadd.f32 %v3803, %v4785
      %v4834 = vadd.f32 %v3804, %v4656
      %v4835 = vadd.f32 %v3805, %v4700
      %v4836 = vadd.f32 %v3806, %v4744
      %v4837 = vadd.f32 %v3807, %v4788
      %v4838 = vadd.f32 %v3808, %v4658
      %v4839 = vadd.f32 %v3809, %v4702
      %v4840 = vadd.f32 %v3810, %v4746
      %v4841 = vadd.f32 %v3811, %v4790
      %v4842 = vadd.f32 %v3812, %v4661
      %v4843 = vadd.f32 %v3813, %v4705
      %v4844 = vadd.f32 %v3814, %v4749
      %v4845 = vadd.f32 %v3815, %v4793
      %v4846 = vadd.f32 %v3816, %v4663
      %v4847 = vadd.f32 %v3817, %v4707
      %v4848 = vadd.f32 %v3818, %v4751
      %v4849 = vadd.f32 %v3819, %v4795
      %v4850 = vadd.f32 %v3820, %v4666
      %v4851 = vadd.f32 %v3821, %v4710
      %v4852 = vadd.f32 %v3822, %v4754
      %v4853 = vadd.f32 %v3823, %v4798
      %v4854 = vadd.f32 %v3824, %v4668
      %v4855 = vadd.f32 %v3825, %v4712
      %v4856 = vadd.f32 %v3826, %v4756
      %v4857 = vadd.f32 %v3827, %v4800
      %v4858 = vpack.c.bf16 %v524, %v523
      %v4860 = vsel %vm613, %v4858, 0
      %4862 = vmatpush.bf16.msra.mxu0 0
      %4863 = vmatpush.bf16.msra.mxu0 0
      %4864 = vmatpush.bf16.msra.mxu0 0
      %4865 = vmatpush.bf16.msra.mxu0 0
      %4866 = vmatpush.bf16.msra.mxu0 0
      %4867 = vmatpush.bf16.msra.mxu0 0
      %4868 = vmatpush.bf16.msra.mxu0 %v4342
      %4869 = vmatpush.bf16.msra.mxu0 %v4338
      %4870 = vmatmul.bf16.gmra.mxu0 %v618
      %v4871 = vpop.f32.mrf.mxu0
      %v4872 = vadd.f32 0.0, %v4871
      %v4873 = vpop.f32.mrf.mxu0
      %v4874 = vadd.f32 0.0, %v4873
      %4875 = vmatmul.bf16.gmra.mxu0 %v621
      %v4876 = vpop.f32.mrf.mxu0
      %v4877 = vadd.f32 0.0, %v4876
      %v4878 = vpop.f32.mrf.mxu0
      %v4879 = vadd.f32 0.0, %v4878
      %4880 = vmatmul.bf16.gmra.mxu0 %v624
      %v4881 = vpop.f32.mrf.mxu0
      %v4882 = vadd.f32 0.0, %v4881
      %v4883 = vpop.f32.mrf.mxu0
      %v4884 = vadd.f32 0.0, %v4883
      %4885 = vmatmul.bf16.gmra.mxu0 %v627
      %v4886 = vpop.f32.mrf.mxu0
      %v4887 = vadd.f32 0.0, %v4886
      %v4888 = vpop.f32.mrf.mxu0
      %v4889 = vadd.f32 0.0, %v4888
      %4890 = vmatmul.bf16.gmra.mxu0 %v630
      %v4891 = vpop.f32.mrf.mxu0
      %v4892 = vadd.f32 0.0, %v4891
      %v4893 = vpop.f32.mrf.mxu0
      %v4894 = vadd.f32 0.0, %v4893
      %4895 = vmatmul.bf16.gmra.mxu0 %v633
      %v4896 = vpop.f32.mrf.mxu0
      %v4897 = vadd.f32 0.0, %v4896
      %v4898 = vpop.f32.mrf.mxu0
      %v4899 = vadd.f32 0.0, %v4898
      %4900 = vmatmul.bf16.gmra.mxu0 %v4860
      %v4901 = vpop.f32.mrf.mxu0
      %v4902 = vadd.f32 0.0, %v4901
      %v4903 = vpop.f32.mrf.mxu0
      %v4904 = vadd.f32 0.0, %v4903
      %4905 = vdwg.mxu0
      %4906 = vmatpush.bf16.msra.mxu0 0
      %4907 = vmatpush.bf16.msra.mxu0 0
      %4908 = vmatpush.bf16.msra.mxu0 0
      %4909 = vmatpush.bf16.msra.mxu0 0
      %4910 = vmatpush.bf16.msra.mxu0 0
      %4911 = vmatpush.bf16.msra.mxu0 0
      %4912 = vmatpush.bf16.msra.mxu0 %v4343
      %4913 = vmatpush.bf16.msra.mxu0 %v4339
      %4914 = vmatmul.bf16.gmra.mxu0 %v618
      %v4915 = vpop.f32.mrf.mxu0
      %v4916 = vadd.f32 0.0, %v4915
      %v4917 = vpop.f32.mrf.mxu0
      %v4918 = vadd.f32 0.0, %v4917
      %4919 = vmatmul.bf16.gmra.mxu0 %v621
      %v4920 = vpop.f32.mrf.mxu0
      %v4921 = vadd.f32 0.0, %v4920
      %v4922 = vpop.f32.mrf.mxu0
      %v4923 = vadd.f32 0.0, %v4922
      %4924 = vmatmul.bf16.gmra.mxu0 %v624
      %v4925 = vpop.f32.mrf.mxu0
      %v4926 = vadd.f32 0.0, %v4925
      %v4927 = vpop.f32.mrf.mxu0
      %v4928 = vadd.f32 0.0, %v4927
      %4929 = vmatmul.bf16.gmra.mxu0 %v627
      %v4930 = vpop.f32.mrf.mxu0
      %v4931 = vadd.f32 0.0, %v4930
      %v4932 = vpop.f32.mrf.mxu0
      %v4933 = vadd.f32 0.0, %v4932
      %4934 = vmatmul.bf16.gmra.mxu0 %v630
      %v4935 = vpop.f32.mrf.mxu0
      %v4936 = vadd.f32 0.0, %v4935
      %v4937 = vpop.f32.mrf.mxu0
      %v4938 = vadd.f32 0.0, %v4937
      %4939 = vmatmul.bf16.gmra.mxu0 %v633
      %v4940 = vpop.f32.mrf.mxu0
      %v4941 = vadd.f32 0.0, %v4940
      %v4942 = vpop.f32.mrf.mxu0
      %v4943 = vadd.f32 0.0, %v4942
      %4944 = vmatmul.bf16.gmra.mxu0 %v4860
      %v4945 = vpop.f32.mrf.mxu0
      %v4946 = vadd.f32 0.0, %v4945
      %v4947 = vpop.f32.mrf.mxu0
      %v4948 = vadd.f32 0.0, %v4947
      %4949 = vdwg.mxu0
      %4950 = vmatpush.bf16.msra.mxu0 0
      %4951 = vmatpush.bf16.msra.mxu0 0
      %4952 = vmatpush.bf16.msra.mxu0 0
      %4953 = vmatpush.bf16.msra.mxu0 0
      %4954 = vmatpush.bf16.msra.mxu0 0
      %4955 = vmatpush.bf16.msra.mxu0 0
      %4956 = vmatpush.bf16.msra.mxu0 %v4344
      %4957 = vmatpush.bf16.msra.mxu0 %v4340
      %4958 = vmatmul.bf16.gmra.mxu0 %v618
      %v4959 = vpop.f32.mrf.mxu0
      %v4960 = vadd.f32 0.0, %v4959
      %v4961 = vpop.f32.mrf.mxu0
      %v4962 = vadd.f32 0.0, %v4961
      %4963 = vmatmul.bf16.gmra.mxu0 %v621
      %v4964 = vpop.f32.mrf.mxu0
      %v4965 = vadd.f32 0.0, %v4964
      %v4966 = vpop.f32.mrf.mxu0
      %v4967 = vadd.f32 0.0, %v4966
      %4968 = vmatmul.bf16.gmra.mxu0 %v624
      %v4969 = vpop.f32.mrf.mxu0
      %v4970 = vadd.f32 0.0, %v4969
      %v4971 = vpop.f32.mrf.mxu0
      %v4972 = vadd.f32 0.0, %v4971
      %4973 = vmatmul.bf16.gmra.mxu0 %v627
      %v4974 = vpop.f32.mrf.mxu0
      %v4975 = vadd.f32 0.0, %v4974
      %v4976 = vpop.f32.mrf.mxu0
      %v4977 = vadd.f32 0.0, %v4976
      %4978 = vmatmul.bf16.gmra.mxu0 %v630
      %v4979 = vpop.f32.mrf.mxu0
      %v4980 = vadd.f32 0.0, %v4979
      %v4981 = vpop.f32.mrf.mxu0
      %v4982 = vadd.f32 0.0, %v4981
      %4983 = vmatmul.bf16.gmra.mxu0 %v633
      %v4984 = vpop.f32.mrf.mxu0
      %v4985 = vadd.f32 0.0, %v4984
      %v4986 = vpop.f32.mrf.mxu0
      %v4987 = vadd.f32 0.0, %v4986
      %4988 = vmatmul.bf16.gmra.mxu0 %v4860
      %v4989 = vpop.f32.mrf.mxu0
      %v4990 = vadd.f32 0.0, %v4989
      %v4991 = vpop.f32.mrf.mxu0
      %v4992 = vadd.f32 0.0, %v4991
      %4993 = vdwg.mxu0
      %4994 = vmatpush.bf16.msra.mxu0 0
      %4995 = vmatpush.bf16.msra.mxu0 0
      %4996 = vmatpush.bf16.msra.mxu0 0
      %4997 = vmatpush.bf16.msra.mxu0 0
      %4998 = vmatpush.bf16.msra.mxu0 0
      %4999 = vmatpush.bf16.msra.mxu0 0
      %5000 = vmatpush.bf16.msra.mxu0 %v4345
      %5001 = vmatpush.bf16.msra.mxu0 %v4341
      %5002 = vmatmul.bf16.gmra.mxu0 %v618
      %v5003 = vpop.f32.mrf.mxu0
      %v5004 = vadd.f32 0.0, %v5003
      %v5005 = vpop.f32.mrf.mxu0
      %v5006 = vadd.f32 0.0, %v5005
      %5007 = vmatmul.bf16.gmra.mxu0 %v621
      %v5008 = vpop.f32.mrf.mxu0
      %v5009 = vadd.f32 0.0, %v5008
      %v5010 = vpop.f32.mrf.mxu0
      %v5011 = vadd.f32 0.0, %v5010
      %5012 = vmatmul.bf16.gmra.mxu0 %v624
      %v5013 = vpop.f32.mrf.mxu0
      %v5014 = vadd.f32 0.0, %v5013
      %v5015 = vpop.f32.mrf.mxu0
      %v5016 = vadd.f32 0.0, %v5015
      %5017 = vmatmul.bf16.gmra.mxu0 %v627
      %v5018 = vpop.f32.mrf.mxu0
      %v5019 = vadd.f32 0.0, %v5018
      %v5020 = vpop.f32.mrf.mxu0
      %v5021 = vadd.f32 0.0, %v5020
      %5022 = vmatmul.bf16.gmra.mxu0 %v630
      %v5023 = vpop.f32.mrf.mxu0
      %v5024 = vadd.f32 0.0, %v5023
      %v5025 = vpop.f32.mrf.mxu0
      %v5026 = vadd.f32 0.0, %v5025
      %5027 = vmatmul.bf16.gmra.mxu0 %v633
      %v5028 = vpop.f32.mrf.mxu0
      %v5029 = vadd.f32 0.0, %v5028
      %v5030 = vpop.f32.mrf.mxu0
      %v5031 = vadd.f32 0.0, %v5030
      %5032 = vmatmul.bf16.gmra.mxu0 %v4860
      %v5033 = vpop.f32.mrf.mxu0
      %v5034 = vadd.f32 0.0, %v5033
      %v5035 = vpop.f32.mrf.mxu0
      %v5036 = vadd.f32 0.0, %v5035
      %5037 = vdwg.mxu0
      %v5038 = vadd.f32 %v4008, %v4872
      %v5039 = vadd.f32 %v4009, %v4916
      %v5040 = vadd.f32 %v4010, %v4960
      %v5041 = vadd.f32 %v4011, %v5004
      %v5042 = vadd.f32 %v4012, %v4874
      %v5043 = vadd.f32 %v4013, %v4918
      %v5044 = vadd.f32 %v4014, %v4962
      %v5045 = vadd.f32 %v4015, %v5006
      %v5046 = vadd.f32 %v4016, %v4877
      %v5047 = vadd.f32 %v4017, %v4921
      %v5048 = vadd.f32 %v4018, %v4965
      %v5049 = vadd.f32 %v4019, %v5009
      %v5050 = vadd.f32 %v4020, %v4879
      %v5051 = vadd.f32 %v4021, %v4923
      %v5052 = vadd.f32 %v4022, %v4967
      %v5053 = vadd.f32 %v4023, %v5011
      %v5054 = vadd.f32 %v4024, %v4882
      %v5055 = vadd.f32 %v4025, %v4926
      %v5056 = vadd.f32 %v4026, %v4970
      %v5057 = vadd.f32 %v4027, %v5014
      %v5058 = vadd.f32 %v4028, %v4884
      %v5059 = vadd.f32 %v4029, %v4928
      %v5060 = vadd.f32 %v4030, %v4972
      %v5061 = vadd.f32 %v4031, %v5016
      %v5062 = vadd.f32 %v4032, %v4887
      %v5063 = vadd.f32 %v4033, %v4931
      %v5064 = vadd.f32 %v4034, %v4975
      %v5065 = vadd.f32 %v4035, %v5019
      %v5066 = vadd.f32 %v4036, %v4889
      %v5067 = vadd.f32 %v4037, %v4933
      %v5068 = vadd.f32 %v4038, %v4977
      %v5069 = vadd.f32 %v4039, %v5021
      %v5070 = vadd.f32 %v4040, %v4892
      %v5071 = vadd.f32 %v4041, %v4936
      %v5072 = vadd.f32 %v4042, %v4980
      %v5073 = vadd.f32 %v4043, %v5024
      %v5074 = vadd.f32 %v4044, %v4894
      %v5075 = vadd.f32 %v4045, %v4938
      %v5076 = vadd.f32 %v4046, %v4982
      %v5077 = vadd.f32 %v4047, %v5026
      %v5078 = vadd.f32 %v4048, %v4897
      %v5079 = vadd.f32 %v4049, %v4941
      %v5080 = vadd.f32 %v4050, %v4985
      %v5081 = vadd.f32 %v4051, %v5029
      %v5082 = vadd.f32 %v4052, %v4899
      %v5083 = vadd.f32 %v4053, %v4943
      %v5084 = vadd.f32 %v4054, %v4987
      %v5085 = vadd.f32 %v4055, %v5031
      %v5086 = vadd.f32 %v4056, %v4902
      %v5087 = vadd.f32 %v4057, %v4946
      %v5088 = vadd.f32 %v4058, %v4990
      %v5089 = vadd.f32 %v4059, %v5034
      %v5090 = vadd.f32 %v4060, %v4904
      %v5091 = vadd.f32 %v4061, %v4948
      %v5092 = vadd.f32 %v4062, %v4992
      %v5093 = vadd.f32 %v4063, %v5036
      %5094 = vmatpush.bf16.msra.mxu0 0
      %5095 = vmatpush.bf16.msra.mxu0 0
      %5096 = vmatpush.bf16.msra.mxu0 0
      %5097 = vmatpush.bf16.msra.mxu0 0
      %5098 = vmatpush.bf16.msra.mxu0 0
      %5099 = vmatpush.bf16.msra.mxu0 0
      %5100 = vmatpush.bf16.msra.mxu0 %v4614
      %5101 = vmatpush.bf16.msra.mxu0 %v4610
      %5102 = vmatmul.bf16.gmra.mxu0 %v618
      %v5103 = vpop.f32.mrf.mxu0
      %v5104 = vadd.f32 0.0, %v5103
      %v5105 = vpop.f32.mrf.mxu0
      %v5106 = vadd.f32 0.0, %v5105
      %5107 = vmatmul.bf16.gmra.mxu0 %v621
      %v5108 = vpop.f32.mrf.mxu0
      %v5109 = vadd.f32 0.0, %v5108
      %v5110 = vpop.f32.mrf.mxu0
      %v5111 = vadd.f32 0.0, %v5110
      %5112 = vmatmul.bf16.gmra.mxu0 %v624
      %v5113 = vpop.f32.mrf.mxu0
      %v5114 = vadd.f32 0.0, %v5113
      %v5115 = vpop.f32.mrf.mxu0
      %v5116 = vadd.f32 0.0, %v5115
      %5117 = vmatmul.bf16.gmra.mxu0 %v627
      %v5118 = vpop.f32.mrf.mxu0
      %v5119 = vadd.f32 0.0, %v5118
      %v5120 = vpop.f32.mrf.mxu0
      %v5121 = vadd.f32 0.0, %v5120
      %5122 = vmatmul.bf16.gmra.mxu0 %v630
      %v5123 = vpop.f32.mrf.mxu0
      %v5124 = vadd.f32 0.0, %v5123
      %v5125 = vpop.f32.mrf.mxu0
      %v5126 = vadd.f32 0.0, %v5125
      %5127 = vmatmul.bf16.gmra.mxu0 %v633
      %v5128 = vpop.f32.mrf.mxu0
      %v5129 = vadd.f32 0.0, %v5128
      %v5130 = vpop.f32.mrf.mxu0
      %v5131 = vadd.f32 0.0, %v5130
      %5132 = vmatmul.bf16.gmra.mxu0 %v4860
      %v5133 = vpop.f32.mrf.mxu0
      %v5134 = vadd.f32 0.0, %v5133
      %v5135 = vpop.f32.mrf.mxu0
      %v5136 = vadd.f32 0.0, %v5135
      %5137 = vdwg.mxu0
      %5138 = vmatpush.bf16.msra.mxu0 0
      %5139 = vmatpush.bf16.msra.mxu0 0
      %5140 = vmatpush.bf16.msra.mxu0 0
      %5141 = vmatpush.bf16.msra.mxu0 0
      %5142 = vmatpush.bf16.msra.mxu0 0
      %5143 = vmatpush.bf16.msra.mxu0 0
      %5144 = vmatpush.bf16.msra.mxu0 %v4615
      %5145 = vmatpush.bf16.msra.mxu0 %v4611
      %5146 = vmatmul.bf16.gmra.mxu0 %v618
      %v5147 = vpop.f32.mrf.mxu0
      %v5148 = vadd.f32 0.0, %v5147
      %v5149 = vpop.f32.mrf.mxu0
      %v5150 = vadd.f32 0.0, %v5149
      %5151 = vmatmul.bf16.gmra.mxu0 %v621
      %v5152 = vpop.f32.mrf.mxu0
      %v5153 = vadd.f32 0.0, %v5152
      %v5154 = vpop.f32.mrf.mxu0
      %v5155 = vadd.f32 0.0, %v5154
      %5156 = vmatmul.bf16.gmra.mxu0 %v624
      %v5157 = vpop.f32.mrf.mxu0
      %v5158 = vadd.f32 0.0, %v5157
      %v5159 = vpop.f32.mrf.mxu0
      %v5160 = vadd.f32 0.0, %v5159
      %5161 = vmatmul.bf16.gmra.mxu0 %v627
      %v5162 = vpop.f32.mrf.mxu0
      %v5163 = vadd.f32 0.0, %v5162
      %v5164 = vpop.f32.mrf.mxu0
      %v5165 = vadd.f32 0.0, %v5164
      %5166 = vmatmul.bf16.gmra.mxu0 %v630
      %v5167 = vpop.f32.mrf.mxu0
      %v5168 = vadd.f32 0.0, %v5167
      %v5169 = vpop.f32.mrf.mxu0
      %v5170 = vadd.f32 0.0, %v5169
      %5171 = vmatmul.bf16.gmra.mxu0 %v633
      %v5172 = vpop.f32.mrf.mxu0
      %v5173 = vadd.f32 0.0, %v5172
      %v5174 = vpop.f32.mrf.mxu0
      %v5175 = vadd.f32 0.0, %v5174
      %5176 = vmatmul.bf16.gmra.mxu0 %v4860
      %v5177 = vpop.f32.mrf.mxu0
      %v5178 = vadd.f32 0.0, %v5177
      %v5179 = vpop.f32.mrf.mxu0
      %v5180 = vadd.f32 0.0, %v5179
      %5181 = vdwg.mxu0
      %5182 = vmatpush.bf16.msra.mxu0 0
      %5183 = vmatpush.bf16.msra.mxu0 0
      %5184 = vmatpush.bf16.msra.mxu0 0
      %5185 = vmatpush.bf16.msra.mxu0 0
      %5186 = vmatpush.bf16.msra.mxu0 0
      %5187 = vmatpush.bf16.msra.mxu0 0
      %5188 = vmatpush.bf16.msra.mxu0 %v4616
      %5189 = vmatpush.bf16.msra.mxu0 %v4612
      %5190 = vmatmul.bf16.gmra.mxu0 %v618
      %v5191 = vpop.f32.mrf.mxu0
      %v5192 = vadd.f32 0.0, %v5191
      %v5193 = vpop.f32.mrf.mxu0
      %v5194 = vadd.f32 0.0, %v5193
      %5195 = vmatmul.bf16.gmra.mxu0 %v621
      %v5196 = vpop.f32.mrf.mxu0
      %v5197 = vadd.f32 0.0, %v5196
      %v5198 = vpop.f32.mrf.mxu0
      %v5199 = vadd.f32 0.0, %v5198
      %5200 = vmatmul.bf16.gmra.mxu0 %v624
      %v5201 = vpop.f32.mrf.mxu0
      %v5202 = vadd.f32 0.0, %v5201
      %v5203 = vpop.f32.mrf.mxu0
      %v5204 = vadd.f32 0.0, %v5203
      %5205 = vmatmul.bf16.gmra.mxu0 %v627
      %v5206 = vpop.f32.mrf.mxu0
      %v5207 = vadd.f32 0.0, %v5206
      %v5208 = vpop.f32.mrf.mxu0
      %v5209 = vadd.f32 0.0, %v5208
      %5210 = vmatmul.bf16.gmra.mxu0 %v630
      %v5211 = vpop.f32.mrf.mxu0
      %v5212 = vadd.f32 0.0, %v5211
      %v5213 = vpop.f32.mrf.mxu0
      %v5214 = vadd.f32 0.0, %v5213
      %5215 = vmatmul.bf16.gmra.mxu0 %v633
      %v5216 = vpop.f32.mrf.mxu0
      %v5217 = vadd.f32 0.0, %v5216
      %v5218 = vpop.f32.mrf.mxu0
      %v5219 = vadd.f32 0.0, %v5218
      %5220 = vmatmul.bf16.gmra.mxu0 %v4860
      %v5221 = vpop.f32.mrf.mxu0
      %v5222 = vadd.f32 0.0, %v5221
      %v5223 = vpop.f32.mrf.mxu0
      %v5224 = vadd.f32 0.0, %v5223
      %5225 = vdwg.mxu0
      %5226 = vmatpush.bf16.msra.mxu0 0
      %5227 = vmatpush.bf16.msra.mxu0 0
      %5228 = vmatpush.bf16.msra.mxu0 0
      %5229 = vmatpush.bf16.msra.mxu0 0
      %5230 = vmatpush.bf16.msra.mxu0 0
      %5231 = vmatpush.bf16.msra.mxu0 0
      %5232 = vmatpush.bf16.msra.mxu0 %v4617
      %5233 = vmatpush.bf16.msra.mxu0 %v4613
      %5234 = vmatmul.bf16.gmra.mxu0 %v618
      %v5235 = vpop.f32.mrf.mxu0
      %v5236 = vadd.f32 0.0, %v5235
      %v5237 = vpop.f32.mrf.mxu0
      %v5238 = vadd.f32 0.0, %v5237
      %5239 = vmatmul.bf16.gmra.mxu0 %v621
      %v5240 = vpop.f32.mrf.mxu0
      %v5241 = vadd.f32 0.0, %v5240
      %v5242 = vpop.f32.mrf.mxu0
      %v5243 = vadd.f32 0.0, %v5242
      %5244 = vmatmul.bf16.gmra.mxu0 %v624
      %v5245 = vpop.f32.mrf.mxu0
      %v5246 = vadd.f32 0.0, %v5245
      %v5247 = vpop.f32.mrf.mxu0
      %v5248 = vadd.f32 0.0, %v5247
      %5249 = vmatmul.bf16.gmra.mxu0 %v627
      %v5250 = vpop.f32.mrf.mxu0
      %v5251 = vadd.f32 0.0, %v5250
      %v5252 = vpop.f32.mrf.mxu0
      %v5253 = vadd.f32 0.0, %v5252
      %5254 = vmatmul.bf16.gmra.mxu0 %v630
      %v5255 = vpop.f32.mrf.mxu0
      %v5256 = vadd.f32 0.0, %v5255
      %v5257 = vpop.f32.mrf.mxu0
      %v5258 = vadd.f32 0.0, %v5257
      %5259 = vmatmul.bf16.gmra.mxu0 %v633
      %v5260 = vpop.f32.mrf.mxu0
      %v5261 = vadd.f32 0.0, %v5260
      %v5262 = vpop.f32.mrf.mxu0
      %v5263 = vadd.f32 0.0, %v5262
      %5264 = vmatmul.bf16.gmra.mxu0 %v4860
      %v5265 = vpop.f32.mrf.mxu0
      %v5266 = vadd.f32 0.0, %v5265
      %v5267 = vpop.f32.mrf.mxu0
      %v5268 = vadd.f32 0.0, %v5267
      %5269 = vdwg.mxu0
      %v5270 = vadd.f32 %v4240, %v5104
      %v5271 = vadd.f32 %v4241, %v5148
      %v5272 = vadd.f32 %v4242, %v5192
      %v5273 = vadd.f32 %v4243, %v5236
      %v5274 = vadd.f32 %v4244, %v5106
      %v5275 = vadd.f32 %v4245, %v5150
      %v5276 = vadd.f32 %v4246, %v5194
      %v5277 = vadd.f32 %v4247, %v5238
      %v5278 = vadd.f32 %v4248, %v5109
      %v5279 = vadd.f32 %v4249, %v5153
      %v5280 = vadd.f32 %v4250, %v5197
      %v5281 = vadd.f32 %v4251, %v5241
      %v5282 = vadd.f32 %v4252, %v5111
      %v5283 = vadd.f32 %v4253, %v5155
      %v5284 = vadd.f32 %v4254, %v5199
      %v5285 = vadd.f32 %v4255, %v5243
      %v5286 = vadd.f32 %v4256, %v5114
      %v5287 = vadd.f32 %v4257, %v5158
      %v5288 = vadd.f32 %v4258, %v5202
      %v5289 = vadd.f32 %v4259, %v5246
      %v5290 = vadd.f32 %v4260, %v5116
      %v5291 = vadd.f32 %v4261, %v5160
      %v5292 = vadd.f32 %v4262, %v5204
      %v5293 = vadd.f32 %v4263, %v5248
      %v5294 = vadd.f32 %v4264, %v5119
      %v5295 = vadd.f32 %v4265, %v5163
      %v5296 = vadd.f32 %v4266, %v5207
      %v5297 = vadd.f32 %v4267, %v5251
      %v5298 = vadd.f32 %v4268, %v5121
      %v5299 = vadd.f32 %v4269, %v5165
      %v5300 = vadd.f32 %v4270, %v5209
      %v5301 = vadd.f32 %v4271, %v5253
      %v5302 = vadd.f32 %v4272, %v5124
      %v5303 = vadd.f32 %v4273, %v5168
      %v5304 = vadd.f32 %v4274, %v5212
      %v5305 = vadd.f32 %v4275, %v5256
      %v5306 = vadd.f32 %v4276, %v5126
      %v5307 = vadd.f32 %v4277, %v5170
      %v5308 = vadd.f32 %v4278, %v5214
      %v5309 = vadd.f32 %v4279, %v5258
      %v5310 = vadd.f32 %v4280, %v5129
      %v5311 = vadd.f32 %v4281, %v5173
      %v5312 = vadd.f32 %v4282, %v5217
      %v5313 = vadd.f32 %v4283, %v5261
      %v5314 = vadd.f32 %v4284, %v5131
      %v5315 = vadd.f32 %v4285, %v5175
      %v5316 = vadd.f32 %v4286, %v5219
      %v5317 = vadd.f32 %v4287, %v5263
      %v5318 = vadd.f32 %v4288, %v5134
      %v5319 = vadd.f32 %v4289, %v5178
      %v5320 = vadd.f32 %v4290, %v5222
      %v5321 = vadd.f32 %v4291, %v5266
      %v5322 = vadd.f32 %v4292, %v5136
      %v5323 = vadd.f32 %v4293, %v5180
      %v5324 = vadd.f32 %v4294, %v5224
      %v5325 = vadd.f32 %v4295, %v5268
      %v5326 = vld [vmem:[%s4] sm:$0xf]
      %v5327 = vld [vmem:[%s5] sm:$0xf]
      %v5329 = vperm.slane %v5326, 0
      %v5330 = vperm.slane %v5326, 1
      %v5331 = vperm.slane %v5326, 2
      %v5332 = vperm.slane %v5326, 3
      %v5337 = vmul.f32 %v4530, %v5329
      %v5338 = vmul.f32 %v4531, %v5330
      %v5339 = vmul.f32 %v4532, %v5331
      %v5340 = vmul.f32 %v4533, %v5332
      %v5341 = vmul.f32 %v4534, %v5329
      %v5342 = vmul.f32 %v4535, %v5330
      %v5343 = vmul.f32 %v4536, %v5331
      %v5344 = vmul.f32 %v4537, %v5332
      %v5345 = vmul.f32 %v4538, %v5329
      %v5346 = vmul.f32 %v4539, %v5330
      %v5347 = vmul.f32 %v4540, %v5331
      %v5348 = vmul.f32 %v4541, %v5332
      %v5349 = vmul.f32 %v4542, %v5329
      %v5350 = vmul.f32 %v4543, %v5330
      %v5351 = vmul.f32 %v4544, %v5331
      %v5352 = vmul.f32 %v4545, %v5332
      %v5353 = vmul.f32 %v4546, %v5329
      %v5354 = vmul.f32 %v4547, %v5330
      %v5355 = vmul.f32 %v4548, %v5331
      %v5356 = vmul.f32 %v4549, %v5332
      %v5357 = vmul.f32 %v4550, %v5329
      %v5358 = vmul.f32 %v4551, %v5330
      %v5359 = vmul.f32 %v4552, %v5331
      %v5360 = vmul.f32 %v4553, %v5332
      %v5361 = vmul.f32 %v4554, %v5329
      %v5362 = vmul.f32 %v4555, %v5330
      %v5363 = vmul.f32 %v4556, %v5331
      %v5364 = vmul.f32 %v4557, %v5332
      %v5365 = vmul.f32 %v4558, %v5329
      %v5366 = vmul.f32 %v4559, %v5330
      %v5367 = vmul.f32 %v4560, %v5331
      %v5368 = vmul.f32 %v4561, %v5332
      %v5369 = vmul.f32 %v4562, %v5329
      %v5370 = vmul.f32 %v4563, %v5330
      %v5371 = vmul.f32 %v4564, %v5331
      %v5372 = vmul.f32 %v4565, %v5332
      %v5373 = vmul.f32 %v4566, %v5329
      %v5374 = vmul.f32 %v4567, %v5330
      %v5375 = vmul.f32 %v4568, %v5331
      %v5376 = vmul.f32 %v4569, %v5332
      %v5377 = vmul.f32 %v4570, %v5329
      %v5378 = vmul.f32 %v4571, %v5330
      %v5379 = vmul.f32 %v4572, %v5331
      %v5380 = vmul.f32 %v4573, %v5332
      %v5381 = vmul.f32 %v4574, %v5329
      %v5382 = vmul.f32 %v4575, %v5330
      %v5383 = vmul.f32 %v4576, %v5331
      %v5384 = vmul.f32 %v4577, %v5332
      %v5385 = vmul.f32 %v4578, %v5329
      %v5386 = vmul.f32 %v4579, %v5330
      %v5387 = vmul.f32 %v4580, %v5331
      %v5388 = vmul.f32 %v4581, %v5332
      %v5389 = vmul.f32 %v4582, %v5329
      %v5390 = vmul.f32 %v4583, %v5330
      %v5391 = vmul.f32 %v4584, %v5331
      %v5392 = vmul.f32 %v4585, %v5332
      %v5394 = vperm.slane %v5327, 0
      %v5395 = vperm.slane %v5327, 1
      %v5396 = vperm.slane %v5327, 2
      %v5397 = vperm.slane %v5327, 3
      %v5402 = vadd.f32 %v5337, %v5394
      %v5403 = vadd.f32 %v5338, %v5395
      %v5404 = vadd.f32 %v5339, %v5396
      %v5405 = vadd.f32 %v5340, %v5397
      %v5406 = vadd.f32 %v5341, %v5394
      %v5407 = vadd.f32 %v5342, %v5395
      %v5408 = vadd.f32 %v5343, %v5396
      %v5409 = vadd.f32 %v5344, %v5397
      %v5410 = vadd.f32 %v5345, %v5394
      %v5411 = vadd.f32 %v5346, %v5395
      %v5412 = vadd.f32 %v5347, %v5396
      %v5413 = vadd.f32 %v5348, %v5397
      %v5414 = vadd.f32 %v5349, %v5394
      %v5415 = vadd.f32 %v5350, %v5395
      %v5416 = vadd.f32 %v5351, %v5396
      %v5417 = vadd.f32 %v5352, %v5397
      %v5418 = vadd.f32 %v5353, %v5394
      %v5419 = vadd.f32 %v5354, %v5395
      %v5420 = vadd.f32 %v5355, %v5396
      %v5421 = vadd.f32 %v5356, %v5397
      %v5422 = vadd.f32 %v5357, %v5394
      %v5423 = vadd.f32 %v5358, %v5395
      %v5424 = vadd.f32 %v5359, %v5396
      %v5425 = vadd.f32 %v5360, %v5397
      %v5426 = vadd.f32 %v5361, %v5394
      %v5427 = vadd.f32 %v5362, %v5395
      %v5428 = vadd.f32 %v5363, %v5396
      %v5429 = vadd.f32 %v5364, %v5397
      %v5430 = vadd.f32 %v5365, %v5394
      %v5431 = vadd.f32 %v5366, %v5395
      %v5432 = vadd.f32 %v5367, %v5396
      %v5433 = vadd.f32 %v5368, %v5397
      %v5434 = vadd.f32 %v5369, %v5394
      %v5435 = vadd.f32 %v5370, %v5395
      %v5436 = vadd.f32 %v5371, %v5396
      %v5437 = vadd.f32 %v5372, %v5397
      %v5438 = vadd.f32 %v5373, %v5394
      %v5439 = vadd.f32 %v5374, %v5395
      %v5440 = vadd.f32 %v5375, %v5396
      %v5441 = vadd.f32 %v5376, %v5397
      %v5442 = vadd.f32 %v5377, %v5394
      %v5443 = vadd.f32 %v5378, %v5395
      %v5444 = vadd.f32 %v5379, %v5396
      %v5445 = vadd.f32 %v5380, %v5397
      %v5446 = vadd.f32 %v5381, %v5394
      %v5447 = vadd.f32 %v5382, %v5395
      %v5448 = vadd.f32 %v5383, %v5396
      %v5449 = vadd.f32 %v5384, %v5397
      %v5450 = vadd.f32 %v5385, %v5394
      %v5451 = vadd.f32 %v5386, %v5395
      %v5452 = vadd.f32 %v5387, %v5396
      %v5453 = vadd.f32 %v5388, %v5397
      %v5454 = vadd.f32 %v5389, %v5394
      %v5455 = vadd.f32 %v5390, %v5395
      %v5456 = vadd.f32 %v5391, %v5396
      %v5457 = vadd.f32 %v5392, %v5397
      %vm5458 = vcmp.ge.f32.partialorder %v5402, 0.0
      %vm5459 = vcmp.ge.f32.partialorder %v5403, 0.0
      %vm5460 = vcmp.ge.f32.partialorder %v5404, 0.0
      %vm5461 = vcmp.ge.f32.partialorder %v5405, 0.0
      %vm5462 = vcmp.ge.f32.partialorder %v5406, 0.0
      %vm5463 = vcmp.ge.f32.partialorder %v5407, 0.0
      %vm5464 = vcmp.ge.f32.partialorder %v5408, 0.0
      %vm5465 = vcmp.ge.f32.partialorder %v5409, 0.0
      %vm5466 = vcmp.ge.f32.partialorder %v5410, 0.0
      %vm5467 = vcmp.ge.f32.partialorder %v5411, 0.0
      %vm5468 = vcmp.ge.f32.partialorder %v5412, 0.0
      %vm5469 = vcmp.ge.f32.partialorder %v5413, 0.0
      %vm5470 = vcmp.ge.f32.partialorder %v5414, 0.0
      %vm5471 = vcmp.ge.f32.partialorder %v5415, 0.0
      %vm5472 = vcmp.ge.f32.partialorder %v5416, 0.0
      %vm5473 = vcmp.ge.f32.partialorder %v5417, 0.0
      %vm5474 = vcmp.ge.f32.partialorder %v5418, 0.0
      %vm5475 = vcmp.ge.f32.partialorder %v5419, 0.0
      %vm5476 = vcmp.ge.f32.partialorder %v5420, 0.0
      %vm5477 = vcmp.ge.f32.partialorder %v5421, 0.0
      %vm5478 = vcmp.ge.f32.partialorder %v5422, 0.0
      %vm5479 = vcmp.ge.f32.partialorder %v5423, 0.0
      %vm5480 = vcmp.ge.f32.partialorder %v5424, 0.0
      %vm5481 = vcmp.ge.f32.partialorder %v5425, 0.0
      %vm5482 = vcmp.ge.f32.partialorder %v5426, 0.0
      %vm5483 = vcmp.ge.f32.partialorder %v5427, 0.0
      %vm5484 = vcmp.ge.f32.partialorder %v5428, 0.0
      %vm5485 = vcmp.ge.f32.partialorder %v5429, 0.0
      %vm5486 = vcmp.ge.f32.partialorder %v5430, 0.0
      %vm5487 = vcmp.ge.f32.partialorder %v5431, 0.0
      %vm5488 = vcmp.ge.f32.partialorder %v5432, 0.0
      %vm5489 = vcmp.ge.f32.partialorder %v5433, 0.0
      %vm5490 = vcmp.ge.f32.partialorder %v5434, 0.0
      %vm5491 = vcmp.ge.f32.partialorder %v5435, 0.0
      %vm5492 = vcmp.ge.f32.partialorder %v5436, 0.0
      %vm5493 = vcmp.ge.f32.partialorder %v5437, 0.0
      %vm5494 = vcmp.ge.f32.partialorder %v5438, 0.0
      %vm5495 = vcmp.ge.f32.partialorder %v5439, 0.0
      %vm5496 = vcmp.ge.f32.partialorder %v5440, 0.0
      %vm5497 = vcmp.ge.f32.partialorder %v5441, 0.0
      %vm5498 = vcmp.ge.f32.partialorder %v5442, 0.0
      %vm5499 = vcmp.ge.f32.partialorder %v5443, 0.0
      %vm5500 = vcmp.ge.f32.partialorder %v5444, 0.0
      %vm5501 = vcmp.ge.f32.partialorder %v5445, 0.0
      %vm5502 = vcmp.ge.f32.partialorder %v5446, 0.0
      %vm5503 = vcmp.ge.f32.partialorder %v5447, 0.0
      %vm5504 = vcmp.ge.f32.partialorder %v5448, 0.0
      %vm5505 = vcmp.ge.f32.partialorder %v5449, 0.0
      %vm5506 = vcmp.ge.f32.partialorder %v5450, 0.0
      %vm5507 = vcmp.ge.f32.partialorder %v5451, 0.0
      %vm5508 = vcmp.ge.f32.partialorder %v5452, 0.0
      %vm5509 = vcmp.ge.f32.partialorder %v5453, 0.0
      %vm5510 = vcmp.ge.f32.partialorder %v5454, 0.0
      %vm5511 = vcmp.ge.f32.partialorder %v5455, 0.0
      %vm5512 = vcmp.ge.f32.partialorder %v5456, 0.0
      %vm5513 = vcmp.ge.f32.partialorder %v5457, 0.0
      %v5514 = vmul.f32 %v5402, 0.01
      %v5515 = vmul.f32 %v5403, 0.01
      %v5516 = vmul.f32 %v5404, 0.01
      %v5517 = vmul.f32 %v5405, 0.01
      %v5518 = vmul.f32 %v5406, 0.01
      %v5519 = vmul.f32 %v5407, 0.01
      %v5520 = vmul.f32 %v5408, 0.01
      %v5521 = vmul.f32 %v5409, 0.01
      %v5522 = vmul.f32 %v5410, 0.01
      %v5523 = vmul.f32 %v5411, 0.01
      %v5524 = vmul.f32 %v5412, 0.01
      %v5525 = vmul.f32 %v5413, 0.01
      %v5526 = vmul.f32 %v5414, 0.01
      %v5527 = vmul.f32 %v5415, 0.01
      %v5528 = vmul.f32 %v5416, 0.01
      %v5529 = vmul.f32 %v5417, 0.01
      %v5530 = vmul.f32 %v5418, 0.01
      %v5531 = vmul.f32 %v5419, 0.01
      %v5532 = vmul.f32 %v5420, 0.01
      %v5533 = vmul.f32 %v5421, 0.01
      %v5534 = vmul.f32 %v5422, 0.01
      %v5535 = vmul.f32 %v5423, 0.01
      %v5536 = vmul.f32 %v5424, 0.01
      %v5537 = vmul.f32 %v5425, 0.01
      %v5538 = vmul.f32 %v5426, 0.01
      %v5539 = vmul.f32 %v5427, 0.01
      %v5540 = vmul.f32 %v5428, 0.01
      %v5541 = vmul.f32 %v5429, 0.01
      %v5542 = vmul.f32 %v5430, 0.01
      %v5543 = vmul.f32 %v5431, 0.01
      %v5544 = vmul.f32 %v5432, 0.01
      %v5545 = vmul.f32 %v5433, 0.01
      %v5546 = vmul.f32 %v5434, 0.01
      %v5547 = vmul.f32 %v5435, 0.01
      %v5548 = vmul.f32 %v5436, 0.01
      %v5549 = vmul.f32 %v5437, 0.01
      %v5550 = vmul.f32 %v5438, 0.01
      %v5551 = vmul.f32 %v5439, 0.01
      %v5552 = vmul.f32 %v5440, 0.01
      %v5553 = vmul.f32 %v5441, 0.01
      %v5554 = vmul.f32 %v5442, 0.01
      %v5555 = vmul.f32 %v5443, 0.01
      %v5556 = vmul.f32 %v5444, 0.01
      %v5557 = vmul.f32 %v5445, 0.01
      %v5558 = vmul.f32 %v5446, 0.01
      %v5559 = vmul.f32 %v5447, 0.01
      %v5560 = vmul.f32 %v5448, 0.01
      %v5561 = vmul.f32 %v5449, 0.01
      %v5562 = vmul.f32 %v5450, 0.01
      %v5563 = vmul.f32 %v5451, 0.01
      %v5564 = vmul.f32 %v5452, 0.01
      %v5565 = vmul.f32 %v5453, 0.01
      %v5566 = vmul.f32 %v5454, 0.01
      %v5567 = vmul.f32 %v5455, 0.01
      %v5568 = vmul.f32 %v5456, 0.01
      %v5569 = vmul.f32 %v5457, 0.01
      %v5570 = vsel %vm5458, %v5402, %v5514
      %v5571 = vsel %vm5459, %v5403, %v5515
      %v5572 = vsel %vm5460, %v5404, %v5516
      %v5573 = vsel %vm5461, %v5405, %v5517
      %v5574 = vsel %vm5462, %v5406, %v5518
      %v5575 = vsel %vm5463, %v5407, %v5519
      %v5576 = vsel %vm5464, %v5408, %v5520
      %v5577 = vsel %vm5465, %v5409, %v5521
      %v5578 = vsel %vm5466, %v5410, %v5522
      %v5579 = vsel %vm5467, %v5411, %v5523
      %v5580 = vsel %vm5468, %v5412, %v5524
      %v5581 = vsel %vm5469, %v5413, %v5525
      %v5582 = vsel %vm5470, %v5414, %v5526
      %v5583 = vsel %vm5471, %v5415, %v5527
      %v5584 = vsel %vm5472, %v5416, %v5528
      %v5585 = vsel %vm5473, %v5417, %v5529
      %v5586 = vsel %vm5474, %v5418, %v5530
      %v5587 = vsel %vm5475, %v5419, %v5531
      %v5588 = vsel %vm5476, %v5420, %v5532
      %v5589 = vsel %vm5477, %v5421, %v5533
      %v5590 = vsel %vm5478, %v5422, %v5534
      %v5591 = vsel %vm5479, %v5423, %v5535
      %v5592 = vsel %vm5480, %v5424, %v5536
      %v5593 = vsel %vm5481, %v5425, %v5537
      %v5594 = vsel %vm5482, %v5426, %v5538
      %v5595 = vsel %vm5483, %v5427, %v5539
      %v5596 = vsel %vm5484, %v5428, %v5540
      %v5597 = vsel %vm5485, %v5429, %v5541
      %v5598 = vsel %vm5486, %v5430, %v5542
      %v5599 = vsel %vm5487, %v5431, %v5543
      %v5600 = vsel %vm5488, %v5432, %v5544
      %v5601 = vsel %vm5489, %v5433, %v5545
      %v5602 = vsel %vm5490, %v5434, %v5546
      %v5603 = vsel %vm5491, %v5435, %v5547
      %v5604 = vsel %vm5492, %v5436, %v5548
      %v5605 = vsel %vm5493, %v5437, %v5549
      %v5606 = vsel %vm5494, %v5438, %v5550
      %v5607 = vsel %vm5495, %v5439, %v5551
      %v5608 = vsel %vm5496, %v5440, %v5552
      %v5609 = vsel %vm5497, %v5441, %v5553
      %v5610 = vsel %vm5498, %v5442, %v5554
      %v5611 = vsel %vm5499, %v5443, %v5555
      %v5612 = vsel %vm5500, %v5444, %v5556
      %v5613 = vsel %vm5501, %v5445, %v5557
      %v5614 = vsel %vm5502, %v5446, %v5558
      %v5615 = vsel %vm5503, %v5447, %v5559
      %v5616 = vsel %vm5504, %v5448, %v5560
      %v5617 = vsel %vm5505, %v5449, %v5561
      %v5618 = vsel %vm5506, %v5450, %v5562
      %v5619 = vsel %vm5507, %v5451, %v5563
      %v5620 = vsel %vm5508, %v5452, %v5564
      %v5621 = vsel %vm5509, %v5453, %v5565
      %v5622 = vsel %vm5510, %v5454, %v5566
      %v5623 = vsel %vm5511, %v5455, %v5567
      %v5624 = vsel %vm5512, %v5456, %v5568
      %v5625 = vsel %vm5513, %v5457, %v5569
      %v5626 = vmul.f32 %v4802, %v5329
      %v5627 = vmul.f32 %v4803, %v5330
      %v5628 = vmul.f32 %v4804, %v5331
      %v5629 = vmul.f32 %v4805, %v5332
      %v5630 = vmul.f32 %v4806, %v5329
      %v5631 = vmul.f32 %v4807, %v5330
      %v5632 = vmul.f32 %v4808, %v5331
      %v5633 = vmul.f32 %v4809, %v5332
      %v5634 = vmul.f32 %v4810, %v5329
      %v5635 = vmul.f32 %v4811, %v5330
      %v5636 = vmul.f32 %v4812, %v5331
      %v5637 = vmul.f32 %v4813, %v5332
      %v5638 = vmul.f32 %v4814, %v5329
      %v5639 = vmul.f32 %v4815, %v5330
      %v5640 = vmul.f32 %v4816, %v5331
      %v5641 = vmul.f32 %v4817, %v5332
      %v5642 = vmul.f32 %v4818, %v5329
      %v5643 = vmul.f32 %v4819, %v5330
      %v5644 = vmul.f32 %v4820, %v5331
      %v5645 = vmul.f32 %v4821, %v5332
      %v5646 = vmul.f32 %v4822, %v5329
      %v5647 = vmul.f32 %v4823, %v5330
      %v5648 = vmul.f32 %v4824, %v5331
      %v5649 = vmul.f32 %v4825, %v5332
      %v5650 = vmul.f32 %v4826, %v5329
      %v5651 = vmul.f32 %v4827, %v5330
      %v5652 = vmul.f32 %v4828, %v5331
      %v5653 = vmul.f32 %v4829, %v5332
      %v5654 = vmul.f32 %v4830, %v5329
      %v5655 = vmul.f32 %v4831, %v5330
      %v5656 = vmul.f32 %v4832, %v5331
      %v5657 = vmul.f32 %v4833, %v5332
      %v5658 = vmul.f32 %v4834, %v5329
      %v5659 = vmul.f32 %v4835, %v5330
      %v5660 = vmul.f32 %v4836, %v5331
      %v5661 = vmul.f32 %v4837, %v5332
      %v5662 = vmul.f32 %v4838, %v5329
      %v5663 = vmul.f32 %v4839, %v5330
      %v5664 = vmul.f32 %v4840, %v5331
      %v5665 = vmul.f32 %v4841, %v5332
      %v5666 = vmul.f32 %v4842, %v5329
      %v5667 = vmul.f32 %v4843, %v5330
      %v5668 = vmul.f32 %v4844, %v5331
      %v5669 = vmul.f32 %v4845, %v5332
      %v5670 = vmul.f32 %v4846, %v5329
      %v5671 = vmul.f32 %v4847, %v5330
      %v5672 = vmul.f32 %v4848, %v5331
      %v5673 = vmul.f32 %v4849, %v5332
      %v5674 = vmul.f32 %v4850, %v5329
      %v5675 = vmul.f32 %v4851, %v5330
      %v5676 = vmul.f32 %v4852, %v5331
      %v5677 = vmul.f32 %v4853, %v5332
      %v5678 = vmul.f32 %v4854, %v5329
      %v5679 = vmul.f32 %v4855, %v5330
      %v5680 = vmul.f32 %v4856, %v5331
      %v5681 = vmul.f32 %v4857, %v5332
      %v5682 = vadd.f32 %v5626, %v5394
      %v5683 = vadd.f32 %v5627, %v5395
      %v5684 = vadd.f32 %v5628, %v5396
      %v5685 = vadd.f32 %v5629, %v5397
      %v5686 = vadd.f32 %v5630, %v5394
      %v5687 = vadd.f32 %v5631, %v5395
      %v5688 = vadd.f32 %v5632, %v5396
      %v5689 = vadd.f32 %v5633, %v5397
      %v5690 = vadd.f32 %v5634, %v5394
      %v5691 = vadd.f32 %v5635, %v5395
      %v5692 = vadd.f32 %v5636, %v5396
      %v5693 = vadd.f32 %v5637, %v5397
      %v5694 = vadd.f32 %v5638, %v5394
      %v5695 = vadd.f32 %v5639, %v5395
      %v5696 = vadd.f32 %v5640, %v5396
      %v5697 = vadd.f32 %v5641, %v5397
      %v5698 = vadd.f32 %v5642, %v5394
      %v5699 = vadd.f32 %v5643, %v5395
      %v5700 = vadd.f32 %v5644, %v5396
      %v5701 = vadd.f32 %v5645, %v5397
      %v5702 = vadd.f32 %v5646, %v5394
      %v5703 = vadd.f32 %v5647, %v5395
      %v5704 = vadd.f32 %v5648, %v5396
      %v5705 = vadd.f32 %v5649, %v5397
      %v5706 = vadd.f32 %v5650, %v5394
      %v5707 = vadd.f32 %v5651, %v5395
      %v5708 = vadd.f32 %v5652, %v5396
      %v5709 = vadd.f32 %v5653, %v5397
      %v5710 = vadd.f32 %v5654, %v5394
      %v5711 = vadd.f32 %v5655, %v5395
      %v5712 = vadd.f32 %v5656, %v5396
      %v5713 = vadd.f32 %v5657, %v5397
      %v5714 = vadd.f32 %v5658, %v5394
      %v5715 = vadd.f32 %v5659, %v5395
      %v5716 = vadd.f32 %v5660, %v5396
      %v5717 = vadd.f32 %v5661, %v5397
      %v5718 = vadd.f32 %v5662, %v5394
      %v5719 = vadd.f32 %v5663, %v5395
      %v5720 = vadd.f32 %v5664, %v5396
      %v5721 = vadd.f32 %v5665, %v5397
      %v5722 = vadd.f32 %v5666, %v5394
      %v5723 = vadd.f32 %v5667, %v5395
      %v5724 = vadd.f32 %v5668, %v5396
      %v5725 = vadd.f32 %v5669, %v5397
      %v5726 = vadd.f32 %v5670, %v5394
      %v5727 = vadd.f32 %v5671, %v5395
      %v5728 = vadd.f32 %v5672, %v5396
      %v5729 = vadd.f32 %v5673, %v5397
      %v5730 = vadd.f32 %v5674, %v5394
      %v5731 = vadd.f32 %v5675, %v5395
      %v5732 = vadd.f32 %v5676, %v5396
      %v5733 = vadd.f32 %v5677, %v5397
      %v5734 = vadd.f32 %v5678, %v5394
      %v5735 = vadd.f32 %v5679, %v5395
      %v5736 = vadd.f32 %v5680, %v5396
      %v5737 = vadd.f32 %v5681, %v5397
      %vm5738 = vcmp.ge.f32.partialorder %v5682, 0.0
      %vm5739 = vcmp.ge.f32.partialorder %v5683, 0.0
      %vm5740 = vcmp.ge.f32.partialorder %v5684, 0.0
      %vm5741 = vcmp.ge.f32.partialorder %v5685, 0.0
      %vm5742 = vcmp.ge.f32.partialorder %v5686, 0.0
      %vm5743 = vcmp.ge.f32.partialorder %v5687, 0.0
      %vm5744 = vcmp.ge.f32.partialorder %v5688, 0.0
      %vm5745 = vcmp.ge.f32.partialorder %v5689, 0.0
      %vm5746 = vcmp.ge.f32.partialorder %v5690, 0.0
      %vm5747 = vcmp.ge.f32.partialorder %v5691, 0.0
      %vm5748 = vcmp.ge.f32.partialorder %v5692, 0.0
      %vm5749 = vcmp.ge.f32.partialorder %v5693, 0.0
      %vm5750 = vcmp.ge.f32.partialorder %v5694, 0.0
      %vm5751 = vcmp.ge.f32.partialorder %v5695, 0.0
      %vm5752 = vcmp.ge.f32.partialorder %v5696, 0.0
      %vm5753 = vcmp.ge.f32.partialorder %v5697, 0.0
      %vm5754 = vcmp.ge.f32.partialorder %v5698, 0.0
      %vm5755 = vcmp.ge.f32.partialorder %v5699, 0.0
      %vm5756 = vcmp.ge.f32.partialorder %v5700, 0.0
      %vm5757 = vcmp.ge.f32.partialorder %v5701, 0.0
      %vm5758 = vcmp.ge.f32.partialorder %v5702, 0.0
      %vm5759 = vcmp.ge.f32.partialorder %v5703, 0.0
      %vm5760 = vcmp.ge.f32.partialorder %v5704, 0.0
      %vm5761 = vcmp.ge.f32.partialorder %v5705, 0.0
      %vm5762 = vcmp.ge.f32.partialorder %v5706, 0.0
      %vm5763 = vcmp.ge.f32.partialorder %v5707, 0.0
      %vm5764 = vcmp.ge.f32.partialorder %v5708, 0.0
      %vm5765 = vcmp.ge.f32.partialorder %v5709, 0.0
      %vm5766 = vcmp.ge.f32.partialorder %v5710, 0.0
      %vm5767 = vcmp.ge.f32.partialorder %v5711, 0.0
      %vm5768 = vcmp.ge.f32.partialorder %v5712, 0.0
      %vm5769 = vcmp.ge.f32.partialorder %v5713, 0.0
      %vm5770 = vcmp.ge.f32.partialorder %v5714, 0.0
      %vm5771 = vcmp.ge.f32.partialorder %v5715, 0.0
      %vm5772 = vcmp.ge.f32.partialorder %v5716, 0.0
      %vm5773 = vcmp.ge.f32.partialorder %v5717, 0.0
      %vm5774 = vcmp.ge.f32.partialorder %v5718, 0.0
      %vm5775 = vcmp.ge.f32.partialorder %v5719, 0.0
      %vm5776 = vcmp.ge.f32.partialorder %v5720, 0.0
      %vm5777 = vcmp.ge.f32.partialorder %v5721, 0.0
      %vm5778 = vcmp.ge.f32.partialorder %v5722, 0.0
      %vm5779 = vcmp.ge.f32.partialorder %v5723, 0.0
      %vm5780 = vcmp.ge.f32.partialorder %v5724, 0.0
      %vm5781 = vcmp.ge.f32.partialorder %v5725, 0.0
      %vm5782 = vcmp.ge.f32.partialorder %v5726, 0.0
      %vm5783 = vcmp.ge.f32.partialorder %v5727, 0.0
      %vm5784 = vcmp.ge.f32.partialorder %v5728, 0.0
      %vm5785 = vcmp.ge.f32.partialorder %v5729, 0.0
      %vm5786 = vcmp.ge.f32.partialorder %v5730, 0.0
      %vm5787 = vcmp.ge.f32.partialorder %v5731, 0.0
      %vm5788 = vcmp.ge.f32.partialorder %v5732, 0.0
      %vm5789 = vcmp.ge.f32.partialorder %v5733, 0.0
      %vm5790 = vcmp.ge.f32.partialorder %v5734, 0.0
      %vm5791 = vcmp.ge.f32.partialorder %v5735, 0.0
      %vm5792 = vcmp.ge.f32.partialorder %v5736, 0.0
      %vm5793 = vcmp.ge.f32.partialorder %v5737, 0.0
      %v5794 = vmul.f32 %v5682, 0.01
      %v5795 = vmul.f32 %v5683, 0.01
      %v5796 = vmul.f32 %v5684, 0.01
      %v5797 = vmul.f32 %v5685, 0.01
      %v5798 = vmul.f32 %v5686, 0.01
      %v5799 = vmul.f32 %v5687, 0.01
      %v5800 = vmul.f32 %v5688, 0.01
      %v5801 = vmul.f32 %v5689, 0.01
      %v5802 = vmul.f32 %v5690, 0.01
      %v5803 = vmul.f32 %v5691, 0.01
      %v5804 = vmul.f32 %v5692, 0.01
      %v5805 = vmul.f32 %v5693, 0.01
      %v5806 = vmul.f32 %v5694, 0.01
      %v5807 = vmul.f32 %v5695, 0.01
      %v5808 = vmul.f32 %v5696, 0.01
      %v5809 = vmul.f32 %v5697, 0.01
      %v5810 = vmul.f32 %v5698, 0.01
      %v5811 = vmul.f32 %v5699, 0.01
      %v5812 = vmul.f32 %v5700, 0.01
      %v5813 = vmul.f32 %v5701, 0.01
      %v5814 = vmul.f32 %v5702, 0.01
      %v5815 = vmul.f32 %v5703, 0.01
      %v5816 = vmul.f32 %v5704, 0.01
      %v5817 = vmul.f32 %v5705, 0.01
      %v5818 = vmul.f32 %v5706, 0.01
      %v5819 = vmul.f32 %v5707, 0.01
      %v5820 = vmul.f32 %v5708, 0.01
      %v5821 = vmul.f32 %v5709, 0.01
      %v5822 = vmul.f32 %v5710, 0.01
      %v5823 = vmul.f32 %v5711, 0.01
      %v5824 = vmul.f32 %v5712, 0.01
      %v5825 = vmul.f32 %v5713, 0.01
      %v5826 = vmul.f32 %v5714, 0.01
      %v5827 = vmul.f32 %v5715, 0.01
      %v5828 = vmul.f32 %v5716, 0.01
      %v5829 = vmul.f32 %v5717, 0.01
      %v5830 = vmul.f32 %v5718, 0.01
      %v5831 = vmul.f32 %v5719, 0.01
      %v5832 = vmul.f32 %v5720, 0.01
      %v5833 = vmul.f32 %v5721, 0.01
      %v5834 = vmul.f32 %v5722, 0.01
      %v5835 = vmul.f32 %v5723, 0.01
      %v5836 = vmul.f32 %v5724, 0.01
      %v5837 = vmul.f32 %v5725, 0.01
      %v5838 = vmul.f32 %v5726, 0.01
      %v5839 = vmul.f32 %v5727, 0.01
      %v5840 = vmul.f32 %v5728, 0.01
      %v5841 = vmul.f32 %v5729, 0.01
      %v5842 = vmul.f32 %v5730, 0.01
      %v5843 = vmul.f32 %v5731, 0.01
      %v5844 = vmul.f32 %v5732, 0.01
      %v5845 = vmul.f32 %v5733, 0.01
      %v5846 = vmul.f32 %v5734, 0.01
      %v5847 = vmul.f32 %v5735, 0.01
      %v5848 = vmul.f32 %v5736, 0.01
      %v5849 = vmul.f32 %v5737, 0.01
      %v5850 = vsel %vm5738, %v5682, %v5794
      %v5851 = vsel %vm5739, %v5683, %v5795
      %v5852 = vsel %vm5740, %v5684, %v5796
      %v5853 = vsel %vm5741, %v5685, %v5797
      %v5854 = vsel %vm5742, %v5686, %v5798
      %v5855 = vsel %vm5743, %v5687, %v5799
      %v5856 = vsel %vm5744, %v5688, %v5800
      %v5857 = vsel %vm5745, %v5689, %v5801
      %v5858 = vsel %vm5746, %v5690, %v5802
      %v5859 = vsel %vm5747, %v5691, %v5803
      %v5860 = vsel %vm5748, %v5692, %v5804
      %v5861 = vsel %vm5749, %v5693, %v5805
      %v5862 = vsel %vm5750, %v5694, %v5806
      %v5863 = vsel %vm5751, %v5695, %v5807
      %v5864 = vsel %vm5752, %v5696, %v5808
      %v5865 = vsel %vm5753, %v5697, %v5809
      %v5866 = vsel %vm5754, %v5698, %v5810
      %v5867 = vsel %vm5755, %v5699, %v5811
      %v5868 = vsel %vm5756, %v5700, %v5812
      %v5869 = vsel %vm5757, %v5701, %v5813
      %v5870 = vsel %vm5758, %v5702, %v5814
      %v5871 = vsel %vm5759, %v5703, %v5815
      %v5872 = vsel %vm5760, %v5704, %v5816
      %v5873 = vsel %vm5761, %v5705, %v5817
      %v5874 = vsel %vm5762, %v5706, %v5818
      %v5875 = vsel %vm5763, %v5707, %v5819
      %v5876 = vsel %vm5764, %v5708, %v5820
      %v5877 = vsel %vm5765, %v5709, %v5821
      %v5878 = vsel %vm5766, %v5710, %v5822
      %v5879 = vsel %vm5767, %v5711, %v5823
      %v5880 = vsel %vm5768, %v5712, %v5824
      %v5881 = vsel %vm5769, %v5713, %v5825
      %v5882 = vsel %vm5770, %v5714, %v5826
      %v5883 = vsel %vm5771, %v5715, %v5827
      %v5884 = vsel %vm5772, %v5716, %v5828
      %v5885 = vsel %vm5773, %v5717, %v5829
      %v5886 = vsel %vm5774, %v5718, %v5830
      %v5887 = vsel %vm5775, %v5719, %v5831
      %v5888 = vsel %vm5776, %v5720, %v5832
      %v5889 = vsel %vm5777, %v5721, %v5833
      %v5890 = vsel %vm5778, %v5722, %v5834
      %v5891 = vsel %vm5779, %v5723, %v5835
      %v5892 = vsel %vm5780, %v5724, %v5836
      %v5893 = vsel %vm5781, %v5725, %v5837
      %v5894 = vsel %vm5782, %v5726, %v5838
      %v5895 = vsel %vm5783, %v5727, %v5839
      %v5896 = vsel %vm5784, %v5728, %v5840
      %v5897 = vsel %vm5785, %v5729, %v5841
      %v5898 = vsel %vm5786, %v5730, %v5842
      %v5899 = vsel %vm5787, %v5731, %v5843
      %v5900 = vsel %vm5788, %v5732, %v5844
      %v5901 = vsel %vm5789, %v5733, %v5845
      %v5902 = vsel %vm5790, %v5734, %v5846
      %v5903 = vsel %vm5791, %v5735, %v5847
      %v5904 = vsel %vm5792, %v5736, %v5848
      %v5905 = vsel %vm5793, %v5737, %v5849
      %v5906 = vmax.f32 %v5570, %v5850
      %v5907 = vmax.f32 %v5571, %v5851
      %v5908 = vmax.f32 %v5572, %v5852
      %v5909 = vmax.f32 %v5573, %v5853
      %v5910 = vmax.f32 %v5574, %v5854
      %v5911 = vmax.f32 %v5575, %v5855
      %v5912 = vmax.f32 %v5576, %v5856
      %v5913 = vmax.f32 %v5577, %v5857
      %v5914 = vmax.f32 %v5578, %v5858
      %v5915 = vmax.f32 %v5579, %v5859
      %v5916 = vmax.f32 %v5580, %v5860
      %v5917 = vmax.f32 %v5581, %v5861
      %v5918 = vmax.f32 %v5582, %v5862
      %v5919 = vmax.f32 %v5583, %v5863
      %v5920 = vmax.f32 %v5584, %v5864
      %v5921 = vmax.f32 %v5585, %v5865
      %v5922 = vmax.f32 %v5586, %v5866
      %v5923 = vmax.f32 %v5587, %v5867
      %v5924 = vmax.f32 %v5588, %v5868
      %v5925 = vmax.f32 %v5589, %v5869
      %v5926 = vmax.f32 %v5590, %v5870
      %v5927 = vmax.f32 %v5591, %v5871
      %v5928 = vmax.f32 %v5592, %v5872
      %v5929 = vmax.f32 %v5593, %v5873
      %v5930 = vmax.f32 %v5594, %v5874
      %v5931 = vmax.f32 %v5595, %v5875
      %v5932 = vmax.f32 %v5596, %v5876
      %v5933 = vmax.f32 %v5597, %v5877
      %v5934 = vmax.f32 %v5598, %v5878
      %v5935 = vmax.f32 %v5599, %v5879
      %v5936 = vmax.f32 %v5600, %v5880
      %v5937 = vmax.f32 %v5601, %v5881
      %v5938 = vmax.f32 %v5602, %v5882
      %v5939 = vmax.f32 %v5603, %v5883
      %v5940 = vmax.f32 %v5604, %v5884
      %v5941 = vmax.f32 %v5605, %v5885
      %v5942 = vmax.f32 %v5606, %v5886
      %v5943 = vmax.f32 %v5607, %v5887
      %v5944 = vmax.f32 %v5608, %v5888
      %v5945 = vmax.f32 %v5609, %v5889
      %v5946 = vmax.f32 %v5610, %v5890
      %v5947 = vmax.f32 %v5611, %v5891
      %v5948 = vmax.f32 %v5612, %v5892
      %v5949 = vmax.f32 %v5613, %v5893
      %v5950 = vmax.f32 %v5614, %v5894
      %v5951 = vmax.f32 %v5615, %v5895
      %v5952 = vmax.f32 %v5616, %v5896
      %v5953 = vmax.f32 %v5617, %v5897
      %v5954 = vmax.f32 %v5618, %v5898
      %v5955 = vmax.f32 %v5619, %v5899
      %v5956 = vmax.f32 %v5620, %v5900
      %v5957 = vmax.f32 %v5621, %v5901
      %v5958 = vmax.f32 %v5622, %v5902
      %v5959 = vmax.f32 %v5623, %v5903
      %v5960 = vmax.f32 %v5624, %v5904
      %v5961 = vmax.f32 %v5625, %v5905
      %v5962 = vmul.f32 %v5038, %v5329
      %v5963 = vmul.f32 %v5039, %v5330
      %v5964 = vmul.f32 %v5040, %v5331
      %v5965 = vmul.f32 %v5041, %v5332
      %v5966 = vmul.f32 %v5042, %v5329
      %v5967 = vmul.f32 %v5043, %v5330
      %v5968 = vmul.f32 %v5044, %v5331
      %v5969 = vmul.f32 %v5045, %v5332
      %v5970 = vmul.f32 %v5046, %v5329
      %v5971 = vmul.f32 %v5047, %v5330
      %v5972 = vmul.f32 %v5048, %v5331
      %v5973 = vmul.f32 %v5049, %v5332
      %v5974 = vmul.f32 %v5050, %v5329
      %v5975 = vmul.f32 %v5051, %v5330
      %v5976 = vmul.f32 %v5052, %v5331
      %v5977 = vmul.f32 %v5053, %v5332
      %v5978 = vmul.f32 %v5054, %v5329
      %v5979 = vmul.f32 %v5055, %v5330
      %v5980 = vmul.f32 %v5056, %v5331
      %v5981 = vmul.f32 %v5057, %v5332
      %v5982 = vmul.f32 %v5058, %v5329
      %v5983 = vmul.f32 %v5059, %v5330
      %v5984 = vmul.f32 %v5060, %v5331
      %v5985 = vmul.f32 %v5061, %v5332
      %v5986 = vmul.f32 %v5062, %v5329
      %v5987 = vmul.f32 %v5063, %v5330
      %v5988 = vmul.f32 %v5064, %v5331
      %v5989 = vmul.f32 %v5065, %v5332
      %v5990 = vmul.f32 %v5066, %v5329
      %v5991 = vmul.f32 %v5067, %v5330
      %v5992 = vmul.f32 %v5068, %v5331
      %v5993 = vmul.f32 %v5069, %v5332
      %v5994 = vmul.f32 %v5070, %v5329
      %v5995 = vmul.f32 %v5071, %v5330
      %v5996 = vmul.f32 %v5072, %v5331
      %v5997 = vmul.f32 %v5073, %v5332
      %v5998 = vmul.f32 %v5074, %v5329
      %v5999 = vmul.f32 %v5075, %v5330
      %v6000 = vmul.f32 %v5076, %v5331
      %v6001 = vmul.f32 %v5077, %v5332
      %v6002 = vmul.f32 %v5078, %v5329
      %v6003 = vmul.f32 %v5079, %v5330
      %v6004 = vmul.f32 %v5080, %v5331
      %v6005 = vmul.f32 %v5081, %v5332
      %v6006 = vmul.f32 %v5082, %v5329
      %v6007 = vmul.f32 %v5083, %v5330
      %v6008 = vmul.f32 %v5084, %v5331
      %v6009 = vmul.f32 %v5085, %v5332
      %v6010 = vmul.f32 %v5086, %v5329
      %v6011 = vmul.f32 %v5087, %v5330
      %v6012 = vmul.f32 %v5088, %v5331
      %v6013 = vmul.f32 %v5089, %v5332
      %v6014 = vmul.f32 %v5090, %v5329
      %v6015 = vmul.f32 %v5091, %v5330
      %v6016 = vmul.f32 %v5092, %v5331
      %v6017 = vmul.f32 %v5093, %v5332
      %v6018 = vadd.f32 %v5962, %v5394
      %v6019 = vadd.f32 %v5963, %v5395
      %v6020 = vadd.f32 %v5964, %v5396
      %v6021 = vadd.f32 %v5965, %v5397
      %v6022 = vadd.f32 %v5966, %v5394
      %v6023 = vadd.f32 %v5967, %v5395
      %v6024 = vadd.f32 %v5968, %v5396
      %v6025 = vadd.f32 %v5969, %v5397
      %v6026 = vadd.f32 %v5970, %v5394
      %v6027 = vadd.f32 %v5971, %v5395
      %v6028 = vadd.f32 %v5972, %v5396
      %v6029 = vadd.f32 %v5973, %v5397
      %v6030 = vadd.f32 %v5974, %v5394
      %v6031 = vadd.f32 %v5975, %v5395
      %v6032 = vadd.f32 %v5976, %v5396
      %v6033 = vadd.f32 %v5977, %v5397
      %v6034 = vadd.f32 %v5978, %v5394
      %v6035 = vadd.f32 %v5979, %v5395
      %v6036 = vadd.f32 %v5980, %v5396
      %v6037 = vadd.f32 %v5981, %v5397
      %v6038 = vadd.f32 %v5982, %v5394
      %v6039 = vadd.f32 %v5983, %v5395
      %v6040 = vadd.f32 %v5984, %v5396
      %v6041 = vadd.f32 %v5985, %v5397
      %v6042 = vadd.f32 %v5986, %v5394
      %v6043 = vadd.f32 %v5987, %v5395
      %v6044 = vadd.f32 %v5988, %v5396
      %v6045 = vadd.f32 %v5989, %v5397
      %v6046 = vadd.f32 %v5990, %v5394
      %v6047 = vadd.f32 %v5991, %v5395
      %v6048 = vadd.f32 %v5992, %v5396
      %v6049 = vadd.f32 %v5993, %v5397
      %v6050 = vadd.f32 %v5994, %v5394
      %v6051 = vadd.f32 %v5995, %v5395
      %v6052 = vadd.f32 %v5996, %v5396
      %v6053 = vadd.f32 %v5997, %v5397
      %v6054 = vadd.f32 %v5998, %v5394
      %v6055 = vadd.f32 %v5999, %v5395
      %v6056 = vadd.f32 %v6000, %v5396
      %v6057 = vadd.f32 %v6001, %v5397
      %v6058 = vadd.f32 %v6002, %v5394
      %v6059 = vadd.f32 %v6003, %v5395
      %v6060 = vadd.f32 %v6004, %v5396
      %v6061 = vadd.f32 %v6005, %v5397
      %v6062 = vadd.f32 %v6006, %v5394
      %v6063 = vadd.f32 %v6007, %v5395
      %v6064 = vadd.f32 %v6008, %v5396
      %v6065 = vadd.f32 %v6009, %v5397
      %v6066 = vadd.f32 %v6010, %v5394
      %v6067 = vadd.f32 %v6011, %v5395
      %v6068 = vadd.f32 %v6012, %v5396
      %v6069 = vadd.f32 %v6013, %v5397
      %v6070 = vadd.f32 %v6014, %v5394
      %v6071 = vadd.f32 %v6015, %v5395
      %v6072 = vadd.f32 %v6016, %v5396
      %v6073 = vadd.f32 %v6017, %v5397
      %vm6074 = vcmp.ge.f32.partialorder %v6018, 0.0
      %vm6075 = vcmp.ge.f32.partialorder %v6019, 0.0
      %vm6076 = vcmp.ge.f32.partialorder %v6020, 0.0
      %vm6077 = vcmp.ge.f32.partialorder %v6021, 0.0
      %vm6078 = vcmp.ge.f32.partialorder %v6022, 0.0
      %vm6079 = vcmp.ge.f32.partialorder %v6023, 0.0
      %vm6080 = vcmp.ge.f32.partialorder %v6024, 0.0
      %vm6081 = vcmp.ge.f32.partialorder %v6025, 0.0
      %vm6082 = vcmp.ge.f32.partialorder %v6026, 0.0
      %vm6083 = vcmp.ge.f32.partialorder %v6027, 0.0
      %vm6084 = vcmp.ge.f32.partialorder %v6028, 0.0
      %vm6085 = vcmp.ge.f32.partialorder %v6029, 0.0
      %vm6086 = vcmp.ge.f32.partialorder %v6030, 0.0
      %vm6087 = vcmp.ge.f32.partialorder %v6031, 0.0
      %vm6088 = vcmp.ge.f32.partialorder %v6032, 0.0
      %vm6089 = vcmp.ge.f32.partialorder %v6033, 0.0
      %vm6090 = vcmp.ge.f32.partialorder %v6034, 0.0
      %vm6091 = vcmp.ge.f32.partialorder %v6035, 0.0
      %vm6092 = vcmp.ge.f32.partialorder %v6036, 0.0
      %vm6093 = vcmp.ge.f32.partialorder %v6037, 0.0
      %vm6094 = vcmp.ge.f32.partialorder %v6038, 0.0
      %vm6095 = vcmp.ge.f32.partialorder %v6039, 0.0
      %vm6096 = vcmp.ge.f32.partialorder %v6040, 0.0
      %vm6097 = vcmp.ge.f32.partialorder %v6041, 0.0
      %vm6098 = vcmp.ge.f32.partialorder %v6042, 0.0
      %vm6099 = vcmp.ge.f32.partialorder %v6043, 0.0
      %vm6100 = vcmp.ge.f32.partialorder %v6044, 0.0
      %vm6101 = vcmp.ge.f32.partialorder %v6045, 0.0
      %vm6102 = vcmp.ge.f32.partialorder %v6046, 0.0
      %vm6103 = vcmp.ge.f32.partialorder %v6047, 0.0
      %vm6104 = vcmp.ge.f32.partialorder %v6048, 0.0
      %vm6105 = vcmp.ge.f32.partialorder %v6049, 0.0
      %vm6106 = vcmp.ge.f32.partialorder %v6050, 0.0
      %vm6107 = vcmp.ge.f32.partialorder %v6051, 0.0
      %vm6108 = vcmp.ge.f32.partialorder %v6052, 0.0
      %vm6109 = vcmp.ge.f32.partialorder %v6053, 0.0
      %vm6110 = vcmp.ge.f32.partialorder %v6054, 0.0
      %vm6111 = vcmp.ge.f32.partialorder %v6055, 0.0
      %vm6112 = vcmp.ge.f32.partialorder %v6056, 0.0
      %vm6113 = vcmp.ge.f32.partialorder %v6057, 0.0
      %vm6114 = vcmp.ge.f32.partialorder %v6058, 0.0
      %vm6115 = vcmp.ge.f32.partialorder %v6059, 0.0
      %vm6116 = vcmp.ge.f32.partialorder %v6060, 0.0
      %vm6117 = vcmp.ge.f32.partialorder %v6061, 0.0
      %vm6118 = vcmp.ge.f32.partialorder %v6062, 0.0
      %vm6119 = vcmp.ge.f32.partialorder %v6063, 0.0
      %vm6120 = vcmp.ge.f32.partialorder %v6064, 0.0
      %vm6121 = vcmp.ge.f32.partialorder %v6065, 0.0
      %vm6122 = vcmp.ge.f32.partialorder %v6066, 0.0
      %vm6123 = vcmp.ge.f32.partialorder %v6067, 0.0
      %vm6124 = vcmp.ge.f32.partialorder %v6068, 0.0
      %vm6125 = vcmp.ge.f32.partialorder %v6069, 0.0
      %vm6126 = vcmp.ge.f32.partialorder %v6070, 0.0
      %vm6127 = vcmp.ge.f32.partialorder %v6071, 0.0
      %vm6128 = vcmp.ge.f32.partialorder %v6072, 0.0
      %vm6129 = vcmp.ge.f32.partialorder %v6073, 0.0
      %v6130 = vmul.f32 %v6018, 0.01
      %v6131 = vmul.f32 %v6019, 0.01
      %v6132 = vmul.f32 %v6020, 0.01
      %v6133 = vmul.f32 %v6021, 0.01
      %v6134 = vmul.f32 %v6022, 0.01
      %v6135 = vmul.f32 %v6023, 0.01
      %v6136 = vmul.f32 %v6024, 0.01
      %v6137 = vmul.f32 %v6025, 0.01
      %v6138 = vmul.f32 %v6026, 0.01
      %v6139 = vmul.f32 %v6027, 0.01
      %v6140 = vmul.f32 %v6028, 0.01
      %v6141 = vmul.f32 %v6029, 0.01
      %v6142 = vmul.f32 %v6030, 0.01
      %v6143 = vmul.f32 %v6031, 0.01
      %v6144 = vmul.f32 %v6032, 0.01
      %v6145 = vmul.f32 %v6033, 0.01
      %v6146 = vmul.f32 %v6034, 0.01
      %v6147 = vmul.f32 %v6035, 0.01
      %v6148 = vmul.f32 %v6036, 0.01
      %v6149 = vmul.f32 %v6037, 0.01
      %v6150 = vmul.f32 %v6038, 0.01
      %v6151 = vmul.f32 %v6039, 0.01
      %v6152 = vmul.f32 %v6040, 0.01
      %v6153 = vmul.f32 %v6041, 0.01
      %v6154 = vmul.f32 %v6042, 0.01
      %v6155 = vmul.f32 %v6043, 0.01
      %v6156 = vmul.f32 %v6044, 0.01
      %v6157 = vmul.f32 %v6045, 0.01
      %v6158 = vmul.f32 %v6046, 0.01
      %v6159 = vmul.f32 %v6047, 0.01
      %v6160 = vmul.f32 %v6048, 0.01
      %v6161 = vmul.f32 %v6049, 0.01
      %v6162 = vmul.f32 %v6050, 0.01
      %v6163 = vmul.f32 %v6051, 0.01
      %v6164 = vmul.f32 %v6052, 0.01
      %v6165 = vmul.f32 %v6053, 0.01
      %v6166 = vmul.f32 %v6054, 0.01
      %v6167 = vmul.f32 %v6055, 0.01
      %v6168 = vmul.f32 %v6056, 0.01
      %v6169 = vmul.f32 %v6057, 0.01
      %v6170 = vmul.f32 %v6058, 0.01
      %v6171 = vmul.f32 %v6059, 0.01
      %v6172 = vmul.f32 %v6060, 0.01
      %v6173 = vmul.f32 %v6061, 0.01
      %v6174 = vmul.f32 %v6062, 0.01
      %v6175 = vmul.f32 %v6063, 0.01
      %v6176 = vmul.f32 %v6064, 0.01
      %v6177 = vmul.f32 %v6065, 0.01
      %v6178 = vmul.f32 %v6066, 0.01
      %v6179 = vmul.f32 %v6067, 0.01
      %v6180 = vmul.f32 %v6068, 0.01
      %v6181 = vmul.f32 %v6069, 0.01
      %v6182 = vmul.f32 %v6070, 0.01
      %v6183 = vmul.f32 %v6071, 0.01
      %v6184 = vmul.f32 %v6072, 0.01
      %v6185 = vmul.f32 %v6073, 0.01
      %v6186 = vsel %vm6074, %v6018, %v6130
      %v6187 = vsel %vm6075, %v6019, %v6131
      %v6188 = vsel %vm6076, %v6020, %v6132
      %v6189 = vsel %vm6077, %v6021, %v6133
      %v6190 = vsel %vm6078, %v6022, %v6134
      %v6191 = vsel %vm6079, %v6023, %v6135
      %v6192 = vsel %vm6080, %v6024, %v6136
      %v6193 = vsel %vm6081, %v6025, %v6137
      %v6194 = vsel %vm6082, %v6026, %v6138
      %v6195 = vsel %vm6083, %v6027, %v6139
      %v6196 = vsel %vm6084, %v6028, %v6140
      %v6197 = vsel %vm6085, %v6029, %v6141
      %v6198 = vsel %vm6086, %v6030, %v6142
      %v6199 = vsel %vm6087, %v6031, %v6143
      %v6200 = vsel %vm6088, %v6032, %v6144
      %v6201 = vsel %vm6089, %v6033, %v6145
      %v6202 = vsel %vm6090, %v6034, %v6146
      %v6203 = vsel %vm6091, %v6035, %v6147
      %v6204 = vsel %vm6092, %v6036, %v6148
      %v6205 = vsel %vm6093, %v6037, %v6149
      %v6206 = vsel %vm6094, %v6038, %v6150
      %v6207 = vsel %vm6095, %v6039, %v6151
      %v6208 = vsel %vm6096, %v6040, %v6152
      %v6209 = vsel %vm6097, %v6041, %v6153
      %v6210 = vsel %vm6098, %v6042, %v6154
      %v6211 = vsel %vm6099, %v6043, %v6155
      %v6212 = vsel %vm6100, %v6044, %v6156
      %v6213 = vsel %vm6101, %v6045, %v6157
      %v6214 = vsel %vm6102, %v6046, %v6158
      %v6215 = vsel %vm6103, %v6047, %v6159
      %v6216 = vsel %vm6104, %v6048, %v6160
      %v6217 = vsel %vm6105, %v6049, %v6161
      %v6218 = vsel %vm6106, %v6050, %v6162
      %v6219 = vsel %vm6107, %v6051, %v6163
      %v6220 = vsel %vm6108, %v6052, %v6164
      %v6221 = vsel %vm6109, %v6053, %v6165
      %v6222 = vsel %vm6110, %v6054, %v6166
      %v6223 = vsel %vm6111, %v6055, %v6167
      %v6224 = vsel %vm6112, %v6056, %v6168
      %v6225 = vsel %vm6113, %v6057, %v6169
      %v6226 = vsel %vm6114, %v6058, %v6170
      %v6227 = vsel %vm6115, %v6059, %v6171
      %v6228 = vsel %vm6116, %v6060, %v6172
      %v6229 = vsel %vm6117, %v6061, %v6173
      %v6230 = vsel %vm6118, %v6062, %v6174
      %v6231 = vsel %vm6119, %v6063, %v6175
      %v6232 = vsel %vm6120, %v6064, %v6176
      %v6233 = vsel %vm6121, %v6065, %v6177
      %v6234 = vsel %vm6122, %v6066, %v6178
      %v6235 = vsel %vm6123, %v6067, %v6179
      %v6236 = vsel %vm6124, %v6068, %v6180
      %v6237 = vsel %vm6125, %v6069, %v6181
      %v6238 = vsel %vm6126, %v6070, %v6182
      %v6239 = vsel %vm6127, %v6071, %v6183
      %v6240 = vsel %vm6128, %v6072, %v6184
      %v6241 = vsel %vm6129, %v6073, %v6185
      %v6242 = vmul.f32 %v5270, %v5329
      %v6243 = vmul.f32 %v5271, %v5330
      %v6244 = vmul.f32 %v5272, %v5331
      %v6245 = vmul.f32 %v5273, %v5332
      %v6246 = vmul.f32 %v5274, %v5329
      %v6247 = vmul.f32 %v5275, %v5330
      %v6248 = vmul.f32 %v5276, %v5331
      %v6249 = vmul.f32 %v5277, %v5332
      %v6250 = vmul.f32 %v5278, %v5329
      %v6251 = vmul.f32 %v5279, %v5330
      %v6252 = vmul.f32 %v5280, %v5331
      %v6253 = vmul.f32 %v5281, %v5332
      %v6254 = vmul.f32 %v5282, %v5329
      %v6255 = vmul.f32 %v5283, %v5330
      %v6256 = vmul.f32 %v5284, %v5331
      %v6257 = vmul.f32 %v5285, %v5332
      %v6258 = vmul.f32 %v5286, %v5329
      %v6259 = vmul.f32 %v5287, %v5330
      %v6260 = vmul.f32 %v5288, %v5331
      %v6261 = vmul.f32 %v5289, %v5332
      %v6262 = vmul.f32 %v5290, %v5329
      %v6263 = vmul.f32 %v5291, %v5330
      %v6264 = vmul.f32 %v5292, %v5331
      %v6265 = vmul.f32 %v5293, %v5332
      %v6266 = vmul.f32 %v5294, %v5329
      %v6267 = vmul.f32 %v5295, %v5330
      %v6268 = vmul.f32 %v5296, %v5331
      %v6269 = vmul.f32 %v5297, %v5332
      %v6270 = vmul.f32 %v5298, %v5329
      %v6271 = vmul.f32 %v5299, %v5330
      %v6272 = vmul.f32 %v5300, %v5331
      %v6273 = vmul.f32 %v5301, %v5332
      %v6274 = vmul.f32 %v5302, %v5329
      %v6275 = vmul.f32 %v5303, %v5330
      %v6276 = vmul.f32 %v5304, %v5331
      %v6277 = vmul.f32 %v5305, %v5332
      %v6278 = vmul.f32 %v5306, %v5329
      %v6279 = vmul.f32 %v5307, %v5330
      %v6280 = vmul.f32 %v5308, %v5331
      %v6281 = vmul.f32 %v5309, %v5332
      %v6282 = vmul.f32 %v5310, %v5329
      %v6283 = vmul.f32 %v5311, %v5330
      %v6284 = vmul.f32 %v5312, %v5331
      %v6285 = vmul.f32 %v5313, %v5332
      %v6286 = vmul.f32 %v5314, %v5329
      %v6287 = vmul.f32 %v5315, %v5330
      %v6288 = vmul.f32 %v5316, %v5331
      %v6289 = vmul.f32 %v5317, %v5332
      %v6290 = vmul.f32 %v5318, %v5329
      %v6291 = vmul.f32 %v5319, %v5330
      %v6292 = vmul.f32 %v5320, %v5331
      %v6293 = vmul.f32 %v5321, %v5332
      %v6294 = vmul.f32 %v5322, %v5329
      %v6295 = vmul.f32 %v5323, %v5330
      %v6296 = vmul.f32 %v5324, %v5331
      %v6297 = vmul.f32 %v5325, %v5332
      %v6298 = vadd.f32 %v6242, %v5394
      %v6299 = vadd.f32 %v6243, %v5395
      %v6300 = vadd.f32 %v6244, %v5396
      %v6301 = vadd.f32 %v6245, %v5397
      %v6302 = vadd.f32 %v6246, %v5394
      %v6303 = vadd.f32 %v6247, %v5395
      %v6304 = vadd.f32 %v6248, %v5396
      %v6305 = vadd.f32 %v6249, %v5397
      %v6306 = vadd.f32 %v6250, %v5394
      %v6307 = vadd.f32 %v6251, %v5395
      %v6308 = vadd.f32 %v6252, %v5396
      %v6309 = vadd.f32 %v6253, %v5397
      %v6310 = vadd.f32 %v6254, %v5394
      %v6311 = vadd.f32 %v6255, %v5395
      %v6312 = vadd.f32 %v6256, %v5396
      %v6313 = vadd.f32 %v6257, %v5397
      %v6314 = vadd.f32 %v6258, %v5394
      %v6315 = vadd.f32 %v6259, %v5395
      %v6316 = vadd.f32 %v6260, %v5396
      %v6317 = vadd.f32 %v6261, %v5397
      %v6318 = vadd.f32 %v6262, %v5394
      %v6319 = vadd.f32 %v6263, %v5395
      %v6320 = vadd.f32 %v6264, %v5396
      %v6321 = vadd.f32 %v6265, %v5397
      %v6322 = vadd.f32 %v6266, %v5394
      %v6323 = vadd.f32 %v6267, %v5395
      %v6324 = vadd.f32 %v6268, %v5396
      %v6325 = vadd.f32 %v6269, %v5397
      %v6326 = vadd.f32 %v6270, %v5394
      %v6327 = vadd.f32 %v6271, %v5395
      %v6328 = vadd.f32 %v6272, %v5396
      %v6329 = vadd.f32 %v6273, %v5397
      %v6330 = vadd.f32 %v6274, %v5394
      %v6331 = vadd.f32 %v6275, %v5395
      %v6332 = vadd.f32 %v6276, %v5396
      %v6333 = vadd.f32 %v6277, %v5397
      %v6334 = vadd.f32 %v6278, %v5394
      %v6335 = vadd.f32 %v6279, %v5395
      %v6336 = vadd.f32 %v6280, %v5396
      %v6337 = vadd.f32 %v6281, %v5397
      %v6338 = vadd.f32 %v6282, %v5394
      %v6339 = vadd.f32 %v6283, %v5395
      %v6340 = vadd.f32 %v6284, %v5396
      %v6341 = vadd.f32 %v6285, %v5397
      %v6342 = vadd.f32 %v6286, %v5394
      %v6343 = vadd.f32 %v6287, %v5395
      %v6344 = vadd.f32 %v6288, %v5396
      %v6345 = vadd.f32 %v6289, %v5397
      %v6346 = vadd.f32 %v6290, %v5394
      %v6347 = vadd.f32 %v6291, %v5395
      %v6348 = vadd.f32 %v6292, %v5396
      %v6349 = vadd.f32 %v6293, %v5397
      %v6350 = vadd.f32 %v6294, %v5394
      %v6351 = vadd.f32 %v6295, %v5395
      %v6352 = vadd.f32 %v6296, %v5396
      %v6353 = vadd.f32 %v6297, %v5397
      %vm6354 = vcmp.ge.f32.partialorder %v6298, 0.0
      %vm6355 = vcmp.ge.f32.partialorder %v6299, 0.0
      %vm6356 = vcmp.ge.f32.partialorder %v6300, 0.0
      %vm6357 = vcmp.ge.f32.partialorder %v6301, 0.0
      %vm6358 = vcmp.ge.f32.partialorder %v6302, 0.0
      %vm6359 = vcmp.ge.f32.partialorder %v6303, 0.0
      %vm6360 = vcmp.ge.f32.partialorder %v6304, 0.0
      %vm6361 = vcmp.ge.f32.partialorder %v6305, 0.0
      %vm6362 = vcmp.ge.f32.partialorder %v6306, 0.0
      %vm6363 = vcmp.ge.f32.partialorder %v6307, 0.0
      %vm6364 = vcmp.ge.f32.partialorder %v6308, 0.0
      %vm6365 = vcmp.ge.f32.partialorder %v6309, 0.0
      %vm6366 = vcmp.ge.f32.partialorder %v6310, 0.0
      %vm6367 = vcmp.ge.f32.partialorder %v6311, 0.0
      %vm6368 = vcmp.ge.f32.partialorder %v6312, 0.0
      %vm6369 = vcmp.ge.f32.partialorder %v6313, 0.0
      %vm6370 = vcmp.ge.f32.partialorder %v6314, 0.0
      %vm6371 = vcmp.ge.f32.partialorder %v6315, 0.0
      %vm6372 = vcmp.ge.f32.partialorder %v6316, 0.0
      %vm6373 = vcmp.ge.f32.partialorder %v6317, 0.0
      %vm6374 = vcmp.ge.f32.partialorder %v6318, 0.0
      %vm6375 = vcmp.ge.f32.partialorder %v6319, 0.0
      %vm6376 = vcmp.ge.f32.partialorder %v6320, 0.0
      %vm6377 = vcmp.ge.f32.partialorder %v6321, 0.0
      %vm6378 = vcmp.ge.f32.partialorder %v6322, 0.0
      %vm6379 = vcmp.ge.f32.partialorder %v6323, 0.0
      %vm6380 = vcmp.ge.f32.partialorder %v6324, 0.0
      %vm6381 = vcmp.ge.f32.partialorder %v6325, 0.0
      %vm6382 = vcmp.ge.f32.partialorder %v6326, 0.0
      %vm6383 = vcmp.ge.f32.partialorder %v6327, 0.0
      %vm6384 = vcmp.ge.f32.partialorder %v6328, 0.0
      %vm6385 = vcmp.ge.f32.partialorder %v6329, 0.0
      %vm6386 = vcmp.ge.f32.partialorder %v6330, 0.0
      %vm6387 = vcmp.ge.f32.partialorder %v6331, 0.0
      %vm6388 = vcmp.ge.f32.partialorder %v6332, 0.0
      %vm6389 = vcmp.ge.f32.partialorder %v6333, 0.0
      %vm6390 = vcmp.ge.f32.partialorder %v6334, 0.0
      %vm6391 = vcmp.ge.f32.partialorder %v6335, 0.0
      %vm6392 = vcmp.ge.f32.partialorder %v6336, 0.0
      %vm6393 = vcmp.ge.f32.partialorder %v6337, 0.0
      %vm6394 = vcmp.ge.f32.partialorder %v6338, 0.0
      %vm6395 = vcmp.ge.f32.partialorder %v6339, 0.0
      %vm6396 = vcmp.ge.f32.partialorder %v6340, 0.0
      %vm6397 = vcmp.ge.f32.partialorder %v6341, 0.0
      %vm6398 = vcmp.ge.f32.partialorder %v6342, 0.0
      %vm6399 = vcmp.ge.f32.partialorder %v6343, 0.0
      %vm6400 = vcmp.ge.f32.partialorder %v6344, 0.0
      %vm6401 = vcmp.ge.f32.partialorder %v6345, 0.0
      %vm6402 = vcmp.ge.f32.partialorder %v6346, 0.0
      %vm6403 = vcmp.ge.f32.partialorder %v6347, 0.0
      %vm6404 = vcmp.ge.f32.partialorder %v6348, 0.0
      %vm6405 = vcmp.ge.f32.partialorder %v6349, 0.0
      %vm6406 = vcmp.ge.f32.partialorder %v6350, 0.0
      %vm6407 = vcmp.ge.f32.partialorder %v6351, 0.0
      %vm6408 = vcmp.ge.f32.partialorder %v6352, 0.0
      %vm6409 = vcmp.ge.f32.partialorder %v6353, 0.0
      %v6410 = vmul.f32 %v6298, 0.01
      %v6411 = vmul.f32 %v6299, 0.01
      %v6412 = vmul.f32 %v6300, 0.01
      %v6413 = vmul.f32 %v6301, 0.01
      %v6414 = vmul.f32 %v6302, 0.01
      %v6415 = vmul.f32 %v6303, 0.01
      %v6416 = vmul.f32 %v6304, 0.01
      %v6417 = vmul.f32 %v6305, 0.01
      %v6418 = vmul.f32 %v6306, 0.01
      %v6419 = vmul.f32 %v6307, 0.01
      %v6420 = vmul.f32 %v6308, 0.01
      %v6421 = vmul.f32 %v6309, 0.01
      %v6422 = vmul.f32 %v6310, 0.01
      %v6423 = vmul.f32 %v6311, 0.01
      %v6424 = vmul.f32 %v6312, 0.01
      %v6425 = vmul.f32 %v6313, 0.01
      %v6426 = vmul.f32 %v6314, 0.01
      %v6427 = vmul.f32 %v6315, 0.01
      %v6428 = vmul.f32 %v6316, 0.01
      %v6429 = vmul.f32 %v6317, 0.01
      %v6430 = vmul.f32 %v6318, 0.01
      %v6431 = vmul.f32 %v6319, 0.01
      %v6432 = vmul.f32 %v6320, 0.01
      %v6433 = vmul.f32 %v6321, 0.01
      %v6434 = vmul.f32 %v6322, 0.01
      %v6435 = vmul.f32 %v6323, 0.01
      %v6436 = vmul.f32 %v6324, 0.01
      %v6437 = vmul.f32 %v6325, 0.01
      %v6438 = vmul.f32 %v6326, 0.01
      %v6439 = vmul.f32 %v6327, 0.01
      %v6440 = vmul.f32 %v6328, 0.01
      %v6441 = vmul.f32 %v6329, 0.01
      %v6442 = vmul.f32 %v6330, 0.01
      %v6443 = vmul.f32 %v6331, 0.01
      %v6444 = vmul.f32 %v6332, 0.01
      %v6445 = vmul.f32 %v6333, 0.01
      %v6446 = vmul.f32 %v6334, 0.01
      %v6447 = vmul.f32 %v6335, 0.01
      %v6448 = vmul.f32 %v6336, 0.01
      %v6449 = vmul.f32 %v6337, 0.01
      %v6450 = vmul.f32 %v6338, 0.01
      %v6451 = vmul.f32 %v6339, 0.01
      %v6452 = vmul.f32 %v6340, 0.01
      %v6453 = vmul.f32 %v6341, 0.01
      %v6454 = vmul.f32 %v6342, 0.01
      %v6455 = vmul.f32 %v6343, 0.01
      %v6456 = vmul.f32 %v6344, 0.01
      %v6457 = vmul.f32 %v6345, 0.01
      %v6458 = vmul.f32 %v6346, 0.01
      %v6459 = vmul.f32 %v6347, 0.01
      %v6460 = vmul.f32 %v6348, 0.01
      %v6461 = vmul.f32 %v6349, 0.01
      %v6462 = vmul.f32 %v6350, 0.01
      %v6463 = vmul.f32 %v6351, 0.01
      %v6464 = vmul.f32 %v6352, 0.01
      %v6465 = vmul.f32 %v6353, 0.01
      %v6466 = vsel %vm6354, %v6298, %v6410
      %v6467 = vsel %vm6355, %v6299, %v6411
      %v6468 = vsel %vm6356, %v6300, %v6412
      %v6469 = vsel %vm6357, %v6301, %v6413
      %v6470 = vsel %vm6358, %v6302, %v6414
      %v6471 = vsel %vm6359, %v6303, %v6415
      %v6472 = vsel %vm6360, %v6304, %v6416
      %v6473 = vsel %vm6361, %v6305, %v6417
      %v6474 = vsel %vm6362, %v6306, %v6418
      %v6475 = vsel %vm6363, %v6307, %v6419
      %v6476 = vsel %vm6364, %v6308, %v6420
      %v6477 = vsel %vm6365, %v6309, %v6421
      %v6478 = vsel %vm6366, %v6310, %v6422
      %v6479 = vsel %vm6367, %v6311, %v6423
      %v6480 = vsel %vm6368, %v6312, %v6424
      %v6481 = vsel %vm6369, %v6313, %v6425
      %v6482 = vsel %vm6370, %v6314, %v6426
      %v6483 = vsel %vm6371, %v6315, %v6427
      %v6484 = vsel %vm6372, %v6316, %v6428
      %v6485 = vsel %vm6373, %v6317, %v6429
      %v6486 = vsel %vm6374, %v6318, %v6430
      %v6487 = vsel %vm6375, %v6319, %v6431
      %v6488 = vsel %vm6376, %v6320, %v6432
      %v6489 = vsel %vm6377, %v6321, %v6433
      %v6490 = vsel %vm6378, %v6322, %v6434
      %v6491 = vsel %vm6379, %v6323, %v6435
      %v6492 = vsel %vm6380, %v6324, %v6436
      %v6493 = vsel %vm6381, %v6325, %v6437
      %v6494 = vsel %vm6382, %v6326, %v6438
      %v6495 = vsel %vm6383, %v6327, %v6439
      %v6496 = vsel %vm6384, %v6328, %v6440
      %v6497 = vsel %vm6385, %v6329, %v6441
      %v6498 = vsel %vm6386, %v6330, %v6442
      %v6499 = vsel %vm6387, %v6331, %v6443
      %v6500 = vsel %vm6388, %v6332, %v6444
      %v6501 = vsel %vm6389, %v6333, %v6445
      %v6502 = vsel %vm6390, %v6334, %v6446
      %v6503 = vsel %vm6391, %v6335, %v6447
      %v6504 = vsel %vm6392, %v6336, %v6448
      %v6505 = vsel %vm6393, %v6337, %v6449
      %v6506 = vsel %vm6394, %v6338, %v6450
      %v6507 = vsel %vm6395, %v6339, %v6451
      %v6508 = vsel %vm6396, %v6340, %v6452
      %v6509 = vsel %vm6397, %v6341, %v6453
      %v6510 = vsel %vm6398, %v6342, %v6454
      %v6511 = vsel %vm6399, %v6343, %v6455
      %v6512 = vsel %vm6400, %v6344, %v6456
      %v6513 = vsel %vm6401, %v6345, %v6457
      %v6514 = vsel %vm6402, %v6346, %v6458
      %v6515 = vsel %vm6403, %v6347, %v6459
      %v6516 = vsel %vm6404, %v6348, %v6460
      %v6517 = vsel %vm6405, %v6349, %v6461
      %v6518 = vsel %vm6406, %v6350, %v6462
      %v6519 = vsel %vm6407, %v6351, %v6463
      %v6520 = vsel %vm6408, %v6352, %v6464
      %v6521 = vsel %vm6409, %v6353, %v6465
      %v6522 = vmax.f32 %v6186, %v6466
      %v6523 = vmax.f32 %v6187, %v6467
      %v6524 = vmax.f32 %v6188, %v6468
      %v6525 = vmax.f32 %v6189, %v6469
      %v6526 = vmax.f32 %v6190, %v6470
      %v6527 = vmax.f32 %v6191, %v6471
      %v6528 = vmax.f32 %v6192, %v6472
      %v6529 = vmax.f32 %v6193, %v6473
      %v6530 = vmax.f32 %v6194, %v6474
      %v6531 = vmax.f32 %v6195, %v6475
      %v6532 = vmax.f32 %v6196, %v6476
      %v6533 = vmax.f32 %v6197, %v6477
      %v6534 = vmax.f32 %v6198, %v6478
      %v6535 = vmax.f32 %v6199, %v6479
      %v6536 = vmax.f32 %v6200, %v6480
      %v6537 = vmax.f32 %v6201, %v6481
      %v6538 = vmax.f32 %v6202, %v6482
      %v6539 = vmax.f32 %v6203, %v6483
      %v6540 = vmax.f32 %v6204, %v6484
      %v6541 = vmax.f32 %v6205, %v6485
      %v6542 = vmax.f32 %v6206, %v6486
      %v6543 = vmax.f32 %v6207, %v6487
      %v6544 = vmax.f32 %v6208, %v6488
      %v6545 = vmax.f32 %v6209, %v6489
      %v6546 = vmax.f32 %v6210, %v6490
      %v6547 = vmax.f32 %v6211, %v6491
      %v6548 = vmax.f32 %v6212, %v6492
      %v6549 = vmax.f32 %v6213, %v6493
      %v6550 = vmax.f32 %v6214, %v6494
      %v6551 = vmax.f32 %v6215, %v6495
      %v6552 = vmax.f32 %v6216, %v6496
      %v6553 = vmax.f32 %v6217, %v6497
      %v6554 = vmax.f32 %v6218, %v6498
      %v6555 = vmax.f32 %v6219, %v6499
      %v6556 = vmax.f32 %v6220, %v6500
      %v6557 = vmax.f32 %v6221, %v6501
      %v6558 = vmax.f32 %v6222, %v6502
      %v6559 = vmax.f32 %v6223, %v6503
      %v6560 = vmax.f32 %v6224, %v6504
      %v6561 = vmax.f32 %v6225, %v6505
      %v6562 = vmax.f32 %v6226, %v6506
      %v6563 = vmax.f32 %v6227, %v6507
      %v6564 = vmax.f32 %v6228, %v6508
      %v6565 = vmax.f32 %v6229, %v6509
      %v6566 = vmax.f32 %v6230, %v6510
      %v6567 = vmax.f32 %v6231, %v6511
      %v6568 = vmax.f32 %v6232, %v6512
      %v6569 = vmax.f32 %v6233, %v6513
      %v6570 = vmax.f32 %v6234, %v6514
      %v6571 = vmax.f32 %v6235, %v6515
      %v6572 = vmax.f32 %v6236, %v6516
      %v6573 = vmax.f32 %v6237, %v6517
      %v6574 = vmax.f32 %v6238, %v6518
      %v6575 = vmax.f32 %v6239, %v6519
      %v6576 = vmax.f32 %v6240, %v6520
      %v6577 = vmax.f32 %v6241, %v6521
      %v6578 = vmax.f32 %v5906, %v6522
      %v6579 = vmax.f32 %v5907, %v6523
      %v6580 = vmax.f32 %v5908, %v6524
      %v6581 = vmax.f32 %v5909, %v6525
      %v6582 = vmax.f32 %v5910, %v6526
      %v6583 = vmax.f32 %v5911, %v6527
      %v6584 = vmax.f32 %v5912, %v6528
      %v6585 = vmax.f32 %v5913, %v6529
      %v6586 = vmax.f32 %v5914, %v6530
      %v6587 = vmax.f32 %v5915, %v6531
      %v6588 = vmax.f32 %v5916, %v6532
      %v6589 = vmax.f32 %v5917, %v6533
      %v6590 = vmax.f32 %v5918, %v6534
      %v6591 = vmax.f32 %v5919, %v6535
      %v6592 = vmax.f32 %v5920, %v6536
      %v6593 = vmax.f32 %v5921, %v6537
      %v6594 = vmax.f32 %v5922, %v6538
      %v6595 = vmax.f32 %v5923, %v6539
      %v6596 = vmax.f32 %v5924, %v6540
      %v6597 = vmax.f32 %v5925, %v6541
      %v6598 = vmax.f32 %v5926, %v6542
      %v6599 = vmax.f32 %v5927, %v6543
      %v6600 = vmax.f32 %v5928, %v6544
      %v6601 = vmax.f32 %v5929, %v6545
      %v6602 = vmax.f32 %v5930, %v6546
      %v6603 = vmax.f32 %v5931, %v6547
      %v6604 = vmax.f32 %v5932, %v6548
      %v6605 = vmax.f32 %v5933, %v6549
      %v6606 = vmax.f32 %v5934, %v6550
      %v6607 = vmax.f32 %v5935, %v6551
      %v6608 = vmax.f32 %v5936, %v6552
      %v6609 = vmax.f32 %v5937, %v6553
      %v6610 = vmax.f32 %v5938, %v6554
      %v6611 = vmax.f32 %v5939, %v6555
      %v6612 = vmax.f32 %v5940, %v6556
      %v6613 = vmax.f32 %v5941, %v6557
      %v6614 = vmax.f32 %v5942, %v6558
      %v6615 = vmax.f32 %v5943, %v6559
      %v6616 = vmax.f32 %v5944, %v6560
      %v6617 = vmax.f32 %v5945, %v6561
      %v6618 = vmax.f32 %v5946, %v6562
      %v6619 = vmax.f32 %v5947, %v6563
      %v6620 = vmax.f32 %v5948, %v6564
      %v6621 = vmax.f32 %v5949, %v6565
      %v6622 = vmax.f32 %v5950, %v6566
      %v6623 = vmax.f32 %v5951, %v6567
      %v6624 = vmax.f32 %v5952, %v6568
      %v6625 = vmax.f32 %v5953, %v6569
      %v6626 = vmax.f32 %v5954, %v6570
      %v6627 = vmax.f32 %v5955, %v6571
      %v6628 = vmax.f32 %v5956, %v6572
      %v6629 = vmax.f32 %v5957, %v6573
      %v6630 = vmax.f32 %v5958, %v6574
      %v6631 = vmax.f32 %v5959, %v6575
      %v6632 = vmax.f32 %v5960, %v6576
      %v6633 = vmax.f32 %v5961, %v6577
      %v6634 = vpack.c.bf16 %v6582, %v6578
      %v6635 = vpack.c.bf16 %v6583, %v6579
      %v6636 = vpack.c.bf16 %v6584, %v6580
      %v6637 = vpack.c.bf16 %v6585, %v6581
      %v6638 = vpack.c.bf16 %v6590, %v6586
      %v6639 = vpack.c.bf16 %v6591, %v6587
      %v6640 = vpack.c.bf16 %v6592, %v6588
      %v6641 = vpack.c.bf16 %v6593, %v6589
      %v6642 = vpack.c.bf16 %v6598, %v6594
      %v6643 = vpack.c.bf16 %v6599, %v6595
      %v6644 = vpack.c.bf16 %v6600, %v6596
      %v6645 = vpack.c.bf16 %v6601, %v6597
      %v6646 = vpack.c.bf16 %v6606, %v6602
      %v6647 = vpack.c.bf16 %v6607, %v6603
      %v6648 = vpack.c.bf16 %v6608, %v6604
      %v6649 = vpack.c.bf16 %v6609, %v6605
      %v6650 = vpack.c.bf16 %v6614, %v6610
      %v6651 = vpack.c.bf16 %v6615, %v6611
      %v6652 = vpack.c.bf16 %v6616, %v6612
      %v6653 = vpack.c.bf16 %v6617, %v6613
      %v6654 = vld [vmem:[%s6] sm:$0xff]
      %v6655 = vld [vmem:[%s6 + $0x8] sm:$0xff]
      %v6656 = vld [vmem:[%s6 + $0x10] sm:$0xff]
      %v6657 = vld [vmem:[%s6 + $0x18] sm:$0xff]
      %v6658 = vld [vmem:[%s6 + $0x20] sm:$0xff]
      %v6659 = vld [vmem:[%s6 + $0x28] sm:$0xff]
      %v6660 = vld [vmem:[%s6 + $0x30] sm:$0xff]
      %v6661 = vld [vmem:[%s6 + $0x38] sm:$0xff]
      %v6662 = vld [vmem:[%s6 + $0x40] sm:$0xff]
      %v6663 = vld [vmem:[%s6 + $0x48] sm:$0xff]
      %v6664 = vld [vmem:[%s6 + $0x50] sm:$0xff]
      %v6665 = vld [vmem:[%s6 + $0x58] sm:$0xff]
      %v6666 = vld [vmem:[%s6 + $0x60] sm:$0xff]
      %v6667 = vld [vmem:[%s6 + $0x68] sm:$0xff]
      %v6668 = vld [vmem:[%s6 + $0x70] sm:$0xff]
      %v6669 = vld [vmem:[%s6 + $0x78] sm:$0xff]
      %v6670 = vld [vmem:[%s6 + $0x80] sm:$0xff]
      %v6671 = vld [vmem:[%s6 + $0x88] sm:$0xff]
      %v6672 = vld [vmem:[%s6 + $0x90] sm:$0xff]
      %v6673 = vld [vmem:[%s6 + $0x98] sm:$0xff]
      %v6674 = vld [vmem:[%s6 + $0xa0] sm:$0xff]
      %v6675 = vld [vmem:[%s6 + $0xa8] sm:$0xff]
      %v6676 = vld [vmem:[%s6 + $0xb0] sm:$0xff]
      %v6677 = vld [vmem:[%s6 + $0xb8] sm:$0xff]
      %v6678 = vld [vmem:[%s6 + $0xc0] sm:$0xff]
      %v6679 = vld [vmem:[%s6 + $0xc8] sm:$0xff]
      %v6680 = vld [vmem:[%s6 + $0xd0] sm:$0xff]
      %v6681 = vld [vmem:[%s6 + $0xd8] sm:$0xff]
      %v6682 = vld [vmem:[%s6 + $0xe0] sm:$0xff]
      %v6683 = vld [vmem:[%s6 + $0xe8] sm:$0xff]
      %v6684 = vld [vmem:[%s6 + $0xf0] sm:$0xff]
      %v6685 = vld [vmem:[%s6 + $0xf8] sm:$0xff]
      %v6686 = vld [vmem:[%s6 + $0x100] sm:$0xff]
      %v6687 = vld [vmem:[%s6 + $0x108] sm:$0xff]
      %v6688 = vld [vmem:[%s6 + $0x110] sm:$0xff]
      %v6689 = vld [vmem:[%s6 + $0x118] sm:$0xff]
      %v6690 = vld [vmem:[%s6 + $0x120] sm:$0xff]
      %v6691 = vld [vmem:[%s6 + $0x128] sm:$0xff]
      %v6692 = vld [vmem:[%s6 + $0x130] sm:$0xff]
      %v6693 = vld [vmem:[%s6 + $0x138] sm:$0xff]
      %v6694 = vld [vmem:[%s6 + $0x140] sm:$0xff]
      %v6695 = vld [vmem:[%s6 + $0x148] sm:$0xff]
      %v6696 = vld [vmem:[%s6 + $0x150] sm:$0xff]
      %v6697 = vld [vmem:[%s6 + $0x158] sm:$0xff]
      %v6698 = vld [vmem:[%s6 + $0x160] sm:$0xff]
      %v6699 = vld [vmem:[%s6 + $0x168] sm:$0xff]
      %v6700 = vld [vmem:[%s6 + $0x170] sm:$0xff]
      %v6701 = vld [vmem:[%s6 + $0x178] sm:$0xff]
      %v6702 = vld [vmem:[%s6 + $0x180] sm:$0xff]
      %v6703 = vld [vmem:[%s6 + $0x188] sm:$0xff]
      %v6704 = vld [vmem:[%s6 + $0x190] sm:$0xff]
      %v6705 = vld [vmem:[%s6 + $0x198] sm:$0xff]
      %v6706 = vld [vmem:[%s6 + $0x1a0] sm:$0xff]
      %v6707 = vld [vmem:[%s6 + $0x1a8] sm:$0xff]
      %v6708 = vld [vmem:[%s6 + $0x1b0] sm:$0xff]
      %v6709 = vld [vmem:[%s6 + $0x1b8] sm:$0xff]
      %v6710 = vpack.c.bf16 %v6586, %v6582
      %v6711 = vpack.c.bf16 %v6587, %v6583
      %v6712 = vpack.c.bf16 %v6588, %v6584
      %v6713 = vpack.c.bf16 %v6589, %v6585
      %v6714 = vpack.c.bf16 %v6594, %v6590
      %v6715 = vpack.c.bf16 %v6595, %v6591
      %v6716 = vpack.c.bf16 %v6596, %v6592
      %v6717 = vpack.c.bf16 %v6597, %v6593
      %v6718 = vpack.c.bf16 %v6602, %v6598
      %v6719 = vpack.c.bf16 %v6603, %v6599
      %v6720 = vpack.c.bf16 %v6604, %v6600
      %v6721 = vpack.c.bf16 %v6605, %v6601
      %v6722 = vpack.c.bf16 %v6610, %v6606
      %v6723 = vpack.c.bf16 %v6611, %v6607
      %v6724 = vpack.c.bf16 %v6612, %v6608
      %v6725 = vpack.c.bf16 %v6613, %v6609
      %v6726 = vpack.c.bf16 %v6618, %v6614
      %v6727 = vpack.c.bf16 %v6619, %v6615
      %v6728 = vpack.c.bf16 %v6620, %v6616
      %v6729 = vpack.c.bf16 %v6621, %v6617
      %s6730 = scalar_lea.vmem %s6, 448
      %v6731 = vld [vmem:[%s6730] sm:$0xff]
      %v6732 = vld [vmem:[%s6730 + $0x8] sm:$0xff]
      %v6733 = vld [vmem:[%s6730 + $0x10] sm:$0xff]
      %v6734 = vld [vmem:[%s6730 + $0x18] sm:$0xff]
      %v6735 = vld [vmem:[%s6730 + $0x20] sm:$0xff]
      %v6736 = vld [vmem:[%s6730 + $0x28] sm:$0xff]
      %v6737 = vld [vmem:[%s6730 + $0x30] sm:$0xff]
      %v6738 = vld [vmem:[%s6730 + $0x38] sm:$0xff]
      %v6739 = vld [vmem:[%s6730 + $0x40] sm:$0xff]
      %v6740 = vld [vmem:[%s6730 + $0x48] sm:$0xff]
      %v6741 = vld [vmem:[%s6730 + $0x50] sm:$0xff]
      %v6742 = vld [vmem:[%s6730 + $0x58] sm:$0xff]
      %v6743 = vld [vmem:[%s6730 + $0x60] sm:$0xff]
      %v6744 = vld [vmem:[%s6730 + $0x68] sm:$0xff]
      %v6745 = vld [vmem:[%s6730 + $0x70] sm:$0xff]
      %v6746 = vld [vmem:[%s6730 + $0x78] sm:$0xff]
      %v6747 = vld [vmem:[%s6730 + $0x80] sm:$0xff]
      %v6748 = vld [vmem:[%s6730 + $0x88] sm:$0xff]
      %v6749 = vld [vmem:[%s6730 + $0x90] sm:$0xff]
      %v6750 = vld [vmem:[%s6730 + $0x98] sm:$0xff]
      %v6751 = vld [vmem:[%s6730 + $0xa0] sm:$0xff]
      %v6752 = vld [vmem:[%s6730 + $0xa8] sm:$0xff]
      %v6753 = vld [vmem:[%s6730 + $0xb0] sm:$0xff]
      %v6754 = vld [vmem:[%s6730 + $0xb8] sm:$0xff]
      %v6755 = vld [vmem:[%s6730 + $0xc0] sm:$0xff]
      %v6756 = vld [vmem:[%s6730 + $0xc8] sm:$0xff]
      %v6757 = vld [vmem:[%s6730 + $0xd0] sm:$0xff]
      %v6758 = vld [vmem:[%s6730 + $0xd8] sm:$0xff]
      %v6759 = vld [vmem:[%s6730 + $0xe0] sm:$0xff]
      %v6760 = vld [vmem:[%s6730 + $0xe8] sm:$0xff]
      %v6761 = vld [vmem:[%s6730 + $0xf0] sm:$0xff]
      %v6762 = vld [vmem:[%s6730 + $0xf8] sm:$0xff]
      %v6763 = vld [vmem:[%s6730 + $0x100] sm:$0xff]
      %v6764 = vld [vmem:[%s6730 + $0x108] sm:$0xff]
      %v6765 = vld [vmem:[%s6730 + $0x110] sm:$0xff]
      %v6766 = vld [vmem:[%s6730 + $0x118] sm:$0xff]
      %v6767 = vld [vmem:[%s6730 + $0x120] sm:$0xff]
      %v6768 = vld [vmem:[%s6730 + $0x128] sm:$0xff]
      %v6769 = vld [vmem:[%s6730 + $0x130] sm:$0xff]
      %v6770 = vld [vmem:[%s6730 + $0x138] sm:$0xff]
      %v6771 = vld [vmem:[%s6730 + $0x140] sm:$0xff]
      %v6772 = vld [vmem:[%s6730 + $0x148] sm:$0xff]
      %v6773 = vld [vmem:[%s6730 + $0x150] sm:$0xff]
      %v6774 = vld [vmem:[%s6730 + $0x158] sm:$0xff]
      %v6775 = vld [vmem:[%s6730 + $0x160] sm:$0xff]
      %v6776 = vld [vmem:[%s6730 + $0x168] sm:$0xff]
      %v6777 = vld [vmem:[%s6730 + $0x170] sm:$0xff]
      %v6778 = vld [vmem:[%s6730 + $0x178] sm:$0xff]
      %v6779 = vld [vmem:[%s6730 + $0x180] sm:$0xff]
      %v6780 = vld [vmem:[%s6730 + $0x188] sm:$0xff]
      %v6781 = vld [vmem:[%s6730 + $0x190] sm:$0xff]
      %v6782 = vld [vmem:[%s6730 + $0x198] sm:$0xff]
      %v6783 = vld [vmem:[%s6730 + $0x1a0] sm:$0xff]
      %v6784 = vld [vmem:[%s6730 + $0x1a8] sm:$0xff]
      %v6785 = vld [vmem:[%s6730 + $0x1b0] sm:$0xff]
      %v6786 = vld [vmem:[%s6730 + $0x1b8] sm:$0xff]
      %v6843 = vunpack.c.l.b16 %v6731
      %v6844 = vunpack.c.h.b16 %v6731
      %v6845 = vunpack.c.l.b16 %v6732
      %v6846 = vunpack.c.h.b16 %v6732
      %v6847 = vunpack.c.l.b16 %v6733
      %v6848 = vunpack.c.h.b16 %v6733
      %v6849 = vunpack.c.l.b16 %v6734
      %v6850 = vunpack.c.h.b16 %v6734
      %v6851 = vunpack.c.l.b16 %v6735
      %v6852 = vunpack.c.h.b16 %v6735
      %v6853 = vunpack.c.l.b16 %v6736
      %v6854 = vunpack.c.h.b16 %v6736
      %v6855 = vunpack.c.l.b16 %v6737
      %v6856 = vunpack.c.h.b16 %v6737
      %v6857 = vunpack.c.l.b16 %v6738
      %v6858 = vunpack.c.h.b16 %v6738
      %v6859 = vunpack.c.l.b16 %v6739
      %v6860 = vunpack.c.h.b16 %v6739
      %v6861 = vunpack.c.l.b16 %v6740
      %v6862 = vunpack.c.h.b16 %v6740
      %v6863 = vunpack.c.l.b16 %v6741
      %v6864 = vunpack.c.h.b16 %v6741
      %v6865 = vunpack.c.l.b16 %v6742
      %v6866 = vunpack.c.h.b16 %v6742
      %v6867 = vunpack.c.l.b16 %v6743
      %v6868 = vunpack.c.h.b16 %v6743
      %v6869 = vunpack.c.l.b16 %v6744
      %v6870 = vunpack.c.h.b16 %v6744
      %v6871 = vunpack.c.l.b16 %v6745
      %v6872 = vunpack.c.h.b16 %v6745
      %v6873 = vunpack.c.l.b16 %v6746
      %v6874 = vunpack.c.h.b16 %v6746
      %v6875 = vunpack.c.l.b16 %v6747
      %v6876 = vunpack.c.h.b16 %v6747
      %v6877 = vunpack.c.l.b16 %v6748
      %v6878 = vunpack.c.h.b16 %v6748
      %v6879 = vunpack.c.l.b16 %v6749
      %v6880 = vunpack.c.h.b16 %v6749
      %v6881 = vunpack.c.l.b16 %v6750
      %v6882 = vunpack.c.h.b16 %v6750
      %v6883 = vunpack.c.l.b16 %v6751
      %v6884 = vunpack.c.h.b16 %v6751
      %v6885 = vunpack.c.l.b16 %v6752
      %v6886 = vunpack.c.h.b16 %v6752
      %v6887 = vunpack.c.l.b16 %v6753
      %v6888 = vunpack.c.h.b16 %v6753
      %v6889 = vunpack.c.l.b16 %v6754
      %v6890 = vunpack.c.h.b16 %v6754
      %v6891 = vunpack.c.l.b16 %v6755
      %v6892 = vunpack.c.h.b16 %v6755
      %v6893 = vunpack.c.l.b16 %v6756
      %v6894 = vunpack.c.h.b16 %v6756
      %v6895 = vunpack.c.l.b16 %v6757
      %v6896 = vunpack.c.h.b16 %v6757
      %v6897 = vunpack.c.l.b16 %v6758
      %v6898 = vunpack.c.h.b16 %v6758
      %v6899 = vunpack.c.l.b16 %v6759
      %v6900 = vunpack.c.h.b16 %v6759
      %v6901 = vunpack.c.l.b16 %v6760
      %v6902 = vunpack.c.h.b16 %v6760
      %v6903 = vunpack.c.l.b16 %v6761
      %v6904 = vunpack.c.h.b16 %v6761
      %v6905 = vunpack.c.l.b16 %v6762
      %v6906 = vunpack.c.h.b16 %v6762
      %v6907 = vunpack.c.l.b16 %v6763
      %v6908 = vunpack.c.h.b16 %v6763
      %v6909 = vunpack.c.l.b16 %v6764
      %v6910 = vunpack.c.h.b16 %v6764
      %v6911 = vunpack.c.l.b16 %v6765
      %v6912 = vunpack.c.h.b16 %v6765
      %v6913 = vunpack.c.l.b16 %v6766
      %v6914 = vunpack.c.h.b16 %v6766
      %v6915 = vunpack.c.l.b16 %v6767
      %v6916 = vunpack.c.h.b16 %v6767
      %v6917 = vunpack.c.l.b16 %v6768
      %v6918 = vunpack.c.h.b16 %v6768
      %v6919 = vunpack.c.l.b16 %v6769
      %v6920 = vunpack.c.h.b16 %v6769
      %v6921 = vunpack.c.l.b16 %v6770
      %v6922 = vunpack.c.h.b16 %v6770
      %v6923 = vunpack.c.l.b16 %v6771
      %v6924 = vunpack.c.h.b16 %v6771
      %v6925 = vunpack.c.l.b16 %v6772
      %v6926 = vunpack.c.h.b16 %v6772
      %v6927 = vunpack.c.l.b16 %v6773
      %v6928 = vunpack.c.h.b16 %v6773
      %v6929 = vunpack.c.l.b16 %v6774
      %v6930 = vunpack.c.h.b16 %v6774
      %v6931 = vunpack.c.l.b16 %v6775
      %v6932 = vunpack.c.h.b16 %v6775
      %v6933 = vunpack.c.l.b16 %v6776
      %v6934 = vunpack.c.h.b16 %v6776
      %v6935 = vunpack.c.l.b16 %v6777
      %v6936 = vunpack.c.h.b16 %v6777
      %v6937 = vunpack.c.l.b16 %v6778
      %v6938 = vunpack.c.h.b16 %v6778
      %v6939 = vunpack.c.l.b16 %v6779
      %v6940 = vunpack.c.h.b16 %v6779
      %v6941 = vunpack.c.l.b16 %v6780
      %v6942 = vunpack.c.h.b16 %v6780
      %v6943 = vunpack.c.l.b16 %v6781
      %v6944 = vunpack.c.h.b16 %v6781
      %v6945 = vunpack.c.l.b16 %v6782
      %v6946 = vunpack.c.h.b16 %v6782
      %v6947 = vunpack.c.l.b16 %v6783
      %v6948 = vunpack.c.h.b16 %v6783
      %v6949 = vunpack.c.l.b16 %v6784
      %v6950 = vunpack.c.h.b16 %v6784
      %v6951 = vunpack.c.l.b16 %v6785
      %v6952 = vunpack.c.h.b16 %v6785
      %v6953 = vunpack.c.l.b16 %v6786
      %v6954 = vunpack.c.h.b16 %v6786
      %v6955 = vpack.c.b16 %v6845, %v6843
      %v6956 = vpack.c.b16 %v6846, %v6844
      %v6957 = vpack.c.b16 %v6849, %v6847
      %v6958 = vpack.c.b16 %v6850, %v6848
      %v6959 = vpack.c.b16 %v6853, %v6851
      %v6960 = vpack.c.b16 %v6854, %v6852
      %v6961 = vpack.c.b16 %v6857, %v6855
      %v6962 = vpack.c.b16 %v6858, %v6856
      %v6963 = vpack.c.b16 %v6861, %v6859
      %v6964 = vpack.c.b16 %v6862, %v6860
      %v6965 = vpack.c.b16 %v6865, %v6863
      %v6966 = vpack.c.b16 %v6866, %v6864
      %v6967 = vpack.c.b16 %v6869, %v6867
      %v6968 = vpack.c.b16 %v6870, %v6868
      %v6969 = vpack.c.b16 %v6873, %v6871
      %v6970 = vpack.c.b16 %v6874, %v6872
      %v6971 = vpack.c.b16 %v6877, %v6875
      %v6972 = vpack.c.b16 %v6878, %v6876
      %v6973 = vpack.c.b16 %v6881, %v6879
      %v6974 = vpack.c.b16 %v6882, %v6880
      %v6975 = vpack.c.b16 %v6885, %v6883
      %v6976 = vpack.c.b16 %v6886, %v6884
      %v6977 = vpack.c.b16 %v6889, %v6887
      %v6978 = vpack.c.b16 %v6890, %v6888
      %v6979 = vpack.c.b16 %v6893, %v6891
      %v6980 = vpack.c.b16 %v6894, %v6892
      %v6981 = vpack.c.b16 %v6897, %v6895
      %v6982 = vpack.c.b16 %v6898, %v6896
      %v6983 = vpack.c.b16 %v6901, %v6899
      %v6984 = vpack.c.b16 %v6902, %v6900
      %v6985 = vpack.c.b16 %v6905, %v6903
      %v6986 = vpack.c.b16 %v6906, %v6904
      %v6987 = vpack.c.b16 %v6909, %v6907
      %v6988 = vpack.c.b16 %v6910, %v6908
      %v6989 = vpack.c.b16 %v6913, %v6911
      %v6990 = vpack.c.b16 %v6914, %v6912
      %v6991 = vpack.c.b16 %v6917, %v6915
      %v6992 = vpack.c.b16 %v6918, %v6916
      %v6993 = vpack.c.b16 %v6921, %v6919
      %v6994 = vpack.c.b16 %v6922, %v6920
      %v6995 = vpack.c.b16 %v6925, %v6923
      %v6996 = vpack.c.b16 %v6926, %v6924
      %v6997 = vpack.c.b16 %v6929, %v6927
      %v6998 = vpack.c.b16 %v6930, %v6928
      %v6999 = vpack.c.b16 %v6933, %v6931
      %v7000 = vpack.c.b16 %v6934, %v6932
      %v7001 = vpack.c.b16 %v6937, %v6935
      %v7002 = vpack.c.b16 %v6938, %v6936
      %v7003 = vpack.c.b16 %v6941, %v6939
      %v7004 = vpack.c.b16 %v6942, %v6940
      %v7005 = vpack.c.b16 %v6945, %v6943
      %v7006 = vpack.c.b16 %v6946, %v6944
      %v7007 = vpack.c.b16 %v6949, %v6947
      %v7008 = vpack.c.b16 %v6950, %v6948
      %v7009 = vpack.c.b16 %v6953, %v6951
      %v7010 = vpack.c.b16 %v6954, %v6952
      %vm7067 = vcmask 523264
      %v7069 = vsel %vm7067, %v6713, 0
      %v7072 = vsel %vm7067, %v6717, 0
      %v7075 = vsel %vm7067, %v6721, 0
      %v7078 = vsel %vm7067, %v6725, 0
      %v7081 = vsel %vm7067, %v6729, 0
      %7083 = vmatpush.bf16.msra.mxu0 %v6969
      %7084 = vmatpush.bf16.msra.mxu0 %v6967
      %7085 = vmatpush.bf16.msra.mxu0 %v6965
      %7086 = vmatpush.bf16.msra.mxu0 %v6963
      %7087 = vmatpush.bf16.msra.mxu0 %v6961
      %7088 = vmatpush.bf16.msra.mxu0 %v6959
      %7089 = vmatpush.bf16.msra.mxu0 %v6957
      %7090 = vmatpush.bf16.msra.mxu0 %v6955
      %7091 = vmatmul.bf16.gmra.mxu0 %v6710
      %v7092 = vpop.f32.mrf.mxu0
      %v7093 = vadd.f32 0.0, %v7092
      %v7094 = vpop.f32.mrf.mxu0
      %v7095 = vadd.f32 0.0, %v7094
      %7096 = vmatmul.bf16.gmra.mxu0 %v6714
      %v7097 = vpop.f32.mrf.mxu0
      %v7098 = vadd.f32 0.0, %v7097
      %v7099 = vpop.f32.mrf.mxu0
      %v7100 = vadd.f32 0.0, %v7099
      %7101 = vmatmul.bf16.gmra.mxu0 %v6718
      %v7102 = vpop.f32.mrf.mxu0
      %v7103 = vadd.f32 0.0, %v7102
      %v7104 = vpop.f32.mrf.mxu0
      %v7105 = vadd.f32 0.0, %v7104
      %7106 = vmatmul.bf16.gmra.mxu0 %v6722
      %v7107 = vpop.f32.mrf.mxu0
      %v7108 = vadd.f32 0.0, %v7107
      %v7109 = vpop.f32.mrf.mxu0
      %v7110 = vadd.f32 0.0, %v7109
      %7111 = vmatmul.bf16.gmra.mxu0 %v6726
      %v7112 = vpop.f32.mrf.mxu0
      %v7113 = vadd.f32 0.0, %v7112
      %v7114 = vpop.f32.mrf.mxu0
      %v7115 = vadd.f32 0.0, %v7114
      %7116 = vdwg.mxu0
      %7117 = vmatpush.bf16.msra.mxu0 %v6985
      %7118 = vmatpush.bf16.msra.mxu0 %v6983
      %7119 = vmatpush.bf16.msra.mxu0 %v6981
      %7120 = vmatpush.bf16.msra.mxu0 %v6979
      %7121 = vmatpush.bf16.msra.mxu0 %v6977
      %7122 = vmatpush.bf16.msra.mxu0 %v6975
      %7123 = vmatpush.bf16.msra.mxu0 %v6973
      %7124 = vmatpush.bf16.msra.mxu0 %v6971
      %7125 = vmatmul.bf16.gmra.mxu0 %v6711
      %v7126 = vpop.f32.mrf.mxu0
      %v7127 = vadd.f32 %v7093, %v7126
      %v7128 = vpop.f32.mrf.mxu0
      %v7129 = vadd.f32 %v7095, %v7128
      %7130 = vmatmul.bf16.gmra.mxu0 %v6715
      %v7131 = vpop.f32.mrf.mxu0
      %v7132 = vadd.f32 %v7098, %v7131
      %v7133 = vpop.f32.mrf.mxu0
      %v7134 = vadd.f32 %v7100, %v7133
      %7135 = vmatmul.bf16.gmra.mxu0 %v6719
      %v7136 = vpop.f32.mrf.mxu0
      %v7137 = vadd.f32 %v7103, %v7136
      %v7138 = vpop.f32.mrf.mxu0
      %v7139 = vadd.f32 %v7105, %v7138
      %7140 = vmatmul.bf16.gmra.mxu0 %v6723
      %v7141 = vpop.f32.mrf.mxu0
      %v7142 = vadd.f32 %v7108, %v7141
      %v7143 = vpop.f32.mrf.mxu0
      %v7144 = vadd.f32 %v7110, %v7143
      %7145 = vmatmul.bf16.gmra.mxu0 %v6727
      %v7146 = vpop.f32.mrf.mxu0
      %v7147 = vadd.f32 %v7113, %v7146
      %v7148 = vpop.f32.mrf.mxu0
      %v7149 = vadd.f32 %v7115, %v7148
      %7150 = vdwg.mxu0
      %7151 = vmatpush.bf16.msra.mxu0 %v7001
      %7152 = vmatpush.bf16.msra.mxu0 %v6999
      %7153 = vmatpush.bf16.msra.mxu0 %v6997
      %7154 = vmatpush.bf16.msra.mxu0 %v6995
      %7155 = vmatpush.bf16.msra.mxu0 %v6993
      %7156 = vmatpush.bf16.msra.mxu0 %v6991
      %7157 = vmatpush.bf16.msra.mxu0 %v6989
      %7158 = vmatpush.bf16.msra.mxu0 %v6987
      %7159 = vmatmul.bf16.gmra.mxu0 %v6712
      %v7160 = vpop.f32.mrf.mxu0
      %v7161 = vadd.f32 %v7127, %v7160
      %v7162 = vpop.f32.mrf.mxu0
      %v7163 = vadd.f32 %v7129, %v7162
      %7164 = vmatmul.bf16.gmra.mxu0 %v6716
      %v7165 = vpop.f32.mrf.mxu0
      %v7166 = vadd.f32 %v7132, %v7165
      %v7167 = vpop.f32.mrf.mxu0
      %v7168 = vadd.f32 %v7134, %v7167
      %7169 = vmatmul.bf16.gmra.mxu0 %v6720
      %v7170 = vpop.f32.mrf.mxu0
      %v7171 = vadd.f32 %v7137, %v7170
      %v7172 = vpop.f32.mrf.mxu0
      %v7173 = vadd.f32 %v7139, %v7172
      %7174 = vmatmul.bf16.gmra.mxu0 %v6724
      %v7175 = vpop.f32.mrf.mxu0
      %v7176 = vadd.f32 %v7142, %v7175
      %v7177 = vpop.f32.mrf.mxu0
      %v7178 = vadd.f32 %v7144, %v7177
      %7179 = vmatmul.bf16.gmra.mxu0 %v6728
      %v7180 = vpop.f32.mrf.mxu0
      %v7181 = vadd.f32 %v7147, %v7180
      %v7182 = vpop.f32.mrf.mxu0
      %v7183 = vadd.f32 %v7149, %v7182
      %7184 = vdwg.mxu0
      %7185 = vmatpush.bf16.msra.mxu0 0
      %7186 = vmatpush.bf16.msra.mxu0 0
      %7187 = vmatpush.bf16.msra.mxu0 0
      %7188 = vmatpush.bf16.msra.mxu0 0
      %7189 = vmatpush.bf16.msra.mxu0 %v7009
      %7190 = vmatpush.bf16.msra.mxu0 %v7007
      %7191 = vmatpush.bf16.msra.mxu0 %v7005
      %7192 = vmatpush.bf16.msra.mxu0 %v7003
      %7193 = vmatmul.bf16.gmra.mxu0 %v7069
      %v7194 = vpop.f32.mrf.mxu0
      %v7195 = vadd.f32 %v7161, %v7194
      %v7196 = vpop.f32.mrf.mxu0
      %v7197 = vadd.f32 %v7163, %v7196
      %7198 = vmatmul.bf16.gmra.mxu0 %v7072
      %v7199 = vpop.f32.mrf.mxu0
      %v7200 = vadd.f32 %v7166, %v7199
      %v7201 = vpop.f32.mrf.mxu0
      %v7202 = vadd.f32 %v7168, %v7201
      %7203 = vmatmul.bf16.gmra.mxu0 %v7075
      %v7204 = vpop.f32.mrf.mxu0
      %v7205 = vadd.f32 %v7171, %v7204
      %v7206 = vpop.f32.mrf.mxu0
      %v7207 = vadd.f32 %v7173, %v7206
      %7208 = vmatmul.bf16.gmra.mxu0 %v7078
      %v7209 = vpop.f32.mrf.mxu0
      %v7210 = vadd.f32 %v7176, %v7209
      %v7211 = vpop.f32.mrf.mxu0
      %v7212 = vadd.f32 %v7178, %v7211
      %7213 = vmatmul.bf16.gmra.mxu0 %v7081
      %v7214 = vpop.f32.mrf.mxu0
      %v7215 = vadd.f32 %v7181, %v7214
      %v7216 = vpop.f32.mrf.mxu0
      %v7217 = vadd.f32 %v7183, %v7216
      %7218 = vdwg.mxu0
      %7219 = vmatpush.bf16.msra.mxu0 %v6970
      %7220 = vmatpush.bf16.msra.mxu0 %v6968
      %7221 = vmatpush.bf16.msra.mxu0 %v6966
      %7222 = vmatpush.bf16.msra.mxu0 %v6964
      %7223 = vmatpush.bf16.msra.mxu0 %v6962
      %7224 = vmatpush.bf16.msra.mxu0 %v6960
      %7225 = vmatpush.bf16.msra.mxu0 %v6958
      %7226 = vmatpush.bf16.msra.mxu0 %v6956
      %7227 = vmatmul.bf16.gmra.mxu0 %v6710
      %v7228 = vpop.f32.mrf.mxu0
      %v7229 = vadd.f32 0.0, %v7228
      %v7230 = vpop.f32.mrf.mxu0
      %v7231 = vadd.f32 0.0, %v7230
      %7232 = vmatmul.bf16.gmra.mxu0 %v6714
      %v7233 = vpop.f32.mrf.mxu0
      %v7234 = vadd.f32 0.0, %v7233
      %v7235 = vpop.f32.mrf.mxu0
      %v7236 = vadd.f32 0.0, %v7235
      %7237 = vmatmul.bf16.gmra.mxu0 %v6718
      %v7238 = vpop.f32.mrf.mxu0
      %v7239 = vadd.f32 0.0, %v7238
      %v7240 = vpop.f32.mrf.mxu0
      %v7241 = vadd.f32 0.0, %v7240
      %7242 = vmatmul.bf16.gmra.mxu0 %v6722
      %v7243 = vpop.f32.mrf.mxu0
      %v7244 = vadd.f32 0.0, %v7243
      %v7245 = vpop.f32.mrf.mxu0
      %v7246 = vadd.f32 0.0, %v7245
      %7247 = vmatmul.bf16.gmra.mxu0 %v6726
      %v7248 = vpop.f32.mrf.mxu0
      %v7249 = vadd.f32 0.0, %v7248
      %v7250 = vpop.f32.mrf.mxu0
      %v7251 = vadd.f32 0.0, %v7250
      %7252 = vdwg.mxu0
      %7253 = vmatpush.bf16.msra.mxu0 %v6986
      %7254 = vmatpush.bf16.msra.mxu0 %v6984
      %7255 = vmatpush.bf16.msra.mxu0 %v6982
      %7256 = vmatpush.bf16.msra.mxu0 %v6980
      %7257 = vmatpush.bf16.msra.mxu0 %v6978
      %7258 = vmatpush.bf16.msra.mxu0 %v6976
      %7259 = vmatpush.bf16.msra.mxu0 %v6974
      %7260 = vmatpush.bf16.msra.mxu0 %v6972
      %7261 = vmatmul.bf16.gmra.mxu0 %v6711
      %v7262 = vpop.f32.mrf.mxu0
      %v7263 = vadd.f32 %v7229, %v7262
      %v7264 = vpop.f32.mrf.mxu0
      %v7265 = vadd.f32 %v7231, %v7264
      %7266 = vmatmul.bf16.gmra.mxu0 %v6715
      %v7267 = vpop.f32.mrf.mxu0
      %v7268 = vadd.f32 %v7234, %v7267
      %v7269 = vpop.f32.mrf.mxu0
      %v7270 = vadd.f32 %v7236, %v7269
      %7271 = vmatmul.bf16.gmra.mxu0 %v6719
      %v7272 = vpop.f32.mrf.mxu0
      %v7273 = vadd.f32 %v7239, %v7272
      %v7274 = vpop.f32.mrf.mxu0
      %v7275 = vadd.f32 %v7241, %v7274
      %7276 = vmatmul.bf16.gmra.mxu0 %v6723
      %v7277 = vpop.f32.mrf.mxu0
      %v7278 = vadd.f32 %v7244, %v7277
      %v7279 = vpop.f32.mrf.mxu0
      %v7280 = vadd.f32 %v7246, %v7279
      %7281 = vmatmul.bf16.gmra.mxu0 %v6727
      %v7282 = vpop.f32.mrf.mxu0
      %v7283 = vadd.f32 %v7249, %v7282
      %v7284 = vpop.f32.mrf.mxu0
      %v7285 = vadd.f32 %v7251, %v7284
      %7286 = vdwg.mxu0
      %7287 = vmatpush.bf16.msra.mxu0 %v7002
      %7288 = vmatpush.bf16.msra.mxu0 %v7000
      %7289 = vmatpush.bf16.msra.mxu0 %v6998
      %7290 = vmatpush.bf16.msra.mxu0 %v6996
      %7291 = vmatpush.bf16.msra.mxu0 %v6994
      %7292 = vmatpush.bf16.msra.mxu0 %v6992
      %7293 = vmatpush.bf16.msra.mxu0 %v6990
      %7294 = vmatpush.bf16.msra.mxu0 %v6988
      %7295 = vmatmul.bf16.gmra.mxu0 %v6712
      %v7296 = vpop.f32.mrf.mxu0
      %v7297 = vadd.f32 %v7263, %v7296
      %v7298 = vpop.f32.mrf.mxu0
      %v7299 = vadd.f32 %v7265, %v7298
      %7300 = vmatmul.bf16.gmra.mxu0 %v6716
      %v7301 = vpop.f32.mrf.mxu0
      %v7302 = vadd.f32 %v7268, %v7301
      %v7303 = vpop.f32.mrf.mxu0
      %v7304 = vadd.f32 %v7270, %v7303
      %7305 = vmatmul.bf16.gmra.mxu0 %v6720
      %v7306 = vpop.f32.mrf.mxu0
      %v7307 = vadd.f32 %v7273, %v7306
      %v7308 = vpop.f32.mrf.mxu0
      %v7309 = vadd.f32 %v7275, %v7308
      %7310 = vmatmul.bf16.gmra.mxu0 %v6724
      %v7311 = vpop.f32.mrf.mxu0
      %v7312 = vadd.f32 %v7278, %v7311
      %v7313 = vpop.f32.mrf.mxu0
      %v7314 = vadd.f32 %v7280, %v7313
      %7315 = vmatmul.bf16.gmra.mxu0 %v6728
      %v7316 = vpop.f32.mrf.mxu0
      %v7317 = vadd.f32 %v7283, %v7316
      %v7318 = vpop.f32.mrf.mxu0
      %v7319 = vadd.f32 %v7285, %v7318
      %7320 = vdwg.mxu0
      %7321 = vmatpush.bf16.msra.mxu0 0
      %7322 = vmatpush.bf16.msra.mxu0 0
      %7323 = vmatpush.bf16.msra.mxu0 0
      %7324 = vmatpush.bf16.msra.mxu0 0
      %7325 = vmatpush.bf16.msra.mxu0 %v7010
      %7326 = vmatpush.bf16.msra.mxu0 %v7008
      %7327 = vmatpush.bf16.msra.mxu0 %v7006
      %7328 = vmatpush.bf16.msra.mxu0 %v7004
      %7329 = vmatmul.bf16.gmra.mxu0 %v7069
      %v7330 = vpop.f32.mrf.mxu0
      %v7331 = vadd.f32 %v7297, %v7330
      %v7332 = vpop.f32.mrf.mxu0
      %v7333 = vadd.f32 %v7299, %v7332
      %7334 = vmatmul.bf16.gmra.mxu0 %v7072
      %v7335 = vpop.f32.mrf.mxu0
      %v7336 = vadd.f32 %v7302, %v7335
      %v7337 = vpop.f32.mrf.mxu0
      %v7338 = vadd.f32 %v7304, %v7337
      %7339 = vmatmul.bf16.gmra.mxu0 %v7075
      %v7340 = vpop.f32.mrf.mxu0
      %v7341 = vadd.f32 %v7307, %v7340
      %v7342 = vpop.f32.mrf.mxu0
      %v7343 = vadd.f32 %v7309, %v7342
      %7344 = vmatmul.bf16.gmra.mxu0 %v7078
      %v7345 = vpop.f32.mrf.mxu0
      %v7346 = vadd.f32 %v7312, %v7345
      %v7347 = vpop.f32.mrf.mxu0
      %v7348 = vadd.f32 %v7314, %v7347
      %7349 = vmatmul.bf16.gmra.mxu0 %v7081
      %v7350 = vpop.f32.mrf.mxu0
      %v7351 = vadd.f32 %v7317, %v7350
      %v7352 = vpop.f32.mrf.mxu0
      %v7353 = vadd.f32 %v7319, %v7352
      %7354 = vdwg.mxu0
      %v7411 = vunpack.c.l.b16 %v6654
      %v7412 = vunpack.c.h.b16 %v6654
      %v7413 = vunpack.c.l.b16 %v6655
      %v7414 = vunpack.c.h.b16 %v6655
      %v7415 = vunpack.c.l.b16 %v6656
      %v7416 = vunpack.c.h.b16 %v6656
      %v7417 = vunpack.c.l.b16 %v6657
      %v7418 = vunpack.c.h.b16 %v6657
      %v7419 = vunpack.c.l.b16 %v6658
      %v7420 = vunpack.c.h.b16 %v6658
      %v7421 = vunpack.c.l.b16 %v6659
      %v7422 = vunpack.c.h.b16 %v6659
      %v7423 = vunpack.c.l.b16 %v6660
      %v7424 = vunpack.c.h.b16 %v6660
      %v7425 = vunpack.c.l.b16 %v6661
      %v7426 = vunpack.c.h.b16 %v6661
      %v7427 = vunpack.c.l.b16 %v6662
      %v7428 = vunpack.c.h.b16 %v6662
      %v7429 = vunpack.c.l.b16 %v6663
      %v7430 = vunpack.c.h.b16 %v6663
      %v7431 = vunpack.c.l.b16 %v6664
      %v7432 = vunpack.c.h.b16 %v6664
      %v7433 = vunpack.c.l.b16 %v6665
      %v7434 = vunpack.c.h.b16 %v6665
      %v7435 = vunpack.c.l.b16 %v6666
      %v7436 = vunpack.c.h.b16 %v6666
      %v7437 = vunpack.c.l.b16 %v6667
      %v7438 = vunpack.c.h.b16 %v6667
      %v7439 = vunpack.c.l.b16 %v6668
      %v7440 = vunpack.c.h.b16 %v6668
      %v7441 = vunpack.c.l.b16 %v6669
      %v7442 = vunpack.c.h.b16 %v6669
      %v7443 = vunpack.c.l.b16 %v6670
      %v7444 = vunpack.c.h.b16 %v6670
      %v7445 = vunpack.c.l.b16 %v6671
      %v7446 = vunpack.c.h.b16 %v6671
      %v7447 = vunpack.c.l.b16 %v6672
      %v7448 = vunpack.c.h.b16 %v6672
      %v7449 = vunpack.c.l.b16 %v6673
      %v7450 = vunpack.c.h.b16 %v6673
      %v7451 = vunpack.c.l.b16 %v6674
      %v7452 = vunpack.c.h.b16 %v6674
      %v7453 = vunpack.c.l.b16 %v6675
      %v7454 = vunpack.c.h.b16 %v6675
      %v7455 = vunpack.c.l.b16 %v6676
      %v7456 = vunpack.c.h.b16 %v6676
      %v7457 = vunpack.c.l.b16 %v6677
      %v7458 = vunpack.c.h.b16 %v6677
      %v7459 = vunpack.c.l.b16 %v6678
      %v7460 = vunpack.c.h.b16 %v6678
      %v7461 = vunpack.c.l.b16 %v6679
      %v7462 = vunpack.c.h.b16 %v6679
      %v7463 = vunpack.c.l.b16 %v6680
      %v7464 = vunpack.c.h.b16 %v6680
      %v7465 = vunpack.c.l.b16 %v6681
      %v7466 = vunpack.c.h.b16 %v6681
      %v7467 = vunpack.c.l.b16 %v6682
      %v7468 = vunpack.c.h.b16 %v6682
      %v7469 = vunpack.c.l.b16 %v6683
      %v7470 = vunpack.c.h.b16 %v6683
      %v7471 = vunpack.c.l.b16 %v6684
      %v7472 = vunpack.c.h.b16 %v6684
      %v7473 = vunpack.c.l.b16 %v6685
      %v7474 = vunpack.c.h.b16 %v6685
      %v7475 = vunpack.c.l.b16 %v6686
      %v7476 = vunpack.c.h.b16 %v6686
      %v7477 = vunpack.c.l.b16 %v6687
      %v7478 = vunpack.c.h.b16 %v6687
      %v7479 = vunpack.c.l.b16 %v6688
      %v7480 = vunpack.c.h.b16 %v6688
      %v7481 = vunpack.c.l.b16 %v6689
      %v7482 = vunpack.c.h.b16 %v6689
      %v7483 = vunpack.c.l.b16 %v6690
      %v7484 = vunpack.c.h.b16 %v6690
      %v7485 = vunpack.c.l.b16 %v6691
      %v7486 = vunpack.c.h.b16 %v6691
      %v7487 = vunpack.c.l.b16 %v6692
      %v7488 = vunpack.c.h.b16 %v6692
      %v7489 = vunpack.c.l.b16 %v6693
      %v7490 = vunpack.c.h.b16 %v6693
      %v7491 = vunpack.c.l.b16 %v6694
      %v7492 = vunpack.c.h.b16 %v6694
      %v7493 = vunpack.c.l.b16 %v6695
      %v7494 = vunpack.c.h.b16 %v6695
      %v7495 = vunpack.c.l.b16 %v6696
      %v7496 = vunpack.c.h.b16 %v6696
      %v7497 = vunpack.c.l.b16 %v6697
      %v7498 = vunpack.c.h.b16 %v6697
      %v7499 = vunpack.c.l.b16 %v6698
      %v7500 = vunpack.c.h.b16 %v6698
      %v7501 = vunpack.c.l.b16 %v6699
      %v7502 = vunpack.c.h.b16 %v6699
      %v7503 = vunpack.c.l.b16 %v6700
      %v7504 = vunpack.c.h.b16 %v6700
      %v7505 = vunpack.c.l.b16 %v6701
      %v7506 = vunpack.c.h.b16 %v6701
      %v7507 = vunpack.c.l.b16 %v6702
      %v7508 = vunpack.c.h.b16 %v6702
      %v7509 = vunpack.c.l.b16 %v6703
      %v7510 = vunpack.c.h.b16 %v6703
      %v7511 = vunpack.c.l.b16 %v6704
      %v7512 = vunpack.c.h.b16 %v6704
      %v7513 = vunpack.c.l.b16 %v6705
      %v7514 = vunpack.c.h.b16 %v6705
      %v7515 = vunpack.c.l.b16 %v6706
      %v7516 = vunpack.c.h.b16 %v6706
      %v7517 = vunpack.c.l.b16 %v6707
      %v7518 = vunpack.c.h.b16 %v6707
      %v7519 = vunpack.c.l.b16 %v6708
      %v7520 = vunpack.c.h.b16 %v6708
      %v7521 = vunpack.c.l.b16 %v6709
      %v7522 = vunpack.c.h.b16 %v6709
      %v7523 = vpack.c.b16 %v7413, %v7411
      %v7524 = vpack.c.b16 %v7414, %v7412
      %v7525 = vpack.c.b16 %v7417, %v7415
      %v7526 = vpack.c.b16 %v7418, %v7416
      %v7527 = vpack.c.b16 %v7421, %v7419
      %v7528 = vpack.c.b16 %v7422, %v7420
      %v7529 = vpack.c.b16 %v7425, %v7423
      %v7530 = vpack.c.b16 %v7426, %v7424
      %v7531 = vpack.c.b16 %v7429, %v7427
      %v7532 = vpack.c.b16 %v7430, %v7428
      %v7533 = vpack.c.b16 %v7433, %v7431
      %v7534 = vpack.c.b16 %v7434, %v7432
      %v7535 = vpack.c.b16 %v7437, %v7435
      %v7536 = vpack.c.b16 %v7438, %v7436
      %v7537 = vpack.c.b16 %v7441, %v7439
      %v7538 = vpack.c.b16 %v7442, %v7440
      %v7539 = vpack.c.b16 %v7445, %v7443
      %v7540 = vpack.c.b16 %v7446, %v7444
      %v7541 = vpack.c.b16 %v7449, %v7447
      %v7542 = vpack.c.b16 %v7450, %v7448
      %v7543 = vpack.c.b16 %v7453, %v7451
      %v7544 = vpack.c.b16 %v7454, %v7452
      %v7545 = vpack.c.b16 %v7457, %v7455
      %v7546 = vpack.c.b16 %v7458, %v7456
      %v7547 = vpack.c.b16 %v7461, %v7459
      %v7548 = vpack.c.b16 %v7462, %v7460
      %v7549 = vpack.c.b16 %v7465, %v7463
      %v7550 = vpack.c.b16 %v7466, %v7464
      %v7551 = vpack.c.b16 %v7469, %v7467
      %v7552 = vpack.c.b16 %v7470, %v7468
      %v7553 = vpack.c.b16 %v7473, %v7471
      %v7554 = vpack.c.b16 %v7474, %v7472
      %v7555 = vpack.c.b16 %v7477, %v7475
      %v7556 = vpack.c.b16 %v7478, %v7476
      %v7557 = vpack.c.b16 %v7481, %v7479
      %v7558 = vpack.c.b16 %v7482, %v7480
      %v7559 = vpack.c.b16 %v7485, %v7483
      %v7560 = vpack.c.b16 %v7486, %v7484
      %v7561 = vpack.c.b16 %v7489, %v7487
      %v7562 = vpack.c.b16 %v7490, %v7488
      %v7563 = vpack.c.b16 %v7493, %v7491
      %v7564 = vpack.c.b16 %v7494, %v7492
      %v7565 = vpack.c.b16 %v7497, %v7495
      %v7566 = vpack.c.b16 %v7498, %v7496
      %v7567 = vpack.c.b16 %v7501, %v7499
      %v7568 = vpack.c.b16 %v7502, %v7500
      %v7569 = vpack.c.b16 %v7505, %v7503
      %v7570 = vpack.c.b16 %v7506, %v7504
      %v7571 = vpack.c.b16 %v7509, %v7507
      %v7572 = vpack.c.b16 %v7510, %v7508
      %v7573 = vpack.c.b16 %v7513, %v7511
      %v7574 = vpack.c.b16 %v7514, %v7512
      %v7575 = vpack.c.b16 %v7517, %v7515
      %v7576 = vpack.c.b16 %v7518, %v7516
      %v7577 = vpack.c.b16 %v7521, %v7519
      %v7578 = vpack.c.b16 %v7522, %v7520
      %v7636 = vsel %vm7067, %v6637, 0
      %v7639 = vsel %vm7067, %v6641, 0
      %v7642 = vsel %vm7067, %v6645, 0
      %v7645 = vsel %vm7067, %v6649, 0
      %v7648 = vsel %vm7067, %v6653, 0
      %7650 = vmatpush.bf16.msra.mxu0 %v7537
      %7651 = vmatpush.bf16.msra.mxu0 %v7535
      %7652 = vmatpush.bf16.msra.mxu0 %v7533
      %7653 = vmatpush.bf16.msra.mxu0 %v7531
      %7654 = vmatpush.bf16.msra.mxu0 %v7529
      %7655 = vmatpush.bf16.msra.mxu0 %v7527
      %7656 = vmatpush.bf16.msra.mxu0 %v7525
      %7657 = vmatpush.bf16.msra.mxu0 %v7523
      %7658 = vmatmul.bf16.gmra.mxu0 %v6634
      %v7659 = vpop.f32.mrf.mxu0
      %v7660 = vadd.f32 %v7195, %v7659
      %v7661 = vpop.f32.mrf.mxu0
      %v7662 = vadd.f32 %v7197, %v7661
      %7663 = vmatmul.bf16.gmra.mxu0 %v6638
      %v7664 = vpop.f32.mrf.mxu0
      %v7665 = vadd.f32 %v7200, %v7664
      %v7666 = vpop.f32.mrf.mxu0
      %v7667 = vadd.f32 %v7202, %v7666
      %7668 = vmatmul.bf16.gmra.mxu0 %v6642
      %v7669 = vpop.f32.mrf.mxu0
      %v7670 = vadd.f32 %v7205, %v7669
      %v7671 = vpop.f32.mrf.mxu0
      %v7672 = vadd.f32 %v7207, %v7671
      %7673 = vmatmul.bf16.gmra.mxu0 %v6646
      %v7674 = vpop.f32.mrf.mxu0
      %v7675 = vadd.f32 %v7210, %v7674
      %v7676 = vpop.f32.mrf.mxu0
      %v7677 = vadd.f32 %v7212, %v7676
      %7678 = vmatmul.bf16.gmra.mxu0 %v6650
      %v7679 = vpop.f32.mrf.mxu0
      %v7680 = vadd.f32 %v7215, %v7679
      %v7681 = vpop.f32.mrf.mxu0
      %v7682 = vadd.f32 %v7217, %v7681
      %7683 = vdwg.mxu0
      %7684 = vmatpush.bf16.msra.mxu0 %v7553
      %7685 = vmatpush.bf16.msra.mxu0 %v7551
      %7686 = vmatpush.bf16.msra.mxu0 %v7549
      %7687 = vmatpush.bf16.msra.mxu0 %v7547
      %7688 = vmatpush.bf16.msra.mxu0 %v7545
      %7689 = vmatpush.bf16.msra.mxu0 %v7543
      %7690 = vmatpush.bf16.msra.mxu0 %v7541
      %7691 = vmatpush.bf16.msra.mxu0 %v7539
      %7692 = vmatmul.bf16.gmra.mxu0 %v6635
      %v7693 = vpop.f32.mrf.mxu0
      %v7694 = vadd.f32 %v7660, %v7693
      %v7695 = vpop.f32.mrf.mxu0
      %v7696 = vadd.f32 %v7662, %v7695
      %7697 = vmatmul.bf16.gmra.mxu0 %v6639
      %v7698 = vpop.f32.mrf.mxu0
      %v7699 = vadd.f32 %v7665, %v7698
      %v7700 = vpop.f32.mrf.mxu0
      %v7701 = vadd.f32 %v7667, %v7700
      %7702 = vmatmul.bf16.gmra.mxu0 %v6643
      %v7703 = vpop.f32.mrf.mxu0
      %v7704 = vadd.f32 %v7670, %v7703
      %v7705 = vpop.f32.mrf.mxu0
      %v7706 = vadd.f32 %v7672, %v7705
      %7707 = vmatmul.bf16.gmra.mxu0 %v6647
      %v7708 = vpop.f32.mrf.mxu0
      %v7709 = vadd.f32 %v7675, %v7708
      %v7710 = vpop.f32.mrf.mxu0
      %v7711 = vadd.f32 %v7677, %v7710
      %7712 = vmatmul.bf16.gmra.mxu0 %v6651
      %v7713 = vpop.f32.mrf.mxu0
      %v7714 = vadd.f32 %v7680, %v7713
      %v7715 = vpop.f32.mrf.mxu0
      %v7716 = vadd.f32 %v7682, %v7715
      %7717 = vdwg.mxu0
      %7718 = vmatpush.bf16.msra.mxu0 %v7569
      %7719 = vmatpush.bf16.msra.mxu0 %v7567
      %7720 = vmatpush.bf16.msra.mxu0 %v7565
      %7721 = vmatpush.bf16.msra.mxu0 %v7563
      %7722 = vmatpush.bf16.msra.mxu0 %v7561
      %7723 = vmatpush.bf16.msra.mxu0 %v7559
      %7724 = vmatpush.bf16.msra.mxu0 %v7557
      %7725 = vmatpush.bf16.msra.mxu0 %v7555
      %7726 = vmatmul.bf16.gmra.mxu0 %v6636
      %v7727 = vpop.f32.mrf.mxu0
      %v7728 = vadd.f32 %v7694, %v7727
      %v7729 = vpop.f32.mrf.mxu0
      %v7730 = vadd.f32 %v7696, %v7729
      %7731 = vmatmul.bf16.gmra.mxu0 %v6640
      %v7732 = vpop.f32.mrf.mxu0
      %v7733 = vadd.f32 %v7699, %v7732
      %v7734 = vpop.f32.mrf.mxu0
      %v7735 = vadd.f32 %v7701, %v7734
      %7736 = vmatmul.bf16.gmra.mxu0 %v6644
      %v7737 = vpop.f32.mrf.mxu0
      %v7738 = vadd.f32 %v7704, %v7737
      %v7739 = vpop.f32.mrf.mxu0
      %v7740 = vadd.f32 %v7706, %v7739
      %7741 = vmatmul.bf16.gmra.mxu0 %v6648
      %v7742 = vpop.f32.mrf.mxu0
      %v7743 = vadd.f32 %v7709, %v7742
      %v7744 = vpop.f32.mrf.mxu0
      %v7745 = vadd.f32 %v7711, %v7744
      %7746 = vmatmul.bf16.gmra.mxu0 %v6652
      %v7747 = vpop.f32.mrf.mxu0
      %v7748 = vadd.f32 %v7714, %v7747
      %v7749 = vpop.f32.mrf.mxu0
      %v7750 = vadd.f32 %v7716, %v7749
      %7751 = vdwg.mxu0
      %7752 = vmatpush.bf16.msra.mxu0 0
      %7753 = vmatpush.bf16.msra.mxu0 0
      %7754 = vmatpush.bf16.msra.mxu0 0
      %7755 = vmatpush.bf16.msra.mxu0 0
      %7756 = vmatpush.bf16.msra.mxu0 %v7577
      %7757 = vmatpush.bf16.msra.mxu0 %v7575
      %7758 = vmatpush.bf16.msra.mxu0 %v7573
      %7759 = vmatpush.bf16.msra.mxu0 %v7571
      %7760 = vmatmul.bf16.gmra.mxu0 %v7636
      %v7761 = vpop.f32.mrf.mxu0
      %v7762 = vadd.f32 %v7728, %v7761
      %v7763 = vpop.f32.mrf.mxu0
      %v7764 = vadd.f32 %v7730, %v7763
      %7765 = vmatmul.bf16.gmra.mxu0 %v7639
      %v7766 = vpop.f32.mrf.mxu0
      %v7767 = vadd.f32 %v7733, %v7766
      %v7768 = vpop.f32.mrf.mxu0
      %v7769 = vadd.f32 %v7735, %v7768
      %7770 = vmatmul.bf16.gmra.mxu0 %v7642
      %v7771 = vpop.f32.mrf.mxu0
      %v7772 = vadd.f32 %v7738, %v7771
      %v7773 = vpop.f32.mrf.mxu0
      %v7774 = vadd.f32 %v7740, %v7773
      %7775 = vmatmul.bf16.gmra.mxu0 %v7645
      %v7776 = vpop.f32.mrf.mxu0
      %v7777 = vadd.f32 %v7743, %v7776
      %v7778 = vpop.f32.mrf.mxu0
      %v7779 = vadd.f32 %v7745, %v7778
      %7780 = vmatmul.bf16.gmra.mxu0 %v7648
      %v7781 = vpop.f32.mrf.mxu0
      %v7782 = vadd.f32 %v7748, %v7781
      %v7783 = vpop.f32.mrf.mxu0
      %v7784 = vadd.f32 %v7750, %v7783
      %7785 = vdwg.mxu0
      %7786 = vmatpush.bf16.msra.mxu0 %v7538
      %7787 = vmatpush.bf16.msra.mxu0 %v7536
      %7788 = vmatpush.bf16.msra.mxu0 %v7534
      %7789 = vmatpush.bf16.msra.mxu0 %v7532
      %7790 = vmatpush.bf16.msra.mxu0 %v7530
      %7791 = vmatpush.bf16.msra.mxu0 %v7528
      %7792 = vmatpush.bf16.msra.mxu0 %v7526
      %7793 = vmatpush.bf16.msra.mxu0 %v7524
      %7794 = vmatmul.bf16.gmra.mxu0 %v6634
      %v7795 = vpop.f32.mrf.mxu0
      %v7796 = vadd.f32 %v7331, %v7795
      %v7797 = vpop.f32.mrf.mxu0
      %v7798 = vadd.f32 %v7333, %v7797
      %7799 = vmatmul.bf16.gmra.mxu0 %v6638
      %v7800 = vpop.f32.mrf.mxu0
      %v7801 = vadd.f32 %v7336, %v7800
      %v7802 = vpop.f32.mrf.mxu0
      %v7803 = vadd.f32 %v7338, %v7802
      %7804 = vmatmul.bf16.gmra.mxu0 %v6642
      %v7805 = vpop.f32.mrf.mxu0
      %v7806 = vadd.f32 %v7341, %v7805
      %v7807 = vpop.f32.mrf.mxu0
      %v7808 = vadd.f32 %v7343, %v7807
      %7809 = vmatmul.bf16.gmra.mxu0 %v6646
      %v7810 = vpop.f32.mrf.mxu0
      %v7811 = vadd.f32 %v7346, %v7810
      %v7812 = vpop.f32.mrf.mxu0
      %v7813 = vadd.f32 %v7348, %v7812
      %7814 = vmatmul.bf16.gmra.mxu0 %v6650
      %v7815 = vpop.f32.mrf.mxu0
      %v7816 = vadd.f32 %v7351, %v7815
      %v7817 = vpop.f32.mrf.mxu0
      %v7818 = vadd.f32 %v7353, %v7817
      %7819 = vdwg.mxu0
      %7820 = vmatpush.bf16.msra.mxu0 %v7554
      %7821 = vmatpush.bf16.msra.mxu0 %v7552
      %7822 = vmatpush.bf16.msra.mxu0 %v7550
      %7823 = vmatpush.bf16.msra.mxu0 %v7548
      %7824 = vmatpush.bf16.msra.mxu0 %v7546
      %7825 = vmatpush.bf16.msra.mxu0 %v7544
      %7826 = vmatpush.bf16.msra.mxu0 %v7542
      %7827 = vmatpush.bf16.msra.mxu0 %v7540
      %7828 = vmatmul.bf16.gmra.mxu0 %v6635
      %v7829 = vpop.f32.mrf.mxu0
      %v7830 = vadd.f32 %v7796, %v7829
      %v7831 = vpop.f32.mrf.mxu0
      %v7832 = vadd.f32 %v7798, %v7831
      %7833 = vmatmul.bf16.gmra.mxu0 %v6639
      %v7834 = vpop.f32.mrf.mxu0
      %v7835 = vadd.f32 %v7801, %v7834
      %v7836 = vpop.f32.mrf.mxu0
      %v7837 = vadd.f32 %v7803, %v7836
      %7838 = vmatmul.bf16.gmra.mxu0 %v6643
      %v7839 = vpop.f32.mrf.mxu0
      %v7840 = vadd.f32 %v7806, %v7839
      %v7841 = vpop.f32.mrf.mxu0
      %v7842 = vadd.f32 %v7808, %v7841
      %7843 = vmatmul.bf16.gmra.mxu0 %v6647
      %v7844 = vpop.f32.mrf.mxu0
      %v7845 = vadd.f32 %v7811, %v7844
      %v7846 = vpop.f32.mrf.mxu0
      %v7847 = vadd.f32 %v7813, %v7846
      %7848 = vmatmul.bf16.gmra.mxu0 %v6651
      %v7849 = vpop.f32.mrf.mxu0
      %v7850 = vadd.f32 %v7816, %v7849
      %v7851 = vpop.f32.mrf.mxu0
      %v7852 = vadd.f32 %v7818, %v7851
      %7853 = vdwg.mxu0
      %7854 = vmatpush.bf16.msra.mxu0 %v7570
      %7855 = vmatpush.bf16.msra.mxu0 %v7568
      %7856 = vmatpush.bf16.msra.mxu0 %v7566
      %7857 = vmatpush.bf16.msra.mxu0 %v7564
      %7858 = vmatpush.bf16.msra.mxu0 %v7562
      %7859 = vmatpush.bf16.msra.mxu0 %v7560
      %7860 = vmatpush.bf16.msra.mxu0 %v7558
      %7861 = vmatpush.bf16.msra.mxu0 %v7556
      %7862 = vmatmul.bf16.gmra.mxu0 %v6636
      %v7863 = vpop.f32.mrf.mxu0
      %v7864 = vadd.f32 %v7830, %v7863
      %v7865 = vpop.f32.mrf.mxu0
      %v7866 = vadd.f32 %v7832, %v7865
      %7867 = vmatmul.bf16.gmra.mxu0 %v6640
      %v7868 = vpop.f32.mrf.mxu0
      %v7869 = vadd.f32 %v7835, %v7868
      %v7870 = vpop.f32.mrf.mxu0
      %v7871 = vadd.f32 %v7837, %v7870
      %7872 = vmatmul.bf16.gmra.mxu0 %v6644
      %v7873 = vpop.f32.mrf.mxu0
      %v7874 = vadd.f32 %v7840, %v7873
      %v7875 = vpop.f32.mrf.mxu0
      %v7876 = vadd.f32 %v7842, %v7875
      %7877 = vmatmul.bf16.gmra.mxu0 %v6648
      %v7878 = vpop.f32.mrf.mxu0
      %v7879 = vadd.f32 %v7845, %v7878
      %v7880 = vpop.f32.mrf.mxu0
      %v7881 = vadd.f32 %v7847, %v7880
      %7882 = vmatmul.bf16.gmra.mxu0 %v6652
      %v7883 = vpop.f32.mrf.mxu0
      %v7884 = vadd.f32 %v7850, %v7883
      %v7885 = vpop.f32.mrf.mxu0
      %v7886 = vadd.f32 %v7852, %v7885
      %7887 = vdwg.mxu0
      %7888 = vmatpush.bf16.msra.mxu0 0
      %7889 = vmatpush.bf16.msra.mxu0 0
      %7890 = vmatpush.bf16.msra.mxu0 0
      %7891 = vmatpush.bf16.msra.mxu0 0
      %7892 = vmatpush.bf16.msra.mxu0 %v7578
      %7893 = vmatpush.bf16.msra.mxu0 %v7576
      %7894 = vmatpush.bf16.msra.mxu0 %v7574
      %7895 = vmatpush.bf16.msra.mxu0 %v7572
      %7896 = vmatmul.bf16.gmra.mxu0 %v7636
      %v7897 = vpop.f32.mrf.mxu0
      %v7898 = vadd.f32 %v7864, %v7897
      %v7899 = vpop.f32.mrf.mxu0
      %v7900 = vadd.f32 %v7866, %v7899
      %7901 = vmatmul.bf16.gmra.mxu0 %v7639
      %v7902 = vpop.f32.mrf.mxu0
      %v7903 = vadd.f32 %v7869, %v7902
      %v7904 = vpop.f32.mrf.mxu0
      %v7905 = vadd.f32 %v7871, %v7904
      %7906 = vmatmul.bf16.gmra.mxu0 %v7642
      %v7907 = vpop.f32.mrf.mxu0
      %v7908 = vadd.f32 %v7874, %v7907
      %v7909 = vpop.f32.mrf.mxu0
      %v7910 = vadd.f32 %v7876, %v7909
      %7911 = vmatmul.bf16.gmra.mxu0 %v7645
      %v7912 = vpop.f32.mrf.mxu0
      %v7913 = vadd.f32 %v7879, %v7912
      %v7914 = vpop.f32.mrf.mxu0
      %v7915 = vadd.f32 %v7881, %v7914
      %7916 = vmatmul.bf16.gmra.mxu0 %v7648
      %v7917 = vpop.f32.mrf.mxu0
      %v7918 = vadd.f32 %v7884, %v7917
      %v7919 = vpop.f32.mrf.mxu0
      %v7920 = vadd.f32 %v7886, %v7919
      %7921 = vdwg.mxu0
      %v7922 = vpack.c.bf16 %v6622, %v6618
      %v7923 = vpack.c.bf16 %v6623, %v6619
      %v7924 = vpack.c.bf16 %v6624, %v6620
      %v7925 = vpack.c.bf16 %v6625, %v6621
      %s7926 = scalar_lea.vmem %s6, 896
      %v7927 = vld [vmem:[%s7926] sm:$0xff]
      %v7928 = vld [vmem:[%s7926 + $0x8] sm:$0xff]
      %v7929 = vld [vmem:[%s7926 + $0x10] sm:$0xff]
      %v7930 = vld [vmem:[%s7926 + $0x18] sm:$0xff]
      %v7931 = vld [vmem:[%s7926 + $0x20] sm:$0xff]
      %v7932 = vld [vmem:[%s7926 + $0x28] sm:$0xff]
      %v7933 = vld [vmem:[%s7926 + $0x30] sm:$0xff]
      %v7934 = vld [vmem:[%s7926 + $0x38] sm:$0xff]
      %v7935 = vld [vmem:[%s7926 + $0x40] sm:$0xff]
      %v7936 = vld [vmem:[%s7926 + $0x48] sm:$0xff]
      %v7937 = vld [vmem:[%s7926 + $0x50] sm:$0xff]
      %v7938 = vld [vmem:[%s7926 + $0x58] sm:$0xff]
      %v7939 = vld [vmem:[%s7926 + $0x60] sm:$0xff]
      %v7940 = vld [vmem:[%s7926 + $0x68] sm:$0xff]
      %v7941 = vld [vmem:[%s7926 + $0x70] sm:$0xff]
      %v7942 = vld [vmem:[%s7926 + $0x78] sm:$0xff]
      %v7943 = vld [vmem:[%s7926 + $0x80] sm:$0xff]
      %v7944 = vld [vmem:[%s7926 + $0x88] sm:$0xff]
      %v7945 = vld [vmem:[%s7926 + $0x90] sm:$0xff]
      %v7946 = vld [vmem:[%s7926 + $0x98] sm:$0xff]
      %v7947 = vld [vmem:[%s7926 + $0xa0] sm:$0xff]
      %v7948 = vld [vmem:[%s7926 + $0xa8] sm:$0xff]
      %v7949 = vld [vmem:[%s7926 + $0xb0] sm:$0xff]
      %v7950 = vld [vmem:[%s7926 + $0xb8] sm:$0xff]
      %v7951 = vld [vmem:[%s7926 + $0xc0] sm:$0xff]
      %v7952 = vld [vmem:[%s7926 + $0xc8] sm:$0xff]
      %v7953 = vld [vmem:[%s7926 + $0xd0] sm:$0xff]
      %v7954 = vld [vmem:[%s7926 + $0xd8] sm:$0xff]
      %v7955 = vld [vmem:[%s7926 + $0xe0] sm:$0xff]
      %v7956 = vld [vmem:[%s7926 + $0xe8] sm:$0xff]
      %v7957 = vld [vmem:[%s7926 + $0xf0] sm:$0xff]
      %v7958 = vld [vmem:[%s7926 + $0xf8] sm:$0xff]
      %v7959 = vld [vmem:[%s7926 + $0x100] sm:$0xff]
      %v7960 = vld [vmem:[%s7926 + $0x108] sm:$0xff]
      %v7961 = vld [vmem:[%s7926 + $0x110] sm:$0xff]
      %v7962 = vld [vmem:[%s7926 + $0x118] sm:$0xff]
      %v7963 = vld [vmem:[%s7926 + $0x120] sm:$0xff]
      %v7964 = vld [vmem:[%s7926 + $0x128] sm:$0xff]
      %v7965 = vld [vmem:[%s7926 + $0x130] sm:$0xff]
      %v7966 = vld [vmem:[%s7926 + $0x138] sm:$0xff]
      %v7967 = vld [vmem:[%s7926 + $0x140] sm:$0xff]
      %v7968 = vld [vmem:[%s7926 + $0x148] sm:$0xff]
      %v7969 = vld [vmem:[%s7926 + $0x150] sm:$0xff]
      %v7970 = vld [vmem:[%s7926 + $0x158] sm:$0xff]
      %v7971 = vld [vmem:[%s7926 + $0x160] sm:$0xff]
      %v7972 = vld [vmem:[%s7926 + $0x168] sm:$0xff]
      %v7973 = vld [vmem:[%s7926 + $0x170] sm:$0xff]
      %v7974 = vld [vmem:[%s7926 + $0x178] sm:$0xff]
      %v7975 = vld [vmem:[%s7926 + $0x180] sm:$0xff]
      %v7976 = vld [vmem:[%s7926 + $0x188] sm:$0xff]
      %v7977 = vld [vmem:[%s7926 + $0x190] sm:$0xff]
      %v7978 = vld [vmem:[%s7926 + $0x198] sm:$0xff]
      %v7979 = vld [vmem:[%s7926 + $0x1a0] sm:$0xff]
      %v7980 = vld [vmem:[%s7926 + $0x1a8] sm:$0xff]
      %v7981 = vld [vmem:[%s7926 + $0x1b0] sm:$0xff]
      %v7982 = vld [vmem:[%s7926 + $0x1b8] sm:$0xff]
      %v8039 = vunpack.c.l.b16 %v7927
      %v8040 = vunpack.c.h.b16 %v7927
      %v8041 = vunpack.c.l.b16 %v7928
      %v8042 = vunpack.c.h.b16 %v7928
      %v8043 = vunpack.c.l.b16 %v7929
      %v8044 = vunpack.c.h.b16 %v7929
      %v8045 = vunpack.c.l.b16 %v7930
      %v8046 = vunpack.c.h.b16 %v7930
      %v8047 = vunpack.c.l.b16 %v7931
      %v8048 = vunpack.c.h.b16 %v7931
      %v8049 = vunpack.c.l.b16 %v7932
      %v8050 = vunpack.c.h.b16 %v7932
      %v8051 = vunpack.c.l.b16 %v7933
      %v8052 = vunpack.c.h.b16 %v7933
      %v8053 = vunpack.c.l.b16 %v7934
      %v8054 = vunpack.c.h.b16 %v7934
      %v8055 = vunpack.c.l.b16 %v7935
      %v8056 = vunpack.c.h.b16 %v7935
      %v8057 = vunpack.c.l.b16 %v7936
      %v8058 = vunpack.c.h.b16 %v7936
      %v8059 = vunpack.c.l.b16 %v7937
      %v8060 = vunpack.c.h.b16 %v7937
      %v8061 = vunpack.c.l.b16 %v7938
      %v8062 = vunpack.c.h.b16 %v7938
      %v8063 = vunpack.c.l.b16 %v7939
      %v8064 = vunpack.c.h.b16 %v7939
      %v8065 = vunpack.c.l.b16 %v7940
      %v8066 = vunpack.c.h.b16 %v7940
      %v8067 = vunpack.c.l.b16 %v7941
      %v8068 = vunpack.c.h.b16 %v7941
      %v8069 = vunpack.c.l.b16 %v7942
      %v8070 = vunpack.c.h.b16 %v7942
      %v8071 = vunpack.c.l.b16 %v7943
      %v8072 = vunpack.c.h.b16 %v7943
      %v8073 = vunpack.c.l.b16 %v7944
      %v8074 = vunpack.c.h.b16 %v7944
      %v8075 = vunpack.c.l.b16 %v7945
      %v8076 = vunpack.c.h.b16 %v7945
      %v8077 = vunpack.c.l.b16 %v7946
      %v8078 = vunpack.c.h.b16 %v7946
      %v8079 = vunpack.c.l.b16 %v7947
      %v8080 = vunpack.c.h.b16 %v7947
      %v8081 = vunpack.c.l.b16 %v7948
      %v8082 = vunpack.c.h.b16 %v7948
      %v8083 = vunpack.c.l.b16 %v7949
      %v8084 = vunpack.c.h.b16 %v7949
      %v8085 = vunpack.c.l.b16 %v7950
      %v8086 = vunpack.c.h.b16 %v7950
      %v8087 = vunpack.c.l.b16 %v7951
      %v8088 = vunpack.c.h.b16 %v7951
      %v8089 = vunpack.c.l.b16 %v7952
      %v8090 = vunpack.c.h.b16 %v7952
      %v8091 = vunpack.c.l.b16 %v7953
      %v8092 = vunpack.c.h.b16 %v7953
      %v8093 = vunpack.c.l.b16 %v7954
      %v8094 = vunpack.c.h.b16 %v7954
      %v8095 = vunpack.c.l.b16 %v7955
      %v8096 = vunpack.c.h.b16 %v7955
      %v8097 = vunpack.c.l.b16 %v7956
      %v8098 = vunpack.c.h.b16 %v7956
      %v8099 = vunpack.c.l.b16 %v7957
      %v8100 = vunpack.c.h.b16 %v7957
      %v8101 = vunpack.c.l.b16 %v7958
      %v8102 = vunpack.c.h.b16 %v7958
      %v8103 = vunpack.c.l.b16 %v7959
      %v8104 = vunpack.c.h.b16 %v7959
      %v8105 = vunpack.c.l.b16 %v7960
      %v8106 = vunpack.c.h.b16 %v7960
      %v8107 = vunpack.c.l.b16 %v7961
      %v8108 = vunpack.c.h.b16 %v7961
      %v8109 = vunpack.c.l.b16 %v7962
      %v8110 = vunpack.c.h.b16 %v7962
      %v8111 = vunpack.c.l.b16 %v7963
      %v8112 = vunpack.c.h.b16 %v7963
      %v8113 = vunpack.c.l.b16 %v7964
      %v8114 = vunpack.c.h.b16 %v7964
      %v8115 = vunpack.c.l.b16 %v7965
      %v8116 = vunpack.c.h.b16 %v7965
      %v8117 = vunpack.c.l.b16 %v7966
      %v8118 = vunpack.c.h.b16 %v7966
      %v8119 = vunpack.c.l.b16 %v7967
      %v8120 = vunpack.c.h.b16 %v7967
      %v8121 = vunpack.c.l.b16 %v7968
      %v8122 = vunpack.c.h.b16 %v7968
      %v8123 = vunpack.c.l.b16 %v7969
      %v8124 = vunpack.c.h.b16 %v7969
      %v8125 = vunpack.c.l.b16 %v7970
      %v8126 = vunpack.c.h.b16 %v7970
      %v8127 = vunpack.c.l.b16 %v7971
      %v8128 = vunpack.c.h.b16 %v7971
      %v8129 = vunpack.c.l.b16 %v7972
      %v8130 = vunpack.c.h.b16 %v7972
      %v8131 = vunpack.c.l.b16 %v7973
      %v8132 = vunpack.c.h.b16 %v7973
      %v8133 = vunpack.c.l.b16 %v7974
      %v8134 = vunpack.c.h.b16 %v7974
      %v8135 = vunpack.c.l.b16 %v7975
      %v8136 = vunpack.c.h.b16 %v7975
      %v8137 = vunpack.c.l.b16 %v7976
      %v8138 = vunpack.c.h.b16 %v7976
      %v8139 = vunpack.c.l.b16 %v7977
      %v8140 = vunpack.c.h.b16 %v7977
      %v8141 = vunpack.c.l.b16 %v7978
      %v8142 = vunpack.c.h.b16 %v7978
      %v8143 = vunpack.c.l.b16 %v7979
      %v8144 = vunpack.c.h.b16 %v7979
      %v8145 = vunpack.c.l.b16 %v7980
      %v8146 = vunpack.c.h.b16 %v7980
      %v8147 = vunpack.c.l.b16 %v7981
      %v8148 = vunpack.c.h.b16 %v7981
      %v8149 = vunpack.c.l.b16 %v7982
      %v8150 = vunpack.c.h.b16 %v7982
      %v8151 = vpack.c.b16 %v8041, %v8039
      %v8152 = vpack.c.b16 %v8042, %v8040
      %v8153 = vpack.c.b16 %v8045, %v8043
      %v8154 = vpack.c.b16 %v8046, %v8044
      %v8155 = vpack.c.b16 %v8049, %v8047
      %v8156 = vpack.c.b16 %v8050, %v8048
      %v8157 = vpack.c.b16 %v8053, %v8051
      %v8158 = vpack.c.b16 %v8054, %v8052
      %v8159 = vpack.c.b16 %v8057, %v8055
      %v8160 = vpack.c.b16 %v8058, %v8056
      %v8161 = vpack.c.b16 %v8061, %v8059
      %v8162 = vpack.c.b16 %v8062, %v8060
      %v8163 = vpack.c.b16 %v8065, %v8063
      %v8164 = vpack.c.b16 %v8066, %v8064
      %v8165 = vpack.c.b16 %v8069, %v8067
      %v8166 = vpack.c.b16 %v8070, %v8068
      %v8167 = vpack.c.b16 %v8073, %v8071
      %v8168 = vpack.c.b16 %v8074, %v8072
      %v8169 = vpack.c.b16 %v8077, %v8075
      %v8170 = vpack.c.b16 %v8078, %v8076
      %v8171 = vpack.c.b16 %v8081, %v8079
      %v8172 = vpack.c.b16 %v8082, %v8080
      %v8173 = vpack.c.b16 %v8085, %v8083
      %v8174 = vpack.c.b16 %v8086, %v8084
      %v8175 = vpack.c.b16 %v8089, %v8087
      %v8176 = vpack.c.b16 %v8090, %v8088
      %v8177 = vpack.c.b16 %v8093, %v8091
      %v8178 = vpack.c.b16 %v8094, %v8092
      %v8179 = vpack.c.b16 %v8097, %v8095
      %v8180 = vpack.c.b16 %v8098, %v8096
      %v8181 = vpack.c.b16 %v8101, %v8099
      %v8182 = vpack.c.b16 %v8102, %v8100
      %v8183 = vpack.c.b16 %v8105, %v8103
      %v8184 = vpack.c.b16 %v8106, %v8104
      %v8185 = vpack.c.b16 %v8109, %v8107
      %v8186 = vpack.c.b16 %v8110, %v8108
      %v8187 = vpack.c.b16 %v8113, %v8111
      %v8188 = vpack.c.b16 %v8114, %v8112
      %v8189 = vpack.c.b16 %v8117, %v8115
      %v8190 = vpack.c.b16 %v8118, %v8116
      %v8191 = vpack.c.b16 %v8121, %v8119
      %v8192 = vpack.c.b16 %v8122, %v8120
      %v8193 = vpack.c.b16 %v8125, %v8123
      %v8194 = vpack.c.b16 %v8126, %v8124
      %v8195 = vpack.c.b16 %v8129, %v8127
      %v8196 = vpack.c.b16 %v8130, %v8128
      %v8197 = vpack.c.b16 %v8133, %v8131
      %v8198 = vpack.c.b16 %v8134, %v8132
      %v8199 = vpack.c.b16 %v8137, %v8135
      %v8200 = vpack.c.b16 %v8138, %v8136
      %v8201 = vpack.c.b16 %v8141, %v8139
      %v8202 = vpack.c.b16 %v8142, %v8140
      %v8203 = vpack.c.b16 %v8145, %v8143
      %v8204 = vpack.c.b16 %v8146, %v8144
      %v8205 = vpack.c.b16 %v8149, %v8147
      %v8206 = vpack.c.b16 %v8150, %v8148
      %v8264 = vsel %vm7067, %v7925, 0
      %8266 = vmatpush.bf16.msra.mxu0 %v8165
      %8267 = vmatpush.bf16.msra.mxu0 %v8163
      %8268 = vmatpush.bf16.msra.mxu0 %v8161
      %8269 = vmatpush.bf16.msra.mxu0 %v8159
      %8270 = vmatpush.bf16.msra.mxu0 %v8157
      %8271 = vmatpush.bf16.msra.mxu0 %v8155
      %8272 = vmatpush.bf16.msra.mxu0 %v8153
      %8273 = vmatpush.bf16.msra.mxu0 %v8151
      %8274 = vmatmul.bf16.gmra.mxu0 %v6638
      %v8275 = vpop.f32.mrf.mxu0
      %v8276 = vadd.f32 0.0, %v8275
      %v8277 = vpop.f32.mrf.mxu0
      %v8278 = vadd.f32 0.0, %v8277
      %8279 = vmatmul.bf16.gmra.mxu0 %v6642
      %v8280 = vpop.f32.mrf.mxu0
      %v8281 = vadd.f32 0.0, %v8280
      %v8282 = vpop.f32.mrf.mxu0
      %v8283 = vadd.f32 0.0, %v8282
      %8284 = vmatmul.bf16.gmra.mxu0 %v6646
      %v8285 = vpop.f32.mrf.mxu0
      %v8286 = vadd.f32 0.0, %v8285
      %v8287 = vpop.f32.mrf.mxu0
      %v8288 = vadd.f32 0.0, %v8287
      %8289 = vmatmul.bf16.gmra.mxu0 %v6650
      %v8290 = vpop.f32.mrf.mxu0
      %v8291 = vadd.f32 0.0, %v8290
      %v8292 = vpop.f32.mrf.mxu0
      %v8293 = vadd.f32 0.0, %v8292
      %8294 = vmatmul.bf16.gmra.mxu0 %v7922
      %v8295 = vpop.f32.mrf.mxu0
      %v8296 = vadd.f32 0.0, %v8295
      %v8297 = vpop.f32.mrf.mxu0
      %v8298 = vadd.f32 0.0, %v8297
      %8299 = vdwg.mxu0
      %8300 = vmatpush.bf16.msra.mxu0 %v8181
      %8301 = vmatpush.bf16.msra.mxu0 %v8179
      %8302 = vmatpush.bf16.msra.mxu0 %v8177
      %8303 = vmatpush.bf16.msra.mxu0 %v8175
      %8304 = vmatpush.bf16.msra.mxu0 %v8173
      %8305 = vmatpush.bf16.msra.mxu0 %v8171
      %8306 = vmatpush.bf16.msra.mxu0 %v8169
      %8307 = vmatpush.bf16.msra.mxu0 %v8167
      %8308 = vmatmul.bf16.gmra.mxu0 %v6639
      %v8309 = vpop.f32.mrf.mxu0
      %v8310 = vadd.f32 %v8276, %v8309
      %v8311 = vpop.f32.mrf.mxu0
      %v8312 = vadd.f32 %v8278, %v8311
      %8313 = vmatmul.bf16.gmra.mxu0 %v6643
      %v8314 = vpop.f32.mrf.mxu0
      %v8315 = vadd.f32 %v8281, %v8314
      %v8316 = vpop.f32.mrf.mxu0
      %v8317 = vadd.f32 %v8283, %v8316
      %8318 = vmatmul.bf16.gmra.mxu0 %v6647
      %v8319 = vpop.f32.mrf.mxu0
      %v8320 = vadd.f32 %v8286, %v8319
      %v8321 = vpop.f32.mrf.mxu0
      %v8322 = vadd.f32 %v8288, %v8321
      %8323 = vmatmul.bf16.gmra.mxu0 %v6651
      %v8324 = vpop.f32.mrf.mxu0
      %v8325 = vadd.f32 %v8291, %v8324
      %v8326 = vpop.f32.mrf.mxu0
      %v8327 = vadd.f32 %v8293, %v8326
      %8328 = vmatmul.bf16.gmra.mxu0 %v7923
      %v8329 = vpop.f32.mrf.mxu0
      %v8330 = vadd.f32 %v8296, %v8329
      %v8331 = vpop.f32.mrf.mxu0
      %v8332 = vadd.f32 %v8298, %v8331
      %8333 = vdwg.mxu0
      %8334 = vmatpush.bf16.msra.mxu0 %v8197
      %8335 = vmatpush.bf16.msra.mxu0 %v8195
      %8336 = vmatpush.bf16.msra.mxu0 %v8193
      %8337 = vmatpush.bf16.msra.mxu0 %v8191
      %8338 = vmatpush.bf16.msra.mxu0 %v8189
      %8339 = vmatpush.bf16.msra.mxu0 %v8187
      %8340 = vmatpush.bf16.msra.mxu0 %v8185
      %8341 = vmatpush.bf16.msra.mxu0 %v8183
      %8342 = vmatmul.bf16.gmra.mxu0 %v6640
      %v8343 = vpop.f32.mrf.mxu0
      %v8344 = vadd.f32 %v8310, %v8343
      %v8345 = vpop.f32.mrf.mxu0
      %v8346 = vadd.f32 %v8312, %v8345
      %8347 = vmatmul.bf16.gmra.mxu0 %v6644
      %v8348 = vpop.f32.mrf.mxu0
      %v8349 = vadd.f32 %v8315, %v8348
      %v8350 = vpop.f32.mrf.mxu0
      %v8351 = vadd.f32 %v8317, %v8350
      %8352 = vmatmul.bf16.gmra.mxu0 %v6648
      %v8353 = vpop.f32.mrf.mxu0
      %v8354 = vadd.f32 %v8320, %v8353
      %v8355 = vpop.f32.mrf.mxu0
      %v8356 = vadd.f32 %v8322, %v8355
      %8357 = vmatmul.bf16.gmra.mxu0 %v6652
      %v8358 = vpop.f32.mrf.mxu0
      %v8359 = vadd.f32 %v8325, %v8358
      %v8360 = vpop.f32.mrf.mxu0
      %v8361 = vadd.f32 %v8327, %v8360
      %8362 = vmatmul.bf16.gmra.mxu0 %v7924
      %v8363 = vpop.f32.mrf.mxu0
      %v8364 = vadd.f32 %v8330, %v8363
      %v8365 = vpop.f32.mrf.mxu0
      %v8366 = vadd.f32 %v8332, %v8365
      %8367 = vdwg.mxu0
      %8368 = vmatpush.bf16.msra.mxu0 0
      %8369 = vmatpush.bf16.msra.mxu0 0
      %8370 = vmatpush.bf16.msra.mxu0 0
      %8371 = vmatpush.bf16.msra.mxu0 0
      %8372 = vmatpush.bf16.msra.mxu0 %v8205
      %8373 = vmatpush.bf16.msra.mxu0 %v8203
      %8374 = vmatpush.bf16.msra.mxu0 %v8201
      %8375 = vmatpush.bf16.msra.mxu0 %v8199
      %8376 = vmatmul.bf16.gmra.mxu0 %v7639
      %v8377 = vpop.f32.mrf.mxu0
      %v8378 = vadd.f32 %v8344, %v8377
      %v8379 = vpop.f32.mrf.mxu0
      %v8380 = vadd.f32 %v8346, %v8379
      %8381 = vmatmul.bf16.gmra.mxu0 %v7642
      %v8382 = vpop.f32.mrf.mxu0
      %v8383 = vadd.f32 %v8349, %v8382
      %v8384 = vpop.f32.mrf.mxu0
      %v8385 = vadd.f32 %v8351, %v8384
      %8386 = vmatmul.bf16.gmra.mxu0 %v7645
      %v8387 = vpop.f32.mrf.mxu0
      %v8388 = vadd.f32 %v8354, %v8387
      %v8389 = vpop.f32.mrf.mxu0
      %v8390 = vadd.f32 %v8356, %v8389
      %8391 = vmatmul.bf16.gmra.mxu0 %v7648
      %v8392 = vpop.f32.mrf.mxu0
      %v8393 = vadd.f32 %v8359, %v8392
      %v8394 = vpop.f32.mrf.mxu0
      %v8395 = vadd.f32 %v8361, %v8394
      %8396 = vmatmul.bf16.gmra.mxu0 %v8264
      %v8397 = vpop.f32.mrf.mxu0
      %v8398 = vadd.f32 %v8364, %v8397
      %v8399 = vpop.f32.mrf.mxu0
      %v8400 = vadd.f32 %v8366, %v8399
      %8401 = vdwg.mxu0
      %8402 = vmatpush.bf16.msra.mxu0 %v8166
      %8403 = vmatpush.bf16.msra.mxu0 %v8164
      %8404 = vmatpush.bf16.msra.mxu0 %v8162
      %8405 = vmatpush.bf16.msra.mxu0 %v8160
      %8406 = vmatpush.bf16.msra.mxu0 %v8158
      %8407 = vmatpush.bf16.msra.mxu0 %v8156
      %8408 = vmatpush.bf16.msra.mxu0 %v8154
      %8409 = vmatpush.bf16.msra.mxu0 %v8152
      %8410 = vmatmul.bf16.gmra.mxu0 %v6638
      %v8411 = vpop.f32.mrf.mxu0
      %v8412 = vadd.f32 0.0, %v8411
      %v8413 = vpop.f32.mrf.mxu0
      %v8414 = vadd.f32 0.0, %v8413
      %8415 = vmatmul.bf16.gmra.mxu0 %v6642
      %v8416 = vpop.f32.mrf.mxu0
      %v8417 = vadd.f32 0.0, %v8416
      %v8418 = vpop.f32.mrf.mxu0
      %v8419 = vadd.f32 0.0, %v8418
      %8420 = vmatmul.bf16.gmra.mxu0 %v6646
      %v8421 = vpop.f32.mrf.mxu0
      %v8422 = vadd.f32 0.0, %v8421
      %v8423 = vpop.f32.mrf.mxu0
      %v8424 = vadd.f32 0.0, %v8423
      %8425 = vmatmul.bf16.gmra.mxu0 %v6650
      %v8426 = vpop.f32.mrf.mxu0
      %v8427 = vadd.f32 0.0, %v8426
      %v8428 = vpop.f32.mrf.mxu0
      %v8429 = vadd.f32 0.0, %v8428
      %8430 = vmatmul.bf16.gmra.mxu0 %v7922
      %v8431 = vpop.f32.mrf.mxu0
      %v8432 = vadd.f32 0.0, %v8431
      %v8433 = vpop.f32.mrf.mxu0
      %v8434 = vadd.f32 0.0, %v8433
      %8435 = vdwg.mxu0
      %8436 = vmatpush.bf16.msra.mxu0 %v8182
      %8437 = vmatpush.bf16.msra.mxu0 %v8180
      %8438 = vmatpush.bf16.msra.mxu0 %v8178
      %8439 = vmatpush.bf16.msra.mxu0 %v8176
      %8440 = vmatpush.bf16.msra.mxu0 %v8174
      %8441 = vmatpush.bf16.msra.mxu0 %v8172
      %8442 = vmatpush.bf16.msra.mxu0 %v8170
      %8443 = vmatpush.bf16.msra.mxu0 %v8168
      %8444 = vmatmul.bf16.gmra.mxu0 %v6639
      %v8445 = vpop.f32.mrf.mxu0
      %v8446 = vadd.f32 %v8412, %v8445
      %v8447 = vpop.f32.mrf.mxu0
      %v8448 = vadd.f32 %v8414, %v8447
      %8449 = vmatmul.bf16.gmra.mxu0 %v6643
      %v8450 = vpop.f32.mrf.mxu0
      %v8451 = vadd.f32 %v8417, %v8450
      %v8452 = vpop.f32.mrf.mxu0
      %v8453 = vadd.f32 %v8419, %v8452
      %8454 = vmatmul.bf16.gmra.mxu0 %v6647
      %v8455 = vpop.f32.mrf.mxu0
      %v8456 = vadd.f32 %v8422, %v8455
      %v8457 = vpop.f32.mrf.mxu0
      %v8458 = vadd.f32 %v8424, %v8457
      %8459 = vmatmul.bf16.gmra.mxu0 %v6651
      %v8460 = vpop.f32.mrf.mxu0
      %v8461 = vadd.f32 %v8427, %v8460
      %v8462 = vpop.f32.mrf.mxu0
      %v8463 = vadd.f32 %v8429, %v8462
      %8464 = vmatmul.bf16.gmra.mxu0 %v7923
      %v8465 = vpop.f32.mrf.mxu0
      %v8466 = vadd.f32 %v8432, %v8465
      %v8467 = vpop.f32.mrf.mxu0
      %v8468 = vadd.f32 %v8434, %v8467
      %8469 = vdwg.mxu0
      %8470 = vmatpush.bf16.msra.mxu0 %v8198
      %8471 = vmatpush.bf16.msra.mxu0 %v8196
      %8472 = vmatpush.bf16.msra.mxu0 %v8194
      %8473 = vmatpush.bf16.msra.mxu0 %v8192
      %8474 = vmatpush.bf16.msra.mxu0 %v8190
      %8475 = vmatpush.bf16.msra.mxu0 %v8188
      %8476 = vmatpush.bf16.msra.mxu0 %v8186
      %8477 = vmatpush.bf16.msra.mxu0 %v8184
      %8478 = vmatmul.bf16.gmra.mxu0 %v6640
      %v8479 = vpop.f32.mrf.mxu0
      %v8480 = vadd.f32 %v8446, %v8479
      %v8481 = vpop.f32.mrf.mxu0
      %v8482 = vadd.f32 %v8448, %v8481
      %8483 = vmatmul.bf16.gmra.mxu0 %v6644
      %v8484 = vpop.f32.mrf.mxu0
      %v8485 = vadd.f32 %v8451, %v8484
      %v8486 = vpop.f32.mrf.mxu0
      %v8487 = vadd.f32 %v8453, %v8486
      %8488 = vmatmul.bf16.gmra.mxu0 %v6648
      %v8489 = vpop.f32.mrf.mxu0
      %v8490 = vadd.f32 %v8456, %v8489
      %v8491 = vpop.f32.mrf.mxu0
      %v8492 = vadd.f32 %v8458, %v8491
      %8493 = vmatmul.bf16.gmra.mxu0 %v6652
      %v8494 = vpop.f32.mrf.mxu0
      %v8495 = vadd.f32 %v8461, %v8494
      %v8496 = vpop.f32.mrf.mxu0
      %v8497 = vadd.f32 %v8463, %v8496
      %8498 = vmatmul.bf16.gmra.mxu0 %v7924
      %v8499 = vpop.f32.mrf.mxu0
      %v8500 = vadd.f32 %v8466, %v8499
      %v8501 = vpop.f32.mrf.mxu0
      %v8502 = vadd.f32 %v8468, %v8501
      %8503 = vdwg.mxu0
      %8504 = vmatpush.bf16.msra.mxu0 0
      %8505 = vmatpush.bf16.msra.mxu0 0
      %8506 = vmatpush.bf16.msra.mxu0 0
      %8507 = vmatpush.bf16.msra.mxu0 0
      %8508 = vmatpush.bf16.msra.mxu0 %v8206
      %8509 = vmatpush.bf16.msra.mxu0 %v8204
      %8510 = vmatpush.bf16.msra.mxu0 %v8202
      %8511 = vmatpush.bf16.msra.mxu0 %v8200
      %8512 = vmatmul.bf16.gmra.mxu0 %v7639
      %v8513 = vpop.f32.mrf.mxu0
      %v8514 = vadd.f32 %v8480, %v8513
      %v8515 = vpop.f32.mrf.mxu0
      %v8516 = vadd.f32 %v8482, %v8515
      %8517 = vmatmul.bf16.gmra.mxu0 %v7642
      %v8518 = vpop.f32.mrf.mxu0
      %v8519 = vadd.f32 %v8485, %v8518
      %v8520 = vpop.f32.mrf.mxu0
      %v8521 = vadd.f32 %v8487, %v8520
      %8522 = vmatmul.bf16.gmra.mxu0 %v7645
      %v8523 = vpop.f32.mrf.mxu0
      %v8524 = vadd.f32 %v8490, %v8523
      %v8525 = vpop.f32.mrf.mxu0
      %v8526 = vadd.f32 %v8492, %v8525
      %8527 = vmatmul.bf16.gmra.mxu0 %v7648
      %v8528 = vpop.f32.mrf.mxu0
      %v8529 = vadd.f32 %v8495, %v8528
      %v8530 = vpop.f32.mrf.mxu0
      %v8531 = vadd.f32 %v8497, %v8530
      %8532 = vmatmul.bf16.gmra.mxu0 %v8264
      %v8533 = vpop.f32.mrf.mxu0
      %v8534 = vadd.f32 %v8500, %v8533
      %v8535 = vpop.f32.mrf.mxu0
      %v8536 = vadd.f32 %v8502, %v8535
      %8537 = vdwg.mxu0
      %v8538 = vadd.f32 %v7762, %v8378
      %v8539 = vadd.f32 %v7898, %v8514
      %v8540 = vadd.f32 %v7764, %v8380
      %v8541 = vadd.f32 %v7900, %v8516
      %v8542 = vadd.f32 %v7767, %v8383
      %v8543 = vadd.f32 %v7903, %v8519
      %v8544 = vadd.f32 %v7769, %v8385
      %v8545 = vadd.f32 %v7905, %v8521
      %v8546 = vadd.f32 %v7772, %v8388
      %v8547 = vadd.f32 %v7908, %v8524
      %v8548 = vadd.f32 %v7774, %v8390
      %v8549 = vadd.f32 %v7910, %v8526
      %v8550 = vadd.f32 %v7777, %v8393
      %v8551 = vadd.f32 %v7913, %v8529
      %v8552 = vadd.f32 %v7779, %v8395
      %v8553 = vadd.f32 %v7915, %v8531
      %v8554 = vadd.f32 %v7782, %v8398
      %v8555 = vadd.f32 %v7918, %v8534
      %v8556 = vadd.f32 %v7784, %v8400
      %v8557 = vadd.f32 %v7920, %v8536
      %v8558 = vpack.c.bf16 %v6626, %v6622
      %v8559 = vpack.c.bf16 %v6627, %v6623
      %v8560 = vpack.c.bf16 %v6628, %v6624
      %v8561 = vpack.c.bf16 %v6629, %v6625
      %s8562 = scalar_lea.vmem %s6, 1344
      %v8563 = vld [vmem:[%s8562] sm:$0xff]
      %v8564 = vld [vmem:[%s8562 + $0x8] sm:$0xff]
      %v8565 = vld [vmem:[%s8562 + $0x10] sm:$0xff]
      %v8566 = vld [vmem:[%s8562 + $0x18] sm:$0xff]
      %v8567 = vld [vmem:[%s8562 + $0x20] sm:$0xff]
      %v8568 = vld [vmem:[%s8562 + $0x28] sm:$0xff]
      %v8569 = vld [vmem:[%s8562 + $0x30] sm:$0xff]
      %v8570 = vld [vmem:[%s8562 + $0x38] sm:$0xff]
      %v8571 = vld [vmem:[%s8562 + $0x40] sm:$0xff]
      %v8572 = vld [vmem:[%s8562 + $0x48] sm:$0xff]
      %v8573 = vld [vmem:[%s8562 + $0x50] sm:$0xff]
      %v8574 = vld [vmem:[%s8562 + $0x58] sm:$0xff]
      %v8575 = vld [vmem:[%s8562 + $0x60] sm:$0xff]
      %v8576 = vld [vmem:[%s8562 + $0x68] sm:$0xff]
      %v8577 = vld [vmem:[%s8562 + $0x70] sm:$0xff]
      %v8578 = vld [vmem:[%s8562 + $0x78] sm:$0xff]
      %v8579 = vld [vmem:[%s8562 + $0x80] sm:$0xff]
      %v8580 = vld [vmem:[%s8562 + $0x88] sm:$0xff]
      %v8581 = vld [vmem:[%s8562 + $0x90] sm:$0xff]
      %v8582 = vld [vmem:[%s8562 + $0x98] sm:$0xff]
      %v8583 = vld [vmem:[%s8562 + $0xa0] sm:$0xff]
      %v8584 = vld [vmem:[%s8562 + $0xa8] sm:$0xff]
      %v8585 = vld [vmem:[%s8562 + $0xb0] sm:$0xff]
      %v8586 = vld [vmem:[%s8562 + $0xb8] sm:$0xff]
      %v8587 = vld [vmem:[%s8562 + $0xc0] sm:$0xff]
      %v8588 = vld [vmem:[%s8562 + $0xc8] sm:$0xff]
      %v8589 = vld [vmem:[%s8562 + $0xd0] sm:$0xff]
      %v8590 = vld [vmem:[%s8562 + $0xd8] sm:$0xff]
      %v8591 = vld [vmem:[%s8562 + $0xe0] sm:$0xff]
      %v8592 = vld [vmem:[%s8562 + $0xe8] sm:$0xff]
      %v8593 = vld [vmem:[%s8562 + $0xf0] sm:$0xff]
      %v8594 = vld [vmem:[%s8562 + $0xf8] sm:$0xff]
      %v8595 = vld [vmem:[%s8562 + $0x100] sm:$0xff]
      %v8596 = vld [vmem:[%s8562 + $0x108] sm:$0xff]
      %v8597 = vld [vmem:[%s8562 + $0x110] sm:$0xff]
      %v8598 = vld [vmem:[%s8562 + $0x118] sm:$0xff]
      %v8599 = vld [vmem:[%s8562 + $0x120] sm:$0xff]
      %v8600 = vld [vmem:[%s8562 + $0x128] sm:$0xff]
      %v8601 = vld [vmem:[%s8562 + $0x130] sm:$0xff]
      %v8602 = vld [vmem:[%s8562 + $0x138] sm:$0xff]
      %v8603 = vld [vmem:[%s8562 + $0x140] sm:$0xff]
      %v8604 = vld [vmem:[%s8562 + $0x148] sm:$0xff]
      %v8605 = vld [vmem:[%s8562 + $0x150] sm:$0xff]
      %v8606 = vld [vmem:[%s8562 + $0x158] sm:$0xff]
      %v8607 = vld [vmem:[%s8562 + $0x160] sm:$0xff]
      %v8608 = vld [vmem:[%s8562 + $0x168] sm:$0xff]
      %v8609 = vld [vmem:[%s8562 + $0x170] sm:$0xff]
      %v8610 = vld [vmem:[%s8562 + $0x178] sm:$0xff]
      %v8611 = vld [vmem:[%s8562 + $0x180] sm:$0xff]
      %v8612 = vld [vmem:[%s8562 + $0x188] sm:$0xff]
      %v8613 = vld [vmem:[%s8562 + $0x190] sm:$0xff]
      %v8614 = vld [vmem:[%s8562 + $0x198] sm:$0xff]
      %v8615 = vld [vmem:[%s8562 + $0x1a0] sm:$0xff]
      %v8616 = vld [vmem:[%s8562 + $0x1a8] sm:$0xff]
      %v8617 = vld [vmem:[%s8562 + $0x1b0] sm:$0xff]
      %v8618 = vld [vmem:[%s8562 + $0x1b8] sm:$0xff]
      %v8675 = vunpack.c.l.b16 %v8563
      %v8676 = vunpack.c.h.b16 %v8563
      %v8677 = vunpack.c.l.b16 %v8564
      %v8678 = vunpack.c.h.b16 %v8564
      %v8679 = vunpack.c.l.b16 %v8565
      %v8680 = vunpack.c.h.b16 %v8565
      %v8681 = vunpack.c.l.b16 %v8566
      %v8682 = vunpack.c.h.b16 %v8566
      %v8683 = vunpack.c.l.b16 %v8567
      %v8684 = vunpack.c.h.b16 %v8567
      %v8685 = vunpack.c.l.b16 %v8568
      %v8686 = vunpack.c.h.b16 %v8568
      %v8687 = vunpack.c.l.b16 %v8569
      %v8688 = vunpack.c.h.b16 %v8569
      %v8689 = vunpack.c.l.b16 %v8570
      %v8690 = vunpack.c.h.b16 %v8570
      %v8691 = vunpack.c.l.b16 %v8571
      %v8692 = vunpack.c.h.b16 %v8571
      %v8693 = vunpack.c.l.b16 %v8572
      %v8694 = vunpack.c.h.b16 %v8572
      %v8695 = vunpack.c.l.b16 %v8573
      %v8696 = vunpack.c.h.b16 %v8573
      %v8697 = vunpack.c.l.b16 %v8574
      %v8698 = vunpack.c.h.b16 %v8574
      %v8699 = vunpack.c.l.b16 %v8575
      %v8700 = vunpack.c.h.b16 %v8575
      %v8701 = vunpack.c.l.b16 %v8576
      %v8702 = vunpack.c.h.b16 %v8576
      %v8703 = vunpack.c.l.b16 %v8577
      %v8704 = vunpack.c.h.b16 %v8577
      %v8705 = vunpack.c.l.b16 %v8578
      %v8706 = vunpack.c.h.b16 %v8578
      %v8707 = vunpack.c.l.b16 %v8579
      %v8708 = vunpack.c.h.b16 %v8579
      %v8709 = vunpack.c.l.b16 %v8580
      %v8710 = vunpack.c.h.b16 %v8580
      %v8711 = vunpack.c.l.b16 %v8581
      %v8712 = vunpack.c.h.b16 %v8581
      %v8713 = vunpack.c.l.b16 %v8582
      %v8714 = vunpack.c.h.b16 %v8582
      %v8715 = vunpack.c.l.b16 %v8583
      %v8716 = vunpack.c.h.b16 %v8583
      %v8717 = vunpack.c.l.b16 %v8584
      %v8718 = vunpack.c.h.b16 %v8584
      %v8719 = vunpack.c.l.b16 %v8585
      %v8720 = vunpack.c.h.b16 %v8585
      %v8721 = vunpack.c.l.b16 %v8586
      %v8722 = vunpack.c.h.b16 %v8586
      %v8723 = vunpack.c.l.b16 %v8587
      %v8724 = vunpack.c.h.b16 %v8587
      %v8725 = vunpack.c.l.b16 %v8588
      %v8726 = vunpack.c.h.b16 %v8588
      %v8727 = vunpack.c.l.b16 %v8589
      %v8728 = vunpack.c.h.b16 %v8589
      %v8729 = vunpack.c.l.b16 %v8590
      %v8730 = vunpack.c.h.b16 %v8590
      %v8731 = vunpack.c.l.b16 %v8591
      %v8732 = vunpack.c.h.b16 %v8591
      %v8733 = vunpack.c.l.b16 %v8592
      %v8734 = vunpack.c.h.b16 %v8592
      %v8735 = vunpack.c.l.b16 %v8593
      %v8736 = vunpack.c.h.b16 %v8593
      %v8737 = vunpack.c.l.b16 %v8594
      %v8738 = vunpack.c.h.b16 %v8594
      %v8739 = vunpack.c.l.b16 %v8595
      %v8740 = vunpack.c.h.b16 %v8595
      %v8741 = vunpack.c.l.b16 %v8596
      %v8742 = vunpack.c.h.b16 %v8596
      %v8743 = vunpack.c.l.b16 %v8597
      %v8744 = vunpack.c.h.b16 %v8597
      %v8745 = vunpack.c.l.b16 %v8598
      %v8746 = vunpack.c.h.b16 %v8598
      %v8747 = vunpack.c.l.b16 %v8599
      %v8748 = vunpack.c.h.b16 %v8599
      %v8749 = vunpack.c.l.b16 %v8600
      %v8750 = vunpack.c.h.b16 %v8600
      %v8751 = vunpack.c.l.b16 %v8601
      %v8752 = vunpack.c.h.b16 %v8601
      %v8753 = vunpack.c.l.b16 %v8602
      %v8754 = vunpack.c.h.b16 %v8602
      %v8755 = vunpack.c.l.b16 %v8603
      %v8756 = vunpack.c.h.b16 %v8603
      %v8757 = vunpack.c.l.b16 %v8604
      %v8758 = vunpack.c.h.b16 %v8604
      %v8759 = vunpack.c.l.b16 %v8605
      %v8760 = vunpack.c.h.b16 %v8605
      %v8761 = vunpack.c.l.b16 %v8606
      %v8762 = vunpack.c.h.b16 %v8606
      %v8763 = vunpack.c.l.b16 %v8607
      %v8764 = vunpack.c.h.b16 %v8607
      %v8765 = vunpack.c.l.b16 %v8608
      %v8766 = vunpack.c.h.b16 %v8608
      %v8767 = vunpack.c.l.b16 %v8609
      %v8768 = vunpack.c.h.b16 %v8609
      %v8769 = vunpack.c.l.b16 %v8610
      %v8770 = vunpack.c.h.b16 %v8610
      %v8771 = vunpack.c.l.b16 %v8611
      %v8772 = vunpack.c.h.b16 %v8611
      %v8773 = vunpack.c.l.b16 %v8612
      %v8774 = vunpack.c.h.b16 %v8612
      %v8775 = vunpack.c.l.b16 %v8613
      %v8776 = vunpack.c.h.b16 %v8613
      %v8777 = vunpack.c.l.b16 %v8614
      %v8778 = vunpack.c.h.b16 %v8614
      %v8779 = vunpack.c.l.b16 %v8615
      %v8780 = vunpack.c.h.b16 %v8615
      %v8781 = vunpack.c.l.b16 %v8616
      %v8782 = vunpack.c.h.b16 %v8616
      %v8783 = vunpack.c.l.b16 %v8617
      %v8784 = vunpack.c.h.b16 %v8617
      %v8785 = vunpack.c.l.b16 %v8618
      %v8786 = vunpack.c.h.b16 %v8618
      %v8787 = vpack.c.b16 %v8677, %v8675
      %v8788 = vpack.c.b16 %v8678, %v8676
      %v8789 = vpack.c.b16 %v8681, %v8679
      %v8790 = vpack.c.b16 %v8682, %v8680
      %v8791 = vpack.c.b16 %v8685, %v8683
      %v8792 = vpack.c.b16 %v8686, %v8684
      %v8793 = vpack.c.b16 %v8689, %v8687
      %v8794 = vpack.c.b16 %v8690, %v8688
      %v8795 = vpack.c.b16 %v8693, %v8691
      %v8796 = vpack.c.b16 %v8694, %v8692
      %v8797 = vpack.c.b16 %v8697, %v8695
      %v8798 = vpack.c.b16 %v8698, %v8696
      %v8799 = vpack.c.b16 %v8701, %v8699
      %v8800 = vpack.c.b16 %v8702, %v8700
      %v8801 = vpack.c.b16 %v8705, %v8703
      %v8802 = vpack.c.b16 %v8706, %v8704
      %v8803 = vpack.c.b16 %v8709, %v8707
      %v8804 = vpack.c.b16 %v8710, %v8708
      %v8805 = vpack.c.b16 %v8713, %v8711
      %v8806 = vpack.c.b16 %v8714, %v8712
      %v8807 = vpack.c.b16 %v8717, %v8715
      %v8808 = vpack.c.b16 %v8718, %v8716
      %v8809 = vpack.c.b16 %v8721, %v8719
      %v8810 = vpack.c.b16 %v8722, %v8720
      %v8811 = vpack.c.b16 %v8725, %v8723
      %v8812 = vpack.c.b16 %v8726, %v8724
      %v8813 = vpack.c.b16 %v8729, %v8727
      %v8814 = vpack.c.b16 %v8730, %v8728
      %v8815 = vpack.c.b16 %v8733, %v8731
      %v8816 = vpack.c.b16 %v8734, %v8732
      %v8817 = vpack.c.b16 %v8737, %v8735
      %v8818 = vpack.c.b16 %v8738, %v8736
      %v8819 = vpack.c.b16 %v8741, %v8739
      %v8820 = vpack.c.b16 %v8742, %v8740
      %v8821 = vpack.c.b16 %v8745, %v8743
      %v8822 = vpack.c.b16 %v8746, %v8744
      %v8823 = vpack.c.b16 %v8749, %v8747
      %v8824 = vpack.c.b16 %v8750, %v8748
      %v8825 = vpack.c.b16 %v8753, %v8751
      %v8826 = vpack.c.b16 %v8754, %v8752
      %v8827 = vpack.c.b16 %v8757, %v8755
      %v8828 = vpack.c.b16 %v8758, %v8756
      %v8829 = vpack.c.b16 %v8761, %v8759
      %v8830 = vpack.c.b16 %v8762, %v8760
      %v8831 = vpack.c.b16 %v8765, %v8763
      %v8832 = vpack.c.b16 %v8766, %v8764
      %v8833 = vpack.c.b16 %v8769, %v8767
      %v8834 = vpack.c.b16 %v8770, %v8768
      %v8835 = vpack.c.b16 %v8773, %v8771
      %v8836 = vpack.c.b16 %v8774, %v8772
      %v8837 = vpack.c.b16 %v8777, %v8775
      %v8838 = vpack.c.b16 %v8778, %v8776
      %v8839 = vpack.c.b16 %v8781, %v8779
      %v8840 = vpack.c.b16 %v8782, %v8780
      %v8841 = vpack.c.b16 %v8785, %v8783
      %v8842 = vpack.c.b16 %v8786, %v8784
      %v8900 = vsel %vm7067, %v8561, 0
      %8902 = vmatpush.bf16.msra.mxu0 %v8801
      %8903 = vmatpush.bf16.msra.mxu0 %v8799
      %8904 = vmatpush.bf16.msra.mxu0 %v8797
      %8905 = vmatpush.bf16.msra.mxu0 %v8795
      %8906 = vmatpush.bf16.msra.mxu0 %v8793
      %8907 = vmatpush.bf16.msra.mxu0 %v8791
      %8908 = vmatpush.bf16.msra.mxu0 %v8789
      %8909 = vmatpush.bf16.msra.mxu0 %v8787
      %8910 = vmatmul.bf16.gmra.mxu0 %v6714
      %v8911 = vpop.f32.mrf.mxu0
      %v8912 = vadd.f32 0.0, %v8911
      %v8913 = vpop.f32.mrf.mxu0
      %v8914 = vadd.f32 0.0, %v8913
      %8915 = vmatmul.bf16.gmra.mxu0 %v6718
      %v8916 = vpop.f32.mrf.mxu0
      %v8917 = vadd.f32 0.0, %v8916
      %v8918 = vpop.f32.mrf.mxu0
      %v8919 = vadd.f32 0.0, %v8918
      %8920 = vmatmul.bf16.gmra.mxu0 %v6722
      %v8921 = vpop.f32.mrf.mxu0
      %v8922 = vadd.f32 0.0, %v8921
      %v8923 = vpop.f32.mrf.mxu0
      %v8924 = vadd.f32 0.0, %v8923
      %8925 = vmatmul.bf16.gmra.mxu0 %v6726
      %v8926 = vpop.f32.mrf.mxu0
      %v8927 = vadd.f32 0.0, %v8926
      %v8928 = vpop.f32.mrf.mxu0
      %v8929 = vadd.f32 0.0, %v8928
      %8930 = vmatmul.bf16.gmra.mxu0 %v8558
      %v8931 = vpop.f32.mrf.mxu0
      %v8932 = vadd.f32 0.0, %v8931
      %v8933 = vpop.f32.mrf.mxu0
      %v8934 = vadd.f32 0.0, %v8933
      %8935 = vdwg.mxu0
      %8936 = vmatpush.bf16.msra.mxu0 %v8817
      %8937 = vmatpush.bf16.msra.mxu0 %v8815
      %8938 = vmatpush.bf16.msra.mxu0 %v8813
      %8939 = vmatpush.bf16.msra.mxu0 %v8811
      %8940 = vmatpush.bf16.msra.mxu0 %v8809
      %8941 = vmatpush.bf16.msra.mxu0 %v8807
      %8942 = vmatpush.bf16.msra.mxu0 %v8805
      %8943 = vmatpush.bf16.msra.mxu0 %v8803
      %8944 = vmatmul.bf16.gmra.mxu0 %v6715
      %v8945 = vpop.f32.mrf.mxu0
      %v8946 = vadd.f32 %v8912, %v8945
      %v8947 = vpop.f32.mrf.mxu0
      %v8948 = vadd.f32 %v8914, %v8947
      %8949 = vmatmul.bf16.gmra.mxu0 %v6719
      %v8950 = vpop.f32.mrf.mxu0
      %v8951 = vadd.f32 %v8917, %v8950
      %v8952 = vpop.f32.mrf.mxu0
      %v8953 = vadd.f32 %v8919, %v8952
      %8954 = vmatmul.bf16.gmra.mxu0 %v6723
      %v8955 = vpop.f32.mrf.mxu0
      %v8956 = vadd.f32 %v8922, %v8955
      %v8957 = vpop.f32.mrf.mxu0
      %v8958 = vadd.f32 %v8924, %v8957
      %8959 = vmatmul.bf16.gmra.mxu0 %v6727
      %v8960 = vpop.f32.mrf.mxu0
      %v8961 = vadd.f32 %v8927, %v8960
      %v8962 = vpop.f32.mrf.mxu0
      %v8963 = vadd.f32 %v8929, %v8962
      %8964 = vmatmul.bf16.gmra.mxu0 %v8559
      %v8965 = vpop.f32.mrf.mxu0
      %v8966 = vadd.f32 %v8932, %v8965
      %v8967 = vpop.f32.mrf.mxu0
      %v8968 = vadd.f32 %v8934, %v8967
      %8969 = vdwg.mxu0
      %8970 = vmatpush.bf16.msra.mxu0 %v8833
      %8971 = vmatpush.bf16.msra.mxu0 %v8831
      %8972 = vmatpush.bf16.msra.mxu0 %v8829
      %8973 = vmatpush.bf16.msra.mxu0 %v8827
      %8974 = vmatpush.bf16.msra.mxu0 %v8825
      %8975 = vmatpush.bf16.msra.mxu0 %v8823
      %8976 = vmatpush.bf16.msra.mxu0 %v8821
      %8977 = vmatpush.bf16.msra.mxu0 %v8819
      %8978 = vmatmul.bf16.gmra.mxu0 %v6716
      %v8979 = vpop.f32.mrf.mxu0
      %v8980 = vadd.f32 %v8946, %v8979
      %v8981 = vpop.f32.mrf.mxu0
      %v8982 = vadd.f32 %v8948, %v8981
      %8983 = vmatmul.bf16.gmra.mxu0 %v6720
      %v8984 = vpop.f32.mrf.mxu0
      %v8985 = vadd.f32 %v8951, %v8984
      %v8986 = vpop.f32.mrf.mxu0
      %v8987 = vadd.f32 %v8953, %v8986
      %8988 = vmatmul.bf16.gmra.mxu0 %v6724
      %v8989 = vpop.f32.mrf.mxu0
      %v8990 = vadd.f32 %v8956, %v8989
      %v8991 = vpop.f32.mrf.mxu0
      %v8992 = vadd.f32 %v8958, %v8991
      %8993 = vmatmul.bf16.gmra.mxu0 %v6728
      %v8994 = vpop.f32.mrf.mxu0
      %v8995 = vadd.f32 %v8961, %v8994
      %v8996 = vpop.f32.mrf.mxu0
      %v8997 = vadd.f32 %v8963, %v8996
      %8998 = vmatmul.bf16.gmra.mxu0 %v8560
      %v8999 = vpop.f32.mrf.mxu0
      %v9000 = vadd.f32 %v8966, %v8999
      %v9001 = vpop.f32.mrf.mxu0
      %v9002 = vadd.f32 %v8968, %v9001
      %9003 = vdwg.mxu0
      %9004 = vmatpush.bf16.msra.mxu0 0
      %9005 = vmatpush.bf16.msra.mxu0 0
      %9006 = vmatpush.bf16.msra.mxu0 0
      %9007 = vmatpush.bf16.msra.mxu0 0
      %9008 = vmatpush.bf16.msra.mxu0 %v8841
      %9009 = vmatpush.bf16.msra.mxu0 %v8839
      %9010 = vmatpush.bf16.msra.mxu0 %v8837
      %9011 = vmatpush.bf16.msra.mxu0 %v8835
      %9012 = vmatmul.bf16.gmra.mxu0 %v7072
      %v9013 = vpop.f32.mrf.mxu0
      %v9014 = vadd.f32 %v8980, %v9013
      %v9015 = vpop.f32.mrf.mxu0
      %v9016 = vadd.f32 %v8982, %v9015
      %9017 = vmatmul.bf16.gmra.mxu0 %v7075
      %v9018 = vpop.f32.mrf.mxu0
      %v9019 = vadd.f32 %v8985, %v9018
      %v9020 = vpop.f32.mrf.mxu0
      %v9021 = vadd.f32 %v8987, %v9020
      %9022 = vmatmul.bf16.gmra.mxu0 %v7078
      %v9023 = vpop.f32.mrf.mxu0
      %v9024 = vadd.f32 %v8990, %v9023
      %v9025 = vpop.f32.mrf.mxu0
      %v9026 = vadd.f32 %v8992, %v9025
      %9027 = vmatmul.bf16.gmra.mxu0 %v7081
      %v9028 = vpop.f32.mrf.mxu0
      %v9029 = vadd.f32 %v8995, %v9028
      %v9030 = vpop.f32.mrf.mxu0
      %v9031 = vadd.f32 %v8997, %v9030
      %9032 = vmatmul.bf16.gmra.mxu0 %v8900
      %v9033 = vpop.f32.mrf.mxu0
      %v9034 = vadd.f32 %v9000, %v9033
      %v9035 = vpop.f32.mrf.mxu0
      %v9036 = vadd.f32 %v9002, %v9035
      %9037 = vdwg.mxu0
      %9038 = vmatpush.bf16.msra.mxu0 %v8802
      %9039 = vmatpush.bf16.msra.mxu0 %v8800
      %9040 = vmatpush.bf16.msra.mxu0 %v8798
      %9041 = vmatpush.bf16.msra.mxu0 %v8796
      %9042 = vmatpush.bf16.msra.mxu0 %v8794
      %9043 = vmatpush.bf16.msra.mxu0 %v8792
      %9044 = vmatpush.bf16.msra.mxu0 %v8790
      %9045 = vmatpush.bf16.msra.mxu0 %v8788
      %9046 = vmatmul.bf16.gmra.mxu0 %v6714
      %v9047 = vpop.f32.mrf.mxu0
      %v9048 = vadd.f32 0.0, %v9047
      %v9049 = vpop.f32.mrf.mxu0
      %v9050 = vadd.f32 0.0, %v9049
      %9051 = vmatmul.bf16.gmra.mxu0 %v6718
      %v9052 = vpop.f32.mrf.mxu0
      %v9053 = vadd.f32 0.0, %v9052
      %v9054 = vpop.f32.mrf.mxu0
      %v9055 = vadd.f32 0.0, %v9054
      %9056 = vmatmul.bf16.gmra.mxu0 %v6722
      %v9057 = vpop.f32.mrf.mxu0
      %v9058 = vadd.f32 0.0, %v9057
      %v9059 = vpop.f32.mrf.mxu0
      %v9060 = vadd.f32 0.0, %v9059
      %9061 = vmatmul.bf16.gmra.mxu0 %v6726
      %v9062 = vpop.f32.mrf.mxu0
      %v9063 = vadd.f32 0.0, %v9062
      %v9064 = vpop.f32.mrf.mxu0
      %v9065 = vadd.f32 0.0, %v9064
      %9066 = vmatmul.bf16.gmra.mxu0 %v8558
      %v9067 = vpop.f32.mrf.mxu0
      %v9068 = vadd.f32 0.0, %v9067
      %v9069 = vpop.f32.mrf.mxu0
      %v9070 = vadd.f32 0.0, %v9069
      %9071 = vdwg.mxu0
      %9072 = vmatpush.bf16.msra.mxu0 %v8818
      %9073 = vmatpush.bf16.msra.mxu0 %v8816
      %9074 = vmatpush.bf16.msra.mxu0 %v8814
      %9075 = vmatpush.bf16.msra.mxu0 %v8812
      %9076 = vmatpush.bf16.msra.mxu0 %v8810
      %9077 = vmatpush.bf16.msra.mxu0 %v8808
      %9078 = vmatpush.bf16.msra.mxu0 %v8806
      %9079 = vmatpush.bf16.msra.mxu0 %v8804
      %9080 = vmatmul.bf16.gmra.mxu0 %v6715
      %v9081 = vpop.f32.mrf.mxu0
      %v9082 = vadd.f32 %v9048, %v9081
      %v9083 = vpop.f32.mrf.mxu0
      %v9084 = vadd.f32 %v9050, %v9083
      %9085 = vmatmul.bf16.gmra.mxu0 %v6719
      %v9086 = vpop.f32.mrf.mxu0
      %v9087 = vadd.f32 %v9053, %v9086
      %v9088 = vpop.f32.mrf.mxu0
      %v9089 = vadd.f32 %v9055, %v9088
      %9090 = vmatmul.bf16.gmra.mxu0 %v6723
      %v9091 = vpop.f32.mrf.mxu0
      %v9092 = vadd.f32 %v9058, %v9091
      %v9093 = vpop.f32.mrf.mxu0
      %v9094 = vadd.f32 %v9060, %v9093
      %9095 = vmatmul.bf16.gmra.mxu0 %v6727
      %v9096 = vpop.f32.mrf.mxu0
      %v9097 = vadd.f32 %v9063, %v9096
      %v9098 = vpop.f32.mrf.mxu0
      %v9099 = vadd.f32 %v9065, %v9098
      %9100 = vmatmul.bf16.gmra.mxu0 %v8559
      %v9101 = vpop.f32.mrf.mxu0
      %v9102 = vadd.f32 %v9068, %v9101
      %v9103 = vpop.f32.mrf.mxu0
      %v9104 = vadd.f32 %v9070, %v9103
      %9105 = vdwg.mxu0
      %9106 = vmatpush.bf16.msra.mxu0 %v8834
      %9107 = vmatpush.bf16.msra.mxu0 %v8832
      %9108 = vmatpush.bf16.msra.mxu0 %v8830
      %9109 = vmatpush.bf16.msra.mxu0 %v8828
      %9110 = vmatpush.bf16.msra.mxu0 %v8826
      %9111 = vmatpush.bf16.msra.mxu0 %v8824
      %9112 = vmatpush.bf16.msra.mxu0 %v8822
      %9113 = vmatpush.bf16.msra.mxu0 %v8820
      %9114 = vmatmul.bf16.gmra.mxu0 %v6716
      %v9115 = vpop.f32.mrf.mxu0
      %v9116 = vadd.f32 %v9082, %v9115
      %v9117 = vpop.f32.mrf.mxu0
      %v9118 = vadd.f32 %v9084, %v9117
      %9119 = vmatmul.bf16.gmra.mxu0 %v6720
      %v9120 = vpop.f32.mrf.mxu0
      %v9121 = vadd.f32 %v9087, %v9120
      %v9122 = vpop.f32.mrf.mxu0
      %v9123 = vadd.f32 %v9089, %v9122
      %9124 = vmatmul.bf16.gmra.mxu0 %v6724
      %v9125 = vpop.f32.mrf.mxu0
      %v9126 = vadd.f32 %v9092, %v9125
      %v9127 = vpop.f32.mrf.mxu0
      %v9128 = vadd.f32 %v9094, %v9127
      %9129 = vmatmul.bf16.gmra.mxu0 %v6728
      %v9130 = vpop.f32.mrf.mxu0
      %v9131 = vadd.f32 %v9097, %v9130
      %v9132 = vpop.f32.mrf.mxu0
      %v9133 = vadd.f32 %v9099, %v9132
      %9134 = vmatmul.bf16.gmra.mxu0 %v8560
      %v9135 = vpop.f32.mrf.mxu0
      %v9136 = vadd.f32 %v9102, %v9135
      %v9137 = vpop.f32.mrf.mxu0
      %v9138 = vadd.f32 %v9104, %v9137
      %9139 = vdwg.mxu0
      %9140 = vmatpush.bf16.msra.mxu0 0
      %9141 = vmatpush.bf16.msra.mxu0 0
      %9142 = vmatpush.bf16.msra.mxu0 0
      %9143 = vmatpush.bf16.msra.mxu0 0
      %9144 = vmatpush.bf16.msra.mxu0 %v8842
      %9145 = vmatpush.bf16.msra.mxu0 %v8840
      %9146 = vmatpush.bf16.msra.mxu0 %v8838
      %9147 = vmatpush.bf16.msra.mxu0 %v8836
      %9148 = vmatmul.bf16.gmra.mxu0 %v7072
      %v9149 = vpop.f32.mrf.mxu0
      %v9150 = vadd.f32 %v9116, %v9149
      %v9151 = vpop.f32.mrf.mxu0
      %v9152 = vadd.f32 %v9118, %v9151
      %9153 = vmatmul.bf16.gmra.mxu0 %v7075
      %v9154 = vpop.f32.mrf.mxu0
      %v9155 = vadd.f32 %v9121, %v9154
      %v9156 = vpop.f32.mrf.mxu0
      %v9157 = vadd.f32 %v9123, %v9156
      %9158 = vmatmul.bf16.gmra.mxu0 %v7078
      %v9159 = vpop.f32.mrf.mxu0
      %v9160 = vadd.f32 %v9126, %v9159
      %v9161 = vpop.f32.mrf.mxu0
      %v9162 = vadd.f32 %v9128, %v9161
      %9163 = vmatmul.bf16.gmra.mxu0 %v7081
      %v9164 = vpop.f32.mrf.mxu0
      %v9165 = vadd.f32 %v9131, %v9164
      %v9166 = vpop.f32.mrf.mxu0
      %v9167 = vadd.f32 %v9133, %v9166
      %9168 = vmatmul.bf16.gmra.mxu0 %v8900
      %v9169 = vpop.f32.mrf.mxu0
      %v9170 = vadd.f32 %v9136, %v9169
      %v9171 = vpop.f32.mrf.mxu0
      %v9172 = vadd.f32 %v9138, %v9171
      %9173 = vdwg.mxu0
      %v9174 = vadd.f32 %v8538, %v9014
      %v9175 = vadd.f32 %v8539, %v9150
      %v9176 = vadd.f32 %v8540, %v9016
      %v9177 = vadd.f32 %v8541, %v9152
      %v9178 = vadd.f32 %v8542, %v9019
      %v9179 = vadd.f32 %v8543, %v9155
      %v9180 = vadd.f32 %v8544, %v9021
      %v9181 = vadd.f32 %v8545, %v9157
      %v9182 = vadd.f32 %v8546, %v9024
      %v9183 = vadd.f32 %v8547, %v9160
      %v9184 = vadd.f32 %v8548, %v9026
      %v9185 = vadd.f32 %v8549, %v9162
      %v9186 = vadd.f32 %v8550, %v9029
      %v9187 = vadd.f32 %v8551, %v9165
      %v9188 = vadd.f32 %v8552, %v9031
      %v9189 = vadd.f32 %v8553, %v9167
      %v9190 = vadd.f32 %v8554, %v9034
      %v9191 = vadd.f32 %v8555, %v9170
      %v9192 = vadd.f32 %v8556, %v9036
      %v9193 = vadd.f32 %v8557, %v9172
      %v9194 = vpack.c.bf16 %v6630, %v6626
      %v9195 = vpack.c.bf16 %v6631, %v6627
      %v9196 = vpack.c.bf16 %v6632, %v6628
      %v9197 = vpack.c.bf16 %v6633, %v6629
      %s9198 = scalar_lea.vmem %s6, 1792
      %v9199 = vld [vmem:[%s9198] sm:$0xff]
      %v9200 = vld [vmem:[%s9198 + $0x8] sm:$0xff]
      %v9201 = vld [vmem:[%s9198 + $0x10] sm:$0xff]
      %v9202 = vld [vmem:[%s9198 + $0x18] sm:$0xff]
      %v9203 = vld [vmem:[%s9198 + $0x20] sm:$0xff]
      %v9204 = vld [vmem:[%s9198 + $0x28] sm:$0xff]
      %v9205 = vld [vmem:[%s9198 + $0x30] sm:$0xff]
      %v9206 = vld [vmem:[%s9198 + $0x38] sm:$0xff]
      %v9207 = vld [vmem:[%s9198 + $0x40] sm:$0xff]
      %v9208 = vld [vmem:[%s9198 + $0x48] sm:$0xff]
      %v9209 = vld [vmem:[%s9198 + $0x50] sm:$0xff]
      %v9210 = vld [vmem:[%s9198 + $0x58] sm:$0xff]
      %v9211 = vld [vmem:[%s9198 + $0x60] sm:$0xff]
      %v9212 = vld [vmem:[%s9198 + $0x68] sm:$0xff]
      %v9213 = vld [vmem:[%s9198 + $0x70] sm:$0xff]
      %v9214 = vld [vmem:[%s9198 + $0x78] sm:$0xff]
      %v9215 = vld [vmem:[%s9198 + $0x80] sm:$0xff]
      %v9216 = vld [vmem:[%s9198 + $0x88] sm:$0xff]
      %v9217 = vld [vmem:[%s9198 + $0x90] sm:$0xff]
      %v9218 = vld [vmem:[%s9198 + $0x98] sm:$0xff]
      %v9219 = vld [vmem:[%s9198 + $0xa0] sm:$0xff]
      %v9220 = vld [vmem:[%s9198 + $0xa8] sm:$0xff]
      %v9221 = vld [vmem:[%s9198 + $0xb0] sm:$0xff]
      %v9222 = vld [vmem:[%s9198 + $0xb8] sm:$0xff]
      %v9223 = vld [vmem:[%s9198 + $0xc0] sm:$0xff]
      %v9224 = vld [vmem:[%s9198 + $0xc8] sm:$0xff]
      %v9225 = vld [vmem:[%s9198 + $0xd0] sm:$0xff]
      %v9226 = vld [vmem:[%s9198 + $0xd8] sm:$0xff]
      %v9227 = vld [vmem:[%s9198 + $0xe0] sm:$0xff]
      %v9228 = vld [vmem:[%s9198 + $0xe8] sm:$0xff]
      %v9229 = vld [vmem:[%s9198 + $0xf0] sm:$0xff]
      %v9230 = vld [vmem:[%s9198 + $0xf8] sm:$0xff]
      %v9231 = vld [vmem:[%s9198 + $0x100] sm:$0xff]
      %v9232 = vld [vmem:[%s9198 + $0x108] sm:$0xff]
      %v9233 = vld [vmem:[%s9198 + $0x110] sm:$0xff]
      %v9234 = vld [vmem:[%s9198 + $0x118] sm:$0xff]
      %v9235 = vld [vmem:[%s9198 + $0x120] sm:$0xff]
      %v9236 = vld [vmem:[%s9198 + $0x128] sm:$0xff]
      %v9237 = vld [vmem:[%s9198 + $0x130] sm:$0xff]
      %v9238 = vld [vmem:[%s9198 + $0x138] sm:$0xff]
      %v9239 = vld [vmem:[%s9198 + $0x140] sm:$0xff]
      %v9240 = vld [vmem:[%s9198 + $0x148] sm:$0xff]
      %v9241 = vld [vmem:[%s9198 + $0x150] sm:$0xff]
      %v9242 = vld [vmem:[%s9198 + $0x158] sm:$0xff]
      %v9243 = vld [vmem:[%s9198 + $0x160] sm:$0xff]
      %v9244 = vld [vmem:[%s9198 + $0x168] sm:$0xff]
      %v9245 = vld [vmem:[%s9198 + $0x170] sm:$0xff]
      %v9246 = vld [vmem:[%s9198 + $0x178] sm:$0xff]
      %v9247 = vld [vmem:[%s9198 + $0x180] sm:$0xff]
      %v9248 = vld [vmem:[%s9198 + $0x188] sm:$0xff]
      %v9249 = vld [vmem:[%s9198 + $0x190] sm:$0xff]
      %v9250 = vld [vmem:[%s9198 + $0x198] sm:$0xff]
      %v9251 = vld [vmem:[%s9198 + $0x1a0] sm:$0xff]
      %v9252 = vld [vmem:[%s9198 + $0x1a8] sm:$0xff]
      %v9253 = vld [vmem:[%s9198 + $0x1b0] sm:$0xff]
      %v9254 = vld [vmem:[%s9198 + $0x1b8] sm:$0xff]
      %v9311 = vunpack.c.l.b16 %v9199
      %v9312 = vunpack.c.h.b16 %v9199
      %v9313 = vunpack.c.l.b16 %v9200
      %v9314 = vunpack.c.h.b16 %v9200
      %v9315 = vunpack.c.l.b16 %v9201
      %v9316 = vunpack.c.h.b16 %v9201
      %v9317 = vunpack.c.l.b16 %v9202
      %v9318 = vunpack.c.h.b16 %v9202
      %v9319 = vunpack.c.l.b16 %v9203
      %v9320 = vunpack.c.h.b16 %v9203
      %v9321 = vunpack.c.l.b16 %v9204
      %v9322 = vunpack.c.h.b16 %v9204
      %v9323 = vunpack.c.l.b16 %v9205
      %v9324 = vunpack.c.h.b16 %v9205
      %v9325 = vunpack.c.l.b16 %v9206
      %v9326 = vunpack.c.h.b16 %v9206
      %v9327 = vunpack.c.l.b16 %v9207
      %v9328 = vunpack.c.h.b16 %v9207
      %v9329 = vunpack.c.l.b16 %v9208
      %v9330 = vunpack.c.h.b16 %v9208
      %v9331 = vunpack.c.l.b16 %v9209
      %v9332 = vunpack.c.h.b16 %v9209
      %v9333 = vunpack.c.l.b16 %v9210
      %v9334 = vunpack.c.h.b16 %v9210
      %v9335 = vunpack.c.l.b16 %v9211
      %v9336 = vunpack.c.h.b16 %v9211
      %v9337 = vunpack.c.l.b16 %v9212
      %v9338 = vunpack.c.h.b16 %v9212
      %v9339 = vunpack.c.l.b16 %v9213
      %v9340 = vunpack.c.h.b16 %v9213
      %v9341 = vunpack.c.l.b16 %v9214
      %v9342 = vunpack.c.h.b16 %v9214
      %v9343 = vunpack.c.l.b16 %v9215
      %v9344 = vunpack.c.h.b16 %v9215
      %v9345 = vunpack.c.l.b16 %v9216
      %v9346 = vunpack.c.h.b16 %v9216
      %v9347 = vunpack.c.l.b16 %v9217
      %v9348 = vunpack.c.h.b16 %v9217
      %v9349 = vunpack.c.l.b16 %v9218
      %v9350 = vunpack.c.h.b16 %v9218
      %v9351 = vunpack.c.l.b16 %v9219
      %v9352 = vunpack.c.h.b16 %v9219
      %v9353 = vunpack.c.l.b16 %v9220
      %v9354 = vunpack.c.h.b16 %v9220
      %v9355 = vunpack.c.l.b16 %v9221
      %v9356 = vunpack.c.h.b16 %v9221
      %v9357 = vunpack.c.l.b16 %v9222
      %v9358 = vunpack.c.h.b16 %v9222
      %v9359 = vunpack.c.l.b16 %v9223
      %v9360 = vunpack.c.h.b16 %v9223
      %v9361 = vunpack.c.l.b16 %v9224
      %v9362 = vunpack.c.h.b16 %v9224
      %v9363 = vunpack.c.l.b16 %v9225
      %v9364 = vunpack.c.h.b16 %v9225
      %v9365 = vunpack.c.l.b16 %v9226
      %v9366 = vunpack.c.h.b16 %v9226
      %v9367 = vunpack.c.l.b16 %v9227
      %v9368 = vunpack.c.h.b16 %v9227
      %v9369 = vunpack.c.l.b16 %v9228
      %v9370 = vunpack.c.h.b16 %v9228
      %v9371 = vunpack.c.l.b16 %v9229
      %v9372 = vunpack.c.h.b16 %v9229
      %v9373 = vunpack.c.l.b16 %v9230
      %v9374 = vunpack.c.h.b16 %v9230
      %v9375 = vunpack.c.l.b16 %v9231
      %v9376 = vunpack.c.h.b16 %v9231
      %v9377 = vunpack.c.l.b16 %v9232
      %v9378 = vunpack.c.h.b16 %v9232
      %v9379 = vunpack.c.l.b16 %v9233
      %v9380 = vunpack.c.h.b16 %v9233
      %v9381 = vunpack.c.l.b16 %v9234
      %v9382 = vunpack.c.h.b16 %v9234
      %v9383 = vunpack.c.l.b16 %v9235
      %v9384 = vunpack.c.h.b16 %v9235
      %v9385 = vunpack.c.l.b16 %v9236
      %v9386 = vunpack.c.h.b16 %v9236
      %v9387 = vunpack.c.l.b16 %v9237
      %v9388 = vunpack.c.h.b16 %v9237
      %v9389 = vunpack.c.l.b16 %v9238
      %v9390 = vunpack.c.h.b16 %v9238
      %v9391 = vunpack.c.l.b16 %v9239
      %v9392 = vunpack.c.h.b16 %v9239
      %v9393 = vunpack.c.l.b16 %v9240
      %v9394 = vunpack.c.h.b16 %v9240
      %v9395 = vunpack.c.l.b16 %v9241
      %v9396 = vunpack.c.h.b16 %v9241
      %v9397 = vunpack.c.l.b16 %v9242
      %v9398 = vunpack.c.h.b16 %v9242
      %v9399 = vunpack.c.l.b16 %v9243
      %v9400 = vunpack.c.h.b16 %v9243
      %v9401 = vunpack.c.l.b16 %v9244
      %v9402 = vunpack.c.h.b16 %v9244
      %v9403 = vunpack.c.l.b16 %v9245
      %v9404 = vunpack.c.h.b16 %v9245
      %v9405 = vunpack.c.l.b16 %v9246
      %v9406 = vunpack.c.h.b16 %v9246
      %v9407 = vunpack.c.l.b16 %v9247
      %v9408 = vunpack.c.h.b16 %v9247
      %v9409 = vunpack.c.l.b16 %v9248
      %v9410 = vunpack.c.h.b16 %v9248
      %v9411 = vunpack.c.l.b16 %v9249
      %v9412 = vunpack.c.h.b16 %v9249
      %v9413 = vunpack.c.l.b16 %v9250
      %v9414 = vunpack.c.h.b16 %v9250
      %v9415 = vunpack.c.l.b16 %v9251
      %v9416 = vunpack.c.h.b16 %v9251
      %v9417 = vunpack.c.l.b16 %v9252
      %v9418 = vunpack.c.h.b16 %v9252
      %v9419 = vunpack.c.l.b16 %v9253
      %v9420 = vunpack.c.h.b16 %v9253
      %v9421 = vunpack.c.l.b16 %v9254
      %v9422 = vunpack.c.h.b16 %v9254
      %v9423 = vpack.c.b16 %v9313, %v9311
      %v9424 = vpack.c.b16 %v9314, %v9312
      %v9425 = vpack.c.b16 %v9317, %v9315
      %v9426 = vpack.c.b16 %v9318, %v9316
      %v9427 = vpack.c.b16 %v9321, %v9319
      %v9428 = vpack.c.b16 %v9322, %v9320
      %v9429 = vpack.c.b16 %v9325, %v9323
      %v9430 = vpack.c.b16 %v9326, %v9324
      %v9431 = vpack.c.b16 %v9329, %v9327
      %v9432 = vpack.c.b16 %v9330, %v9328
      %v9433 = vpack.c.b16 %v9333, %v9331
      %v9434 = vpack.c.b16 %v9334, %v9332
      %v9435 = vpack.c.b16 %v9337, %v9335
      %v9436 = vpack.c.b16 %v9338, %v9336
      %v9437 = vpack.c.b16 %v9341, %v9339
      %v9438 = vpack.c.b16 %v9342, %v9340
      %v9439 = vpack.c.b16 %v9345, %v9343
      %v9440 = vpack.c.b16 %v9346, %v9344
      %v9441 = vpack.c.b16 %v9349, %v9347
      %v9442 = vpack.c.b16 %v9350, %v9348
      %v9443 = vpack.c.b16 %v9353, %v9351
      %v9444 = vpack.c.b16 %v9354, %v9352
      %v9445 = vpack.c.b16 %v9357, %v9355
      %v9446 = vpack.c.b16 %v9358, %v9356
      %v9447 = vpack.c.b16 %v9361, %v9359
      %v9448 = vpack.c.b16 %v9362, %v9360
      %v9449 = vpack.c.b16 %v9365, %v9363
      %v9450 = vpack.c.b16 %v9366, %v9364
      %v9451 = vpack.c.b16 %v9369, %v9367
      %v9452 = vpack.c.b16 %v9370, %v9368
      %v9453 = vpack.c.b16 %v9373, %v9371
      %v9454 = vpack.c.b16 %v9374, %v9372
      %v9455 = vpack.c.b16 %v9377, %v9375
      %v9456 = vpack.c.b16 %v9378, %v9376
      %v9457 = vpack.c.b16 %v9381, %v9379
      %v9458 = vpack.c.b16 %v9382, %v9380
      %v9459 = vpack.c.b16 %v9385, %v9383
      %v9460 = vpack.c.b16 %v9386, %v9384
      %v9461 = vpack.c.b16 %v9389, %v9387
      %v9462 = vpack.c.b16 %v9390, %v9388
      %v9463 = vpack.c.b16 %v9393, %v9391
      %v9464 = vpack.c.b16 %v9394, %v9392
      %v9465 = vpack.c.b16 %v9397, %v9395
      %v9466 = vpack.c.b16 %v9398, %v9396
      %v9467 = vpack.c.b16 %v9401, %v9399
      %v9468 = vpack.c.b16 %v9402, %v9400
      %v9469 = vpack.c.b16 %v9405, %v9403
      %v9470 = vpack.c.b16 %v9406, %v9404
      %v9471 = vpack.c.b16 %v9409, %v9407
      %v9472 = vpack.c.b16 %v9410, %v9408
      %v9473 = vpack.c.b16 %v9413, %v9411
      %v9474 = vpack.c.b16 %v9414, %v9412
      %v9475 = vpack.c.b16 %v9417, %v9415
      %v9476 = vpack.c.b16 %v9418, %v9416
      %v9477 = vpack.c.b16 %v9421, %v9419
      %v9478 = vpack.c.b16 %v9422, %v9420
      %v9536 = vsel %vm7067, %v9197, 0
      %9538 = vmatpush.bf16.msra.mxu0 %v9437
      %9539 = vmatpush.bf16.msra.mxu0 %v9435
      %9540 = vmatpush.bf16.msra.mxu0 %v9433
      %9541 = vmatpush.bf16.msra.mxu0 %v9431
      %9542 = vmatpush.bf16.msra.mxu0 %v9429
      %9543 = vmatpush.bf16.msra.mxu0 %v9427
      %9544 = vmatpush.bf16.msra.mxu0 %v9425
      %9545 = vmatpush.bf16.msra.mxu0 %v9423
      %9546 = vmatmul.bf16.gmra.mxu0 %v6642
      %v9547 = vpop.f32.mrf.mxu0
      %v9548 = vadd.f32 0.0, %v9547
      %v9549 = vpop.f32.mrf.mxu0
      %v9550 = vadd.f32 0.0, %v9549
      %9551 = vmatmul.bf16.gmra.mxu0 %v6646
      %v9552 = vpop.f32.mrf.mxu0
      %v9553 = vadd.f32 0.0, %v9552
      %v9554 = vpop.f32.mrf.mxu0
      %v9555 = vadd.f32 0.0, %v9554
      %9556 = vmatmul.bf16.gmra.mxu0 %v6650
      %v9557 = vpop.f32.mrf.mxu0
      %v9558 = vadd.f32 0.0, %v9557
      %v9559 = vpop.f32.mrf.mxu0
      %v9560 = vadd.f32 0.0, %v9559
      %9561 = vmatmul.bf16.gmra.mxu0 %v7922
      %v9562 = vpop.f32.mrf.mxu0
      %v9563 = vadd.f32 0.0, %v9562
      %v9564 = vpop.f32.mrf.mxu0
      %v9565 = vadd.f32 0.0, %v9564
      %9566 = vmatmul.bf16.gmra.mxu0 %v9194
      %v9567 = vpop.f32.mrf.mxu0
      %v9568 = vadd.f32 0.0, %v9567
      %v9569 = vpop.f32.mrf.mxu0
      %v9570 = vadd.f32 0.0, %v9569
      %9571 = vdwg.mxu0
      %9572 = vmatpush.bf16.msra.mxu0 %v9453
      %9573 = vmatpush.bf16.msra.mxu0 %v9451
      %9574 = vmatpush.bf16.msra.mxu0 %v9449
      %9575 = vmatpush.bf16.msra.mxu0 %v9447
      %9576 = vmatpush.bf16.msra.mxu0 %v9445
      %9577 = vmatpush.bf16.msra.mxu0 %v9443
      %9578 = vmatpush.bf16.msra.mxu0 %v9441
      %9579 = vmatpush.bf16.msra.mxu0 %v9439
      %9580 = vmatmul.bf16.gmra.mxu0 %v6643
      %v9581 = vpop.f32.mrf.mxu0
      %v9582 = vadd.f32 %v9548, %v9581
      %v9583 = vpop.f32.mrf.mxu0
      %v9584 = vadd.f32 %v9550, %v9583
      %9585 = vmatmul.bf16.gmra.mxu0 %v6647
      %v9586 = vpop.f32.mrf.mxu0
      %v9587 = vadd.f32 %v9553, %v9586
      %v9588 = vpop.f32.mrf.mxu0
      %v9589 = vadd.f32 %v9555, %v9588
      %9590 = vmatmul.bf16.gmra.mxu0 %v6651
      %v9591 = vpop.f32.mrf.mxu0
      %v9592 = vadd.f32 %v9558, %v9591
      %v9593 = vpop.f32.mrf.mxu0
      %v9594 = vadd.f32 %v9560, %v9593
      %9595 = vmatmul.bf16.gmra.mxu0 %v7923
      %v9596 = vpop.f32.mrf.mxu0
      %v9597 = vadd.f32 %v9563, %v9596
      %v9598 = vpop.f32.mrf.mxu0
      %v9599 = vadd.f32 %v9565, %v9598
      %9600 = vmatmul.bf16.gmra.mxu0 %v9195
      %v9601 = vpop.f32.mrf.mxu0
      %v9602 = vadd.f32 %v9568, %v9601
      %v9603 = vpop.f32.mrf.mxu0
      %v9604 = vadd.f32 %v9570, %v9603
      %9605 = vdwg.mxu0
      %9606 = vmatpush.bf16.msra.mxu0 %v9469
      %9607 = vmatpush.bf16.msra.mxu0 %v9467
      %9608 = vmatpush.bf16.msra.mxu0 %v9465
      %9609 = vmatpush.bf16.msra.mxu0 %v9463
      %9610 = vmatpush.bf16.msra.mxu0 %v9461
      %9611 = vmatpush.bf16.msra.mxu0 %v9459
      %9612 = vmatpush.bf16.msra.mxu0 %v9457
      %9613 = vmatpush.bf16.msra.mxu0 %v9455
      %9614 = vmatmul.bf16.gmra.mxu0 %v6644
      %v9615 = vpop.f32.mrf.mxu0
      %v9616 = vadd.f32 %v9582, %v9615
      %v9617 = vpop.f32.mrf.mxu0
      %v9618 = vadd.f32 %v9584, %v9617
      %9619 = vmatmul.bf16.gmra.mxu0 %v6648
      %v9620 = vpop.f32.mrf.mxu0
      %v9621 = vadd.f32 %v9587, %v9620
      %v9622 = vpop.f32.mrf.mxu0
      %v9623 = vadd.f32 %v9589, %v9622
      %9624 = vmatmul.bf16.gmra.mxu0 %v6652
      %v9625 = vpop.f32.mrf.mxu0
      %v9626 = vadd.f32 %v9592, %v9625
      %v9627 = vpop.f32.mrf.mxu0
      %v9628 = vadd.f32 %v9594, %v9627
      %9629 = vmatmul.bf16.gmra.mxu0 %v7924
      %v9630 = vpop.f32.mrf.mxu0
      %v9631 = vadd.f32 %v9597, %v9630
      %v9632 = vpop.f32.mrf.mxu0
      %v9633 = vadd.f32 %v9599, %v9632
      %9634 = vmatmul.bf16.gmra.mxu0 %v9196
      %v9635 = vpop.f32.mrf.mxu0
      %v9636 = vadd.f32 %v9602, %v9635
      %v9637 = vpop.f32.mrf.mxu0
      %v9638 = vadd.f32 %v9604, %v9637
      %9639 = vdwg.mxu0
      %9640 = vmatpush.bf16.msra.mxu0 0
      %9641 = vmatpush.bf16.msra.mxu0 0
      %9642 = vmatpush.bf16.msra.mxu0 0
      %9643 = vmatpush.bf16.msra.mxu0 0
      %9644 = vmatpush.bf16.msra.mxu0 %v9477
      %9645 = vmatpush.bf16.msra.mxu0 %v9475
      %9646 = vmatpush.bf16.msra.mxu0 %v9473
      %9647 = vmatpush.bf16.msra.mxu0 %v9471
      %9648 = vmatmul.bf16.gmra.mxu0 %v7642
      %v9649 = vpop.f32.mrf.mxu0
      %v9650 = vadd.f32 %v9616, %v9649
      %v9651 = vpop.f32.mrf.mxu0
      %v9652 = vadd.f32 %v9618, %v9651
      %9653 = vmatmul.bf16.gmra.mxu0 %v7645
      %v9654 = vpop.f32.mrf.mxu0
      %v9655 = vadd.f32 %v9621, %v9654
      %v9656 = vpop.f32.mrf.mxu0
      %v9657 = vadd.f32 %v9623, %v9656
      %9658 = vmatmul.bf16.gmra.mxu0 %v7648
      %v9659 = vpop.f32.mrf.mxu0
      %v9660 = vadd.f32 %v9626, %v9659
      %v9661 = vpop.f32.mrf.mxu0
      %v9662 = vadd.f32 %v9628, %v9661
      %9663 = vmatmul.bf16.gmra.mxu0 %v8264
      %v9664 = vpop.f32.mrf.mxu0
      %v9665 = vadd.f32 %v9631, %v9664
      %v9666 = vpop.f32.mrf.mxu0
      %v9667 = vadd.f32 %v9633, %v9666
      %9668 = vmatmul.bf16.gmra.mxu0 %v9536
      %v9669 = vpop.f32.mrf.mxu0
      %v9670 = vadd.f32 %v9636, %v9669
      %v9671 = vpop.f32.mrf.mxu0
      %v9672 = vadd.f32 %v9638, %v9671
      %9673 = vdwg.mxu0
      %9674 = vmatpush.bf16.msra.mxu0 %v9438
      %9675 = vmatpush.bf16.msra.mxu0 %v9436
      %9676 = vmatpush.bf16.msra.mxu0 %v9434
      %9677 = vmatpush.bf16.msra.mxu0 %v9432
      %9678 = vmatpush.bf16.msra.mxu0 %v9430
      %9679 = vmatpush.bf16.msra.mxu0 %v9428
      %9680 = vmatpush.bf16.msra.mxu0 %v9426
      %9681 = vmatpush.bf16.msra.mxu0 %v9424
      %9682 = vmatmul.bf16.gmra.mxu0 %v6642
      %v9683 = vpop.f32.mrf.mxu0
      %v9684 = vadd.f32 0.0, %v9683
      %v9685 = vpop.f32.mrf.mxu0
      %v9686 = vadd.f32 0.0, %v9685
      %9687 = vmatmul.bf16.gmra.mxu0 %v6646
      %v9688 = vpop.f32.mrf.mxu0
      %v9689 = vadd.f32 0.0, %v9688
      %v9690 = vpop.f32.mrf.mxu0
      %v9691 = vadd.f32 0.0, %v9690
      %9692 = vmatmul.bf16.gmra.mxu0 %v6650
      %v9693 = vpop.f32.mrf.mxu0
      %v9694 = vadd.f32 0.0, %v9693
      %v9695 = vpop.f32.mrf.mxu0
      %v9696 = vadd.f32 0.0, %v9695
      %9697 = vmatmul.bf16.gmra.mxu0 %v7922
      %v9698 = vpop.f32.mrf.mxu0
      %v9699 = vadd.f32 0.0, %v9698
      %v9700 = vpop.f32.mrf.mxu0
      %v9701 = vadd.f32 0.0, %v9700
      %9702 = vmatmul.bf16.gmra.mxu0 %v9194
      %v9703 = vpop.f32.mrf.mxu0
      %v9704 = vadd.f32 0.0, %v9703
      %v9705 = vpop.f32.mrf.mxu0
      %v9706 = vadd.f32 0.0, %v9705
      %9707 = vdwg.mxu0
      %9708 = vmatpush.bf16.msra.mxu0 %v9454
      %9709 = vmatpush.bf16.msra.mxu0 %v9452
      %9710 = vmatpush.bf16.msra.mxu0 %v9450
      %9711 = vmatpush.bf16.msra.mxu0 %v9448
      %9712 = vmatpush.bf16.msra.mxu0 %v9446
      %9713 = vmatpush.bf16.msra.mxu0 %v9444
      %9714 = vmatpush.bf16.msra.mxu0 %v9442
      %9715 = vmatpush.bf16.msra.mxu0 %v9440
      %9716 = vmatmul.bf16.gmra.mxu0 %v6643
      %v9717 = vpop.f32.mrf.mxu0
      %v9718 = vadd.f32 %v9684, %v9717
      %v9719 = vpop.f32.mrf.mxu0
      %v9720 = vadd.f32 %v9686, %v9719
      %9721 = vmatmul.bf16.gmra.mxu0 %v6647
      %v9722 = vpop.f32.mrf.mxu0
      %v9723 = vadd.f32 %v9689, %v9722
      %v9724 = vpop.f32.mrf.mxu0
      %v9725 = vadd.f32 %v9691, %v9724
      %9726 = vmatmul.bf16.gmra.mxu0 %v6651
      %v9727 = vpop.f32.mrf.mxu0
      %v9728 = vadd.f32 %v9694, %v9727
      %v9729 = vpop.f32.mrf.mxu0
      %v9730 = vadd.f32 %v9696, %v9729
      %9731 = vmatmul.bf16.gmra.mxu0 %v7923
      %v9732 = vpop.f32.mrf.mxu0
      %v9733 = vadd.f32 %v9699, %v9732
      %v9734 = vpop.f32.mrf.mxu0
      %v9735 = vadd.f32 %v9701, %v9734
      %9736 = vmatmul.bf16.gmra.mxu0 %v9195
      %v9737 = vpop.f32.mrf.mxu0
      %v9738 = vadd.f32 %v9704, %v9737
      %v9739 = vpop.f32.mrf.mxu0
      %v9740 = vadd.f32 %v9706, %v9739
      %9741 = vdwg.mxu0
      %9742 = vmatpush.bf16.msra.mxu0 %v9470
      %9743 = vmatpush.bf16.msra.mxu0 %v9468
      %9744 = vmatpush.bf16.msra.mxu0 %v9466
      %9745 = vmatpush.bf16.msra.mxu0 %v9464
      %9746 = vmatpush.bf16.msra.mxu0 %v9462
      %9747 = vmatpush.bf16.msra.mxu0 %v9460
      %9748 = vmatpush.bf16.msra.mxu0 %v9458
      %9749 = vmatpush.bf16.msra.mxu0 %v9456
      %9750 = vmatmul.bf16.gmra.mxu0 %v6644
      %v9751 = vpop.f32.mrf.mxu0
      %v9752 = vadd.f32 %v9718, %v9751
      %v9753 = vpop.f32.mrf.mxu0
      %v9754 = vadd.f32 %v9720, %v9753
      %9755 = vmatmul.bf16.gmra.mxu0 %v6648
      %v9756 = vpop.f32.mrf.mxu0
      %v9757 = vadd.f32 %v9723, %v9756
      %v9758 = vpop.f32.mrf.mxu0
      %v9759 = vadd.f32 %v9725, %v9758
      %9760 = vmatmul.bf16.gmra.mxu0 %v6652
      %v9761 = vpop.f32.mrf.mxu0
      %v9762 = vadd.f32 %v9728, %v9761
      %v9763 = vpop.f32.mrf.mxu0
      %v9764 = vadd.f32 %v9730, %v9763
      %9765 = vmatmul.bf16.gmra.mxu0 %v7924
      %v9766 = vpop.f32.mrf.mxu0
      %v9767 = vadd.f32 %v9733, %v9766
      %v9768 = vpop.f32.mrf.mxu0
      %v9769 = vadd.f32 %v9735, %v9768
      %9770 = vmatmul.bf16.gmra.mxu0 %v9196
      %v9771 = vpop.f32.mrf.mxu0
      %v9772 = vadd.f32 %v9738, %v9771
      %v9773 = vpop.f32.mrf.mxu0
      %v9774 = vadd.f32 %v9740, %v9773
      %9775 = vdwg.mxu0
      %9776 = vmatpush.bf16.msra.mxu0 0
      %9777 = vmatpush.bf16.msra.mxu0 0
      %9778 = vmatpush.bf16.msra.mxu0 0
      %9779 = vmatpush.bf16.msra.mxu0 0
      %9780 = vmatpush.bf16.msra.mxu0 %v9478
      %9781 = vmatpush.bf16.msra.mxu0 %v9476
      %9782 = vmatpush.bf16.msra.mxu0 %v9474
      %9783 = vmatpush.bf16.msra.mxu0 %v9472
      %9784 = vmatmul.bf16.gmra.mxu0 %v7642
      %v9785 = vpop.f32.mrf.mxu0
      %v9786 = vadd.f32 %v9752, %v9785
      %v9787 = vpop.f32.mrf.mxu0
      %v9788 = vadd.f32 %v9754, %v9787
      %9789 = vmatmul.bf16.gmra.mxu0 %v7645
      %v9790 = vpop.f32.mrf.mxu0
      %v9791 = vadd.f32 %v9757, %v9790
      %v9792 = vpop.f32.mrf.mxu0
      %v9793 = vadd.f32 %v9759, %v9792
      %9794 = vmatmul.bf16.gmra.mxu0 %v7648
      %v9795 = vpop.f32.mrf.mxu0
      %v9796 = vadd.f32 %v9762, %v9795
      %v9797 = vpop.f32.mrf.mxu0
      %v9798 = vadd.f32 %v9764, %v9797
      %9799 = vmatmul.bf16.gmra.mxu0 %v8264
      %v9800 = vpop.f32.mrf.mxu0
      %v9801 = vadd.f32 %v9767, %v9800
      %v9802 = vpop.f32.mrf.mxu0
      %v9803 = vadd.f32 %v9769, %v9802
      %9804 = vmatmul.bf16.gmra.mxu0 %v9536
      %v9805 = vpop.f32.mrf.mxu0
      %v9806 = vadd.f32 %v9772, %v9805
      %v9807 = vpop.f32.mrf.mxu0
      %v9808 = vadd.f32 %v9774, %v9807
      %9809 = vdwg.mxu0
      %v9810 = vadd.f32 %v9174, %v9650
      %v9811 = vadd.f32 %v9175, %v9786
      %v9812 = vadd.f32 %v9176, %v9652
      %v9813 = vadd.f32 %v9177, %v9788
      %v9814 = vadd.f32 %v9178, %v9655
      %v9815 = vadd.f32 %v9179, %v9791
      %v9816 = vadd.f32 %v9180, %v9657
      %v9817 = vadd.f32 %v9181, %v9793
      %v9818 = vadd.f32 %v9182, %v9660
      %v9819 = vadd.f32 %v9183, %v9796
      %v9820 = vadd.f32 %v9184, %v9662
      %v9821 = vadd.f32 %v9185, %v9798
      %v9822 = vadd.f32 %v9186, %v9665
      %v9823 = vadd.f32 %v9187, %v9801
      %v9824 = vadd.f32 %v9188, %v9667
      %v9825 = vadd.f32 %v9189, %v9803
      %v9826 = vadd.f32 %v9190, %v9670
      %v9827 = vadd.f32 %v9191, %v9806
      %v9828 = vadd.f32 %v9192, %v9672
      %v9829 = vadd.f32 %v9193, %v9808
      %v9830 = vld [vmem:[%s7] sm:$0x3]
      %v9831 = vld [vmem:[%s8] sm:$0x3]
      %v9833 = vperm.slane %v9830, 0
      %v9834 = vperm.slane %v9830, 1
      %v9837 = vmul.f32 %v9810, %v9833
      %v9838 = vmul.f32 %v9811, %v9834
      %v9839 = vmul.f32 %v9812, %v9833
      %v9840 = vmul.f32 %v9813, %v9834
      %v9841 = vmul.f32 %v9814, %v9833
      %v9842 = vmul.f32 %v9815, %v9834
      %v9843 = vmul.f32 %v9816, %v9833
      %v9844 = vmul.f32 %v9817, %v9834
      %v9845 = vmul.f32 %v9818, %v9833
      %v9846 = vmul.f32 %v9819, %v9834
      %v9847 = vmul.f32 %v9820, %v9833
      %v9848 = vmul.f32 %v9821, %v9834
      %v9849 = vmul.f32 %v9822, %v9833
      %v9850 = vmul.f32 %v9823, %v9834
      %v9851 = vmul.f32 %v9824, %v9833
      %v9852 = vmul.f32 %v9825, %v9834
      %v9853 = vmul.f32 %v9826, %v9833
      %v9854 = vmul.f32 %v9827, %v9834
      %v9855 = vmul.f32 %v9828, %v9833
      %v9856 = vmul.f32 %v9829, %v9834
      %v9858 = vperm.slane %v9831, 0
      %v9859 = vperm.slane %v9831, 1
      %v9862 = vadd.f32 %v9837, %v9858
      %v9863 = vadd.f32 %v9838, %v9859
      %v9864 = vadd.f32 %v9839, %v9858
      %v9865 = vadd.f32 %v9840, %v9859
      %v9866 = vadd.f32 %v9841, %v9858
      %v9867 = vadd.f32 %v9842, %v9859
      %v9868 = vadd.f32 %v9843, %v9858
      %v9869 = vadd.f32 %v9844, %v9859
      %v9870 = vadd.f32 %v9845, %v9858
      %v9871 = vadd.f32 %v9846, %v9859
      %v9872 = vadd.f32 %v9847, %v9858
      %v9873 = vadd.f32 %v9848, %v9859
      %v9874 = vadd.f32 %v9849, %v9858
      %v9875 = vadd.f32 %v9850, %v9859
      %v9876 = vadd.f32 %v9851, %v9858
      %v9877 = vadd.f32 %v9852, %v9859
      %v9878 = vadd.f32 %v9853, %v9858
      %v9879 = vadd.f32 %v9854, %v9859
      %v9880 = vadd.f32 %v9855, %v9858
      %v9881 = vadd.f32 %v9856, %v9859
      %vm9882 = vcmp.ge.f32.partialorder %v9862, 0.0
      %vm9883 = vcmp.ge.f32.partialorder %v9863, 0.0
      %vm9884 = vcmp.ge.f32.partialorder %v9864, 0.0
      %vm9885 = vcmp.ge.f32.partialorder %v9865, 0.0
      %vm9886 = vcmp.ge.f32.partialorder %v9866, 0.0
      %vm9887 = vcmp.ge.f32.partialorder %v9867, 0.0
      %vm9888 = vcmp.ge.f32.partialorder %v9868, 0.0
      %vm9889 = vcmp.ge.f32.partialorder %v9869, 0.0
      %vm9890 = vcmp.ge.f32.partialorder %v9870, 0.0
      %vm9891 = vcmp.ge.f32.partialorder %v9871, 0.0
      %vm9892 = vcmp.ge.f32.partialorder %v9872, 0.0
      %vm9893 = vcmp.ge.f32.partialorder %v9873, 0.0
      %vm9894 = vcmp.ge.f32.partialorder %v9874, 0.0
      %vm9895 = vcmp.ge.f32.partialorder %v9875, 0.0
      %vm9896 = vcmp.ge.f32.partialorder %v9876, 0.0
      %vm9897 = vcmp.ge.f32.partialorder %v9877, 0.0
      %vm9898 = vcmp.ge.f32.partialorder %v9878, 0.0
      %vm9899 = vcmp.ge.f32.partialorder %v9879, 0.0
      %vm9900 = vcmp.ge.f32.partialorder %v9880, 0.0
      %vm9901 = vcmp.ge.f32.partialorder %v9881, 0.0
      %v9902 = vmul.f32 %v9862, 0.01
      %v9903 = vmul.f32 %v9863, 0.01
      %v9904 = vmul.f32 %v9864, 0.01
      %v9905 = vmul.f32 %v9865, 0.01
      %v9906 = vmul.f32 %v9866, 0.01
      %v9907 = vmul.f32 %v9867, 0.01
      %v9908 = vmul.f32 %v9868, 0.01
      %v9909 = vmul.f32 %v9869, 0.01
      %v9910 = vmul.f32 %v9870, 0.01
      %v9911 = vmul.f32 %v9871, 0.01
      %v9912 = vmul.f32 %v9872, 0.01
      %v9913 = vmul.f32 %v9873, 0.01
      %v9914 = vmul.f32 %v9874, 0.01
      %v9915 = vmul.f32 %v9875, 0.01
      %v9916 = vmul.f32 %v9876, 0.01
      %v9917 = vmul.f32 %v9877, 0.01
      %v9918 = vmul.f32 %v9878, 0.01
      %v9919 = vmul.f32 %v9879, 0.01
      %v9920 = vmul.f32 %v9880, 0.01
      %v9921 = vmul.f32 %v9881, 0.01
      %v9922 = vsel %vm9882, %v9862, %v9902
      %v9923 = vsel %vm9883, %v9863, %v9903
      %v9924 = vsel %vm9884, %v9864, %v9904
      %v9925 = vsel %vm9885, %v9865, %v9905
      %v9926 = vsel %vm9886, %v9866, %v9906
      %v9927 = vsel %vm9887, %v9867, %v9907
      %v9928 = vsel %vm9888, %v9868, %v9908
      %v9929 = vsel %vm9889, %v9869, %v9909
      %v9930 = vsel %vm9890, %v9870, %v9910
      %v9931 = vsel %vm9891, %v9871, %v9911
      %v9932 = vsel %vm9892, %v9872, %v9912
      %v9933 = vsel %vm9893, %v9873, %v9913
      %v9934 = vsel %vm9894, %v9874, %v9914
      %v9935 = vsel %vm9895, %v9875, %v9915
      %v9936 = vsel %vm9896, %v9876, %v9916
      %v9937 = vsel %vm9897, %v9877, %v9917
      %v9938 = vsel %vm9898, %v9878, %v9918
      %v9939 = vsel %vm9899, %v9879, %v9919
      %v9940 = vsel %vm9900, %v9880, %v9920
      %v9941 = vsel %vm9901, %v9881, %v9921
      %v9942 = vpack.c.bf16 %v9924, %v9922
      %v9943 = vpack.c.bf16 %v9925, %v9923
      %v9944 = vpack.c.bf16 %v9928, %v9926
      %v9945 = vpack.c.bf16 %v9929, %v9927
      %v9946 = vpack.c.bf16 %v9932, %v9930
      %v9947 = vpack.c.bf16 %v9933, %v9931
      %v9948 = vld [vmem:[%s9] sm:$0xf]
      %v9949 = vld [vmem:[%s9 + $0x4] sm:$0xf]
      %v9950 = vld [vmem:[%s9 + $0x8] sm:$0xf]
      %v9951 = vld [vmem:[%s9 + $0xc] sm:$0xf]
      %v9952 = vld [vmem:[%s9 + $0x10] sm:$0xf]
      %v9953 = vld [vmem:[%s9 + $0x14] sm:$0xf]
      %v9954 = vld [vmem:[%s9 + $0x18] sm:$0xf]
      %v9955 = vld [vmem:[%s9 + $0x1c] sm:$0xf]
      %v9956 = vld [vmem:[%s9 + $0x20] sm:$0xf]
      %v9957 = vld [vmem:[%s9 + $0x24] sm:$0xf]
      %v9958 = vld [vmem:[%s9 + $0x28] sm:$0xf]
      %v9959 = vld [vmem:[%s9 + $0x2c] sm:$0xf]
      %v9960 = vld [vmem:[%s9 + $0x30] sm:$0xf]
      %v9961 = vld [vmem:[%s9 + $0x34] sm:$0xf]
      %v9962 = vld [vmem:[%s9 + $0x38] sm:$0xf]
      %v9963 = vld [vmem:[%s9 + $0x3c] sm:$0xf]
      %v9964 = vld [vmem:[%s9 + $0x40] sm:$0xf]
      %v9965 = vld [vmem:[%s9 + $0x44] sm:$0xf]
      %v9966 = vld [vmem:[%s9 + $0x48] sm:$0xf]
      %v9967 = vld [vmem:[%s9 + $0x4c] sm:$0xf]
      %v9968 = vpack.c.bf16 %v9926, %v9924
      %v9969 = vpack.c.bf16 %v9927, %v9925
      %v9970 = vpack.c.bf16 %v9930, %v9928
      %v9971 = vpack.c.bf16 %v9931, %v9929
      %v9972 = vpack.c.bf16 %v9934, %v9932
      %v9973 = vpack.c.bf16 %v9935, %v9933
      %s9974 = scalar_lea.vmem %s9, 80
      %v9975 = vld [vmem:[%s9974] sm:$0xf]
      %v9976 = vld [vmem:[%s9974 + $0x4] sm:$0xf]
      %v9977 = vld [vmem:[%s9974 + $0x8] sm:$0xf]
      %v9978 = vld [vmem:[%s9974 + $0xc] sm:$0xf]
      %v9979 = vld [vmem:[%s9974 + $0x10] sm:$0xf]
      %v9980 = vld [vmem:[%s9974 + $0x14] sm:$0xf]
      %v9981 = vld [vmem:[%s9974 + $0x18] sm:$0xf]
      %v9982 = vld [vmem:[%s9974 + $0x1c] sm:$0xf]
      %v9983 = vld [vmem:[%s9974 + $0x20] sm:$0xf]
      %v9984 = vld [vmem:[%s9974 + $0x24] sm:$0xf]
      %v9985 = vld [vmem:[%s9974 + $0x28] sm:$0xf]
      %v9986 = vld [vmem:[%s9974 + $0x2c] sm:$0xf]
      %v9987 = vld [vmem:[%s9974 + $0x30] sm:$0xf]
      %v9988 = vld [vmem:[%s9974 + $0x34] sm:$0xf]
      %v9989 = vld [vmem:[%s9974 + $0x38] sm:$0xf]
      %v9990 = vld [vmem:[%s9974 + $0x3c] sm:$0xf]
      %v9991 = vld [vmem:[%s9974 + $0x40] sm:$0xf]
      %v9992 = vld [vmem:[%s9974 + $0x44] sm:$0xf]
      %v9993 = vld [vmem:[%s9974 + $0x48] sm:$0xf]
      %v9994 = vld [vmem:[%s9974 + $0x4c] sm:$0xf]
      %v10015 = vunpack.c.l.b16 %v9975
      %v10016 = vunpack.c.l.b16 %v9976
      %v10017 = vunpack.c.l.b16 %v9977
      %v10018 = vunpack.c.l.b16 %v9978
      %v10019 = vunpack.c.l.b16 %v9979
      %v10020 = vunpack.c.l.b16 %v9980
      %v10021 = vunpack.c.l.b16 %v9981
      %v10022 = vunpack.c.l.b16 %v9982
      %v10023 = vunpack.c.l.b16 %v9983
      %v10024 = vunpack.c.l.b16 %v9984
      %v10025 = vunpack.c.l.b16 %v9985
      %v10026 = vunpack.c.l.b16 %v9986
      %v10027 = vunpack.c.l.b16 %v9987
      %v10028 = vunpack.c.l.b16 %v9988
      %v10029 = vunpack.c.l.b16 %v9989
      %v10030 = vunpack.c.l.b16 %v9990
      %v10031 = vunpack.c.l.b16 %v9991
      %v10032 = vunpack.c.l.b16 %v9992
      %v10033 = vunpack.c.l.b16 %v9993
      %v10034 = vunpack.c.l.b16 %v9994
      %v10035 = vpack.c.b16 %v10016, %v10015
      %v10036 = vpack.c.b16 %v10018, %v10017
      %v10037 = vpack.c.b16 %v10020, %v10019
      %v10038 = vpack.c.b16 %v10022, %v10021
      %v10039 = vpack.c.b16 %v10024, %v10023
      %v10040 = vpack.c.b16 %v10026, %v10025
      %v10041 = vpack.c.b16 %v10028, %v10027
      %v10042 = vpack.c.b16 %v10030, %v10029
      %v10043 = vpack.c.b16 %v10032, %v10031
      %v10044 = vpack.c.b16 %v10034, %v10033
      %v10056 = vsel %vm613, %v9969, 0
      %v10059 = vsel %vm613, %v9971, 0
      %v10062 = vsel %vm613, %v9973, 0
      %10064 = vmatpush.bf16.msra.mxu0 %v10042
      %10065 = vmatpush.bf16.msra.mxu0 %v10041
      %10066 = vmatpush.bf16.msra.mxu0 %v10040
      %10067 = vmatpush.bf16.msra.mxu0 %v10039
      %10068 = vmatpush.bf16.msra.mxu0 %v10038
      %10069 = vmatpush.bf16.msra.mxu0 %v10037
      %10070 = vmatpush.bf16.msra.mxu0 %v10036
      %10071 = vmatpush.bf16.msra.mxu0 %v10035
      %10072 = vmatmul.bf16.gmra.mxu0 %v9968
      %v10073 = vpop.f32.mrf.mxu0
      %v10074 = vadd.f32 0.0, %v10073
      %v10075 = vpop.f32.mrf.mxu0
      %v10076 = vadd.f32 0.0, %v10075
      %10077 = vmatmul.bf16.gmra.mxu0 %v9970
      %v10078 = vpop.f32.mrf.mxu0
      %v10079 = vadd.f32 0.0, %v10078
      %v10080 = vpop.f32.mrf.mxu0
      %v10081 = vadd.f32 0.0, %v10080
      %10082 = vmatmul.bf16.gmra.mxu0 %v9972
      %v10083 = vpop.f32.mrf.mxu0
      %v10084 = vadd.f32 0.0, %v10083
      %v10085 = vpop.f32.mrf.mxu0
      %v10086 = vadd.f32 0.0, %v10085
      %10087 = vdwg.mxu0
      %10088 = vmatpush.bf16.msra.mxu0 0
      %10089 = vmatpush.bf16.msra.mxu0 0
      %10090 = vmatpush.bf16.msra.mxu0 0
      %10091 = vmatpush.bf16.msra.mxu0 0
      %10092 = vmatpush.bf16.msra.mxu0 0
      %10093 = vmatpush.bf16.msra.mxu0 0
      %10094 = vmatpush.bf16.msra.mxu0 %v10044
      %10095 = vmatpush.bf16.msra.mxu0 %v10043
      %10096 = vmatmul.bf16.gmra.mxu0 %v10056
      %v10097 = vpop.f32.mrf.mxu0
      %v10098 = vadd.f32 %v10074, %v10097
      %v10099 = vpop.f32.mrf.mxu0
      %v10100 = vadd.f32 %v10076, %v10099
      %10101 = vmatmul.bf16.gmra.mxu0 %v10059
      %v10102 = vpop.f32.mrf.mxu0
      %v10103 = vadd.f32 %v10079, %v10102
      %v10104 = vpop.f32.mrf.mxu0
      %v10105 = vadd.f32 %v10081, %v10104
      %10106 = vmatmul.bf16.gmra.mxu0 %v10062
      %v10107 = vpop.f32.mrf.mxu0
      %v10108 = vadd.f32 %v10084, %v10107
      %v10109 = vpop.f32.mrf.mxu0
      %v10110 = vadd.f32 %v10086, %v10109
      %10111 = vdwg.mxu0
      %v10132 = vunpack.c.l.b16 %v9948
      %v10133 = vunpack.c.l.b16 %v9949
      %v10134 = vunpack.c.l.b16 %v9950
      %v10135 = vunpack.c.l.b16 %v9951
      %v10136 = vunpack.c.l.b16 %v9952
      %v10137 = vunpack.c.l.b16 %v9953
      %v10138 = vunpack.c.l.b16 %v9954
      %v10139 = vunpack.c.l.b16 %v9955
      %v10140 = vunpack.c.l.b16 %v9956
      %v10141 = vunpack.c.l.b16 %v9957
      %v10142 = vunpack.c.l.b16 %v9958
      %v10143 = vunpack.c.l.b16 %v9959
      %v10144 = vunpack.c.l.b16 %v9960
      %v10145 = vunpack.c.l.b16 %v9961
      %v10146 = vunpack.c.l.b16 %v9962
      %v10147 = vunpack.c.l.b16 %v9963
      %v10148 = vunpack.c.l.b16 %v9964
      %v10149 = vunpack.c.l.b16 %v9965
      %v10150 = vunpack.c.l.b16 %v9966
      %v10151 = vunpack.c.l.b16 %v9967
      %v10152 = vpack.c.b16 %v10133, %v10132
      %v10153 = vpack.c.b16 %v10135, %v10134
      %v10154 = vpack.c.b16 %v10137, %v10136
      %v10155 = vpack.c.b16 %v10139, %v10138
      %v10156 = vpack.c.b16 %v10141, %v10140
      %v10157 = vpack.c.b16 %v10143, %v10142
      %v10158 = vpack.c.b16 %v10145, %v10144
      %v10159 = vpack.c.b16 %v10147, %v10146
      %v10160 = vpack.c.b16 %v10149, %v10148
      %v10161 = vpack.c.b16 %v10151, %v10150
      %v10173 = vsel %vm613, %v9943, 0
      %v10176 = vsel %vm613, %v9945, 0
      %v10179 = vsel %vm613, %v9947, 0
      %10181 = vmatpush.bf16.msra.mxu0 %v10159
      %10182 = vmatpush.bf16.msra.mxu0 %v10158
      %10183 = vmatpush.bf16.msra.mxu0 %v10157
      %10184 = vmatpush.bf16.msra.mxu0 %v10156
      %10185 = vmatpush.bf16.msra.mxu0 %v10155
      %10186 = vmatpush.bf16.msra.mxu0 %v10154
      %10187 = vmatpush.bf16.msra.mxu0 %v10153
      %10188 = vmatpush.bf16.msra.mxu0 %v10152
      %10189 = vmatmul.bf16.gmra.mxu0 %v9942
      %v10190 = vpop.f32.mrf.mxu0
      %v10191 = vadd.f32 %v10098, %v10190
      %v10192 = vpop.f32.mrf.mxu0
      %v10193 = vadd.f32 %v10100, %v10192
      %10194 = vmatmul.bf16.gmra.mxu0 %v9944
      %v10195 = vpop.f32.mrf.mxu0
      %v10196 = vadd.f32 %v10103, %v10195
      %v10197 = vpop.f32.mrf.mxu0
      %v10198 = vadd.f32 %v10105, %v10197
      %10199 = vmatmul.bf16.gmra.mxu0 %v9946
      %v10200 = vpop.f32.mrf.mxu0
      %v10201 = vadd.f32 %v10108, %v10200
      %v10202 = vpop.f32.mrf.mxu0
      %v10203 = vadd.f32 %v10110, %v10202
      %10204 = vdwg.mxu0
      %10205 = vmatpush.bf16.msra.mxu0 0
      %10206 = vmatpush.bf16.msra.mxu0 0
      %10207 = vmatpush.bf16.msra.mxu0 0
      %10208 = vmatpush.bf16.msra.mxu0 0
      %10209 = vmatpush.bf16.msra.mxu0 0
      %10210 = vmatpush.bf16.msra.mxu0 0
      %10211 = vmatpush.bf16.msra.mxu0 %v10161
      %10212 = vmatpush.bf16.msra.mxu0 %v10160
      %10213 = vmatmul.bf16.gmra.mxu0 %v10173
      %v10214 = vpop.f32.mrf.mxu0
      %v10215 = vadd.f32 %v10191, %v10214
      %v10216 = vpop.f32.mrf.mxu0
      %v10217 = vadd.f32 %v10193, %v10216
      %10218 = vmatmul.bf16.gmra.mxu0 %v10176
      %v10219 = vpop.f32.mrf.mxu0
      %v10220 = vadd.f32 %v10196, %v10219
      %v10221 = vpop.f32.mrf.mxu0
      %v10222 = vadd.f32 %v10198, %v10221
      %10223 = vmatmul.bf16.gmra.mxu0 %v10179
      %v10224 = vpop.f32.mrf.mxu0
      %v10225 = vadd.f32 %v10201, %v10224
      %v10226 = vpop.f32.mrf.mxu0
      %v10227 = vadd.f32 %v10203, %v10226
      %10228 = vdwg.mxu0
      %v10229 = vpack.c.bf16 %v9936, %v9934
      %v10230 = vpack.c.bf16 %v9937, %v9935
      %s10231 = scalar_lea.vmem %s9, 160
      %v10232 = vld [vmem:[%s10231] sm:$0xf]
      %v10233 = vld [vmem:[%s10231 + $0x4] sm:$0xf]
      %v10234 = vld [vmem:[%s10231 + $0x8] sm:$0xf]
      %v10235 = vld [vmem:[%s10231 + $0xc] sm:$0xf]
      %v10236 = vld [vmem:[%s10231 + $0x10] sm:$0xf]
      %v10237 = vld [vmem:[%s10231 + $0x14] sm:$0xf]
      %v10238 = vld [vmem:[%s10231 + $0x18] sm:$0xf]
      %v10239 = vld [vmem:[%s10231 + $0x1c] sm:$0xf]
      %v10240 = vld [vmem:[%s10231 + $0x20] sm:$0xf]
      %v10241 = vld [vmem:[%s10231 + $0x24] sm:$0xf]
      %v10242 = vld [vmem:[%s10231 + $0x28] sm:$0xf]
      %v10243 = vld [vmem:[%s10231 + $0x2c] sm:$0xf]
      %v10244 = vld [vmem:[%s10231 + $0x30] sm:$0xf]
      %v10245 = vld [vmem:[%s10231 + $0x34] sm:$0xf]
      %v10246 = vld [vmem:[%s10231 + $0x38] sm:$0xf]
      %v10247 = vld [vmem:[%s10231 + $0x3c] sm:$0xf]
      %v10248 = vld [vmem:[%s10231 + $0x40] sm:$0xf]
      %v10249 = vld [vmem:[%s10231 + $0x44] sm:$0xf]
      %v10250 = vld [vmem:[%s10231 + $0x48] sm:$0xf]
      %v10251 = vld [vmem:[%s10231 + $0x4c] sm:$0xf]
      %v10272 = vunpack.c.l.b16 %v10232
      %v10273 = vunpack.c.l.b16 %v10233
      %v10274 = vunpack.c.l.b16 %v10234
      %v10275 = vunpack.c.l.b16 %v10235
      %v10276 = vunpack.c.l.b16 %v10236
      %v10277 = vunpack.c.l.b16 %v10237
      %v10278 = vunpack.c.l.b16 %v10238
      %v10279 = vunpack.c.l.b16 %v10239
      %v10280 = vunpack.c.l.b16 %v10240
      %v10281 = vunpack.c.l.b16 %v10241
      %v10282 = vunpack.c.l.b16 %v10242
      %v10283 = vunpack.c.l.b16 %v10243
      %v10284 = vunpack.c.l.b16 %v10244
      %v10285 = vunpack.c.l.b16 %v10245
      %v10286 = vunpack.c.l.b16 %v10246
      %v10287 = vunpack.c.l.b16 %v10247
      %v10288 = vunpack.c.l.b16 %v10248
      %v10289 = vunpack.c.l.b16 %v10249
      %v10290 = vunpack.c.l.b16 %v10250
      %v10291 = vunpack.c.l.b16 %v10251
      %v10292 = vpack.c.b16 %v10273, %v10272
      %v10293 = vpack.c.b16 %v10275, %v10274
      %v10294 = vpack.c.b16 %v10277, %v10276
      %v10295 = vpack.c.b16 %v10279, %v10278
      %v10296 = vpack.c.b16 %v10281, %v10280
      %v10297 = vpack.c.b16 %v10283, %v10282
      %v10298 = vpack.c.b16 %v10285, %v10284
      %v10299 = vpack.c.b16 %v10287, %v10286
      %v10300 = vpack.c.b16 %v10289, %v10288
      %v10301 = vpack.c.b16 %v10291, %v10290
      %v10313 = vsel %vm613, %v10230, 0
      %10315 = vmatpush.bf16.msra.mxu0 %v10299
      %10316 = vmatpush.bf16.msra.mxu0 %v10298
      %10317 = vmatpush.bf16.msra.mxu0 %v10297
      %10318 = vmatpush.bf16.msra.mxu0 %v10296
      %10319 = vmatpush.bf16.msra.mxu0 %v10295
      %10320 = vmatpush.bf16.msra.mxu0 %v10294
      %10321 = vmatpush.bf16.msra.mxu0 %v10293
      %10322 = vmatpush.bf16.msra.mxu0 %v10292
      %10323 = vmatmul.bf16.gmra.mxu0 %v9944
      %v10324 = vpop.f32.mrf.mxu0
      %v10325 = vadd.f32 0.0, %v10324
      %v10326 = vpop.f32.mrf.mxu0
      %v10327 = vadd.f32 0.0, %v10326
      %10328 = vmatmul.bf16.gmra.mxu0 %v9946
      %v10329 = vpop.f32.mrf.mxu0
      %v10330 = vadd.f32 0.0, %v10329
      %v10331 = vpop.f32.mrf.mxu0
      %v10332 = vadd.f32 0.0, %v10331
      %10333 = vmatmul.bf16.gmra.mxu0 %v10229
      %v10334 = vpop.f32.mrf.mxu0
      %v10335 = vadd.f32 0.0, %v10334
      %v10336 = vpop.f32.mrf.mxu0
      %v10337 = vadd.f32 0.0, %v10336
      %10338 = vdwg.mxu0
      %10339 = vmatpush.bf16.msra.mxu0 0
      %10340 = vmatpush.bf16.msra.mxu0 0
      %10341 = vmatpush.bf16.msra.mxu0 0
      %10342 = vmatpush.bf16.msra.mxu0 0
      %10343 = vmatpush.bf16.msra.mxu0 0
      %10344 = vmatpush.bf16.msra.mxu0 0
      %10345 = vmatpush.bf16.msra.mxu0 %v10301
      %10346 = vmatpush.bf16.msra.mxu0 %v10300
      %10347 = vmatmul.bf16.gmra.mxu0 %v10176
      %v10348 = vpop.f32.mrf.mxu0
      %v10349 = vadd.f32 %v10325, %v10348
      %v10350 = vpop.f32.mrf.mxu0
      %v10351 = vadd.f32 %v10327, %v10350
      %10352 = vmatmul.bf16.gmra.mxu0 %v10179
      %v10353 = vpop.f32.mrf.mxu0
      %v10354 = vadd.f32 %v10330, %v10353
      %v10355 = vpop.f32.mrf.mxu0
      %v10356 = vadd.f32 %v10332, %v10355
      %10357 = vmatmul.bf16.gmra.mxu0 %v10313
      %v10358 = vpop.f32.mrf.mxu0
      %v10359 = vadd.f32 %v10335, %v10358
      %v10360 = vpop.f32.mrf.mxu0
      %v10361 = vadd.f32 %v10337, %v10360
      %10362 = vdwg.mxu0
      %v10363 = vadd.f32 %v10215, %v10349
      %v10364 = vadd.f32 %v10217, %v10351
      %v10365 = vadd.f32 %v10220, %v10354
      %v10366 = vadd.f32 %v10222, %v10356
      %v10367 = vadd.f32 %v10225, %v10359
      %v10368 = vadd.f32 %v10227, %v10361
      %v10369 = vpack.c.bf16 %v9938, %v9936
      %v10370 = vpack.c.bf16 %v9939, %v9937
      %s10371 = scalar_lea.vmem %s9, 240
      %v10372 = vld [vmem:[%s10371] sm:$0xf]
      %v10373 = vld [vmem:[%s10371 + $0x4] sm:$0xf]
      %v10374 = vld [vmem:[%s10371 + $0x8] sm:$0xf]
      %v10375 = vld [vmem:[%s10371 + $0xc] sm:$0xf]
      %v10376 = vld [vmem:[%s10371 + $0x10] sm:$0xf]
      %v10377 = vld [vmem:[%s10371 + $0x14] sm:$0xf]
      %v10378 = vld [vmem:[%s10371 + $0x18] sm:$0xf]
      %v10379 = vld [vmem:[%s10371 + $0x1c] sm:$0xf]
      %v10380 = vld [vmem:[%s10371 + $0x20] sm:$0xf]
      %v10381 = vld [vmem:[%s10371 + $0x24] sm:$0xf]
      %v10382 = vld [vmem:[%s10371 + $0x28] sm:$0xf]
      %v10383 = vld [vmem:[%s10371 + $0x2c] sm:$0xf]
      %v10384 = vld [vmem:[%s10371 + $0x30] sm:$0xf]
      %v10385 = vld [vmem:[%s10371 + $0x34] sm:$0xf]
      %v10386 = vld [vmem:[%s10371 + $0x38] sm:$0xf]
      %v10387 = vld [vmem:[%s10371 + $0x3c] sm:$0xf]
      %v10388 = vld [vmem:[%s10371 + $0x40] sm:$0xf]
      %v10389 = vld [vmem:[%s10371 + $0x44] sm:$0xf]
      %v10390 = vld [vmem:[%s10371 + $0x48] sm:$0xf]
      %v10391 = vld [vmem:[%s10371 + $0x4c] sm:$0xf]
      %v10412 = vunpack.c.l.b16 %v10372
      %v10413 = vunpack.c.l.b16 %v10373
      %v10414 = vunpack.c.l.b16 %v10374
      %v10415 = vunpack.c.l.b16 %v10375
      %v10416 = vunpack.c.l.b16 %v10376
      %v10417 = vunpack.c.l.b16 %v10377
      %v10418 = vunpack.c.l.b16 %v10378
      %v10419 = vunpack.c.l.b16 %v10379
      %v10420 = vunpack.c.l.b16 %v10380
      %v10421 = vunpack.c.l.b16 %v10381
      %v10422 = vunpack.c.l.b16 %v10382
      %v10423 = vunpack.c.l.b16 %v10383
      %v10424 = vunpack.c.l.b16 %v10384
      %v10425 = vunpack.c.l.b16 %v10385
      %v10426 = vunpack.c.l.b16 %v10386
      %v10427 = vunpack.c.l.b16 %v10387
      %v10428 = vunpack.c.l.b16 %v10388
      %v10429 = vunpack.c.l.b16 %v10389
      %v10430 = vunpack.c.l.b16 %v10390
      %v10431 = vunpack.c.l.b16 %v10391
      %v10432 = vpack.c.b16 %v10413, %v10412
      %v10433 = vpack.c.b16 %v10415, %v10414
      %v10434 = vpack.c.b16 %v10417, %v10416
      %v10435 = vpack.c.b16 %v10419, %v10418
      %v10436 = vpack.c.b16 %v10421, %v10420
      %v10437 = vpack.c.b16 %v10423, %v10422
      %v10438 = vpack.c.b16 %v10425, %v10424
      %v10439 = vpack.c.b16 %v10427, %v10426
      %v10440 = vpack.c.b16 %v10429, %v10428
      %v10441 = vpack.c.b16 %v10431, %v10430
      %v10453 = vsel %vm613, %v10370, 0
      %10455 = vmatpush.bf16.msra.mxu0 %v10439
      %10456 = vmatpush.bf16.msra.mxu0 %v10438
      %10457 = vmatpush.bf16.msra.mxu0 %v10437
      %10458 = vmatpush.bf16.msra.mxu0 %v10436
      %10459 = vmatpush.bf16.msra.mxu0 %v10435
      %10460 = vmatpush.bf16.msra.mxu0 %v10434
      %10461 = vmatpush.bf16.msra.mxu0 %v10433
      %10462 = vmatpush.bf16.msra.mxu0 %v10432
      %10463 = vmatmul.bf16.gmra.mxu0 %v9970
      %v10464 = vpop.f32.mrf.mxu0
      %v10465 = vadd.f32 0.0, %v10464
      %v10466 = vpop.f32.mrf.mxu0
      %v10467 = vadd.f32 0.0, %v10466
      %10468 = vmatmul.bf16.gmra.mxu0 %v9972
      %v10469 = vpop.f32.mrf.mxu0
      %v10470 = vadd.f32 0.0, %v10469
      %v10471 = vpop.f32.mrf.mxu0
      %v10472 = vadd.f32 0.0, %v10471
      %10473 = vmatmul.bf16.gmra.mxu0 %v10369
      %v10474 = vpop.f32.mrf.mxu0
      %v10475 = vadd.f32 0.0, %v10474
      %v10476 = vpop.f32.mrf.mxu0
      %v10477 = vadd.f32 0.0, %v10476
      %10478 = vdwg.mxu0
      %10479 = vmatpush.bf16.msra.mxu0 0
      %10480 = vmatpush.bf16.msra.mxu0 0
      %10481 = vmatpush.bf16.msra.mxu0 0
      %10482 = vmatpush.bf16.msra.mxu0 0
      %10483 = vmatpush.bf16.msra.mxu0 0
      %10484 = vmatpush.bf16.msra.mxu0 0
      %10485 = vmatpush.bf16.msra.mxu0 %v10441
      %10486 = vmatpush.bf16.msra.mxu0 %v10440
      %10487 = vmatmul.bf16.gmra.mxu0 %v10059
      %v10488 = vpop.f32.mrf.mxu0
      %v10489 = vadd.f32 %v10465, %v10488
      %v10490 = vpop.f32.mrf.mxu0
      %v10491 = vadd.f32 %v10467, %v10490
      %10492 = vmatmul.bf16.gmra.mxu0 %v10062
      %v10493 = vpop.f32.mrf.mxu0
      %v10494 = vadd.f32 %v10470, %v10493
      %v10495 = vpop.f32.mrf.mxu0
      %v10496 = vadd.f32 %v10472, %v10495
      %10497 = vmatmul.bf16.gmra.mxu0 %v10453
      %v10498 = vpop.f32.mrf.mxu0
      %v10499 = vadd.f32 %v10475, %v10498
      %v10500 = vpop.f32.mrf.mxu0
      %v10501 = vadd.f32 %v10477, %v10500
      %10502 = vdwg.mxu0
      %v10503 = vadd.f32 %v10363, %v10489
      %v10504 = vadd.f32 %v10364, %v10491
      %v10505 = vadd.f32 %v10365, %v10494
      %v10506 = vadd.f32 %v10366, %v10496
      %v10507 = vadd.f32 %v10367, %v10499
      %v10508 = vadd.f32 %v10368, %v10501
      %v10509 = vpack.c.bf16 %v9940, %v9938
      %v10510 = vpack.c.bf16 %v9941, %v9939
      %s10511 = scalar_lea.vmem %s9, 320
      %v10512 = vld [vmem:[%s10511] sm:$0xf]
      %v10513 = vld [vmem:[%s10511 + $0x4] sm:$0xf]
      %v10514 = vld [vmem:[%s10511 + $0x8] sm:$0xf]
      %v10515 = vld [vmem:[%s10511 + $0xc] sm:$0xf]
      %v10516 = vld [vmem:[%s10511 + $0x10] sm:$0xf]
      %v10517 = vld [vmem:[%s10511 + $0x14] sm:$0xf]
      %v10518 = vld [vmem:[%s10511 + $0x18] sm:$0xf]
      %v10519 = vld [vmem:[%s10511 + $0x1c] sm:$0xf]
      %v10520 = vld [vmem:[%s10511 + $0x20] sm:$0xf]
      %v10521 = vld [vmem:[%s10511 + $0x24] sm:$0xf]
      %v10522 = vld [vmem:[%s10511 + $0x28] sm:$0xf]
      %v10523 = vld [vmem:[%s10511 + $0x2c] sm:$0xf]
      %v10524 = vld [vmem:[%s10511 + $0x30] sm:$0xf]
      %v10525 = vld [vmem:[%s10511 + $0x34] sm:$0xf]
      %v10526 = vld [vmem:[%s10511 + $0x38] sm:$0xf]
      %v10527 = vld [vmem:[%s10511 + $0x3c] sm:$0xf]
      %v10528 = vld [vmem:[%s10511 + $0x40] sm:$0xf]
      %v10529 = vld [vmem:[%s10511 + $0x44] sm:$0xf]
      %v10530 = vld [vmem:[%s10511 + $0x48] sm:$0xf]
      %v10531 = vld [vmem:[%s10511 + $0x4c] sm:$0xf]
      %v10552 = vunpack.c.l.b16 %v10512
      %v10553 = vunpack.c.l.b16 %v10513
      %v10554 = vunpack.c.l.b16 %v10514
      %v10555 = vunpack.c.l.b16 %v10515
      %v10556 = vunpack.c.l.b16 %v10516
      %v10557 = vunpack.c.l.b16 %v10517
      %v10558 = vunpack.c.l.b16 %v10518
      %v10559 = vunpack.c.l.b16 %v10519
      %v10560 = vunpack.c.l.b16 %v10520
      %v10561 = vunpack.c.l.b16 %v10521
      %v10562 = vunpack.c.l.b16 %v10522
      %v10563 = vunpack.c.l.b16 %v10523
      %v10564 = vunpack.c.l.b16 %v10524
      %v10565 = vunpack.c.l.b16 %v10525
      %v10566 = vunpack.c.l.b16 %v10526
      %v10567 = vunpack.c.l.b16 %v10527
      %v10568 = vunpack.c.l.b16 %v10528
      %v10569 = vunpack.c.l.b16 %v10529
      %v10570 = vunpack.c.l.b16 %v10530
      %v10571 = vunpack.c.l.b16 %v10531
      %v10572 = vpack.c.b16 %v10553, %v10552
      %v10573 = vpack.c.b16 %v10555, %v10554
      %v10574 = vpack.c.b16 %v10557, %v10556
      %v10575 = vpack.c.b16 %v10559, %v10558
      %v10576 = vpack.c.b16 %v10561, %v10560
      %v10577 = vpack.c.b16 %v10563, %v10562
      %v10578 = vpack.c.b16 %v10565, %v10564
      %v10579 = vpack.c.b16 %v10567, %v10566
      %v10580 = vpack.c.b16 %v10569, %v10568
      %v10581 = vpack.c.b16 %v10571, %v10570
      %v10593 = vsel %vm613, %v10510, 0
      %10595 = vmatpush.bf16.msra.mxu0 %v10579
      %10596 = vmatpush.bf16.msra.mxu0 %v10578
      %10597 = vmatpush.bf16.msra.mxu0 %v10577
      %10598 = vmatpush.bf16.msra.mxu0 %v10576
      %10599 = vmatpush.bf16.msra.mxu0 %v10575
      %10600 = vmatpush.bf16.msra.mxu0 %v10574
      %10601 = vmatpush.bf16.msra.mxu0 %v10573
      %10602 = vmatpush.bf16.msra.mxu0 %v10572
      %10603 = vmatmul.bf16.gmra.mxu0 %v9946
      %v10604 = vpop.f32.mrf.mxu0
      %v10605 = vadd.f32 0.0, %v10604
      %v10606 = vpop.f32.mrf.mxu0
      %v10607 = vadd.f32 0.0, %v10606
      %10608 = vmatmul.bf16.gmra.mxu0 %v10229
      %v10609 = vpop.f32.mrf.mxu0
      %v10610 = vadd.f32 0.0, %v10609
      %v10611 = vpop.f32.mrf.mxu0
      %v10612 = vadd.f32 0.0, %v10611
      %10613 = vmatmul.bf16.gmra.mxu0 %v10509
      %v10614 = vpop.f32.mrf.mxu0
      %v10615 = vadd.f32 0.0, %v10614
      %v10616 = vpop.f32.mrf.mxu0
      %v10617 = vadd.f32 0.0, %v10616
      %10618 = vdwg.mxu0
      %10619 = vmatpush.bf16.msra.mxu0 0
      %10620 = vmatpush.bf16.msra.mxu0 0
      %10621 = vmatpush.bf16.msra.mxu0 0
      %10622 = vmatpush.bf16.msra.mxu0 0
      %10623 = vmatpush.bf16.msra.mxu0 0
      %10624 = vmatpush.bf16.msra.mxu0 0
      %10625 = vmatpush.bf16.msra.mxu0 %v10581
      %10626 = vmatpush.bf16.msra.mxu0 %v10580
      %10627 = vmatmul.bf16.gmra.mxu0 %v10179
      %v10628 = vpop.f32.mrf.mxu0
      %v10629 = vadd.f32 %v10605, %v10628
      %v10630 = vpop.f32.mrf.mxu0
      %v10631 = vadd.f32 %v10607, %v10630
      %10632 = vmatmul.bf16.gmra.mxu0 %v10313
      %v10633 = vpop.f32.mrf.mxu0
      %v10634 = vadd.f32 %v10610, %v10633
      %v10635 = vpop.f32.mrf.mxu0
      %v10636 = vadd.f32 %v10612, %v10635
      %10637 = vmatmul.bf16.gmra.mxu0 %v10593
      %v10638 = vpop.f32.mrf.mxu0
      %v10639 = vadd.f32 %v10615, %v10638
      %v10640 = vpop.f32.mrf.mxu0
      %v10641 = vadd.f32 %v10617, %v10640
      %10642 = vdwg.mxu0
      %v10643 = vadd.f32 %v10503, %v10629
      %v10644 = vadd.f32 %v10504, %v10631
      %v10645 = vadd.f32 %v10505, %v10634
      %v10646 = vadd.f32 %v10506, %v10636
      %v10647 = vadd.f32 %v10507, %v10639
      %v10648 = vadd.f32 %v10508, %v10641
      %v10649 = vld [vmem:[%s10] sm:$0x1]
      %v10650 = vld [vmem:[%s11] sm:$0x1]
      %v10652 = vperm.slane %v10649, 0
      %v10654 = vmul.f32 %v10643, %v10652
      %v10655 = vmul.f32 %v10644, %v10652
      %v10656 = vmul.f32 %v10645, %v10652
      %v10657 = vmul.f32 %v10646, %v10652
      %v10658 = vmul.f32 %v10647, %v10652
      %v10659 = vmul.f32 %v10648, %v10652
      %v10661 = vperm.slane %v10650, 0
      %v10663 = vadd.f32 %v10654, %v10661
      %v10664 = vadd.f32 %v10655, %v10661
      %v10665 = vadd.f32 %v10656, %v10661
      %v10666 = vadd.f32 %v10657, %v10661
      %v10667 = vadd.f32 %v10658, %v10661
      %v10668 = vadd.f32 %v10659, %v10661
      %vm10669 = vcmp.ge.f32.partialorder %v10663, 0.0
      %vm10670 = vcmp.ge.f32.partialorder %v10664, 0.0
      %vm10671 = vcmp.ge.f32.partialorder %v10665, 0.0
      %vm10672 = vcmp.ge.f32.partialorder %v10666, 0.0
      %vm10673 = vcmp.ge.f32.partialorder %v10667, 0.0
      %vm10674 = vcmp.ge.f32.partialorder %v10668, 0.0
      %v10675 = vmul.f32 %v10663, 0.01
      %v10676 = vmul.f32 %v10664, 0.01
      %v10677 = vmul.f32 %v10665, 0.01
      %v10678 = vmul.f32 %v10666, 0.01
      %v10679 = vmul.f32 %v10667, 0.01
      %v10680 = vmul.f32 %v10668, 0.01
      %v10681 = vsel %vm10669, %v10663, %v10675
      %v10682 = vsel %vm10670, %v10664, %v10676
      %v10683 = vsel %vm10671, %v10665, %v10677
      %v10684 = vsel %vm10672, %v10666, %v10678
      %v10685 = vsel %vm10673, %v10667, %v10679
      %v10686 = vsel %vm10674, %v10668, %v10680
      %v10687 = vld [vmem:[%s12] sm:$0xff]
      %v10688 = vld [vmem:[%s12 + $0x8] sm:$0xff]
      %v10689 = vld [vmem:[%s12 + $0x10] sm:$0xff]
      %v10690 = vld [vmem:[%s12 + $0x18] sm:$0xff]
      %v10691 = vld [vmem:[%s12 + $0x20] sm:$0xff]
      %v10692 = vld [vmem:[%s12 + $0x28] sm:$0xff]
      %v10693 = vmul.f32 %v10681, %v10687
      %v10694 = vmul.f32 %v10682, %v10688
      %v10695 = vmul.f32 %v10683, %v10689
      %v10696 = vmul.f32 %v10684, %v10690
      %v10697 = vmul.f32 %v10685, %v10691
      %v10698 = vmul.f32 %v10686, %v10692
      %vm10699 = vcmask 392192
      %v10700 = vsel %vm10699, %v10693, 0.0
      %10701 = vadd.xlane.f32.xlu0 %v10700
      %v10702 = vpop.xlane.xlu0 %10701
      %v10703 = vsel %vm10699, %v10694, 0.0
      %10704 = vadd.xlane.f32.xlu0 %v10703
      %v10705 = vpop.xlane.xlu0 %10704
      %v10706 = vsel %vm10699, %v10695, 0.0
      %10707 = vadd.xlane.f32.xlu0 %v10706
      %v10708 = vpop.xlane.xlu0 %10707
      %v10709 = vsel %vm10699, %v10696, 0.0
      %10710 = vadd.xlane.f32.xlu0 %v10709
      %v10711 = vpop.xlane.xlu0 %10710
      %v10712 = vsel %vm10699, %v10697, 0.0
      %10713 = vadd.xlane.f32.xlu0 %v10712
      %v10714 = vpop.xlane.xlu0 %10713
      %v10715 = vsel %vm10699, %v10698, 0.0
      %10716 = vadd.xlane.f32.xlu0 %v10715
      %v10717 = vpop.xlane.xlu0 %10716
      %v10718 = vadd.f32 %v10702, %v10705
      %v10719 = vadd.f32 %v10718, %v10708
      %v10720 = vadd.f32 %v10719, %v10711
      %v10721 = vadd.f32 %v10720, %v10714
      %v10722 = vadd.f32 %v10721, %v10717
      %v10723 = vld [vmem:[#allocation2] sm:$0x1]
      %v10725 = vperm.slane %v10723, 0
      %v10727 = vadd.f32 %v10722, %v10725
      %v10728 = vand.u32 2147483647, %v10727
      %v10729 = vsub.f32 0.0, %v10728
      %v10730 = vmul.f32 %v10729, 1.442695
      %v10731 = vpow.pop %v10730
      %vm10732 = vcmp.ge.f32.partialorder %v10727, 0.0
      %v10733 = vadd.f32 %v10731, 1.0
      %v10734 = vrcp.pop %v10733
      %v10735 = vmul.f32 %v10733, %v10734
      %v10736 = vsub.f32 1.0, %v10735
      %v10737 = vmul.f32 %v10734, %v10736
      %v10738 = vadd.f32 %v10734, %v10737
      %vm10739 = vweird.f32 %v10733
      %vm10740 = vweird.f32 %v10734
      %vm10741 = vmor %vm10739, %vm10740
      %v10742 = vsel %vm10741, %v10734, %v10738
      %v10743 = vand.u32 2147483647, %v10733
      %vm10744 = vcmp.eq.f32.partialorder %v10743, 8.507059e+37
      %v10745 = vand.u32 %v10733, 2147483648
      %v10746 = vor.u32 1.1754944e-38, %v10745
      %v10747 = vsel %vm10744, %v10746, %v10742
      %v10748 = vmul.f32 1.0, %v10747
      %v10749 = vmul.f32 %v10731, %v10747
      %v10750 = vsel %vm10732, %v10748, %v10749
      %vm10751 = vcmask 7168
      %10752 = vst.msk [vmem:[%s491] sm:$0xff] %vm10751, %v10750
      %p10753 = scmp.lt.s32.totalorder %s27, 1
      %s10754 = scalar_select %p10753, %s27, 1
      %s10755 = smul.addr %s10754, 8
      %s10756 = scalar_lea.vmem %s14, %s10755
      // Predicated region
      $region77: #{discriminator_forward.1} parent=75 // pred_check
        %p10757 = pneg %p349
      $region78: #{discriminator_forward.1} parent=75 // pred_check_branch
        %10759 = sbr.rel (%p10757) target = $region80
      $region79: #{discriminator_forward.1} parent=75 // pred_region
        _
      $region80: #{discriminator_forward.1} parent=75 // pred_fallthru
        _
    $region76: #{discriminator_forward.1} parent=5 // pred_fallthru
      _
    %p10760 = scmp.le.s32.totalorder 2, %s22
    // Predicated region
    $region81: #{discriminator_forward.1} parent=5 // pred_check
      %p10761 = pneg %p10760
    $region82: #{discriminator_forward.1} parent=5 // pred_check_branch
      %10763 = sbr.rel (%p10761) target = $region84
    $region83: #{discriminator_forward.1} parent=5 // pred_region
      %s10764 = ssub.s32 %s22, 2
      // Predicated region
      $region85: #{discriminator_forward.1} parent=83 // pred_check
        %p10765 = pneg %p355
      $region86: #{discriminator_forward.1} parent=83 // pred_check_branch
        %10767 = sbr.rel (%p10765) target = $region88
      $region87: #{discriminator_forward.1} parent=83 // pred_region
        %p10768 = scmp.lt.s32.totalorder %s28, 1
        %s10769 = scalar_select %p10768, %s28, 1
        %s10770 = smul.addr %s10769, 8
        %s10771 = scalar_lea.vmem %s14, %s10770
      $region88: #{discriminator_forward.1} parent=83 // pred_fallthru
        _
    $region84: #{discriminator_forward.1} parent=5 // pred_fallthru
      _
  $region6: #{discriminator_forward.1} parent=0 // loop_footer
    %s26 = sadd.s32 1, %s22
  $region7: #{discriminator_forward.1} parent=0 // loop_footer_branch
    %21 = sbr.rel target = $region3
  $region8: #{discriminator_forward.1} parent=0 // loop_exit
    _

</llo_original>
